<compile_context>
chip_gen: v5e
topology: v5e:2x2
jax: 0.10.0
libtpu: 0.0.40
codegen_flags: <defaults>
</compile_context>

<pallas_src>
import jax
import jax.numpy as jnp
from jax.experimental import pallas as pl
from jax.experimental.pallas import tpu as pltpu

# ---- Module dimensions (fixed by DepressionPredictor1) ----
F_IN = 2564      # input features
N1 = 2048        # hidden 1
N2 = 512         # hidden 2
N_OUT = 2        # classes

# ---- Kernel tiling constants ----
TN1 = 1024       # layer-1 output tile == layer-2 reduction tile  (N1 // TN1 = 2 grid steps)
TM_CAP = 512     # max rows per M tile (VMEM-safe on all generations)


def _fused_mlp_kernel(temp_ref, x_ref, w1_ref, b1_ref, w2_ref, b2_ref,
                      w3_ref, b3_ref, out_ref, acc_ref):
    # Grid: (M tiles [parallel], N1 tiles [arbitrary / layer-2 reduction]).
    j = pl.program_id(1)

    @pl.when(j == 0)
    def _():
        acc_ref[...] = jnp.zeros_like(acc_ref)

    # Layer 1, one output-feature tile (bf16 operands, f32 MXU accumulation):
    #   h1_j = relu(x @ W1[:, j*TN1:(j+1)*TN1] + b1_j)
    h1 = jnp.dot(x_ref[...], w1_ref[...], preferred_element_type=jnp.float32)
    h1 = jnp.maximum(h1 + b1_ref[...], 0.0)

    # Layer 2 partial sum over the same tile of the contraction axis:
    #   acc += h1_j @ W2[j*TN1:(j+1)*TN1, :]
    acc_ref[...] += jnp.dot(h1.astype(jnp.bfloat16), w2_ref[...],
                            preferred_element_type=jnp.float32)

    # Epilogue on last reduction step: layer-2 bias + ReLU, tiny 512->2 Linear,
    # and temperature scaling (logits / T').
    @pl.when(j == pl.num_programs(1) - 1)
    def _():
        h2 = jnp.maximum(acc_ref[...] + b2_ref[...], 0.0)
        logits = jnp.dot(h2, w3_ref[...], preferred_element_type=jnp.float32)
        logits = logits + b3_ref[...]
        out_ref[...] = (logits / temp_ref[0]).astype(out_ref.dtype)


def fused_mlp(x2, params, temp):
    """logits = (relu(relu(x2@W1+b1)@W2+b2)@W3 + b3) / temp, one pallas_call."""
    M, F = x2.shape
    w1 = params["w1"]                      # (N1//TN1, F, TN1), bf16, tile-major
    n_tiles, f_w, tn1 = w1.shape
    assert f_w == F and tn1 == TN1 and n_tiles * TN1 == N1
    n2 = params["w2"].shape[1]

    # M tiling + padding guard: small batches stay fully resident (block == full dim);
    # large batches use tm = TM_CAP and are zero-padded up to a multiple of it so the
    # double-buffered x tile never scales with M (prevents VMEM blow-up on ragged M).
    if M <= TM_CAP:
        tm, m_pad = M, M
    else:
        tm = TM_CAP
        m_pad = pl.cdiv(M, tm) * tm
        if m_pad != M:
            x2 = jnp.pad(x2, ((0, m_pad - M), (0, 0)))

    grid = (m_pad // tm, n_tiles)

    out = pl.pallas_call(
        _fused_mlp_kernel,
        out_shape=jax.ShapeDtypeStruct((m_pad, N_OUT), jnp.float32),
        grid=grid,
        in_specs=[
            pl.BlockSpec(memory_space=pltpu.MemorySpace.SMEM),       # temperature (1,) f32
            pl.BlockSpec((tm, F), lambda i, j: (i, 0)),              # x tile (bf16)
            pl.BlockSpec((None, F, TN1), lambda i, j: (j, 0, 0)),    # W1 tile (bf16, contiguous)
            pl.BlockSpec((1, TN1), lambda i, j: (0, j)),             # b1 tile (f32)
            pl.BlockSpec((TN1, n2), lambda i, j: (j, 0)),            # W2 row block (bf16)
            pl.BlockSpec((1, n2), lambda i, j: (0, 0)),              # b2 (resident, f32)
            pl.BlockSpec((n2, N_OUT), lambda i, j: (0, 0)),          # W3 (resident, f32)
            pl.BlockSpec((1, N_OUT), lambda i, j: (0, 0)),           # b3 (resident, f32)
        ],
        out_specs=pl.BlockSpec((tm, N_OUT), lambda i, j: (i, 0)),
        scratch_shapes=[pltpu.VMEM((tm, n2), jnp.float32)],          # layer-2 accumulator
        compiler_params=pltpu.CompilerParams(
            dimension_semantics=("parallel", "arbitrary"),
            vmem_limit_bytes=32 * 1024 * 1024,
        ),
    )(temp, x2, w1, params["b1"], params["w2"], params["b2"],
      params["w3"], params["b3"])

    return out[:M] if m_pad != M else out


def init_params(key):
    k1, k2, k3, k4, k5, k6 = jax.random.split(key, 6)

    def lin(kw, kb, fan_in, fan_out, w_dtype):
        bound = 1.0 / jnp.sqrt(jnp.float32(fan_in))
        w = jax.random.uniform(kw, (fan_in, fan_out), jnp.float32, -bound, bound)
        b = jax.random.uniform(kb, (1, fan_out), jnp.float32, -bound, bound)
        return w.astype(w_dtype), b

    w1, b1 = lin(k1, k2, F_IN, N1, jnp.bfloat16)     # streamed in bf16
    w2, b2 = lin(k3, k4, N1, N2, jnp.bfloat16)       # streamed in bf16
    w3, b3 = lin(k5, k6, N2, N_OUT, jnp.float32)     # tiny, kept f32

    # Tile-major W1 layout (N1//TN1, F, TN1): each per-tile DMA becomes one fully
    # contiguous block instead of a strided column slice of the (F, N1) matrix.
    w1_tiled = w1.reshape(F_IN, N1 // TN1, TN1).transpose(1, 0, 2)

    return {
        "w1": w1_tiled, "b1": b1,
        "w2": w2, "b2": b2,
        "w3": w3, "b3": b3,
        # nn.Parameter(torch.ones(1) * 1.0)
        "temperature": jnp.ones((1,), jnp.float32),
    }


@jax.jit
def temperature_scaler_forward(x, params):
    B, S, F = x.shape
    x2 = x.reshape(B * S, F).astype(jnp.bfloat16)
    # temperature_scale: clamp(T, min=0.1) + 1e-5, division fused into the kernel epilogue.
    temp = (jnp.maximum(params["temperature"], 0.1) + 1e-5).astype(jnp.float32)
    logits = fused_mlp(x2, params, temp)
    # model.forward does x.view(-1, num_segments, 2)
    return logits.reshape(B, S, N_OUT)


def reference_forward(x, params):
    """Pure-JAX reference mimicking the kernel's bf16 streaming casts."""
    B, S, F = x.shape
    hi = jax.lax.Precision.HIGHEST
    x2 = x.reshape(B * S, F).astype(jnp.bfloat16).astype(jnp.float32)
    n_tiles = params["w1"].shape[0]
    w1 = params["w1"].transpose(1, 0, 2).reshape(F, n_tiles * TN1).astype(jnp.float32)
    w2 = params["w2"].astype(jnp.float32)
    h1 = jnp.maximum(jnp.dot(x2, w1, precision=hi) + params["b1"], 0.0)
    h1 = h1.astype(jnp.bfloat16).astype(jnp.float32)
    h2 = jnp.maximum(jnp.dot(h1, w2, precision=hi) + params["b2"], 0.0)
    temp = jnp.maximum(params["temperature"], 0.1) + 1e-5
    logits = (jnp.dot(h2, params["w3"], precision=hi) + params["b3"]) / temp
    return logits.reshape(B, S, N_OUT)


if __name__ == "__main__":
    key = jax.random.PRNGKey(0)
    kx, kp = jax.random.split(key)

    B, S = 2, 8                       # small batch / segments; feature dim fixed by the module
    x = jax.random.normal(kx, (B, S, F_IN), jnp.float32)
    params = init_params(kp)

    out = temperature_scaler_forward(x, params)
    out = jax.block_until_ready(out)

    assert out.shape == (B, S, 2), out.shape
    assert out.dtype == jnp.float32
    assert bool(jnp.all(jnp.isfinite(out)))

    ref = reference_forward(x, params)
    max_err = float(jnp.max(jnp.abs(out - ref)))
    assert bool(jnp.allclose(out, ref, rtol=5e-2, atol=5e-2)), max_err

    print("KERNEL_OK")
</pallas_src>

<mosaic_0001>
module attributes {stable_mosaic.version = 11 : i64} {
  func.func @_fused_mlp_kernel(%arg0: i32, %arg1: i32, %arg2: memref<1xf32, #tpu.memory_space<smem>>, %arg3: memref<16x2564xbf16, #tpu.memory_space<vmem>>, %arg4: memref<1x2564x1024xbf16, #tpu.memory_space<vmem>>, %arg5: memref<1x1024xf32, #tpu.memory_space<vmem>>, %arg6: memref<1024x512xbf16, #tpu.memory_space<vmem>>, %arg7: memref<1x512xf32, #tpu.memory_space<vmem>>, %arg8: memref<512x2xf32, #tpu.memory_space<vmem>>, %arg9: memref<1x2xf32, #tpu.memory_space<vmem>>, %arg10: memref<16x2xf32, #tpu.memory_space<vmem>>, %arg11: memref<16x512xf32, #tpu.memory_space<vmem>>) attributes {dimension_semantics = [#tpu.dimension_semantics<parallel>, #tpu.dimension_semantics<arbitrary>], iteration_bounds = array<i64: 1, 2>, scalar_prefetch = 0 : i64, scratch_operands = 1 : i64, tpu.core_type = #tpu.core_type<tc>, window_params = [{transform_indices = @transform_0, window_bounds = array<i64: 1>}, {transform_indices = @transform_1, window_bounds = array<i64: 16, 2564>}, {transform_indices = @transform_2, window_bounds = array<i64: 1, 2564, 1024>}, {transform_indices = @transform_3, window_bounds = array<i64: 1, 1024>}, {transform_indices = @transform_4, window_bounds = array<i64: 1024, 512>}, {pipeline_mode = #tpu.pipeline_mode<synchronous>, transform_indices = @transform_5, window_bounds = array<i64: 1, 512>}, {pipeline_mode = #tpu.pipeline_mode<synchronous>, transform_indices = @transform_6, window_bounds = array<i64: 512, 2>}, {pipeline_mode = #tpu.pipeline_mode<synchronous>, transform_indices = @transform_7, window_bounds = array<i64: 1, 2>}, {transform_indices = @transform_8, window_bounds = array<i64: 16, 2>}]} {
    %c0_i32 = arith.constant 0 : i32
    %0 = arith.cmpi eq, %arg1, %c0_i32 : i32
    %1 = arith.extui %0 : i1 to i32
    %c0_i32_0 = arith.constant 0 : i32
    %2 = arith.cmpi ne, %1, %c0_i32_0 : i32
    scf.if %2 {
      %cst_16 = arith.constant 0.000000e+00 : f32
      %21 = vector.broadcast %cst_16 : f32 to vector<16x512xf32>
      %c0_17 = arith.constant 0 : index
      %c0_18 = arith.constant 0 : index
      %22 = vector.load %arg11[%c0_17, %c0_18] : memref<16x512xf32, #tpu.memory_space<vmem>>, vector<16x512xf32>
      tpu.vector_store %arg11[%c0_17, %c0_18], %21 {strides = array<i32>} : memref<16x512xf32, #tpu.memory_space<vmem>>, vector<16x512xf32>,
    } else {
    }
    %c0 = arith.constant 0 : index
    %c0_1 = arith.constant 0 : index
    %3 = vector.load %arg3[%c0, %c0_1] : memref<16x2564xbf16, #tpu.memory_space<vmem>>, vector<16x2564xbf16>
    %c0_2 = arith.constant 0 : index
    %c0_3 = arith.constant 0 : index
    %c0_4 = arith.constant 0 : index
    %4 = vector.load %arg4[%c0_2, %c0_3, %c0_4] : memref<1x2564x1024xbf16, #tpu.memory_space<vmem>>, vector<1x2564x1024xbf16>
    %5 = vector.shape_cast %4 : vector<1x2564x1024xbf16> to vector<2564x1024xbf16>
    %cst = arith.constant dense<0.000000e+00> : vector<16x1024xf32>
    %6 = tpu.matmul %3, %5, %cst {dimension_numbers = #tpu.dot_dimension_numbers<[1], [0], [0], [1], [0, 0, 1, 1], [], []>} : vector<16x2564xbf16>, vector<2564x1024xbf16>, vector<16x1024xf32> -> vector<16x1024xf32>
    %c0_5 = arith.constant 0 : index
    %c0_6 = arith.constant 0 : index
    %7 = vector.load %arg5[%c0_5, %c0_6] : memref<1x1024xf32, #tpu.memory_space<vmem>>, vector<1x1024xf32>
    %8 = vector.broadcast %7 : vector<1x1024xf32> to vector<16x1024xf32>
    %9 = arith.addf %6, %8 : vector<16x1024xf32>
    %cst_7 = arith.constant 0.000000e+00 : f32
    %10 = vector.broadcast %cst_7 : f32 to vector<16x1024xf32>
    %11 = arith.maximumf %9, %10 : vector<16x1024xf32>
    %c0_8 = arith.constant 0 : index
    %c0_9 = arith.constant 0 : index
    %12 = vector.load %arg11[%c0_8, %c0_9] : memref<16x512xf32, #tpu.memory_space<vmem>>, vector<16x512xf32>
    %13 = arith.truncf %11 : vector<16x1024xf32> to vector<16x1024xbf16>
    %c0_10 = arith.constant 0 : index
    %c0_11 = arith.constant 0 : index
    %14 = vector.load %arg6[%c0_10, %c0_11] : memref<1024x512xbf16, #tpu.memory_space<vmem>>, vector<1024x512xbf16>
    %cst_12 = arith.constant dense<0.000000e+00> : vector<16x512xf32>
    %15 = tpu.matmul %13, %14, %cst_12 {dimension_numbers = #tpu.dot_dimension_numbers<[1], [0], [0], [1], [0, 0, 1, 1], [], []>} : vector<16x1024xbf16>, vector<1024x512xbf16>, vector<16x512xf32> -> vector<16x512xf32>
    %16 = arith.addf %12, %15 : vector<16x512xf32>
    %c0_13 = arith.constant 0 : index
    %c0_14 = arith.constant 0 : index
    %17 = vector.load %arg11[%c0_13, %c0_14] : memref<16x512xf32, #tpu.memory_space<vmem>>, vector<16x512xf32>
    tpu.vector_store %arg11[%c0_13, %c0_14], %16 {strides = array<i32>} : memref<16x512xf32, #tpu.memory_space<vmem>>, vector<16x512xf32>,
    %c1_i32 = arith.constant 1 : i32
    %18 = arith.cmpi eq, %arg1, %c1_i32 : i32
    %19 = arith.extui %18 : i1 to i32
    %c0_i32_15 = arith.constant 0 : i32
    %20 = arith.cmpi ne, %19, %c0_i32_15 : i32
    scf.if %20 {
      %c0_16 = arith.constant 0 : index
      %c0_17 = arith.constant 0 : index
      %21 = vector.load %arg11[%c0_16, %c0_17] : memref<16x512xf32, #tpu.memory_space<vmem>>, vector<16x512xf32>
      %c0_18 = arith.constant 0 : index
      %c0_19 = arith.constant 0 : index
      %22 = vector.load %arg7[%c0_18, %c0_19] : memref<1x512xf32, #tpu.memory_space<vmem>>, vector<1x512xf32>
      %23 = vector.broadcast %22 : vector<1x512xf32> to vector<16x512xf32>
      %24 = arith.addf %21, %23 : vector<16x512xf32>
      %cst_20 = arith.constant 0.000000e+00 : f32
      %25 = vector.broadcast %cst_20 : f32 to vector<16x512xf32>
      %26 = arith.maximumf %24, %25 : vector<16x512xf32>
      %c0_21 = arith.constant 0 : index
      %c0_22 = arith.constant 0 : index
      %27 = vector.load %arg8[%c0_21, %c0_22] : memref<512x2xf32, #tpu.memory_space<vmem>>, vector<512x2xf32>
      %cst_23 = arith.constant dense<0.000000e+00> : vector<16x2xf32>
      %28 = tpu.matmul %26, %27, %cst_23 {dimension_numbers = #tpu.dot_dimension_numbers<[1], [0], [0], [1], [0, 0, 1, 1], [], []>} : vector<16x512xf32>, vector<512x2xf32>, vector<16x2xf32> -> vector<16x2xf32>
      %c0_24 = arith.constant 0 : index
      %c0_25 = arith.constant 0 : index
      %29 = vector.load %arg9[%c0_24, %c0_25] : memref<1x2xf32, #tpu.memory_space<vmem>>, vector<1x2xf32>
      %30 = vector.broadcast %29 : vector<1x2xf32> to vector<16x2xf32>
      %31 = arith.addf %28, %30 : vector<16x2xf32>
      %c0_26 = arith.constant 0 : index
      %32 = memref.load %arg2[%c0_26] : memref<1xf32, #tpu.memory_space<smem>>
      %33 = vector.broadcast %32 : f32 to vector<16x2xf32>
      %34 = arith.divf %31, %33 : vector<16x2xf32>
      %c0_27 = arith.constant 0 : index
      %c0_28 = arith.constant 0 : index
      %35 = vector.load %arg10[%c0_27, %c0_28] : memref<16x2xf32, #tpu.memory_space<vmem>>, vector<16x2xf32>
      tpu.vector_store %arg10[%c0_27, %c0_28], %34 {strides = array<i32>} : memref<16x2xf32, #tpu.memory_space<vmem>>, vector<16x2xf32>,
    } else {
    }
    return
  }
  func.func @transform_0(%arg0: i32, %arg1: i32) -> i32 {
    %c0_i32 = arith.constant 0 : i32
    %c0_i32_0 = arith.constant 0 : i32
    return %c0_i32 : i32
  }
  func.func @transform_1(%arg0: i32, %arg1: i32) -> (i32, i32) {
    %c0_i32 = arith.constant 0 : i32
    %c0_i32_0 = arith.constant 0 : i32
    return %arg0, %c0_i32 : i32, i32
  }
  func.func @transform_2(%arg0: i32, %arg1: i32) -> (i32, i32, i32) {
    %c0_i32 = arith.constant 0 : i32
    %c0_i32_0 = arith.constant 0 : i32
    %c0_i32_1 = arith.constant 0 : i32
    return %arg1, %c0_i32, %c0_i32_0 : i32, i32, i32
  }
  func.func @transform_3(%arg0: i32, %arg1: i32) -> (i32, i32) {
    %c0_i32 = arith.constant 0 : i32
    %c0_i32_0 = arith.constant 0 : i32
    return %c0_i32, %arg1 : i32, i32
  }
  func.func @transform_4(%arg0: i32, %arg1: i32) -> (i32, i32) {
    %c0_i32 = arith.constant 0 : i32
    %c0_i32_0 = arith.constant 0 : i32
    return %arg1, %c0_i32 : i32, i32
  }
  func.func @transform_5(%arg0: i32, %arg1: i32) -> (i32, i32) {
    %c0_i32 = arith.constant 0 : i32
    %c0_i32_0 = arith.constant 0 : i32
    %c0_i32_1 = arith.constant 0 : i32
    return %c0_i32, %c0_i32_0 : i32, i32
  }
  func.func @transform_6(%arg0: i32, %arg1: i32) -> (i32, i32) {
    %c0_i32 = arith.constant 0 : i32
    %c0_i32_0 = arith.constant 0 : i32
    %c0_i32_1 = arith.constant 0 : i32
    return %c0_i32, %c0_i32_0 : i32, i32
  }
  func.func @transform_7(%arg0: i32, %arg1: i32) -> (i32, i32) {
    %c0_i32 = arith.constant 0 : i32
    %c0_i32_0 = arith.constant 0 : i32
    %c0_i32_1 = arith.constant 0 : i32
    return %c0_i32, %c0_i32_0 : i32, i32
  }
  func.func @transform_8(%arg0: i32, %arg1: i32) -> (i32, i32) {
    %c0_i32 = arith.constant 0 : i32
    %c0_i32_0 = arith.constant 0 : i32
    return %arg0, %c0_i32 : i32, i32
  }
}

</mosaic_0001>

<llo_original>
// kernel: temperature_scaler_forward.1
$region0: #{temperature_scaler_forward.1}
  #allocation0 [shape = 'u32[]', space=smem, size = 0x4, offset = 0x4, fixed_abs, tag = 'smem constant byte address 0x4 - core index']
  #allocation1 [shape = 'u32[72,128]{1,0:T(1,128)}', space=vmem, size = 0x9000, scoped, tag = 'internal scratch']
  #allocation2 [shape = 'f32[16,512]{1,0:T(8,128)}', space=vmem, size = 0x8000, scoped, tag = 'scratch operand']
  #allocation3 [shape = 'f32[1]{0:T(128)S(6)}', space=smem, size = 0x200, scoped, tag = 'scoped memory for temperature_scaler_forward.1']
  %s0 = inlined_call_operand.<no memory space> [shape: f32[1], index: 0, kind: input, shape index: {}]
  %s1 = inlined_call_operand.vmem [shape: bf16[16,2564], index: 1, kind: input, shape index: {}]
  %s2 = inlined_call_operand.vmem [shape: bf16[2,2564,1024], index: 2, kind: input, shape index: {}]
  %s3 = inlined_call_operand.vmem [shape: f32[1,2048], index: 3, kind: input, shape index: {}]
  %s4 = inlined_call_operand.vmem [shape: bf16[2048,512], index: 4, kind: input, shape index: {}]
  %s5 = inlined_call_operand.vmem [shape: f32[1,512], index: 5, kind: input, shape index: {}]
  %s6 = inlined_call_operand.vmem [shape: f32[512,2], index: 6, kind: input, shape index: {}]
  %s7 = inlined_call_operand.vmem [shape: f32[1,2], index: 7, kind: input, shape index: {}]
  %s8 = inlined_call_operand.vmem [shape: f32[16,2], index: 8, kind: output, shape index: {}]
  %s9 = sld [smem:[#allocation0]]
  $region73: #{temperature_scaler_forward.1} parent=0
    _
  %s11 = ssub.s32 1, %s9
  %s12 = scalar_select 0, %s11, %s9
  %13 = sst [smem:[#allocation3]] %s0
  loop: start=0, step=1, limit=4
  $region2: #{temperature_scaler_forward.1} parent=0 // loop_pre_header
    _
  $region3: #{temperature_scaler_forward.1} parent=0 // loop_header
    %s15 = sphi 0, %s19
    %p16 = scmp.ge.s32.totalorder %s15, 4
    %s22 = sphi 0, %s34
    %s23 = sphi 0, %s30
    %s24 = sphi 0, %s22
    %s25 = sphi 0, %s23
    %s26 = sphi 0, %s24
    %s27 = sphi 0, %s25
    %s35 = sphi 0, %s35
    %s37 = sphi 0, %s35
    %s38 = sphi 0, %s37
    %s52 = sphi 0, %s38
    %s58 = sphi 0, %s60
    %s61 = sphi 0, %s58
    %s62 = sphi 0, %s61
    %s78 = sphi 0, %s62
    %s84 = sphi 0, %s86
    %s87 = sphi 0, %s84
    %s88 = sphi 0, %s87
    %s104 = sphi 0, %s88
    %s110 = sphi 0, %s112
    %s113 = sphi 0, %s110
    %s114 = sphi 0, %s113
    %s130 = sphi 0, %s114
    %s136 = sphi 0, %s138
    %s139 = sphi 0, %s136
    %s140 = sphi 0, %s139
    %s156 = sphi 0, %s140
    %s160 = sphi 0, %s160
    %s162 = sphi 0, %s160
    %s163 = sphi 0, %s162
    %s177 = sphi 0, %s163
    %s181 = sphi 0, %s181
    %s183 = sphi 0, %s181
    %s184 = sphi 0, %s183
    %s198 = sphi 0, %s184
    %s202 = sphi 0, %s202
    %s204 = sphi 0, %s202
    %s205 = sphi 0, %s204
    %s219 = sphi 0, %s205
    %s225 = sphi 0, %s227
    %s228 = sphi 0, %s225
    %s229 = sphi 0, %s228
    %s245 = sphi 0, %s229
  $region4: #{temperature_scaler_forward.1} parent=0 // loop_header_branch
    %18 = sbr.rel (%p16) target = $region8
  $region5: #{temperature_scaler_forward.1} parent=0 // loop_body
    %s20 = ssub.s32 %s15, 1
    %s21 = ssub.s32 %s15, 2
    %s28 = sadd.s32 1, %s23
    %p29 = scmp.ge.s32.totalorder %s28, 2
    %s30 = scalar_select %p29, 0, %s28
    %s31 = sadd.s32 1, %s22
    %s32 = scalar_select %p29, %s31, %s22
    %p33 = scmp.ge.s32.totalorder %s32, 1
    %s34 = scalar_select %p33, 0, %s32
    %s36 = sadd.s32 %s35, 1
    %p39 = scmp.eq.s32.totalorder %s15, 1
    %p40 = scmp.ne.s32.totalorder %s35, %s37
    %p41 = scmp.eq.s32.totalorder %s15, 0
    %p42 = por %p40, %p41
    %p43 = scmp.ne.s32.totalorder %s35, %s37
    %p44 = scmp.eq.s32.totalorder %s20, 1
    %p45 = por %p43, %p44
    %p46 = scmp.ne.s32.totalorder %s37, %s38
    %p47 = scmp.eq.s32.totalorder %s20, 0
    %p48 = por %p46, %p47
    %p49 = scmp.ne.s32.totalorder %s37, %s38
    %p50 = scmp.eq.s32.totalorder %s21, 1
    %p51 = por %p49, %p50
    %p53 = scmp.ne.s32.totalorder %s38, %s52
    %p54 = scmp.eq.s32.totalorder %s21, 0
    %p55 = por %p53, %p54
    %s56 = ssub.s32 %s22, %s34
    %p57 = scmp.eq.s32.totalorder %s56, 0
    %s59 = sadd.s32 %s58, 1
    %s60 = scalar_select %p57, %s58, %s59
    %p63 = pneg %p57
    %p64 = scmp.eq.s32.totalorder %s15, 1
    %p65 = por %p63, %p64
    %p66 = scmp.ne.s32.totalorder %s58, %s61
    %p67 = scmp.eq.s32.totalorder %s15, 0
    %p68 = por %p66, %p67
    %p69 = scmp.ne.s32.totalorder %s58, %s61
    %p70 = scmp.eq.s32.totalorder %s20, 1
    %p71 = por %p69, %p70
    %p72 = scmp.ne.s32.totalorder %s61, %s62
    %p73 = scmp.eq.s32.totalorder %s20, 0
    %p74 = por %p72, %p73
    %p75 = scmp.ne.s32.totalorder %s61, %s62
    %p76 = scmp.eq.s32.totalorder %s21, 1
    %p77 = por %p75, %p76
    %p79 = scmp.ne.s32.totalorder %s62, %s78
    %p80 = scmp.eq.s32.totalorder %s21, 0
    %p81 = por %p79, %p80
    %s82 = ssub.s32 %s23, %s30
    %p83 = scmp.eq.s32.totalorder %s82, 0
    %s85 = sadd.s32 %s84, 1
    %s86 = scalar_select %p83, %s84, %s85
    %p89 = pneg %p83
    %p90 = scmp.eq.s32.totalorder %s15, 1
    %p91 = por %p89, %p90
    %p92 = scmp.ne.s32.totalorder %s84, %s87
    %p93 = scmp.eq.s32.totalorder %s15, 0
    %p94 = por %p92, %p93
    %p95 = scmp.ne.s32.totalorder %s84, %s87
    %p96 = scmp.eq.s32.totalorder %s20, 1
    %p97 = por %p95, %p96
    %p98 = scmp.ne.s32.totalorder %s87, %s88
    %p99 = scmp.eq.s32.totalorder %s20, 0
    %p100 = por %p98, %p99
    %p101 = scmp.ne.s32.totalorder %s87, %s88
    %p102 = scmp.eq.s32.totalorder %s21, 1
    %p103 = por %p101, %p102
    %p105 = scmp.ne.s32.totalorder %s88, %s104
    %p106 = scmp.eq.s32.totalorder %s21, 0
    %p107 = por %p105, %p106
    %s108 = ssub.s32 %s23, %s30
    %p109 = scmp.eq.s32.totalorder %s108, 0
    %s111 = sadd.s32 %s110, 1
    %s112 = scalar_select %p109, %s110, %s111
    %p115 = pneg %p109
    %p116 = scmp.eq.s32.totalorder %s15, 1
    %p117 = por %p115, %p116
    %p118 = scmp.ne.s32.totalorder %s110, %s113
    %p119 = scmp.eq.s32.totalorder %s15, 0
    %p120 = por %p118, %p119
    %p121 = scmp.ne.s32.totalorder %s110, %s113
    %p122 = scmp.eq.s32.totalorder %s20, 1
    %p123 = por %p121, %p122
    %p124 = scmp.ne.s32.totalorder %s113, %s114
    %p125 = scmp.eq.s32.totalorder %s20, 0
    %p126 = por %p124, %p125
    %p127 = scmp.ne.s32.totalorder %s113, %s114
    %p128 = scmp.eq.s32.totalorder %s21, 1
    %p129 = por %p127, %p128
    %p131 = scmp.ne.s32.totalorder %s114, %s130
    %p132 = scmp.eq.s32.totalorder %s21, 0
    %p133 = por %p131, %p132
    %s134 = ssub.s32 %s23, %s30
    %p135 = scmp.eq.s32.totalorder %s134, 0
    %s137 = sadd.s32 %s136, 1
    %s138 = scalar_select %p135, %s136, %s137
    %p141 = pneg %p135
    %p142 = scmp.eq.s32.totalorder %s15, 1
    %p143 = por %p141, %p142
    %p144 = scmp.ne.s32.totalorder %s136, %s139
    %p145 = scmp.eq.s32.totalorder %s15, 0
    %p146 = por %p144, %p145
    %p147 = scmp.ne.s32.totalorder %s136, %s139
    %p148 = scmp.eq.s32.totalorder %s20, 1
    %p149 = por %p147, %p148
    %p150 = scmp.ne.s32.totalorder %s139, %s140
    %p151 = scmp.eq.s32.totalorder %s20, 0
    %p152 = por %p150, %p151
    %p153 = scmp.ne.s32.totalorder %s139, %s140
    %p154 = scmp.eq.s32.totalorder %s21, 1
    %p155 = por %p153, %p154
    %p157 = scmp.ne.s32.totalorder %s140, %s156
    %p158 = scmp.eq.s32.totalorder %s21, 0
    %p159 = por %p157, %p158
    %s161 = sadd.s32 %s160, 1
    %p164 = scmp.eq.s32.totalorder %s15, 1
    %p165 = scmp.ne.s32.totalorder %s160, %s162
    %p166 = scmp.eq.s32.totalorder %s15, 0
    %p167 = por %p165, %p166
    %p168 = scmp.ne.s32.totalorder %s160, %s162
    %p169 = scmp.eq.s32.totalorder %s20, 1
    %p170 = por %p168, %p169
    %p171 = scmp.ne.s32.totalorder %s162, %s163
    %p172 = scmp.eq.s32.totalorder %s20, 0
    %p173 = por %p171, %p172
    %p174 = scmp.ne.s32.totalorder %s162, %s163
    %p175 = scmp.eq.s32.totalorder %s21, 1
    %p176 = por %p174, %p175
    %p178 = scmp.ne.s32.totalorder %s163, %s177
    %p179 = scmp.eq.s32.totalorder %s21, 0
    %p180 = por %p178, %p179
    %s182 = sadd.s32 %s181, 1
    %p185 = scmp.eq.s32.totalorder %s15, 1
    %p186 = scmp.ne.s32.totalorder %s181, %s183
    %p187 = scmp.eq.s32.totalorder %s15, 0
    %p188 = por %p186, %p187
    %p189 = scmp.ne.s32.totalorder %s181, %s183
    %p190 = scmp.eq.s32.totalorder %s20, 1
    %p191 = por %p189, %p190
    %p192 = scmp.ne.s32.totalorder %s183, %s184
    %p193 = scmp.eq.s32.totalorder %s20, 0
    %p194 = por %p192, %p193
    %p195 = scmp.ne.s32.totalorder %s183, %s184
    %p196 = scmp.eq.s32.totalorder %s21, 1
    %p197 = por %p195, %p196
    %p199 = scmp.ne.s32.totalorder %s184, %s198
    %p200 = scmp.eq.s32.totalorder %s21, 0
    %p201 = por %p199, %p200
    %s203 = sadd.s32 %s202, 1
    %p206 = scmp.eq.s32.totalorder %s15, 1
    %p207 = scmp.ne.s32.totalorder %s202, %s204
    %p208 = scmp.eq.s32.totalorder %s15, 0
    %p209 = por %p207, %p208
    %p210 = scmp.ne.s32.totalorder %s202, %s204
    %p211 = scmp.eq.s32.totalorder %s20, 1
    %p212 = por %p210, %p211
    %p213 = scmp.ne.s32.totalorder %s204, %s205
    %p214 = scmp.eq.s32.totalorder %s20, 0
    %p215 = por %p213, %p214
    %p216 = scmp.ne.s32.totalorder %s204, %s205
    %p217 = scmp.eq.s32.totalorder %s21, 1
    %p218 = por %p216, %p217
    %p220 = scmp.ne.s32.totalorder %s205, %s219
    %p221 = scmp.eq.s32.totalorder %s21, 0
    %p222 = por %p220, %p221
    %s223 = ssub.s32 %s22, %s34
    %p224 = scmp.eq.s32.totalorder %s223, 0
    %s226 = sadd.s32 %s225, 1
    %s227 = scalar_select %p224, %s225, %s226
    %p230 = pneg %p224
    %p231 = scmp.eq.s32.totalorder %s15, 1
    %p232 = por %p230, %p231
    %p233 = scmp.ne.s32.totalorder %s225, %s228
    %p234 = scmp.eq.s32.totalorder %s15, 0
    %p235 = por %p233, %p234
    %p236 = scmp.ne.s32.totalorder %s225, %s228
    %p237 = scmp.eq.s32.totalorder %s20, 1
    %p238 = por %p236, %p237
    %p239 = scmp.ne.s32.totalorder %s228, %s229
    %p240 = scmp.eq.s32.totalorder %s20, 0
    %p241 = por %p239, %p240
    %p242 = scmp.ne.s32.totalorder %s228, %s229
    %p243 = scmp.eq.s32.totalorder %s21, 1
    %p244 = por %p242, %p243
    %p246 = scmp.ne.s32.totalorder %s229, %s245
    %p247 = scmp.eq.s32.totalorder %s21, 0
    %p248 = por %p246, %p247
    %p249 = scmp.le.s32.totalorder 1, %s15
    %p250 = scmp.lt.s32.totalorder %s15, 3
    %p251 = pnand %p249, %p250
    %p252 = pneg %p251
    // Predicated region
    $region9: #{temperature_scaler_forward.1} parent=5 // pred_check
      _
    $region10: #{temperature_scaler_forward.1} parent=5 // pred_check_branch
      %254 = sbr.rel (%p251) target = $region12
    $region11: #{temperature_scaler_forward.1} parent=5 // pred_region
      %s255 = ssub.s32 %s15, 1
      // Predicated region
      $region13: #{temperature_scaler_forward.1} parent=11 // pred_check
        %p256 = pneg %p48
      $region14: #{temperature_scaler_forward.1} parent=11 // pred_check_branch
        %258 = sbr.rel (%p256) target = $region16
      $region15: #{temperature_scaler_forward.1} parent=11 // pred_region
        _
      $region16: #{temperature_scaler_forward.1} parent=11 // pred_fallthru
        _
      // Predicated region
      $region17: #{temperature_scaler_forward.1} parent=11 // pred_check
        %p259 = pneg %p74
      $region18: #{temperature_scaler_forward.1} parent=11 // pred_check_branch
        %261 = sbr.rel (%p259) target = $region20
      $region19: #{temperature_scaler_forward.1} parent=11 // pred_region
        %s262 = smul.u32 2, %s24
        %p263 = scmp.lt.s32.totalorder %s262, 1
        %s264 = scalar_select %p263, %s262, 1
        %s265 = smul.addr %s264, 21
        %s266 = smul.addr %s265, 4
        %s267 = scalar_lea.vmem %s1, %s266
        %s268 = smul.u32 2, %s24
      $region20: #{temperature_scaler_forward.1} parent=11 // pred_fallthru
        _
      // Predicated region
      $region21: #{temperature_scaler_forward.1} parent=11 // pred_check
        %p269 = pneg %p173
      $region22: #{temperature_scaler_forward.1} parent=11 // pred_check_branch
        %271 = sbr.rel (%p269) target = $region24
      $region23: #{temperature_scaler_forward.1} parent=11 // pred_region
        _
      $region24: #{temperature_scaler_forward.1} parent=11 // pred_fallthru
        _
      // Predicated region
      $region25: #{temperature_scaler_forward.1} parent=11 // pred_check
        %p272 = pneg %p194
      $region26: #{temperature_scaler_forward.1} parent=11 // pred_check_branch
        %274 = sbr.rel (%p272) target = $region28
      $region27: #{temperature_scaler_forward.1} parent=11 // pred_region
        _
      $region28: #{temperature_scaler_forward.1} parent=11 // pred_fallthru
        _
      // Predicated region
      $region29: #{temperature_scaler_forward.1} parent=11 // pred_check
        %p275 = pneg %p215
      $region30: #{temperature_scaler_forward.1} parent=11 // pred_check_branch
        %277 = sbr.rel (%p275) target = $region32
      $region31: #{temperature_scaler_forward.1} parent=11 // pred_region
        _
      $region32: #{temperature_scaler_forward.1} parent=11 // pred_fallthru
        _
    $region12: #{temperature_scaler_forward.1} parent=5 // pred_fallthru
      _
    %p278 = scmp.lt.s32.totalorder %s15, 2
    // Predicated region
    $region33: #{temperature_scaler_forward.1} parent=5 // pred_check
      %p279 = pneg %p278
    $region34: #{temperature_scaler_forward.1} parent=5 // pred_check_branch
      %281 = sbr.rel (%p279) target = $region36
    $region35: #{temperature_scaler_forward.1} parent=5 // pred_region
      // Predicated region
      $region37: #{temperature_scaler_forward.1} parent=35 // pred_check
        %p282 = pneg %p94
      $region38: #{temperature_scaler_forward.1} parent=35 // pred_check_branch
        %284 = sbr.rel (%p282) target = $region40
      $region39: #{temperature_scaler_forward.1} parent=35 // pred_region
        %p285 = scmp.lt.s32.totalorder %s23, 1
        %s286 = scalar_select %p285, %s23, 1
        %s287 = smul.addr %s286, 2568
        %s288 = smul.addr %s287, 4
        %s289 = scalar_lea.vmem %s2, %s288
      $region40: #{temperature_scaler_forward.1} parent=35 // pred_fallthru
        _
      // Predicated region
      $region41: #{temperature_scaler_forward.1} parent=35 // pred_check
        %p290 = pneg %p120
      $region42: #{temperature_scaler_forward.1} parent=35 // pred_check_branch
        %292 = sbr.rel (%p290) target = $region44
      $region43: #{temperature_scaler_forward.1} parent=35 // pred_region
        %s293 = smul.u32 8, %s23
        %p294 = scmp.lt.s32.totalorder %s293, 15
        %s295 = scalar_select %p294, %s293, 15
        %s296 = scalar_lea.vmem %s3, %s295
        %s297 = smul.u32 8, %s23
      $region44: #{temperature_scaler_forward.1} parent=35 // pred_fallthru
        _
      // Predicated region
      $region45: #{temperature_scaler_forward.1} parent=35 // pred_check
        %p298 = pneg %p146
      $region46: #{temperature_scaler_forward.1} parent=35 // pred_check_branch
        %300 = sbr.rel (%p298) target = $region48
      $region47: #{temperature_scaler_forward.1} parent=35 // pred_region
        %s301 = smul.u32 128, %s23
        %p302 = scmp.lt.s32.totalorder %s301, 255
        %s303 = scalar_select %p302, %s301, 255
        %s304 = smul.addr %s303, 4
        %s305 = smul.addr %s304, 4
        %s306 = scalar_lea.vmem %s4, %s305
        %s307 = smul.u32 128, %s23
      $region48: #{temperature_scaler_forward.1} parent=35 // pred_fallthru
        _
    $region36: #{temperature_scaler_forward.1} parent=5 // pred_fallthru
      _
    %p308 = scmp.le.s32.totalorder 1, %s15
    %p309 = scmp.lt.s32.totalorder %s15, 3
    %p310 = pnand %p308, %p309
    %p311 = pneg %p310
    // Predicated region
    $region49: #{temperature_scaler_forward.1} parent=5 // pred_check
      _
    $region50: #{temperature_scaler_forward.1} parent=5 // pred_check_branch
      %313 = sbr.rel (%p310) target = $region52
    $region51: #{temperature_scaler_forward.1} parent=5 // pred_region
      %s314 = ssub.s32 %s15, 1
      %p315 = pneg %p48
      %p316 = pneg %p45
      %s317 = smul.u32 2, %s24
      %p318 = scmp.lt.s32.totalorder %s317, 1
      %s319 = scalar_select %p318, %s317, 1
      %s320 = smul.addr %s319, 21
      %s321 = smul.addr %s320, 4
      %s322 = scalar_lea.vmem %s1, %s321
      %p323 = pneg %p74
      %p324 = pneg %p71
      %p325 = scmp.lt.s32.totalorder %s25, 1
      %s326 = scalar_select %p325, %s25, 1
      %s327 = smul.addr %s326, 2568
      %s328 = smul.addr %s327, 4
      %s329 = scalar_lea.vmem %s2, %s328
      %p330 = pneg %p100
      %p331 = pneg %p97
      %s332 = smul.u32 8, %s25
      %p333 = scmp.lt.s32.totalorder %s332, 15
      %s334 = scalar_select %p333, %s332, 15
      %s335 = scalar_lea.vmem %s3, %s334
      %p336 = pneg %p126
      %p337 = pneg %p123
      %s338 = smul.u32 128, %s25
      %p339 = scmp.lt.s32.totalorder %s338, 255
      %s340 = scalar_select %p339, %s338, 255
      %s341 = smul.addr %s340, 4
      %s342 = smul.addr %s341, 4
      %s343 = scalar_lea.vmem %s4, %s342
      %p344 = pneg %p152
      %p345 = pneg %p149
      %p346 = pneg %p173
      %p347 = pneg %p170
      %p348 = pneg %p194
      %p349 = pneg %p191
      %p350 = pneg %p215
      %p351 = pneg %p212
      %p352 = pneg %p241
      %p353 = pneg %p238
      %s354 = smul.u32 2, %s24
      %p355 = scmp.lt.s32.totalorder %s354, 1
      %s356 = scalar_select %p355, %s354, 1
      %s357 = smul.addr %s356, 8
      %s358 = scalar_lea.vmem %s8, %s357
      %s359 = smul.u32 2, %s24
      %p360 = scmp.lt.s32.totalorder %s359, 1
      %s361 = scalar_select %p360, %s359, 1
      %s362 = smul.addr %s361, 21
      %s363 = smul.addr %s362, 4
      %s364 = scalar_lea.vmem %s1, %s363
      %s365 = smul.u32 2, %s24
      %p366 = scmp.lt.s32.totalorder %s25, 1
      %s367 = scalar_select %p366, %s25, 1
      %s368 = smul.addr %s367, 2568
      %s369 = smul.addr %s368, 4
      %s370 = scalar_lea.vmem %s2, %s369
      %s371 = smul.u32 8, %s25
      %p372 = scmp.lt.s32.totalorder %s371, 15
      %s373 = scalar_select %p372, %s371, 15
      %s374 = scalar_lea.vmem %s3, %s373
      %s375 = smul.u32 8, %s25
      %s376 = smul.u32 128, %s25
      %p377 = scmp.lt.s32.totalorder %s376, 255
      %s378 = scalar_select %p377, %s376, 255
      %s379 = smul.addr %s378, 4
      %s380 = smul.addr %s379, 4
      %s381 = scalar_lea.vmem %s4, %s380
      %s382 = smul.u32 128, %s25
      %s383 = smul.u32 2, %s24
      %p384 = scmp.lt.s32.totalorder %s383, 1
      %s385 = scalar_select %p384, %s383, 1
      %s386 = smul.addr %s385, 8
      %s387 = scalar_lea.vmem %s8, %s386
      %s388 = smul.u32 2, %s24
      %p390 = scmp.eq.s32.totalorder %s25, 0
      // Predicated region
      $region53: #{temperature_scaler_forward.1} parent=51 // pred_check
        %p391 = pneg %p390
      $region54: #{temperature_scaler_forward.1} parent=51 // pred_check_branch
        %393 = sbr.rel (%p391) target = $region56
      $region55: #{temperature_scaler_forward.1} parent=51 // pred_region
        %394 = vst [vmem:[#allocation2] sm:$0xff] 0.0
        %395 = vst [vmem:[#allocation2 + $0x8] sm:$0xff] 0.0
        %396 = vst [vmem:[#allocation2 + $0x10] sm:$0xff] 0.0
        %397 = vst [vmem:[#allocation2 + $0x18] sm:$0xff] 0.0
        %398 = vst [vmem:[#allocation2 + $0x20] sm:$0xff] 0.0
        %399 = vst [vmem:[#allocation2 + $0x28] sm:$0xff] 0.0
        %400 = vst [vmem:[#allocation2 + $0x30] sm:$0xff] 0.0
        %401 = vst [vmem:[#allocation2 + $0x38] sm:$0xff] 0.0
      $region56: #{temperature_scaler_forward.1} parent=51 // pred_fallthru
        _
      %v402 = vld [vmem:[%s364] sm:$0xff]
      %v403 = vld [vmem:[%s364 + $0x8] sm:$0xff]
      %v404 = vld [vmem:[%s364 + $0x10] sm:$0xff]
      %v405 = vld [vmem:[%s364 + $0x18] sm:$0xff]
      %v406 = vld [vmem:[%s364 + $0x20] sm:$0xff]
      %v407 = vld [vmem:[%s364 + $0x28] sm:$0xff]
      %v408 = vld [vmem:[%s364 + $0x30] sm:$0xff]
      %v409 = vld [vmem:[%s364 + $0x38] sm:$0xff]
      %v410 = vld [vmem:[%s364 + $0x40] sm:$0xff]
      %v411 = vld [vmem:[%s364 + $0x48] sm:$0xff]
      %v412 = vld [vmem:[%s364 + $0x50] sm:$0xf]
      %v413 = vld [vmem:[%s364 + $0x54] sm:$0xff]
      %v414 = vld [vmem:[%s364 + $0x5c] sm:$0xff]
      %v415 = vld [vmem:[%s364 + $0x64] sm:$0xff]
      %v416 = vld [vmem:[%s364 + $0x6c] sm:$0xff]
      %v417 = vld [vmem:[%s364 + $0x74] sm:$0xff]
      %v418 = vld [vmem:[%s364 + $0x7c] sm:$0xff]
      %v419 = vld [vmem:[%s364 + $0x84] sm:$0xff]
      %v420 = vld [vmem:[%s364 + $0x8c] sm:$0xff]
      %v421 = vld [vmem:[%s364 + $0x94] sm:$0xff]
      %v422 = vld [vmem:[%s364 + $0x9c] sm:$0xff]
      %v423 = vld [vmem:[%s364 + $0xa4] sm:$0xf]
      %v424 = vld [vmem:[%s370] sm:$0xff]
      %v425 = vld [vmem:[%s370 + $0x8] sm:$0xff]
      %v426 = vld [vmem:[%s370 + $0x10] sm:$0xff]
      %v427 = vld [vmem:[%s370 + $0x18] sm:$0xff]
      %v428 = vld [vmem:[%s370 + $0x20] sm:$0xff]
      %v429 = vld [vmem:[%s370 + $0x28] sm:$0xff]
      %v430 = vld [vmem:[%s370 + $0x30] sm:$0xff]
      %v431 = vld [vmem:[%s370 + $0x38] sm:$0xff]
      %v432 = vld [vmem:[%s370 + $0x40] sm:$0xff]
      %v433 = vld [vmem:[%s370 + $0x48] sm:$0xff]
      %v434 = vld [vmem:[%s370 + $0x50] sm:$0xff]
      %v435 = vld [vmem:[%s370 + $0x58] sm:$0xff]
      %v436 = vld [vmem:[%s370 + $0x60] sm:$0xff]
      %v437 = vld [vmem:[%s370 + $0x68] sm:$0xff]
      %v438 = vld [vmem:[%s370 + $0x70] sm:$0xff]
      %v439 = vld [vmem:[%s370 + $0x78] sm:$0xff]
      %v440 = vld [vmem:[%s370 + $0x80] sm:$0xff]
      %v441 = vld [vmem:[%s370 + $0x88] sm:$0xff]
      %v442 = vld [vmem:[%s370 + $0x90] sm:$0xff]
      %v443 = vld [vmem:[%s370 + $0x98] sm:$0xff]
      %v444 = vld [vmem:[%s370 + $0xa0] sm:$0xff]
      %v445 = vld [vmem:[%s370 + $0xa8] sm:$0xff]
      %v446 = vld [vmem:[%s370 + $0xb0] sm:$0xff]
      %v447 = vld [vmem:[%s370 + $0xb8] sm:$0xff]
      %v448 = vld [vmem:[%s370 + $0xc0] sm:$0xff]
      %v449 = vld [vmem:[%s370 + $0xc8] sm:$0xff]
      %v450 = vld [vmem:[%s370 + $0xd0] sm:$0xff]
      %v451 = vld [vmem:[%s370 + $0xd8] sm:$0xff]
      %v452 = vld [vmem:[%s370 + $0xe0] sm:$0xff]
      %v453 = vld [vmem:[%s370 + $0xe8] sm:$0xff]
      %v454 = vld [vmem:[%s370 + $0xf0] sm:$0xff]
      %v455 = vld [vmem:[%s370 + $0xf8] sm:$0xff]
      %v456 = vld [vmem:[%s370 + $0x100] sm:$0xff]
      %v457 = vld [vmem:[%s370 + $0x108] sm:$0xff]
      %v458 = vld [vmem:[%s370 + $0x110] sm:$0xff]
      %v459 = vld [vmem:[%s370 + $0x118] sm:$0xff]
      %v460 = vld [vmem:[%s370 + $0x120] sm:$0xff]
      %v461 = vld [vmem:[%s370 + $0x128] sm:$0xff]
      %v462 = vld [vmem:[%s370 + $0x130] sm:$0xff]
      %v463 = vld [vmem:[%s370 + $0x138] sm:$0xff]
      %v464 = vld [vmem:[%s370 + $0x140] sm:$0xff]
      %v465 = vld [vmem:[%s370 + $0x148] sm:$0xff]
      %v466 = vld [vmem:[%s370 + $0x150] sm:$0xff]
      %v467 = vld [vmem:[%s370 + $0x158] sm:$0xff]
      %v468 = vld [vmem:[%s370 + $0x160] sm:$0xff]
      %v469 = vld [vmem:[%s370 + $0x168] sm:$0xff]
      %v470 = vld [vmem:[%s370 + $0x170] sm:$0xff]
      %v471 = vld [vmem:[%s370 + $0x178] sm:$0xff]
      %v472 = vld [vmem:[%s370 + $0x180] sm:$0xff]
      %v473 = vld [vmem:[%s370 + $0x188] sm:$0xff]
      %v474 = vld [vmem:[%s370 + $0x190] sm:$0xff]
      %v475 = vld [vmem:[%s370 + $0x198] sm:$0xff]
      %v476 = vld [vmem:[%s370 + $0x1a0] sm:$0xff]
      %v477 = vld [vmem:[%s370 + $0x1a8] sm:$0xff]
      %v478 = vld [vmem:[%s370 + $0x1b0] sm:$0xff]
      %v479 = vld [vmem:[%s370 + $0x1b8] sm:$0xff]
      %v480 = vld [vmem:[%s370 + $0x1c0] sm:$0xff]
      %v481 = vld [vmem:[%s370 + $0x1c8] sm:$0xff]
      %v482 = vld [vmem:[%s370 + $0x1d0] sm:$0xff]
      %v483 = vld [vmem:[%s370 + $0x1d8] sm:$0xff]
      %v484 = vld [vmem:[%s370 + $0x1e0] sm:$0xff]
      %v485 = vld [vmem:[%s370 + $0x1e8] sm:$0xff]
      %v486 = vld [vmem:[%s370 + $0x1f0] sm:$0xff]
      %v487 = vld [vmem:[%s370 + $0x1f8] sm:$0xff]
      %v488 = vld [vmem:[%s370 + $0x200] sm:$0xff]
      %v489 = vld [vmem:[%s370 + $0x208] sm:$0xff]
      %v490 = vld [vmem:[%s370 + $0x210] sm:$0xff]
      %v491 = vld [vmem:[%s370 + $0x218] sm:$0xff]
      %v492 = vld [vmem:[%s370 + $0x220] sm:$0xff]
      %v493 = vld [vmem:[%s370 + $0x228] sm:$0xff]
      %v494 = vld [vmem:[%s370 + $0x230] sm:$0xff]
      %v495 = vld [vmem:[%s370 + $0x238] sm:$0xff]
      %v496 = vld [vmem:[%s370 + $0x240] sm:$0xff]
      %v497 = vld [vmem:[%s370 + $0x248] sm:$0xff]
      %v498 = vld [vmem:[%s370 + $0x250] sm:$0xff]
      %v499 = vld [vmem:[%s370 + $0x258] sm:$0xff]
      %v500 = vld [vmem:[%s370 + $0x260] sm:$0xff]
      %v501 = vld [vmem:[%s370 + $0x268] sm:$0xff]
      %v502 = vld [vmem:[%s370 + $0x270] sm:$0xff]
      %v503 = vld [vmem:[%s370 + $0x278] sm:$0xff]
      %v504 = vld [vmem:[%s370 + $0x280] sm:$0xff]
      %v505 = vld [vmem:[%s370 + $0x288] sm:$0xff]
      %v506 = vld [vmem:[%s370 + $0x290] sm:$0xff]
      %v507 = vld [vmem:[%s370 + $0x298] sm:$0xff]
      %v508 = vld [vmem:[%s370 + $0x2a0] sm:$0xff]
      %v509 = vld [vmem:[%s370 + $0x2a8] sm:$0xff]
      %v510 = vld [vmem:[%s370 + $0x2b0] sm:$0xff]
      %v511 = vld [vmem:[%s370 + $0x2b8] sm:$0xff]
      %v512 = vld [vmem:[%s370 + $0x2c0] sm:$0xff]
      %v513 = vld [vmem:[%s370 + $0x2c8] sm:$0xff]
      %v514 = vld [vmem:[%s370 + $0x2d0] sm:$0xff]
      %v515 = vld [vmem:[%s370 + $0x2d8] sm:$0xff]
      %v516 = vld [vmem:[%s370 + $0x2e0] sm:$0xff]
      %v517 = vld [vmem:[%s370 + $0x2e8] sm:$0xff]
      %v518 = vld [vmem:[%s370 + $0x2f0] sm:$0xff]
      %v519 = vld [vmem:[%s370 + $0x2f8] sm:$0xff]
      %v520 = vld [vmem:[%s370 + $0x300] sm:$0xff]
      %v521 = vld [vmem:[%s370 + $0x308] sm:$0xff]
      %v522 = vld [vmem:[%s370 + $0x310] sm:$0xff]
      %v523 = vld [vmem:[%s370 + $0x318] sm:$0xff]
      %v524 = vld [vmem:[%s370 + $0x320] sm:$0xff]
      %v525 = vld [vmem:[%s370 + $0x328] sm:$0xff]
      %v526 = vld [vmem:[%s370 + $0x330] sm:$0xff]
      %v527 = vld [vmem:[%s370 + $0x338] sm:$0xff]
      %v528 = vld [vmem:[%s370 + $0x340] sm:$0xff]
      %v529 = vld [vmem:[%s370 + $0x348] sm:$0xff]
      %v530 = vld [vmem:[%s370 + $0x350] sm:$0xff]
      %v531 = vld [vmem:[%s370 + $0x358] sm:$0xff]
      %v532 = vld [vmem:[%s370 + $0x360] sm:$0xff]
      %v533 = vld [vmem:[%s370 + $0x368] sm:$0xff]
      %v534 = vld [vmem:[%s370 + $0x370] sm:$0xff]
      %v535 = vld [vmem:[%s370 + $0x378] sm:$0xff]
      %v536 = vld [vmem:[%s370 + $0x380] sm:$0xff]
      %v537 = vld [vmem:[%s370 + $0x388] sm:$0xff]
      %v538 = vld [vmem:[%s370 + $0x390] sm:$0xff]
      %v539 = vld [vmem:[%s370 + $0x398] sm:$0xff]
      %v540 = vld [vmem:[%s370 + $0x3a0] sm:$0xff]
      %v541 = vld [vmem:[%s370 + $0x3a8] sm:$0xff]
      %v542 = vld [vmem:[%s370 + $0x3b0] sm:$0xff]
      %v543 = vld [vmem:[%s370 + $0x3b8] sm:$0xff]
      %v544 = vld [vmem:[%s370 + $0x3c0] sm:$0xff]
      %v545 = vld [vmem:[%s370 + $0x3c8] sm:$0xff]
      %v546 = vld [vmem:[%s370 + $0x3d0] sm:$0xff]
      %v547 = vld [vmem:[%s370 + $0x3d8] sm:$0xff]
      %v548 = vld [vmem:[%s370 + $0x3e0] sm:$0xff]
      %v549 = vld [vmem:[%s370 + $0x3e8] sm:$0xff]
      %v550 = vld [vmem:[%s370 + $0x3f0] sm:$0xff]
      %v551 = vld [vmem:[%s370 + $0x3f8] sm:$0xff]
      %v552 = vld [vmem:[%s370 + $0x400] sm:$0xff]
      %v553 = vld [vmem:[%s370 + $0x408] sm:$0xff]
      %v554 = vld [vmem:[%s370 + $0x410] sm:$0xff]
      %v555 = vld [vmem:[%s370 + $0x418] sm:$0xff]
      %v556 = vld [vmem:[%s370 + $0x420] sm:$0xff]
      %v557 = vld [vmem:[%s370 + $0x428] sm:$0xff]
      %v558 = vld [vmem:[%s370 + $0x430] sm:$0xff]
      %v559 = vld [vmem:[%s370 + $0x438] sm:$0xff]
      %v560 = vld [vmem:[%s370 + $0x440] sm:$0xff]
      %v561 = vld [vmem:[%s370 + $0x448] sm:$0xff]
      %v562 = vld [vmem:[%s370 + $0x450] sm:$0xff]
      %v563 = vld [vmem:[%s370 + $0x458] sm:$0xff]
      %v564 = vld [vmem:[%s370 + $0x460] sm:$0xff]
      %v565 = vld [vmem:[%s370 + $0x468] sm:$0xff]
      %v566 = vld [vmem:[%s370 + $0x470] sm:$0xff]
      %v567 = vld [vmem:[%s370 + $0x478] sm:$0xff]
      %v568 = vld [vmem:[%s370 + $0x480] sm:$0xff]
      %v569 = vld [vmem:[%s370 + $0x488] sm:$0xff]
      %v570 = vld [vmem:[%s370 + $0x490] sm:$0xff]
      %v571 = vld [vmem:[%s370 + $0x498] sm:$0xff]
      %v572 = vld [vmem:[%s370 + $0x4a0] sm:$0xff]
      %v573 = vld [vmem:[%s370 + $0x4a8] sm:$0xff]
      %v574 = vld [vmem:[%s370 + $0x4b0] sm:$0xff]
      %v575 = vld [vmem:[%s370 + $0x4b8] sm:$0xff]
      %v576 = vld [vmem:[%s370 + $0x4c0] sm:$0xff]
      %v577 = vld [vmem:[%s370 + $0x4c8] sm:$0xff]
      %v578 = vld [vmem:[%s370 + $0x4d0] sm:$0xff]
      %v579 = vld [vmem:[%s370 + $0x4d8] sm:$0xff]
      %v580 = vld [vmem:[%s370 + $0x4e0] sm:$0xff]
      %v581 = vld [vmem:[%s370 + $0x4e8] sm:$0xff]
      %v582 = vld [vmem:[%s370 + $0x4f0] sm:$0xff]
      %v583 = vld [vmem:[%s370 + $0x4f8] sm:$0xff]
      %v584 = vld [vmem:[%s370 + $0x500] sm:$0xff]
      %v585 = vld [vmem:[%s370 + $0x508] sm:$0xff]
      %v586 = vld [vmem:[%s370 + $0x510] sm:$0xff]
      %v587 = vld [vmem:[%s370 + $0x518] sm:$0xff]
      %v588 = vld [vmem:[%s370 + $0x520] sm:$0xff]
      %v589 = vld [vmem:[%s370 + $0x528] sm:$0xff]
      %v590 = vld [vmem:[%s370 + $0x530] sm:$0xff]
      %v591 = vld [vmem:[%s370 + $0x538] sm:$0xff]
      %v592 = vld [vmem:[%s370 + $0x540] sm:$0xff]
      %v593 = vld [vmem:[%s370 + $0x548] sm:$0xff]
      %v594 = vld [vmem:[%s370 + $0x550] sm:$0xff]
      %v595 = vld [vmem:[%s370 + $0x558] sm:$0xff]
      %v596 = vld [vmem:[%s370 + $0x560] sm:$0xff]
      %v597 = vld [vmem:[%s370 + $0x568] sm:$0xff]
      %v598 = vld [vmem:[%s370 + $0x570] sm:$0xff]
      %v599 = vld [vmem:[%s370 + $0x578] sm:$0xff]
      %v600 = vld [vmem:[%s370 + $0x580] sm:$0xff]
      %v601 = vld [vmem:[%s370 + $0x588] sm:$0xff]
      %v602 = vld [vmem:[%s370 + $0x590] sm:$0xff]
      %v603 = vld [vmem:[%s370 + $0x598] sm:$0xff]
      %v604 = vld [vmem:[%s370 + $0x5a0] sm:$0xff]
      %v605 = vld [vmem:[%s370 + $0x5a8] sm:$0xff]
      %v606 = vld [vmem:[%s370 + $0x5b0] sm:$0xff]
      %v607 = vld [vmem:[%s370 + $0x5b8] sm:$0xff]
      %v608 = vld [vmem:[%s370 + $0x5c0] sm:$0xff]
      %v609 = vld [vmem:[%s370 + $0x5c8] sm:$0xff]
      %v610 = vld [vmem:[%s370 + $0x5d0] sm:$0xff]
      %v611 = vld [vmem:[%s370 + $0x5d8] sm:$0xff]
      %v612 = vld [vmem:[%s370 + $0x5e0] sm:$0xff]
      %v613 = vld [vmem:[%s370 + $0x5e8] sm:$0xff]
      %v614 = vld [vmem:[%s370 + $0x5f0] sm:$0xff]
      %v615 = vld [vmem:[%s370 + $0x5f8] sm:$0xff]
      %v616 = vld [vmem:[%s370 + $0x600] sm:$0xff]
      %v617 = vld [vmem:[%s370 + $0x608] sm:$0xff]
      %v618 = vld [vmem:[%s370 + $0x610] sm:$0xff]
      %v619 = vld [vmem:[%s370 + $0x618] sm:$0xff]
      %v620 = vld [vmem:[%s370 + $0x620] sm:$0xff]
      %v621 = vld [vmem:[%s370 + $0x628] sm:$0xff]
      %v622 = vld [vmem:[%s370 + $0x630] sm:$0xff]
      %v623 = vld [vmem:[%s370 + $0x638] sm:$0xff]
      %v624 = vld [vmem:[%s370 + $0x640] sm:$0xff]
      %v625 = vld [vmem:[%s370 + $0x648] sm:$0xff]
      %v626 = vld [vmem:[%s370 + $0x650] sm:$0xff]
      %v627 = vld [vmem:[%s370 + $0x658] sm:$0xff]
      %v628 = vld [vmem:[%s370 + $0x660] sm:$0xff]
      %v629 = vld [vmem:[%s370 + $0x668] sm:$0xff]
      %v630 = vld [vmem:[%s370 + $0x670] sm:$0xff]
      %v631 = vld [vmem:[%s370 + $0x678] sm:$0xff]
      %v632 = vld [vmem:[%s370 + $0x680] sm:$0xff]
      %v633 = vld [vmem:[%s370 + $0x688] sm:$0xff]
      %v634 = vld [vmem:[%s370 + $0x690] sm:$0xff]
      %v635 = vld [vmem:[%s370 + $0x698] sm:$0xff]
      %v636 = vld [vmem:[%s370 + $0x6a0] sm:$0xff]
      %v637 = vld [vmem:[%s370 + $0x6a8] sm:$0xff]
      %v638 = vld [vmem:[%s370 + $0x6b0] sm:$0xff]
      %v639 = vld [vmem:[%s370 + $0x6b8] sm:$0xff]
      %v640 = vld [vmem:[%s370 + $0x6c0] sm:$0xff]
      %v641 = vld [vmem:[%s370 + $0x6c8] sm:$0xff]
      %v642 = vld [vmem:[%s370 + $0x6d0] sm:$0xff]
      %v643 = vld [vmem:[%s370 + $0x6d8] sm:$0xff]
      %v644 = vld [vmem:[%s370 + $0x6e0] sm:$0xff]
      %v645 = vld [vmem:[%s370 + $0x6e8] sm:$0xff]
      %v646 = vld [vmem:[%s370 + $0x6f0] sm:$0xff]
      %v647 = vld [vmem:[%s370 + $0x6f8] sm:$0xff]
      %v648 = vld [vmem:[%s370 + $0x700] sm:$0xff]
      %v649 = vld [vmem:[%s370 + $0x708] sm:$0xff]
      %v650 = vld [vmem:[%s370 + $0x710] sm:$0xff]
      %v651 = vld [vmem:[%s370 + $0x718] sm:$0xff]
      %v652 = vld [vmem:[%s370 + $0x720] sm:$0xff]
      %v653 = vld [vmem:[%s370 + $0x728] sm:$0xff]
      %v654 = vld [vmem:[%s370 + $0x730] sm:$0xff]
      %v655 = vld [vmem:[%s370 + $0x738] sm:$0xff]
      %v656 = vld [vmem:[%s370 + $0x740] sm:$0xff]
      %v657 = vld [vmem:[%s370 + $0x748] sm:$0xff]
      %v658 = vld [vmem:[%s370 + $0x750] sm:$0xff]
      %v659 = vld [vmem:[%s370 + $0x758] sm:$0xff]
      %v660 = vld [vmem:[%s370 + $0x760] sm:$0xff]
      %v661 = vld [vmem:[%s370 + $0x768] sm:$0xff]
      %v662 = vld [vmem:[%s370 + $0x770] sm:$0xff]
      %v663 = vld [vmem:[%s370 + $0x778] sm:$0xff]
      %v664 = vld [vmem:[%s370 + $0x780] sm:$0xff]
      %v665 = vld [vmem:[%s370 + $0x788] sm:$0xff]
      %v666 = vld [vmem:[%s370 + $0x790] sm:$0xff]
      %v667 = vld [vmem:[%s370 + $0x798] sm:$0xff]
      %v668 = vld [vmem:[%s370 + $0x7a0] sm:$0xff]
      %v669 = vld [vmem:[%s370 + $0x7a8] sm:$0xff]
      %v670 = vld [vmem:[%s370 + $0x7b0] sm:$0xff]
      %v671 = vld [vmem:[%s370 + $0x7b8] sm:$0xff]
      %v672 = vld [vmem:[%s370 + $0x7c0] sm:$0xff]
      %v673 = vld [vmem:[%s370 + $0x7c8] sm:$0xff]
      %v674 = vld [vmem:[%s370 + $0x7d0] sm:$0xff]
      %v675 = vld [vmem:[%s370 + $0x7d8] sm:$0xff]
      %v676 = vld [vmem:[%s370 + $0x7e0] sm:$0xff]
      %v677 = vld [vmem:[%s370 + $0x7e8] sm:$0xff]
      %v678 = vld [vmem:[%s370 + $0x7f0] sm:$0xff]
      %v679 = vld [vmem:[%s370 + $0x7f8] sm:$0xff]
      %v680 = vld [vmem:[%s370 + $0x800] sm:$0xff]
      %v681 = vld [vmem:[%s370 + $0x808] sm:$0xff]
      %v682 = vld [vmem:[%s370 + $0x810] sm:$0xff]
      %v683 = vld [vmem:[%s370 + $0x818] sm:$0xff]
      %v684 = vld [vmem:[%s370 + $0x820] sm:$0xff]
      %v685 = vld [vmem:[%s370 + $0x828] sm:$0xff]
      %v686 = vld [vmem:[%s370 + $0x830] sm:$0xff]
      %v687 = vld [vmem:[%s370 + $0x838] sm:$0xff]
      %v688 = vld [vmem:[%s370 + $0x840] sm:$0xff]
      %v689 = vld [vmem:[%s370 + $0x848] sm:$0xff]
      %v690 = vld [vmem:[%s370 + $0x850] sm:$0xff]
      %v691 = vld [vmem:[%s370 + $0x858] sm:$0xff]
      %v692 = vld [vmem:[%s370 + $0x860] sm:$0xff]
      %v693 = vld [vmem:[%s370 + $0x868] sm:$0xff]
      %v694 = vld [vmem:[%s370 + $0x870] sm:$0xff]
      %v695 = vld [vmem:[%s370 + $0x878] sm:$0xff]
      %v696 = vld [vmem:[%s370 + $0x880] sm:$0xff]
      %v697 = vld [vmem:[%s370 + $0x888] sm:$0xff]
      %v698 = vld [vmem:[%s370 + $0x890] sm:$0xff]
      %v699 = vld [vmem:[%s370 + $0x898] sm:$0xff]
      %v700 = vld [vmem:[%s370 + $0x8a0] sm:$0xff]
      %v701 = vld [vmem:[%s370 + $0x8a8] sm:$0xff]
      %v702 = vld [vmem:[%s370 + $0x8b0] sm:$0xff]
      %v703 = vld [vmem:[%s370 + $0x8b8] sm:$0xff]
      %v704 = vld [vmem:[%s370 + $0x8c0] sm:$0xff]
      %v705 = vld [vmem:[%s370 + $0x8c8] sm:$0xff]
      %v706 = vld [vmem:[%s370 + $0x8d0] sm:$0xff]
      %v707 = vld [vmem:[%s370 + $0x8d8] sm:$0xff]
      %v708 = vld [vmem:[%s370 + $0x8e0] sm:$0xff]
      %v709 = vld [vmem:[%s370 + $0x8e8] sm:$0xff]
      %v710 = vld [vmem:[%s370 + $0x8f0] sm:$0xff]
      %v711 = vld [vmem:[%s370 + $0x8f8] sm:$0xff]
      %v712 = vld [vmem:[%s370 + $0x900] sm:$0xff]
      %v713 = vld [vmem:[%s370 + $0x908] sm:$0xff]
      %v714 = vld [vmem:[%s370 + $0x910] sm:$0xff]
      %v715 = vld [vmem:[%s370 + $0x918] sm:$0xff]
      %v716 = vld [vmem:[%s370 + $0x920] sm:$0xff]
      %v717 = vld [vmem:[%s370 + $0x928] sm:$0xff]
      %v718 = vld [vmem:[%s370 + $0x930] sm:$0xff]
      %v719 = vld [vmem:[%s370 + $0x938] sm:$0xff]
      %v720 = vld [vmem:[%s370 + $0x940] sm:$0xff]
      %v721 = vld [vmem:[%s370 + $0x948] sm:$0xff]
      %v722 = vld [vmem:[%s370 + $0x950] sm:$0xff]
      %v723 = vld [vmem:[%s370 + $0x958] sm:$0xff]
      %v724 = vld [vmem:[%s370 + $0x960] sm:$0xff]
      %v725 = vld [vmem:[%s370 + $0x968] sm:$0xff]
      %v726 = vld [vmem:[%s370 + $0x970] sm:$0xff]
      %v727 = vld [vmem:[%s370 + $0x978] sm:$0xff]
      %v728 = vld [vmem:[%s370 + $0x980] sm:$0xff]
      %v729 = vld [vmem:[%s370 + $0x988] sm:$0xff]
      %v730 = vld [vmem:[%s370 + $0x990] sm:$0xff]
      %v731 = vld [vmem:[%s370 + $0x998] sm:$0xff]
      %v732 = vld [vmem:[%s370 + $0x9a0] sm:$0xff]
      %v733 = vld [vmem:[%s370 + $0x9a8] sm:$0xff]
      %v734 = vld [vmem:[%s370 + $0x9b0] sm:$0xff]
      %v735 = vld [vmem:[%s370 + $0x9b8] sm:$0xff]
      %v736 = vld [vmem:[%s370 + $0x9c0] sm:$0xff]
      %v737 = vld [vmem:[%s370 + $0x9c8] sm:$0xff]
      %v738 = vld [vmem:[%s370 + $0x9d0] sm:$0xff]
      %v739 = vld [vmem:[%s370 + $0x9d8] sm:$0xff]
      %v740 = vld [vmem:[%s370 + $0x9e0] sm:$0xff]
      %v741 = vld [vmem:[%s370 + $0x9e8] sm:$0xff]
      %v742 = vld [vmem:[%s370 + $0x9f0] sm:$0xff]
      %v743 = vld [vmem:[%s370 + $0x9f8] sm:$0xff]
      %v744 = vld [vmem:[%s370 + $0xa00] sm:$0xff]
      %v745 = vld [vmem:[%s370 + $0xa08] sm:$0xff]
      %v746 = vld [vmem:[%s370 + $0xa10] sm:$0xff]
      %v747 = vld [vmem:[%s370 + $0xa18] sm:$0xff]
      %v748 = vld [vmem:[%s370 + $0xa20] sm:$0xff]
      %v749 = vld [vmem:[%s370 + $0xa28] sm:$0xff]
      %v750 = vld [vmem:[%s370 + $0xa30] sm:$0xff]
      %v751 = vld [vmem:[%s370 + $0xa38] sm:$0xff]
      %v752 = vld [vmem:[%s370 + $0xa40] sm:$0xff]
      %v753 = vld [vmem:[%s370 + $0xa48] sm:$0xff]
      %v754 = vld [vmem:[%s370 + $0xa50] sm:$0xff]
      %v755 = vld [vmem:[%s370 + $0xa58] sm:$0xff]
      %v756 = vld [vmem:[%s370 + $0xa60] sm:$0xff]
      %v757 = vld [vmem:[%s370 + $0xa68] sm:$0xff]
      %v758 = vld [vmem:[%s370 + $0xa70] sm:$0xff]
      %v759 = vld [vmem:[%s370 + $0xa78] sm:$0xff]
      %v760 = vld [vmem:[%s370 + $0xa80] sm:$0xff]
      %v761 = vld [vmem:[%s370 + $0xa88] sm:$0xff]
      %v762 = vld [vmem:[%s370 + $0xa90] sm:$0xff]
      %v763 = vld [vmem:[%s370 + $0xa98] sm:$0xff]
      %v764 = vld [vmem:[%s370 + $0xaa0] sm:$0xff]
      %v765 = vld [vmem:[%s370 + $0xaa8] sm:$0xff]
      %v766 = vld [vmem:[%s370 + $0xab0] sm:$0xff]
      %v767 = vld [vmem:[%s370 + $0xab8] sm:$0xff]
      %v768 = vld [vmem:[%s370 + $0xac0] sm:$0xff]
      %v769 = vld [vmem:[%s370 + $0xac8] sm:$0xff]
      %v770 = vld [vmem:[%s370 + $0xad0] sm:$0xff]
      %v771 = vld [vmem:[%s370 + $0xad8] sm:$0xff]
      %v772 = vld [vmem:[%s370 + $0xae0] sm:$0xff]
      %v773 = vld [vmem:[%s370 + $0xae8] sm:$0xff]
      %v774 = vld [vmem:[%s370 + $0xaf0] sm:$0xff]
      %v775 = vld [vmem:[%s370 + $0xaf8] sm:$0xff]
      %v776 = vld [vmem:[%s370 + $0xb00] sm:$0xff]
      %v777 = vld [vmem:[%s370 + $0xb08] sm:$0xff]
      %v778 = vld [vmem:[%s370 + $0xb10] sm:$0xff]
      %v779 = vld [vmem:[%s370 + $0xb18] sm:$0xff]
      %v780 = vld [vmem:[%s370 + $0xb20] sm:$0xff]
      %v781 = vld [vmem:[%s370 + $0xb28] sm:$0xff]
      %v782 = vld [vmem:[%s370 + $0xb30] sm:$0xff]
      %v783 = vld [vmem:[%s370 + $0xb38] sm:$0xff]
      %v784 = vld [vmem:[%s370 + $0xb40] sm:$0xff]
      %v785 = vld [vmem:[%s370 + $0xb48] sm:$0xff]
      %v786 = vld [vmem:[%s370 + $0xb50] sm:$0xff]
      %v787 = vld [vmem:[%s370 + $0xb58] sm:$0xff]
      %v788 = vld [vmem:[%s370 + $0xb60] sm:$0xff]
      %v789 = vld [vmem:[%s370 + $0xb68] sm:$0xff]
      %v790 = vld [vmem:[%s370 + $0xb70] sm:$0xff]
      %v791 = vld [vmem:[%s370 + $0xb78] sm:$0xff]
      %v792 = vld [vmem:[%s370 + $0xb80] sm:$0xff]
      %v793 = vld [vmem:[%s370 + $0xb88] sm:$0xff]
      %v794 = vld [vmem:[%s370 + $0xb90] sm:$0xff]
      %v795 = vld [vmem:[%s370 + $0xb98] sm:$0xff]
      %v796 = vld [vmem:[%s370 + $0xba0] sm:$0xff]
      %v797 = vld [vmem:[%s370 + $0xba8] sm:$0xff]
      %v798 = vld [vmem:[%s370 + $0xbb0] sm:$0xff]
      %v799 = vld [vmem:[%s370 + $0xbb8] sm:$0xff]
      %v800 = vld [vmem:[%s370 + $0xbc0] sm:$0xff]
      %v801 = vld [vmem:[%s370 + $0xbc8] sm:$0xff]
      %v802 = vld [vmem:[%s370 + $0xbd0] sm:$0xff]
      %v803 = vld [vmem:[%s370 + $0xbd8] sm:$0xff]
      %v804 = vld [vmem:[%s370 + $0xbe0] sm:$0xff]
      %v805 = vld [vmem:[%s370 + $0xbe8] sm:$0xff]
      %v806 = vld [vmem:[%s370 + $0xbf0] sm:$0xff]
      %v807 = vld [vmem:[%s370 + $0xbf8] sm:$0xff]
      %v808 = vld [vmem:[%s370 + $0xc00] sm:$0xff]
      %v809 = vld [vmem:[%s370 + $0xc08] sm:$0xff]
      %v810 = vld [vmem:[%s370 + $0xc10] sm:$0xff]
      %v811 = vld [vmem:[%s370 + $0xc18] sm:$0xff]
      %v812 = vld [vmem:[%s370 + $0xc20] sm:$0xff]
      %v813 = vld [vmem:[%s370 + $0xc28] sm:$0xff]
      %v814 = vld [vmem:[%s370 + $0xc30] sm:$0xff]
      %v815 = vld [vmem:[%s370 + $0xc38] sm:$0xff]
      %v816 = vld [vmem:[%s370 + $0xc40] sm:$0xff]
      %v817 = vld [vmem:[%s370 + $0xc48] sm:$0xff]
      %v818 = vld [vmem:[%s370 + $0xc50] sm:$0xff]
      %v819 = vld [vmem:[%s370 + $0xc58] sm:$0xff]
      %v820 = vld [vmem:[%s370 + $0xc60] sm:$0xff]
      %v821 = vld [vmem:[%s370 + $0xc68] sm:$0xff]
      %v822 = vld [vmem:[%s370 + $0xc70] sm:$0xff]
      %v823 = vld [vmem:[%s370 + $0xc78] sm:$0xff]
      %v824 = vld [vmem:[%s370 + $0xc80] sm:$0xff]
      %v825 = vld [vmem:[%s370 + $0xc88] sm:$0xff]
      %v826 = vld [vmem:[%s370 + $0xc90] sm:$0xff]
      %v827 = vld [vmem:[%s370 + $0xc98] sm:$0xff]
      %v828 = vld [vmem:[%s370 + $0xca0] sm:$0xff]
      %v829 = vld [vmem:[%s370 + $0xca8] sm:$0xff]
      %v830 = vld [vmem:[%s370 + $0xcb0] sm:$0xff]
      %v831 = vld [vmem:[%s370 + $0xcb8] sm:$0xff]
      %v832 = vld [vmem:[%s370 + $0xcc0] sm:$0xff]
      %v833 = vld [vmem:[%s370 + $0xcc8] sm:$0xff]
      %v834 = vld [vmem:[%s370 + $0xcd0] sm:$0xff]
      %v835 = vld [vmem:[%s370 + $0xcd8] sm:$0xff]
      %v836 = vld [vmem:[%s370 + $0xce0] sm:$0xff]
      %v837 = vld [vmem:[%s370 + $0xce8] sm:$0xff]
      %v838 = vld [vmem:[%s370 + $0xcf0] sm:$0xff]
      %v839 = vld [vmem:[%s370 + $0xcf8] sm:$0xff]
      %v840 = vld [vmem:[%s370 + $0xd00] sm:$0xff]
      %v841 = vld [vmem:[%s370 + $0xd08] sm:$0xff]
      %v842 = vld [vmem:[%s370 + $0xd10] sm:$0xff]
      %v843 = vld [vmem:[%s370 + $0xd18] sm:$0xff]
      %v844 = vld [vmem:[%s370 + $0xd20] sm:$0xff]
      %v845 = vld [vmem:[%s370 + $0xd28] sm:$0xff]
      %v846 = vld [vmem:[%s370 + $0xd30] sm:$0xff]
      %v847 = vld [vmem:[%s370 + $0xd38] sm:$0xff]
      %v848 = vld [vmem:[%s370 + $0xd40] sm:$0xff]
      %v849 = vld [vmem:[%s370 + $0xd48] sm:$0xff]
      %v850 = vld [vmem:[%s370 + $0xd50] sm:$0xff]
      %v851 = vld [vmem:[%s370 + $0xd58] sm:$0xff]
      %v852 = vld [vmem:[%s370 + $0xd60] sm:$0xff]
      %v853 = vld [vmem:[%s370 + $0xd68] sm:$0xff]
      %v854 = vld [vmem:[%s370 + $0xd70] sm:$0xff]
      %v855 = vld [vmem:[%s370 + $0xd78] sm:$0xff]
      %v856 = vld [vmem:[%s370 + $0xd80] sm:$0xff]
      %v857 = vld [vmem:[%s370 + $0xd88] sm:$0xff]
      %v858 = vld [vmem:[%s370 + $0xd90] sm:$0xff]
      %v859 = vld [vmem:[%s370 + $0xd98] sm:$0xff]
      %v860 = vld [vmem:[%s370 + $0xda0] sm:$0xff]
      %v861 = vld [vmem:[%s370 + $0xda8] sm:$0xff]
      %v862 = vld [vmem:[%s370 + $0xdb0] sm:$0xff]
      %v863 = vld [vmem:[%s370 + $0xdb8] sm:$0xff]
      %v864 = vld [vmem:[%s370 + $0xdc0] sm:$0xff]
      %v865 = vld [vmem:[%s370 + $0xdc8] sm:$0xff]
      %v866 = vld [vmem:[%s370 + $0xdd0] sm:$0xff]
      %v867 = vld [vmem:[%s370 + $0xdd8] sm:$0xff]
      %v868 = vld [vmem:[%s370 + $0xde0] sm:$0xff]
      %v869 = vld [vmem:[%s370 + $0xde8] sm:$0xff]
      %v870 = vld [vmem:[%s370 + $0xdf0] sm:$0xff]
      %v871 = vld [vmem:[%s370 + $0xdf8] sm:$0xff]
      %v872 = vld [vmem:[%s370 + $0xe00] sm:$0xff]
      %v873 = vld [vmem:[%s370 + $0xe08] sm:$0xff]
      %v874 = vld [vmem:[%s370 + $0xe10] sm:$0xff]
      %v875 = vld [vmem:[%s370 + $0xe18] sm:$0xff]
      %v876 = vld [vmem:[%s370 + $0xe20] sm:$0xff]
      %v877 = vld [vmem:[%s370 + $0xe28] sm:$0xff]
      %v878 = vld [vmem:[%s370 + $0xe30] sm:$0xff]
      %v879 = vld [vmem:[%s370 + $0xe38] sm:$0xff]
      %v880 = vld [vmem:[%s370 + $0xe40] sm:$0xff]
      %v881 = vld [vmem:[%s370 + $0xe48] sm:$0xff]
      %v882 = vld [vmem:[%s370 + $0xe50] sm:$0xff]
      %v883 = vld [vmem:[%s370 + $0xe58] sm:$0xff]
      %v884 = vld [vmem:[%s370 + $0xe60] sm:$0xff]
      %v885 = vld [vmem:[%s370 + $0xe68] sm:$0xff]
      %v886 = vld [vmem:[%s370 + $0xe70] sm:$0xff]
      %v887 = vld [vmem:[%s370 + $0xe78] sm:$0xff]
      %v888 = vld [vmem:[%s370 + $0xe80] sm:$0xff]
      %v889 = vld [vmem:[%s370 + $0xe88] sm:$0xff]
      %v890 = vld [vmem:[%s370 + $0xe90] sm:$0xff]
      %v891 = vld [vmem:[%s370 + $0xe98] sm:$0xff]
      %v892 = vld [vmem:[%s370 + $0xea0] sm:$0xff]
      %v893 = vld [vmem:[%s370 + $0xea8] sm:$0xff]
      %v894 = vld [vmem:[%s370 + $0xeb0] sm:$0xff]
      %v895 = vld [vmem:[%s370 + $0xeb8] sm:$0xff]
      %v896 = vld [vmem:[%s370 + $0xec0] sm:$0xff]
      %v897 = vld [vmem:[%s370 + $0xec8] sm:$0xff]
      %v898 = vld [vmem:[%s370 + $0xed0] sm:$0xff]
      %v899 = vld [vmem:[%s370 + $0xed8] sm:$0xff]
      %v900 = vld [vmem:[%s370 + $0xee0] sm:$0xff]
      %v901 = vld [vmem:[%s370 + $0xee8] sm:$0xff]
      %v902 = vld [vmem:[%s370 + $0xef0] sm:$0xff]
      %v903 = vld [vmem:[%s370 + $0xef8] sm:$0xff]
      %v904 = vld [vmem:[%s370 + $0xf00] sm:$0xff]
      %v905 = vld [vmem:[%s370 + $0xf08] sm:$0xff]
      %v906 = vld [vmem:[%s370 + $0xf10] sm:$0xff]
      %v907 = vld [vmem:[%s370 + $0xf18] sm:$0xff]
      %v908 = vld [vmem:[%s370 + $0xf20] sm:$0xff]
      %v909 = vld [vmem:[%s370 + $0xf28] sm:$0xff]
      %v910 = vld [vmem:[%s370 + $0xf30] sm:$0xff]
      %v911 = vld [vmem:[%s370 + $0xf38] sm:$0xff]
      %v912 = vld [vmem:[%s370 + $0xf40] sm:$0xff]
      %v913 = vld [vmem:[%s370 + $0xf48] sm:$0xff]
      %v914 = vld [vmem:[%s370 + $0xf50] sm:$0xff]
      %v915 = vld [vmem:[%s370 + $0xf58] sm:$0xff]
      %v916 = vld [vmem:[%s370 + $0xf60] sm:$0xff]
      %v917 = vld [vmem:[%s370 + $0xf68] sm:$0xff]
      %v918 = vld [vmem:[%s370 + $0xf70] sm:$0xff]
      %v919 = vld [vmem:[%s370 + $0xf78] sm:$0xff]
      %v920 = vld [vmem:[%s370 + $0xf80] sm:$0xff]
      %v921 = vld [vmem:[%s370 + $0xf88] sm:$0xff]
      %v922 = vld [vmem:[%s370 + $0xf90] sm:$0xff]
      %v923 = vld [vmem:[%s370 + $0xf98] sm:$0xff]
      %v924 = vld [vmem:[%s370 + $0xfa0] sm:$0xff]
      %v925 = vld [vmem:[%s370 + $0xfa8] sm:$0xff]
      %v926 = vld [vmem:[%s370 + $0xfb0] sm:$0xff]
      %v927 = vld [vmem:[%s370 + $0xfb8] sm:$0xff]
      %v928 = vld [vmem:[%s370 + $0xfc0] sm:$0xff]
      %v929 = vld [vmem:[%s370 + $0xfc8] sm:$0xff]
      %v930 = vld [vmem:[%s370 + $0xfd0] sm:$0xff]
      %v931 = vld [vmem:[%s370 + $0xfd8] sm:$0xff]
      %v932 = vld [vmem:[%s370 + $0xfe0] sm:$0xff]
      %v933 = vld [vmem:[%s370 + $0xfe8] sm:$0xff]
      %v934 = vld [vmem:[%s370 + $0xff0] sm:$0xff]
      %v935 = vld [vmem:[%s370 + $0xff8] sm:$0xff]
      %v936 = vld [vmem:[%s370 + $0x1000] sm:$0xff]
      %v937 = vld [vmem:[%s370 + $0x1008] sm:$0xff]
      %v938 = vld [vmem:[%s370 + $0x1010] sm:$0xff]
      %v939 = vld [vmem:[%s370 + $0x1018] sm:$0xff]
      %v940 = vld [vmem:[%s370 + $0x1020] sm:$0xff]
      %v941 = vld [vmem:[%s370 + $0x1028] sm:$0xff]
      %v942 = vld [vmem:[%s370 + $0x1030] sm:$0xff]
      %v943 = vld [vmem:[%s370 + $0x1038] sm:$0xff]
      %v944 = vld [vmem:[%s370 + $0x1040] sm:$0xff]
      %v945 = vld [vmem:[%s370 + $0x1048] sm:$0xff]
      %v946 = vld [vmem:[%s370 + $0x1050] sm:$0xff]
      %v947 = vld [vmem:[%s370 + $0x1058] sm:$0xff]
      %v948 = vld [vmem:[%s370 + $0x1060] sm:$0xff]
      %v949 = vld [vmem:[%s370 + $0x1068] sm:$0xff]
      %v950 = vld [vmem:[%s370 + $0x1070] sm:$0xff]
      %v951 = vld [vmem:[%s370 + $0x1078] sm:$0xff]
      %v952 = vld [vmem:[%s370 + $0x1080] sm:$0xff]
      %v953 = vld [vmem:[%s370 + $0x1088] sm:$0xff]
      %v954 = vld [vmem:[%s370 + $0x1090] sm:$0xff]
      %v955 = vld [vmem:[%s370 + $0x1098] sm:$0xff]
      %v956 = vld [vmem:[%s370 + $0x10a0] sm:$0xff]
      %v957 = vld [vmem:[%s370 + $0x10a8] sm:$0xff]
      %v958 = vld [vmem:[%s370 + $0x10b0] sm:$0xff]
      %v959 = vld [vmem:[%s370 + $0x10b8] sm:$0xff]
      %v960 = vld [vmem:[%s370 + $0x10c0] sm:$0xff]
      %v961 = vld [vmem:[%s370 + $0x10c8] sm:$0xff]
      %v962 = vld [vmem:[%s370 + $0x10d0] sm:$0xff]
      %v963 = vld [vmem:[%s370 + $0x10d8] sm:$0xff]
      %v964 = vld [vmem:[%s370 + $0x10e0] sm:$0xff]
      %v965 = vld [vmem:[%s370 + $0x10e8] sm:$0xff]
      %v966 = vld [vmem:[%s370 + $0x10f0] sm:$0xff]
      %v967 = vld [vmem:[%s370 + $0x10f8] sm:$0xff]
      %v968 = vld [vmem:[%s370 + $0x1100] sm:$0xff]
      %v969 = vld [vmem:[%s370 + $0x1108] sm:$0xff]
      %v970 = vld [vmem:[%s370 + $0x1110] sm:$0xff]
      %v971 = vld [vmem:[%s370 + $0x1118] sm:$0xff]
      %v972 = vld [vmem:[%s370 + $0x1120] sm:$0xff]
      %v973 = vld [vmem:[%s370 + $0x1128] sm:$0xff]
      %v974 = vld [vmem:[%s370 + $0x1130] sm:$0xff]
      %v975 = vld [vmem:[%s370 + $0x1138] sm:$0xff]
      %v976 = vld [vmem:[%s370 + $0x1140] sm:$0xff]
      %v977 = vld [vmem:[%s370 + $0x1148] sm:$0xff]
      %v978 = vld [vmem:[%s370 + $0x1150] sm:$0xff]
      %v979 = vld [vmem:[%s370 + $0x1158] sm:$0xff]
      %v980 = vld [vmem:[%s370 + $0x1160] sm:$0xff]
      %v981 = vld [vmem:[%s370 + $0x1168] sm:$0xff]
      %v982 = vld [vmem:[%s370 + $0x1170] sm:$0xff]
      %v983 = vld [vmem:[%s370 + $0x1178] sm:$0xff]
      %v984 = vld [vmem:[%s370 + $0x1180] sm:$0xff]
      %v985 = vld [vmem:[%s370 + $0x1188] sm:$0xff]
      %v986 = vld [vmem:[%s370 + $0x1190] sm:$0xff]
      %v987 = vld [vmem:[%s370 + $0x1198] sm:$0xff]
      %v988 = vld [vmem:[%s370 + $0x11a0] sm:$0xff]
      %v989 = vld [vmem:[%s370 + $0x11a8] sm:$0xff]
      %v990 = vld [vmem:[%s370 + $0x11b0] sm:$0xff]
      %v991 = vld [vmem:[%s370 + $0x11b8] sm:$0xff]
      %v992 = vld [vmem:[%s370 + $0x11c0] sm:$0xff]
      %v993 = vld [vmem:[%s370 + $0x11c8] sm:$0xff]
      %v994 = vld [vmem:[%s370 + $0x11d0] sm:$0xff]
      %v995 = vld [vmem:[%s370 + $0x11d8] sm:$0xff]
      %v996 = vld [vmem:[%s370 + $0x11e0] sm:$0xff]
      %v997 = vld [vmem:[%s370 + $0x11e8] sm:$0xff]
      %v998 = vld [vmem:[%s370 + $0x11f0] sm:$0xff]
      %v999 = vld [vmem:[%s370 + $0x11f8] sm:$0xff]
      %v1000 = vld [vmem:[%s370 + $0x1200] sm:$0xff]
      %v1001 = vld [vmem:[%s370 + $0x1208] sm:$0xff]
      %v1002 = vld [vmem:[%s370 + $0x1210] sm:$0xff]
      %v1003 = vld [vmem:[%s370 + $0x1218] sm:$0xff]
      %v1004 = vld [vmem:[%s370 + $0x1220] sm:$0xff]
      %v1005 = vld [vmem:[%s370 + $0x1228] sm:$0xff]
      %v1006 = vld [vmem:[%s370 + $0x1230] sm:$0xff]
      %v1007 = vld [vmem:[%s370 + $0x1238] sm:$0xff]
      %v1008 = vld [vmem:[%s370 + $0x1240] sm:$0xff]
      %v1009 = vld [vmem:[%s370 + $0x1248] sm:$0xff]
      %v1010 = vld [vmem:[%s370 + $0x1250] sm:$0xff]
      %v1011 = vld [vmem:[%s370 + $0x1258] sm:$0xff]
      %v1012 = vld [vmem:[%s370 + $0x1260] sm:$0xff]
      %v1013 = vld [vmem:[%s370 + $0x1268] sm:$0xff]
      %v1014 = vld [vmem:[%s370 + $0x1270] sm:$0xff]
      %v1015 = vld [vmem:[%s370 + $0x1278] sm:$0xff]
      %v1016 = vld [vmem:[%s370 + $0x1280] sm:$0xff]
      %v1017 = vld [vmem:[%s370 + $0x1288] sm:$0xff]
      %v1018 = vld [vmem:[%s370 + $0x1290] sm:$0xff]
      %v1019 = vld [vmem:[%s370 + $0x1298] sm:$0xff]
      %v1020 = vld [vmem:[%s370 + $0x12a0] sm:$0xff]
      %v1021 = vld [vmem:[%s370 + $0x12a8] sm:$0xff]
      %v1022 = vld [vmem:[%s370 + $0x12b0] sm:$0xff]
      %v1023 = vld [vmem:[%s370 + $0x12b8] sm:$0xff]
      %v1024 = vld [vmem:[%s370 + $0x12c0] sm:$0xff]
      %v1025 = vld [vmem:[%s370 + $0x12c8] sm:$0xff]
      %v1026 = vld [vmem:[%s370 + $0x12d0] sm:$0xff]
      %v1027 = vld [vmem:[%s370 + $0x12d8] sm:$0xff]
      %v1028 = vld [vmem:[%s370 + $0x12e0] sm:$0xff]
      %v1029 = vld [vmem:[%s370 + $0x12e8] sm:$0xff]
      %v1030 = vld [vmem:[%s370 + $0x12f0] sm:$0xff]
      %v1031 = vld [vmem:[%s370 + $0x12f8] sm:$0xff]
      %v1032 = vld [vmem:[%s370 + $0x1300] sm:$0xff]
      %v1033 = vld [vmem:[%s370 + $0x1308] sm:$0xff]
      %v1034 = vld [vmem:[%s370 + $0x1310] sm:$0xff]
      %v1035 = vld [vmem:[%s370 + $0x1318] sm:$0xff]
      %v1036 = vld [vmem:[%s370 + $0x1320] sm:$0xff]
      %v1037 = vld [vmem:[%s370 + $0x1328] sm:$0xff]
      %v1038 = vld [vmem:[%s370 + $0x1330] sm:$0xff]
      %v1039 = vld [vmem:[%s370 + $0x1338] sm:$0xff]
      %v1040 = vld [vmem:[%s370 + $0x1340] sm:$0xff]
      %v1041 = vld [vmem:[%s370 + $0x1348] sm:$0xff]
      %v1042 = vld [vmem:[%s370 + $0x1350] sm:$0xff]
      %v1043 = vld [vmem:[%s370 + $0x1358] sm:$0xff]
      %v1044 = vld [vmem:[%s370 + $0x1360] sm:$0xff]
      %v1045 = vld [vmem:[%s370 + $0x1368] sm:$0xff]
      %v1046 = vld [vmem:[%s370 + $0x1370] sm:$0xff]
      %v1047 = vld [vmem:[%s370 + $0x1378] sm:$0xff]
      %v1048 = vld [vmem:[%s370 + $0x1380] sm:$0xff]
      %v1049 = vld [vmem:[%s370 + $0x1388] sm:$0xff]
      %v1050 = vld [vmem:[%s370 + $0x1390] sm:$0xff]
      %v1051 = vld [vmem:[%s370 + $0x1398] sm:$0xff]
      %v1052 = vld [vmem:[%s370 + $0x13a0] sm:$0xff]
      %v1053 = vld [vmem:[%s370 + $0x13a8] sm:$0xff]
      %v1054 = vld [vmem:[%s370 + $0x13b0] sm:$0xff]
      %v1055 = vld [vmem:[%s370 + $0x13b8] sm:$0xff]
      %v1056 = vld [vmem:[%s370 + $0x13c0] sm:$0xff]
      %v1057 = vld [vmem:[%s370 + $0x13c8] sm:$0xff]
      %v1058 = vld [vmem:[%s370 + $0x13d0] sm:$0xff]
      %v1059 = vld [vmem:[%s370 + $0x13d8] sm:$0xff]
      %v1060 = vld [vmem:[%s370 + $0x13e0] sm:$0xff]
      %v1061 = vld [vmem:[%s370 + $0x13e8] sm:$0xff]
      %v1062 = vld [vmem:[%s370 + $0x13f0] sm:$0xff]
      %v1063 = vld [vmem:[%s370 + $0x13f8] sm:$0xff]
      %v1064 = vld [vmem:[%s370 + $0x1400] sm:$0xff]
      %v1065 = vld [vmem:[%s370 + $0x1408] sm:$0xff]
      %v1066 = vld [vmem:[%s370 + $0x1410] sm:$0xff]
      %v1067 = vld [vmem:[%s370 + $0x1418] sm:$0xff]
      %v1068 = vld [vmem:[%s370 + $0x1420] sm:$0xff]
      %v1069 = vld [vmem:[%s370 + $0x1428] sm:$0xff]
      %v1070 = vld [vmem:[%s370 + $0x1430] sm:$0xff]
      %v1071 = vld [vmem:[%s370 + $0x1438] sm:$0xff]
      %v1072 = vld [vmem:[%s370 + $0x1440] sm:$0xff]
      %v1073 = vld [vmem:[%s370 + $0x1448] sm:$0xff]
      %v1074 = vld [vmem:[%s370 + $0x1450] sm:$0xff]
      %v1075 = vld [vmem:[%s370 + $0x1458] sm:$0xff]
      %v1076 = vld [vmem:[%s370 + $0x1460] sm:$0xff]
      %v1077 = vld [vmem:[%s370 + $0x1468] sm:$0xff]
      %v1078 = vld [vmem:[%s370 + $0x1470] sm:$0xff]
      %v1079 = vld [vmem:[%s370 + $0x1478] sm:$0xff]
      %v1080 = vld [vmem:[%s370 + $0x1480] sm:$0xff]
      %v1081 = vld [vmem:[%s370 + $0x1488] sm:$0xff]
      %v1082 = vld [vmem:[%s370 + $0x1490] sm:$0xff]
      %v1083 = vld [vmem:[%s370 + $0x1498] sm:$0xff]
      %v1084 = vld [vmem:[%s370 + $0x14a0] sm:$0xff]
      %v1085 = vld [vmem:[%s370 + $0x14a8] sm:$0xff]
      %v1086 = vld [vmem:[%s370 + $0x14b0] sm:$0xff]
      %v1087 = vld [vmem:[%s370 + $0x14b8] sm:$0xff]
      %v1088 = vld [vmem:[%s370 + $0x14c0] sm:$0xff]
      %v1089 = vld [vmem:[%s370 + $0x14c8] sm:$0xff]
      %v1090 = vld [vmem:[%s370 + $0x14d0] sm:$0xff]
      %v1091 = vld [vmem:[%s370 + $0x14d8] sm:$0xff]
      %v1092 = vld [vmem:[%s370 + $0x14e0] sm:$0xff]
      %v1093 = vld [vmem:[%s370 + $0x14e8] sm:$0xff]
      %v1094 = vld [vmem:[%s370 + $0x14f0] sm:$0xff]
      %v1095 = vld [vmem:[%s370 + $0x14f8] sm:$0xff]
      %v1096 = vld [vmem:[%s370 + $0x1500] sm:$0xff]
      %v1097 = vld [vmem:[%s370 + $0x1508] sm:$0xff]
      %v1098 = vld [vmem:[%s370 + $0x1510] sm:$0xff]
      %v1099 = vld [vmem:[%s370 + $0x1518] sm:$0xff]
      %v1100 = vld [vmem:[%s370 + $0x1520] sm:$0xff]
      %v1101 = vld [vmem:[%s370 + $0x1528] sm:$0xff]
      %v1102 = vld [vmem:[%s370 + $0x1530] sm:$0xff]
      %v1103 = vld [vmem:[%s370 + $0x1538] sm:$0xff]
      %v1104 = vld [vmem:[%s370 + $0x1540] sm:$0xff]
      %v1105 = vld [vmem:[%s370 + $0x1548] sm:$0xff]
      %v1106 = vld [vmem:[%s370 + $0x1550] sm:$0xff]
      %v1107 = vld [vmem:[%s370 + $0x1558] sm:$0xff]
      %v1108 = vld [vmem:[%s370 + $0x1560] sm:$0xff]
      %v1109 = vld [vmem:[%s370 + $0x1568] sm:$0xff]
      %v1110 = vld [vmem:[%s370 + $0x1570] sm:$0xff]
      %v1111 = vld [vmem:[%s370 + $0x1578] sm:$0xff]
      %v1112 = vld [vmem:[%s370 + $0x1580] sm:$0xff]
      %v1113 = vld [vmem:[%s370 + $0x1588] sm:$0xff]
      %v1114 = vld [vmem:[%s370 + $0x1590] sm:$0xff]
      %v1115 = vld [vmem:[%s370 + $0x1598] sm:$0xff]
      %v1116 = vld [vmem:[%s370 + $0x15a0] sm:$0xff]
      %v1117 = vld [vmem:[%s370 + $0x15a8] sm:$0xff]
      %v1118 = vld [vmem:[%s370 + $0x15b0] sm:$0xff]
      %v1119 = vld [vmem:[%s370 + $0x15b8] sm:$0xff]
      %v1120 = vld [vmem:[%s370 + $0x15c0] sm:$0xff]
      %v1121 = vld [vmem:[%s370 + $0x15c8] sm:$0xff]
      %v1122 = vld [vmem:[%s370 + $0x15d0] sm:$0xff]
      %v1123 = vld [vmem:[%s370 + $0x15d8] sm:$0xff]
      %v1124 = vld [vmem:[%s370 + $0x15e0] sm:$0xff]
      %v1125 = vld [vmem:[%s370 + $0x15e8] sm:$0xff]
      %v1126 = vld [vmem:[%s370 + $0x15f0] sm:$0xff]
      %v1127 = vld [vmem:[%s370 + $0x15f8] sm:$0xff]
      %v1128 = vld [vmem:[%s370 + $0x1600] sm:$0xff]
      %v1129 = vld [vmem:[%s370 + $0x1608] sm:$0xff]
      %v1130 = vld [vmem:[%s370 + $0x1610] sm:$0xff]
      %v1131 = vld [vmem:[%s370 + $0x1618] sm:$0xff]
      %v1132 = vld [vmem:[%s370 + $0x1620] sm:$0xff]
      %v1133 = vld [vmem:[%s370 + $0x1628] sm:$0xff]
      %v1134 = vld [vmem:[%s370 + $0x1630] sm:$0xff]
      %v1135 = vld [vmem:[%s370 + $0x1638] sm:$0xff]
      %v1136 = vld [vmem:[%s370 + $0x1640] sm:$0xff]
      %v1137 = vld [vmem:[%s370 + $0x1648] sm:$0xff]
      %v1138 = vld [vmem:[%s370 + $0x1650] sm:$0xff]
      %v1139 = vld [vmem:[%s370 + $0x1658] sm:$0xff]
      %v1140 = vld [vmem:[%s370 + $0x1660] sm:$0xff]
      %v1141 = vld [vmem:[%s370 + $0x1668] sm:$0xff]
      %v1142 = vld [vmem:[%s370 + $0x1670] sm:$0xff]
      %v1143 = vld [vmem:[%s370 + $0x1678] sm:$0xff]
      %v1144 = vld [vmem:[%s370 + $0x1680] sm:$0xff]
      %v1145 = vld [vmem:[%s370 + $0x1688] sm:$0xff]
      %v1146 = vld [vmem:[%s370 + $0x1690] sm:$0xff]
      %v1147 = vld [vmem:[%s370 + $0x1698] sm:$0xff]
      %v1148 = vld [vmem:[%s370 + $0x16a0] sm:$0xff]
      %v1149 = vld [vmem:[%s370 + $0x16a8] sm:$0xff]
      %v1150 = vld [vmem:[%s370 + $0x16b0] sm:$0xff]
      %v1151 = vld [vmem:[%s370 + $0x16b8] sm:$0xff]
      %v1152 = vld [vmem:[%s370 + $0x16c0] sm:$0xff]
      %v1153 = vld [vmem:[%s370 + $0x16c8] sm:$0xff]
      %v1154 = vld [vmem:[%s370 + $0x16d0] sm:$0xff]
      %v1155 = vld [vmem:[%s370 + $0x16d8] sm:$0xff]
      %v1156 = vld [vmem:[%s370 + $0x16e0] sm:$0xff]
      %v1157 = vld [vmem:[%s370 + $0x16e8] sm:$0xff]
      %v1158 = vld [vmem:[%s370 + $0x16f0] sm:$0xff]
      %v1159 = vld [vmem:[%s370 + $0x16f8] sm:$0xff]
      %v1160 = vld [vmem:[%s370 + $0x1700] sm:$0xff]
      %v1161 = vld [vmem:[%s370 + $0x1708] sm:$0xff]
      %v1162 = vld [vmem:[%s370 + $0x1710] sm:$0xff]
      %v1163 = vld [vmem:[%s370 + $0x1718] sm:$0xff]
      %v1164 = vld [vmem:[%s370 + $0x1720] sm:$0xff]
      %v1165 = vld [vmem:[%s370 + $0x1728] sm:$0xff]
      %v1166 = vld [vmem:[%s370 + $0x1730] sm:$0xff]
      %v1167 = vld [vmem:[%s370 + $0x1738] sm:$0xff]
      %v1168 = vld [vmem:[%s370 + $0x1740] sm:$0xff]
      %v1169 = vld [vmem:[%s370 + $0x1748] sm:$0xff]
      %v1170 = vld [vmem:[%s370 + $0x1750] sm:$0xff]
      %v1171 = vld [vmem:[%s370 + $0x1758] sm:$0xff]
      %v1172 = vld [vmem:[%s370 + $0x1760] sm:$0xff]
      %v1173 = vld [vmem:[%s370 + $0x1768] sm:$0xff]
      %v1174 = vld [vmem:[%s370 + $0x1770] sm:$0xff]
      %v1175 = vld [vmem:[%s370 + $0x1778] sm:$0xff]
      %v1176 = vld [vmem:[%s370 + $0x1780] sm:$0xff]
      %v1177 = vld [vmem:[%s370 + $0x1788] sm:$0xff]
      %v1178 = vld [vmem:[%s370 + $0x1790] sm:$0xff]
      %v1179 = vld [vmem:[%s370 + $0x1798] sm:$0xff]
      %v1180 = vld [vmem:[%s370 + $0x17a0] sm:$0xff]
      %v1181 = vld [vmem:[%s370 + $0x17a8] sm:$0xff]
      %v1182 = vld [vmem:[%s370 + $0x17b0] sm:$0xff]
      %v1183 = vld [vmem:[%s370 + $0x17b8] sm:$0xff]
      %v1184 = vld [vmem:[%s370 + $0x17c0] sm:$0xff]
      %v1185 = vld [vmem:[%s370 + $0x17c8] sm:$0xff]
      %v1186 = vld [vmem:[%s370 + $0x17d0] sm:$0xff]
      %v1187 = vld [vmem:[%s370 + $0x17d8] sm:$0xff]
      %v1188 = vld [vmem:[%s370 + $0x17e0] sm:$0xff]
      %v1189 = vld [vmem:[%s370 + $0x17e8] sm:$0xff]
      %v1190 = vld [vmem:[%s370 + $0x17f0] sm:$0xff]
      %v1191 = vld [vmem:[%s370 + $0x17f8] sm:$0xff]
      %v1192 = vld [vmem:[%s370 + $0x1800] sm:$0xff]
      %v1193 = vld [vmem:[%s370 + $0x1808] sm:$0xff]
      %v1194 = vld [vmem:[%s370 + $0x1810] sm:$0xff]
      %v1195 = vld [vmem:[%s370 + $0x1818] sm:$0xff]
      %v1196 = vld [vmem:[%s370 + $0x1820] sm:$0xff]
      %v1197 = vld [vmem:[%s370 + $0x1828] sm:$0xff]
      %v1198 = vld [vmem:[%s370 + $0x1830] sm:$0xff]
      %v1199 = vld [vmem:[%s370 + $0x1838] sm:$0xff]
      %v1200 = vld [vmem:[%s370 + $0x1840] sm:$0xff]
      %v1201 = vld [vmem:[%s370 + $0x1848] sm:$0xff]
      %v1202 = vld [vmem:[%s370 + $0x1850] sm:$0xff]
      %v1203 = vld [vmem:[%s370 + $0x1858] sm:$0xff]
      %v1204 = vld [vmem:[%s370 + $0x1860] sm:$0xff]
      %v1205 = vld [vmem:[%s370 + $0x1868] sm:$0xff]
      %v1206 = vld [vmem:[%s370 + $0x1870] sm:$0xff]
      %v1207 = vld [vmem:[%s370 + $0x1878] sm:$0xff]
      %v1208 = vld [vmem:[%s370 + $0x1880] sm:$0xff]
      %v1209 = vld [vmem:[%s370 + $0x1888] sm:$0xff]
      %v1210 = vld [vmem:[%s370 + $0x1890] sm:$0xff]
      %v1211 = vld [vmem:[%s370 + $0x1898] sm:$0xff]
      %v1212 = vld [vmem:[%s370 + $0x18a0] sm:$0xff]
      %v1213 = vld [vmem:[%s370 + $0x18a8] sm:$0xff]
      %v1214 = vld [vmem:[%s370 + $0x18b0] sm:$0xff]
      %v1215 = vld [vmem:[%s370 + $0x18b8] sm:$0xff]
      %v1216 = vld [vmem:[%s370 + $0x18c0] sm:$0xff]
      %v1217 = vld [vmem:[%s370 + $0x18c8] sm:$0xff]
      %v1218 = vld [vmem:[%s370 + $0x18d0] sm:$0xff]
      %v1219 = vld [vmem:[%s370 + $0x18d8] sm:$0xff]
      %v1220 = vld [vmem:[%s370 + $0x18e0] sm:$0xff]
      %v1221 = vld [vmem:[%s370 + $0x18e8] sm:$0xff]
      %v1222 = vld [vmem:[%s370 + $0x18f0] sm:$0xff]
      %v1223 = vld [vmem:[%s370 + $0x18f8] sm:$0xff]
      %v1224 = vld [vmem:[%s370 + $0x1900] sm:$0xff]
      %v1225 = vld [vmem:[%s370 + $0x1908] sm:$0xff]
      %v1226 = vld [vmem:[%s370 + $0x1910] sm:$0xff]
      %v1227 = vld [vmem:[%s370 + $0x1918] sm:$0xff]
      %v1228 = vld [vmem:[%s370 + $0x1920] sm:$0xff]
      %v1229 = vld [vmem:[%s370 + $0x1928] sm:$0xff]
      %v1230 = vld [vmem:[%s370 + $0x1930] sm:$0xff]
      %v1231 = vld [vmem:[%s370 + $0x1938] sm:$0xff]
      %v1232 = vld [vmem:[%s370 + $0x1940] sm:$0xff]
      %v1233 = vld [vmem:[%s370 + $0x1948] sm:$0xff]
      %v1234 = vld [vmem:[%s370 + $0x1950] sm:$0xff]
      %v1235 = vld [vmem:[%s370 + $0x1958] sm:$0xff]
      %v1236 = vld [vmem:[%s370 + $0x1960] sm:$0xff]
      %v1237 = vld [vmem:[%s370 + $0x1968] sm:$0xff]
      %v1238 = vld [vmem:[%s370 + $0x1970] sm:$0xff]
      %v1239 = vld [vmem:[%s370 + $0x1978] sm:$0xff]
      %v1240 = vld [vmem:[%s370 + $0x1980] sm:$0xff]
      %v1241 = vld [vmem:[%s370 + $0x1988] sm:$0xff]
      %v1242 = vld [vmem:[%s370 + $0x1990] sm:$0xff]
      %v1243 = vld [vmem:[%s370 + $0x1998] sm:$0xff]
      %v1244 = vld [vmem:[%s370 + $0x19a0] sm:$0xff]
      %v1245 = vld [vmem:[%s370 + $0x19a8] sm:$0xff]
      %v1246 = vld [vmem:[%s370 + $0x19b0] sm:$0xff]
      %v1247 = vld [vmem:[%s370 + $0x19b8] sm:$0xff]
      %v1248 = vld [vmem:[%s370 + $0x19c0] sm:$0xff]
      %v1249 = vld [vmem:[%s370 + $0x19c8] sm:$0xff]
      %v1250 = vld [vmem:[%s370 + $0x19d0] sm:$0xff]
      %v1251 = vld [vmem:[%s370 + $0x19d8] sm:$0xff]
      %v1252 = vld [vmem:[%s370 + $0x19e0] sm:$0xff]
      %v1253 = vld [vmem:[%s370 + $0x19e8] sm:$0xff]
      %v1254 = vld [vmem:[%s370 + $0x19f0] sm:$0xff]
      %v1255 = vld [vmem:[%s370 + $0x19f8] sm:$0xff]
      %v1256 = vld [vmem:[%s370 + $0x1a00] sm:$0xff]
      %v1257 = vld [vmem:[%s370 + $0x1a08] sm:$0xff]
      %v1258 = vld [vmem:[%s370 + $0x1a10] sm:$0xff]
      %v1259 = vld [vmem:[%s370 + $0x1a18] sm:$0xff]
      %v1260 = vld [vmem:[%s370 + $0x1a20] sm:$0xff]
      %v1261 = vld [vmem:[%s370 + $0x1a28] sm:$0xff]
      %v1262 = vld [vmem:[%s370 + $0x1a30] sm:$0xff]
      %v1263 = vld [vmem:[%s370 + $0x1a38] sm:$0xff]
      %v1264 = vld [vmem:[%s370 + $0x1a40] sm:$0xff]
      %v1265 = vld [vmem:[%s370 + $0x1a48] sm:$0xff]
      %v1266 = vld [vmem:[%s370 + $0x1a50] sm:$0xff]
      %v1267 = vld [vmem:[%s370 + $0x1a58] sm:$0xff]
      %v1268 = vld [vmem:[%s370 + $0x1a60] sm:$0xff]
      %v1269 = vld [vmem:[%s370 + $0x1a68] sm:$0xff]
      %v1270 = vld [vmem:[%s370 + $0x1a70] sm:$0xff]
      %v1271 = vld [vmem:[%s370 + $0x1a78] sm:$0xff]
      %v1272 = vld [vmem:[%s370 + $0x1a80] sm:$0xff]
      %v1273 = vld [vmem:[%s370 + $0x1a88] sm:$0xff]
      %v1274 = vld [vmem:[%s370 + $0x1a90] sm:$0xff]
      %v1275 = vld [vmem:[%s370 + $0x1a98] sm:$0xff]
      %v1276 = vld [vmem:[%s370 + $0x1aa0] sm:$0xff]
      %v1277 = vld [vmem:[%s370 + $0x1aa8] sm:$0xff]
      %v1278 = vld [vmem:[%s370 + $0x1ab0] sm:$0xff]
      %v1279 = vld [vmem:[%s370 + $0x1ab8] sm:$0xff]
      %v1280 = vld [vmem:[%s370 + $0x1ac0] sm:$0xff]
      %v1281 = vld [vmem:[%s370 + $0x1ac8] sm:$0xff]
      %v1282 = vld [vmem:[%s370 + $0x1ad0] sm:$0xff]
      %v1283 = vld [vmem:[%s370 + $0x1ad8] sm:$0xff]
      %v1284 = vld [vmem:[%s370 + $0x1ae0] sm:$0xff]
      %v1285 = vld [vmem:[%s370 + $0x1ae8] sm:$0xff]
      %v1286 = vld [vmem:[%s370 + $0x1af0] sm:$0xff]
      %v1287 = vld [vmem:[%s370 + $0x1af8] sm:$0xff]
      %v1288 = vld [vmem:[%s370 + $0x1b00] sm:$0xff]
      %v1289 = vld [vmem:[%s370 + $0x1b08] sm:$0xff]
      %v1290 = vld [vmem:[%s370 + $0x1b10] sm:$0xff]
      %v1291 = vld [vmem:[%s370 + $0x1b18] sm:$0xff]
      %v1292 = vld [vmem:[%s370 + $0x1b20] sm:$0xff]
      %v1293 = vld [vmem:[%s370 + $0x1b28] sm:$0xff]
      %v1294 = vld [vmem:[%s370 + $0x1b30] sm:$0xff]
      %v1295 = vld [vmem:[%s370 + $0x1b38] sm:$0xff]
      %v1296 = vld [vmem:[%s370 + $0x1b40] sm:$0xff]
      %v1297 = vld [vmem:[%s370 + $0x1b48] sm:$0xff]
      %v1298 = vld [vmem:[%s370 + $0x1b50] sm:$0xff]
      %v1299 = vld [vmem:[%s370 + $0x1b58] sm:$0xff]
      %v1300 = vld [vmem:[%s370 + $0x1b60] sm:$0xff]
      %v1301 = vld [vmem:[%s370 + $0x1b68] sm:$0xff]
      %v1302 = vld [vmem:[%s370 + $0x1b70] sm:$0xff]
      %v1303 = vld [vmem:[%s370 + $0x1b78] sm:$0xff]
      %v1304 = vld [vmem:[%s370 + $0x1b80] sm:$0xff]
      %v1305 = vld [vmem:[%s370 + $0x1b88] sm:$0xff]
      %v1306 = vld [vmem:[%s370 + $0x1b90] sm:$0xff]
      %v1307 = vld [vmem:[%s370 + $0x1b98] sm:$0xff]
      %v1308 = vld [vmem:[%s370 + $0x1ba0] sm:$0xff]
      %v1309 = vld [vmem:[%s370 + $0x1ba8] sm:$0xff]
      %v1310 = vld [vmem:[%s370 + $0x1bb0] sm:$0xff]
      %v1311 = vld [vmem:[%s370 + $0x1bb8] sm:$0xff]
      %v1312 = vld [vmem:[%s370 + $0x1bc0] sm:$0xff]
      %v1313 = vld [vmem:[%s370 + $0x1bc8] sm:$0xff]
      %v1314 = vld [vmem:[%s370 + $0x1bd0] sm:$0xff]
      %v1315 = vld [vmem:[%s370 + $0x1bd8] sm:$0xff]
      %v1316 = vld [vmem:[%s370 + $0x1be0] sm:$0xff]
      %v1317 = vld [vmem:[%s370 + $0x1be8] sm:$0xff]
      %v1318 = vld [vmem:[%s370 + $0x1bf0] sm:$0xff]
      %v1319 = vld [vmem:[%s370 + $0x1bf8] sm:$0xff]
      %v1320 = vld [vmem:[%s370 + $0x1c00] sm:$0xff]
      %v1321 = vld [vmem:[%s370 + $0x1c08] sm:$0xff]
      %v1322 = vld [vmem:[%s370 + $0x1c10] sm:$0xff]
      %v1323 = vld [vmem:[%s370 + $0x1c18] sm:$0xff]
      %v1324 = vld [vmem:[%s370 + $0x1c20] sm:$0xff]
      %v1325 = vld [vmem:[%s370 + $0x1c28] sm:$0xff]
      %v1326 = vld [vmem:[%s370 + $0x1c30] sm:$0xff]
      %v1327 = vld [vmem:[%s370 + $0x1c38] sm:$0xff]
      %v1328 = vld [vmem:[%s370 + $0x1c40] sm:$0xff]
      %v1329 = vld [vmem:[%s370 + $0x1c48] sm:$0xff]
      %v1330 = vld [vmem:[%s370 + $0x1c50] sm:$0xff]
      %v1331 = vld [vmem:[%s370 + $0x1c58] sm:$0xff]
      %v1332 = vld [vmem:[%s370 + $0x1c60] sm:$0xff]
      %v1333 = vld [vmem:[%s370 + $0x1c68] sm:$0xff]
      %v1334 = vld [vmem:[%s370 + $0x1c70] sm:$0xff]
      %v1335 = vld [vmem:[%s370 + $0x1c78] sm:$0xff]
      %v1336 = vld [vmem:[%s370 + $0x1c80] sm:$0xff]
      %v1337 = vld [vmem:[%s370 + $0x1c88] sm:$0xff]
      %v1338 = vld [vmem:[%s370 + $0x1c90] sm:$0xff]
      %v1339 = vld [vmem:[%s370 + $0x1c98] sm:$0xff]
      %v1340 = vld [vmem:[%s370 + $0x1ca0] sm:$0xff]
      %v1341 = vld [vmem:[%s370 + $0x1ca8] sm:$0xff]
      %v1342 = vld [vmem:[%s370 + $0x1cb0] sm:$0xff]
      %v1343 = vld [vmem:[%s370 + $0x1cb8] sm:$0xff]
      %v1344 = vld [vmem:[%s370 + $0x1cc0] sm:$0xff]
      %v1345 = vld [vmem:[%s370 + $0x1cc8] sm:$0xff]
      %v1346 = vld [vmem:[%s370 + $0x1cd0] sm:$0xff]
      %v1347 = vld [vmem:[%s370 + $0x1cd8] sm:$0xff]
      %v1348 = vld [vmem:[%s370 + $0x1ce0] sm:$0xff]
      %v1349 = vld [vmem:[%s370 + $0x1ce8] sm:$0xff]
      %v1350 = vld [vmem:[%s370 + $0x1cf0] sm:$0xff]
      %v1351 = vld [vmem:[%s370 + $0x1cf8] sm:$0xff]
      %v1352 = vld [vmem:[%s370 + $0x1d00] sm:$0xff]
      %v1353 = vld [vmem:[%s370 + $0x1d08] sm:$0xff]
      %v1354 = vld [vmem:[%s370 + $0x1d10] sm:$0xff]
      %v1355 = vld [vmem:[%s370 + $0x1d18] sm:$0xff]
      %v1356 = vld [vmem:[%s370 + $0x1d20] sm:$0xff]
      %v1357 = vld [vmem:[%s370 + $0x1d28] sm:$0xff]
      %v1358 = vld [vmem:[%s370 + $0x1d30] sm:$0xff]
      %v1359 = vld [vmem:[%s370 + $0x1d38] sm:$0xff]
      %v1360 = vld [vmem:[%s370 + $0x1d40] sm:$0xff]
      %v1361 = vld [vmem:[%s370 + $0x1d48] sm:$0xff]
      %v1362 = vld [vmem:[%s370 + $0x1d50] sm:$0xff]
      %v1363 = vld [vmem:[%s370 + $0x1d58] sm:$0xff]
      %v1364 = vld [vmem:[%s370 + $0x1d60] sm:$0xff]
      %v1365 = vld [vmem:[%s370 + $0x1d68] sm:$0xff]
      %v1366 = vld [vmem:[%s370 + $0x1d70] sm:$0xff]
      %v1367 = vld [vmem:[%s370 + $0x1d78] sm:$0xff]
      %v1368 = vld [vmem:[%s370 + $0x1d80] sm:$0xff]
      %v1369 = vld [vmem:[%s370 + $0x1d88] sm:$0xff]
      %v1370 = vld [vmem:[%s370 + $0x1d90] sm:$0xff]
      %v1371 = vld [vmem:[%s370 + $0x1d98] sm:$0xff]
      %v1372 = vld [vmem:[%s370 + $0x1da0] sm:$0xff]
      %v1373 = vld [vmem:[%s370 + $0x1da8] sm:$0xff]
      %v1374 = vld [vmem:[%s370 + $0x1db0] sm:$0xff]
      %v1375 = vld [vmem:[%s370 + $0x1db8] sm:$0xff]
      %v1376 = vld [vmem:[%s370 + $0x1dc0] sm:$0xff]
      %v1377 = vld [vmem:[%s370 + $0x1dc8] sm:$0xff]
      %v1378 = vld [vmem:[%s370 + $0x1dd0] sm:$0xff]
      %v1379 = vld [vmem:[%s370 + $0x1dd8] sm:$0xff]
      %v1380 = vld [vmem:[%s370 + $0x1de0] sm:$0xff]
      %v1381 = vld [vmem:[%s370 + $0x1de8] sm:$0xff]
      %v1382 = vld [vmem:[%s370 + $0x1df0] sm:$0xff]
      %v1383 = vld [vmem:[%s370 + $0x1df8] sm:$0xff]
      %v1384 = vld [vmem:[%s370 + $0x1e00] sm:$0xff]
      %v1385 = vld [vmem:[%s370 + $0x1e08] sm:$0xff]
      %v1386 = vld [vmem:[%s370 + $0x1e10] sm:$0xff]
      %v1387 = vld [vmem:[%s370 + $0x1e18] sm:$0xff]
      %v1388 = vld [vmem:[%s370 + $0x1e20] sm:$0xff]
      %v1389 = vld [vmem:[%s370 + $0x1e28] sm:$0xff]
      %v1390 = vld [vmem:[%s370 + $0x1e30] sm:$0xff]
      %v1391 = vld [vmem:[%s370 + $0x1e38] sm:$0xff]
      %v1392 = vld [vmem:[%s370 + $0x1e40] sm:$0xff]
      %v1393 = vld [vmem:[%s370 + $0x1e48] sm:$0xff]
      %v1394 = vld [vmem:[%s370 + $0x1e50] sm:$0xff]
      %v1395 = vld [vmem:[%s370 + $0x1e58] sm:$0xff]
      %v1396 = vld [vmem:[%s370 + $0x1e60] sm:$0xff]
      %v1397 = vld [vmem:[%s370 + $0x1e68] sm:$0xff]
      %v1398 = vld [vmem:[%s370 + $0x1e70] sm:$0xff]
      %v1399 = vld [vmem:[%s370 + $0x1e78] sm:$0xff]
      %v1400 = vld [vmem:[%s370 + $0x1e80] sm:$0xff]
      %v1401 = vld [vmem:[%s370 + $0x1e88] sm:$0xff]
      %v1402 = vld [vmem:[%s370 + $0x1e90] sm:$0xff]
      %v1403 = vld [vmem:[%s370 + $0x1e98] sm:$0xff]
      %v1404 = vld [vmem:[%s370 + $0x1ea0] sm:$0xff]
      %v1405 = vld [vmem:[%s370 + $0x1ea8] sm:$0xff]
      %v1406 = vld [vmem:[%s370 + $0x1eb0] sm:$0xff]
      %v1407 = vld [vmem:[%s370 + $0x1eb8] sm:$0xff]
      %v1408 = vld [vmem:[%s370 + $0x1ec0] sm:$0xff]
      %v1409 = vld [vmem:[%s370 + $0x1ec8] sm:$0xff]
      %v1410 = vld [vmem:[%s370 + $0x1ed0] sm:$0xff]
      %v1411 = vld [vmem:[%s370 + $0x1ed8] sm:$0xff]
      %v1412 = vld [vmem:[%s370 + $0x1ee0] sm:$0xff]
      %v1413 = vld [vmem:[%s370 + $0x1ee8] sm:$0xff]
      %v1414 = vld [vmem:[%s370 + $0x1ef0] sm:$0xff]
      %v1415 = vld [vmem:[%s370 + $0x1ef8] sm:$0xff]
      %v1416 = vld [vmem:[%s370 + $0x1f00] sm:$0xff]
      %v1417 = vld [vmem:[%s370 + $0x1f08] sm:$0xff]
      %v1418 = vld [vmem:[%s370 + $0x1f10] sm:$0xff]
      %v1419 = vld [vmem:[%s370 + $0x1f18] sm:$0xff]
      %v1420 = vld [vmem:[%s370 + $0x1f20] sm:$0xff]
      %v1421 = vld [vmem:[%s370 + $0x1f28] sm:$0xff]
      %v1422 = vld [vmem:[%s370 + $0x1f30] sm:$0xff]
      %v1423 = vld [vmem:[%s370 + $0x1f38] sm:$0xff]
      %v1424 = vld [vmem:[%s370 + $0x1f40] sm:$0xff]
      %v1425 = vld [vmem:[%s370 + $0x1f48] sm:$0xff]
      %v1426 = vld [vmem:[%s370 + $0x1f50] sm:$0xff]
      %v1427 = vld [vmem:[%s370 + $0x1f58] sm:$0xff]
      %v1428 = vld [vmem:[%s370 + $0x1f60] sm:$0xff]
      %v1429 = vld [vmem:[%s370 + $0x1f68] sm:$0xff]
      %v1430 = vld [vmem:[%s370 + $0x1f70] sm:$0xff]
      %v1431 = vld [vmem:[%s370 + $0x1f78] sm:$0xff]
      %v1432 = vld [vmem:[%s370 + $0x1f80] sm:$0xff]
      %v1433 = vld [vmem:[%s370 + $0x1f88] sm:$0xff]
      %v1434 = vld [vmem:[%s370 + $0x1f90] sm:$0xff]
      %v1435 = vld [vmem:[%s370 + $0x1f98] sm:$0xff]
      %v1436 = vld [vmem:[%s370 + $0x1fa0] sm:$0xff]
      %v1437 = vld [vmem:[%s370 + $0x1fa8] sm:$0xff]
      %v1438 = vld [vmem:[%s370 + $0x1fb0] sm:$0xff]
      %v1439 = vld [vmem:[%s370 + $0x1fb8] sm:$0xff]
      %v1440 = vld [vmem:[%s370 + $0x1fc0] sm:$0xff]
      %v1441 = vld [vmem:[%s370 + $0x1fc8] sm:$0xff]
      %v1442 = vld [vmem:[%s370 + $0x1fd0] sm:$0xff]
      %v1443 = vld [vmem:[%s370 + $0x1fd8] sm:$0xff]
      %v1444 = vld [vmem:[%s370 + $0x1fe0] sm:$0xff]
      %v1445 = vld [vmem:[%s370 + $0x1fe8] sm:$0xff]
      %v1446 = vld [vmem:[%s370 + $0x1ff0] sm:$0xff]
      %v1447 = vld [vmem:[%s370 + $0x1ff8] sm:$0xff]
      %v1448 = vld [vmem:[%s370 + $0x2000] sm:$0xff]
      %v1449 = vld [vmem:[%s370 + $0x2008] sm:$0xff]
      %v1450 = vld [vmem:[%s370 + $0x2010] sm:$0xff]
      %v1451 = vld [vmem:[%s370 + $0x2018] sm:$0xff]
      %v1452 = vld [vmem:[%s370 + $0x2020] sm:$0xff]
      %v1453 = vld [vmem:[%s370 + $0x2028] sm:$0xff]
      %v1454 = vld [vmem:[%s370 + $0x2030] sm:$0xff]
      %v1455 = vld [vmem:[%s370 + $0x2038] sm:$0xff]
      %v1456 = vld [vmem:[%s370 + $0x2040] sm:$0xff]
      %v1457 = vld [vmem:[%s370 + $0x2048] sm:$0xff]
      %v1458 = vld [vmem:[%s370 + $0x2050] sm:$0xff]
      %v1459 = vld [vmem:[%s370 + $0x2058] sm:$0xff]
      %v1460 = vld [vmem:[%s370 + $0x2060] sm:$0xff]
      %v1461 = vld [vmem:[%s370 + $0x2068] sm:$0xff]
      %v1462 = vld [vmem:[%s370 + $0x2070] sm:$0xff]
      %v1463 = vld [vmem:[%s370 + $0x2078] sm:$0xff]
      %v1464 = vld [vmem:[%s370 + $0x2080] sm:$0xff]
      %v1465 = vld [vmem:[%s370 + $0x2088] sm:$0xff]
      %v1466 = vld [vmem:[%s370 + $0x2090] sm:$0xff]
      %v1467 = vld [vmem:[%s370 + $0x2098] sm:$0xff]
      %v1468 = vld [vmem:[%s370 + $0x20a0] sm:$0xff]
      %v1469 = vld [vmem:[%s370 + $0x20a8] sm:$0xff]
      %v1470 = vld [vmem:[%s370 + $0x20b0] sm:$0xff]
      %v1471 = vld [vmem:[%s370 + $0x20b8] sm:$0xff]
      %v1472 = vld [vmem:[%s370 + $0x20c0] sm:$0xff]
      %v1473 = vld [vmem:[%s370 + $0x20c8] sm:$0xff]
      %v1474 = vld [vmem:[%s370 + $0x20d0] sm:$0xff]
      %v1475 = vld [vmem:[%s370 + $0x20d8] sm:$0xff]
      %v1476 = vld [vmem:[%s370 + $0x20e0] sm:$0xff]
      %v1477 = vld [vmem:[%s370 + $0x20e8] sm:$0xff]
      %v1478 = vld [vmem:[%s370 + $0x20f0] sm:$0xff]
      %v1479 = vld [vmem:[%s370 + $0x20f8] sm:$0xff]
      %v1480 = vld [vmem:[%s370 + $0x2100] sm:$0xff]
      %v1481 = vld [vmem:[%s370 + $0x2108] sm:$0xff]
      %v1482 = vld [vmem:[%s370 + $0x2110] sm:$0xff]
      %v1483 = vld [vmem:[%s370 + $0x2118] sm:$0xff]
      %v1484 = vld [vmem:[%s370 + $0x2120] sm:$0xff]
      %v1485 = vld [vmem:[%s370 + $0x2128] sm:$0xff]
      %v1486 = vld [vmem:[%s370 + $0x2130] sm:$0xff]
      %v1487 = vld [vmem:[%s370 + $0x2138] sm:$0xff]
      %v1488 = vld [vmem:[%s370 + $0x2140] sm:$0xff]
      %v1489 = vld [vmem:[%s370 + $0x2148] sm:$0xff]
      %v1490 = vld [vmem:[%s370 + $0x2150] sm:$0xff]
      %v1491 = vld [vmem:[%s370 + $0x2158] sm:$0xff]
      %v1492 = vld [vmem:[%s370 + $0x2160] sm:$0xff]
      %v1493 = vld [vmem:[%s370 + $0x2168] sm:$0xff]
      %v1494 = vld [vmem:[%s370 + $0x2170] sm:$0xff]
      %v1495 = vld [vmem:[%s370 + $0x2178] sm:$0xff]
      %v1496 = vld [vmem:[%s370 + $0x2180] sm:$0xff]
      %v1497 = vld [vmem:[%s370 + $0x2188] sm:$0xff]
      %v1498 = vld [vmem:[%s370 + $0x2190] sm:$0xff]
      %v1499 = vld [vmem:[%s370 + $0x2198] sm:$0xff]
      %v1500 = vld [vmem:[%s370 + $0x21a0] sm:$0xff]
      %v1501 = vld [vmem:[%s370 + $0x21a8] sm:$0xff]
      %v1502 = vld [vmem:[%s370 + $0x21b0] sm:$0xff]
      %v1503 = vld [vmem:[%s370 + $0x21b8] sm:$0xff]
      %v1504 = vld [vmem:[%s370 + $0x21c0] sm:$0xff]
      %v1505 = vld [vmem:[%s370 + $0x21c8] sm:$0xff]
      %v1506 = vld [vmem:[%s370 + $0x21d0] sm:$0xff]
      %v1507 = vld [vmem:[%s370 + $0x21d8] sm:$0xff]
      %v1508 = vld [vmem:[%s370 + $0x21e0] sm:$0xff]
      %v1509 = vld [vmem:[%s370 + $0x21e8] sm:$0xff]
      %v1510 = vld [vmem:[%s370 + $0x21f0] sm:$0xff]
      %v1511 = vld [vmem:[%s370 + $0x21f8] sm:$0xff]
      %v1512 = vld [vmem:[%s370 + $0x2200] sm:$0xff]
      %v1513 = vld [vmem:[%s370 + $0x2208] sm:$0xff]
      %v1514 = vld [vmem:[%s370 + $0x2210] sm:$0xff]
      %v1515 = vld [vmem:[%s370 + $0x2218] sm:$0xff]
      %v1516 = vld [vmem:[%s370 + $0x2220] sm:$0xff]
      %v1517 = vld [vmem:[%s370 + $0x2228] sm:$0xff]
      %v1518 = vld [vmem:[%s370 + $0x2230] sm:$0xff]
      %v1519 = vld [vmem:[%s370 + $0x2238] sm:$0xff]
      %v1520 = vld [vmem:[%s370 + $0x2240] sm:$0xff]
      %v1521 = vld [vmem:[%s370 + $0x2248] sm:$0xff]
      %v1522 = vld [vmem:[%s370 + $0x2250] sm:$0xff]
      %v1523 = vld [vmem:[%s370 + $0x2258] sm:$0xff]
      %v1524 = vld [vmem:[%s370 + $0x2260] sm:$0xff]
      %v1525 = vld [vmem:[%s370 + $0x2268] sm:$0xff]
      %v1526 = vld [vmem:[%s370 + $0x2270] sm:$0xff]
      %v1527 = vld [vmem:[%s370 + $0x2278] sm:$0xff]
      %v1528 = vld [vmem:[%s370 + $0x2280] sm:$0xff]
      %v1529 = vld [vmem:[%s370 + $0x2288] sm:$0xff]
      %v1530 = vld [vmem:[%s370 + $0x2290] sm:$0xff]
      %v1531 = vld [vmem:[%s370 + $0x2298] sm:$0xff]
      %v1532 = vld [vmem:[%s370 + $0x22a0] sm:$0xff]
      %v1533 = vld [vmem:[%s370 + $0x22a8] sm:$0xff]
      %v1534 = vld [vmem:[%s370 + $0x22b0] sm:$0xff]
      %v1535 = vld [vmem:[%s370 + $0x22b8] sm:$0xff]
      %v1536 = vld [vmem:[%s370 + $0x22c0] sm:$0xff]
      %v1537 = vld [vmem:[%s370 + $0x22c8] sm:$0xff]
      %v1538 = vld [vmem:[%s370 + $0x22d0] sm:$0xff]
      %v1539 = vld [vmem:[%s370 + $0x22d8] sm:$0xff]
      %v1540 = vld [vmem:[%s370 + $0x22e0] sm:$0xff]
      %v1541 = vld [vmem:[%s370 + $0x22e8] sm:$0xff]
      %v1542 = vld [vmem:[%s370 + $0x22f0] sm:$0xff]
      %v1543 = vld [vmem:[%s370 + $0x22f8] sm:$0xff]
      %v1544 = vld [vmem:[%s370 + $0x2300] sm:$0xff]
      %v1545 = vld [vmem:[%s370 + $0x2308] sm:$0xff]
      %v1546 = vld [vmem:[%s370 + $0x2310] sm:$0xff]
      %v1547 = vld [vmem:[%s370 + $0x2318] sm:$0xff]
      %v1548 = vld [vmem:[%s370 + $0x2320] sm:$0xff]
      %v1549 = vld [vmem:[%s370 + $0x2328] sm:$0xff]
      %v1550 = vld [vmem:[%s370 + $0x2330] sm:$0xff]
      %v1551 = vld [vmem:[%s370 + $0x2338] sm:$0xff]
      %v1552 = vld [vmem:[%s370 + $0x2340] sm:$0xff]
      %v1553 = vld [vmem:[%s370 + $0x2348] sm:$0xff]
      %v1554 = vld [vmem:[%s370 + $0x2350] sm:$0xff]
      %v1555 = vld [vmem:[%s370 + $0x2358] sm:$0xff]
      %v1556 = vld [vmem:[%s370 + $0x2360] sm:$0xff]
      %v1557 = vld [vmem:[%s370 + $0x2368] sm:$0xff]
      %v1558 = vld [vmem:[%s370 + $0x2370] sm:$0xff]
      %v1559 = vld [vmem:[%s370 + $0x2378] sm:$0xff]
      %v1560 = vld [vmem:[%s370 + $0x2380] sm:$0xff]
      %v1561 = vld [vmem:[%s370 + $0x2388] sm:$0xff]
      %v1562 = vld [vmem:[%s370 + $0x2390] sm:$0xff]
      %v1563 = vld [vmem:[%s370 + $0x2398] sm:$0xff]
      %v1564 = vld [vmem:[%s370 + $0x23a0] sm:$0xff]
      %v1565 = vld [vmem:[%s370 + $0x23a8] sm:$0xff]
      %v1566 = vld [vmem:[%s370 + $0x23b0] sm:$0xff]
      %v1567 = vld [vmem:[%s370 + $0x23b8] sm:$0xff]
      %v1568 = vld [vmem:[%s370 + $0x23c0] sm:$0xff]
      %v1569 = vld [vmem:[%s370 + $0x23c8] sm:$0xff]
      %v1570 = vld [vmem:[%s370 + $0x23d0] sm:$0xff]
      %v1571 = vld [vmem:[%s370 + $0x23d8] sm:$0xff]
      %v1572 = vld [vmem:[%s370 + $0x23e0] sm:$0xff]
      %v1573 = vld [vmem:[%s370 + $0x23e8] sm:$0xff]
      %v1574 = vld [vmem:[%s370 + $0x23f0] sm:$0xff]
      %v1575 = vld [vmem:[%s370 + $0x23f8] sm:$0xff]
      %v1576 = vld [vmem:[%s370 + $0x2400] sm:$0xff]
      %v1577 = vld [vmem:[%s370 + $0x2408] sm:$0xff]
      %v1578 = vld [vmem:[%s370 + $0x2410] sm:$0xff]
      %v1579 = vld [vmem:[%s370 + $0x2418] sm:$0xff]
      %v1580 = vld [vmem:[%s370 + $0x2420] sm:$0xff]
      %v1581 = vld [vmem:[%s370 + $0x2428] sm:$0xff]
      %v1582 = vld [vmem:[%s370 + $0x2430] sm:$0xff]
      %v1583 = vld [vmem:[%s370 + $0x2438] sm:$0xff]
      %v1584 = vld [vmem:[%s370 + $0x2440] sm:$0xff]
      %v1585 = vld [vmem:[%s370 + $0x2448] sm:$0xff]
      %v1586 = vld [vmem:[%s370 + $0x2450] sm:$0xff]
      %v1587 = vld [vmem:[%s370 + $0x2458] sm:$0xff]
      %v1588 = vld [vmem:[%s370 + $0x2460] sm:$0xff]
      %v1589 = vld [vmem:[%s370 + $0x2468] sm:$0xff]
      %v1590 = vld [vmem:[%s370 + $0x2470] sm:$0xff]
      %v1591 = vld [vmem:[%s370 + $0x2478] sm:$0xff]
      %v1592 = vld [vmem:[%s370 + $0x2480] sm:$0xff]
      %v1593 = vld [vmem:[%s370 + $0x2488] sm:$0xff]
      %v1594 = vld [vmem:[%s370 + $0x2490] sm:$0xff]
      %v1595 = vld [vmem:[%s370 + $0x2498] sm:$0xff]
      %v1596 = vld [vmem:[%s370 + $0x24a0] sm:$0xff]
      %v1597 = vld [vmem:[%s370 + $0x24a8] sm:$0xff]
      %v1598 = vld [vmem:[%s370 + $0x24b0] sm:$0xff]
      %v1599 = vld [vmem:[%s370 + $0x24b8] sm:$0xff]
      %v1600 = vld [vmem:[%s370 + $0x24c0] sm:$0xff]
      %v1601 = vld [vmem:[%s370 + $0x24c8] sm:$0xff]
      %v1602 = vld [vmem:[%s370 + $0x24d0] sm:$0xff]
      %v1603 = vld [vmem:[%s370 + $0x24d8] sm:$0xff]
      %v1604 = vld [vmem:[%s370 + $0x24e0] sm:$0xff]
      %v1605 = vld [vmem:[%s370 + $0x24e8] sm:$0xff]
      %v1606 = vld [vmem:[%s370 + $0x24f0] sm:$0xff]
      %v1607 = vld [vmem:[%s370 + $0x24f8] sm:$0xff]
      %v1608 = vld [vmem:[%s370 + $0x2500] sm:$0xff]
      %v1609 = vld [vmem:[%s370 + $0x2508] sm:$0xff]
      %v1610 = vld [vmem:[%s370 + $0x2510] sm:$0xff]
      %v1611 = vld [vmem:[%s370 + $0x2518] sm:$0xff]
      %v1612 = vld [vmem:[%s370 + $0x2520] sm:$0xff]
      %v1613 = vld [vmem:[%s370 + $0x2528] sm:$0xff]
      %v1614 = vld [vmem:[%s370 + $0x2530] sm:$0xff]
      %v1615 = vld [vmem:[%s370 + $0x2538] sm:$0xff]
      %v1616 = vld [vmem:[%s370 + $0x2540] sm:$0xff]
      %v1617 = vld [vmem:[%s370 + $0x2548] sm:$0xff]
      %v1618 = vld [vmem:[%s370 + $0x2550] sm:$0xff]
      %v1619 = vld [vmem:[%s370 + $0x2558] sm:$0xff]
      %v1620 = vld [vmem:[%s370 + $0x2560] sm:$0xff]
      %v1621 = vld [vmem:[%s370 + $0x2568] sm:$0xff]
      %v1622 = vld [vmem:[%s370 + $0x2570] sm:$0xff]
      %v1623 = vld [vmem:[%s370 + $0x2578] sm:$0xff]
      %v1624 = vld [vmem:[%s370 + $0x2580] sm:$0xff]
      %v1625 = vld [vmem:[%s370 + $0x2588] sm:$0xff]
      %v1626 = vld [vmem:[%s370 + $0x2590] sm:$0xff]
      %v1627 = vld [vmem:[%s370 + $0x2598] sm:$0xff]
      %v1628 = vld [vmem:[%s370 + $0x25a0] sm:$0xff]
      %v1629 = vld [vmem:[%s370 + $0x25a8] sm:$0xff]
      %v1630 = vld [vmem:[%s370 + $0x25b0] sm:$0xff]
      %v1631 = vld [vmem:[%s370 + $0x25b8] sm:$0xff]
      %v1632 = vld [vmem:[%s370 + $0x25c0] sm:$0xff]
      %v1633 = vld [vmem:[%s370 + $0x25c8] sm:$0xff]
      %v1634 = vld [vmem:[%s370 + $0x25d0] sm:$0xff]
      %v1635 = vld [vmem:[%s370 + $0x25d8] sm:$0xff]
      %v1636 = vld [vmem:[%s370 + $0x25e0] sm:$0xff]
      %v1637 = vld [vmem:[%s370 + $0x25e8] sm:$0xff]
      %v1638 = vld [vmem:[%s370 + $0x25f0] sm:$0xff]
      %v1639 = vld [vmem:[%s370 + $0x25f8] sm:$0xff]
      %v1640 = vld [vmem:[%s370 + $0x2600] sm:$0xff]
      %v1641 = vld [vmem:[%s370 + $0x2608] sm:$0xff]
      %v1642 = vld [vmem:[%s370 + $0x2610] sm:$0xff]
      %v1643 = vld [vmem:[%s370 + $0x2618] sm:$0xff]
      %v1644 = vld [vmem:[%s370 + $0x2620] sm:$0xff]
      %v1645 = vld [vmem:[%s370 + $0x2628] sm:$0xff]
      %v1646 = vld [vmem:[%s370 + $0x2630] sm:$0xff]
      %v1647 = vld [vmem:[%s370 + $0x2638] sm:$0xff]
      %v1648 = vld [vmem:[%s370 + $0x2640] sm:$0xff]
      %v1649 = vld [vmem:[%s370 + $0x2648] sm:$0xff]
      %v1650 = vld [vmem:[%s370 + $0x2650] sm:$0xff]
      %v1651 = vld [vmem:[%s370 + $0x2658] sm:$0xff]
      %v1652 = vld [vmem:[%s370 + $0x2660] sm:$0xff]
      %v1653 = vld [vmem:[%s370 + $0x2668] sm:$0xff]
      %v1654 = vld [vmem:[%s370 + $0x2670] sm:$0xff]
      %v1655 = vld [vmem:[%s370 + $0x2678] sm:$0xff]
      %v1656 = vld [vmem:[%s370 + $0x2680] sm:$0xff]
      %v1657 = vld [vmem:[%s370 + $0x2688] sm:$0xff]
      %v1658 = vld [vmem:[%s370 + $0x2690] sm:$0xff]
      %v1659 = vld [vmem:[%s370 + $0x2698] sm:$0xff]
      %v1660 = vld [vmem:[%s370 + $0x26a0] sm:$0xff]
      %v1661 = vld [vmem:[%s370 + $0x26a8] sm:$0xff]
      %v1662 = vld [vmem:[%s370 + $0x26b0] sm:$0xff]
      %v1663 = vld [vmem:[%s370 + $0x26b8] sm:$0xff]
      %v1664 = vld [vmem:[%s370 + $0x26c0] sm:$0xff]
      %v1665 = vld [vmem:[%s370 + $0x26c8] sm:$0xff]
      %v1666 = vld [vmem:[%s370 + $0x26d0] sm:$0xff]
      %v1667 = vld [vmem:[%s370 + $0x26d8] sm:$0xff]
      %v1668 = vld [vmem:[%s370 + $0x26e0] sm:$0xff]
      %v1669 = vld [vmem:[%s370 + $0x26e8] sm:$0xff]
      %v1670 = vld [vmem:[%s370 + $0x26f0] sm:$0xff]
      %v1671 = vld [vmem:[%s370 + $0x26f8] sm:$0xff]
      %v1672 = vld [vmem:[%s370 + $0x2700] sm:$0xff]
      %v1673 = vld [vmem:[%s370 + $0x2708] sm:$0xff]
      %v1674 = vld [vmem:[%s370 + $0x2710] sm:$0xff]
      %v1675 = vld [vmem:[%s370 + $0x2718] sm:$0xff]
      %v1676 = vld [vmem:[%s370 + $0x2720] sm:$0xff]
      %v1677 = vld [vmem:[%s370 + $0x2728] sm:$0xff]
      %v1678 = vld [vmem:[%s370 + $0x2730] sm:$0xff]
      %v1679 = vld [vmem:[%s370 + $0x2738] sm:$0xff]
      %v1680 = vld [vmem:[%s370 + $0x2740] sm:$0xff]
      %v1681 = vld [vmem:[%s370 + $0x2748] sm:$0xff]
      %v1682 = vld [vmem:[%s370 + $0x2750] sm:$0xff]
      %v1683 = vld [vmem:[%s370 + $0x2758] sm:$0xff]
      %v1684 = vld [vmem:[%s370 + $0x2760] sm:$0xff]
      %v1685 = vld [vmem:[%s370 + $0x2768] sm:$0xff]
      %v1686 = vld [vmem:[%s370 + $0x2770] sm:$0xff]
      %v1687 = vld [vmem:[%s370 + $0x2778] sm:$0xff]
      %v1688 = vld [vmem:[%s370 + $0x2780] sm:$0xff]
      %v1689 = vld [vmem:[%s370 + $0x2788] sm:$0xff]
      %v1690 = vld [vmem:[%s370 + $0x2790] sm:$0xff]
      %v1691 = vld [vmem:[%s370 + $0x2798] sm:$0xff]
      %v1692 = vld [vmem:[%s370 + $0x27a0] sm:$0xff]
      %v1693 = vld [vmem:[%s370 + $0x27a8] sm:$0xff]
      %v1694 = vld [vmem:[%s370 + $0x27b0] sm:$0xff]
      %v1695 = vld [vmem:[%s370 + $0x27b8] sm:$0xff]
      %v1696 = vld [vmem:[%s370 + $0x27c0] sm:$0xff]
      %v1697 = vld [vmem:[%s370 + $0x27c8] sm:$0xff]
      %v1698 = vld [vmem:[%s370 + $0x27d0] sm:$0xff]
      %v1699 = vld [vmem:[%s370 + $0x27d8] sm:$0xff]
      %v1700 = vld [vmem:[%s370 + $0x27e0] sm:$0xff]
      %v1701 = vld [vmem:[%s370 + $0x27e8] sm:$0xff]
      %v1702 = vld [vmem:[%s370 + $0x27f0] sm:$0xff]
      %v1703 = vld [vmem:[%s370 + $0x27f8] sm:$0xff]
      %v1704 = vld [vmem:[%s370 + $0x2800] sm:$0x33]
      %v1705 = vld [vmem:[%s370 + $0x2808] sm:$0x33]
      %v1706 = vld [vmem:[%s370 + $0x2810] sm:$0x33]
      %v1707 = vld [vmem:[%s370 + $0x2818] sm:$0x33]
      %v1708 = vld [vmem:[%s374] sm:$0xff]
      %v1710 = vperm.slane %v1708, 0
      %v1711 = vperm.slane %v1708, 1
      %v1712 = vperm.slane %v1708, 2
      %v1713 = vperm.slane %v1708, 3
      %v1714 = vperm.slane %v1708, 4
      %v1715 = vperm.slane %v1708, 5
      %v1716 = vperm.slane %v1708, 6
      %v1717 = vperm.slane %v1708, 7
      %v1748 = vunpack.c.l.b16 %v402
      %v1749 = vunpack.c.h.b16 %v402
      %v1750 = vunpack.c.l.b16 %v403
      %v1751 = vunpack.c.h.b16 %v403
      %v1752 = vunpack.c.l.b16 %v404
      %v1753 = vunpack.c.h.b16 %v404
      %v1754 = vunpack.c.l.b16 %v405
      %v1755 = vunpack.c.h.b16 %v405
      %v1756 = vunpack.c.l.b16 %v406
      %v1757 = vunpack.c.h.b16 %v406
      %v1758 = vunpack.c.l.b16 %v407
      %v1759 = vunpack.c.h.b16 %v407
      %v1760 = vunpack.c.l.b16 %v408
      %v1761 = vunpack.c.h.b16 %v408
      %v1762 = vunpack.c.l.b16 %v409
      %v1763 = vunpack.c.h.b16 %v409
      %v1764 = vunpack.c.l.b16 %v410
      %v1765 = vunpack.c.h.b16 %v410
      %v1766 = vunpack.c.l.b16 %v411
      %v1767 = vunpack.c.h.b16 %v411
      %v1768 = vunpack.c.l.b16 %v412
      %v1769 = vunpack.c.l.b16 %v413
      %v1770 = vunpack.c.h.b16 %v413
      %v1771 = vunpack.c.l.b16 %v414
      %v1772 = vunpack.c.h.b16 %v414
      %v1773 = vunpack.c.l.b16 %v415
      %v1774 = vunpack.c.h.b16 %v415
      %v1775 = vunpack.c.l.b16 %v416
      %v1776 = vunpack.c.h.b16 %v416
      %v1777 = vunpack.c.l.b16 %v417
      %v1778 = vunpack.c.h.b16 %v417
      %v1779 = vunpack.c.l.b16 %v418
      %v1780 = vunpack.c.h.b16 %v418
      %v1781 = vunpack.c.l.b16 %v419
      %v1782 = vunpack.c.h.b16 %v419
      %v1783 = vunpack.c.l.b16 %v420
      %v1784 = vunpack.c.h.b16 %v420
      %v1785 = vunpack.c.l.b16 %v421
      %v1786 = vunpack.c.h.b16 %v421
      %v1787 = vunpack.c.l.b16 %v422
      %v1788 = vunpack.c.h.b16 %v422
      %v1789 = vunpack.c.l.b16 %v423
      %v1790 = vpack.c.b16 %v1769, %v1748
      %v1791 = vpack.c.b16 %v1770, %v1749
      %v1792 = vpack.c.b16 %v1771, %v1750
      %v1793 = vpack.c.b16 %v1772, %v1751
      %v1794 = vpack.c.b16 %v1773, %v1752
      %v1795 = vpack.c.b16 %v1774, %v1753
      %v1796 = vpack.c.b16 %v1775, %v1754
      %v1797 = vpack.c.b16 %v1776, %v1755
      %v1798 = vpack.c.b16 %v1777, %v1756
      %v1799 = vpack.c.b16 %v1778, %v1757
      %v1800 = vpack.c.b16 %v1779, %v1758
      %v1801 = vpack.c.b16 %v1780, %v1759
      %v1802 = vpack.c.b16 %v1781, %v1760
      %v1803 = vpack.c.b16 %v1782, %v1761
      %v1804 = vpack.c.b16 %v1783, %v1762
      %v1805 = vpack.c.b16 %v1784, %v1763
      %v1806 = vpack.c.b16 %v1785, %v1764
      %v1807 = vpack.c.b16 %v1786, %v1765
      %v1808 = vpack.c.b16 %v1787, %v1766
      %v1809 = vpack.c.b16 %v1788, %v1767
      %v1810 = vpack.c.b16 %v1789, %v1768
      %v3115 = vunpack.c.l.b16 %v424
      %v3116 = vunpack.c.h.b16 %v424
      %v3117 = vunpack.c.l.b16 %v425
      %v3118 = vunpack.c.h.b16 %v425
      %v3119 = vunpack.c.l.b16 %v426
      %v3120 = vunpack.c.h.b16 %v426
      %v3121 = vunpack.c.l.b16 %v427
      %v3122 = vunpack.c.h.b16 %v427
      %v3123 = vunpack.c.l.b16 %v428
      %v3124 = vunpack.c.h.b16 %v428
      %v3125 = vunpack.c.l.b16 %v429
      %v3126 = vunpack.c.h.b16 %v429
      %v3127 = vunpack.c.l.b16 %v430
      %v3128 = vunpack.c.h.b16 %v430
      %v3129 = vunpack.c.l.b16 %v431
      %v3130 = vunpack.c.h.b16 %v431
      %v3131 = vunpack.c.l.b16 %v432
      %v3132 = vunpack.c.h.b16 %v432
      %v3133 = vunpack.c.l.b16 %v433
      %v3134 = vunpack.c.h.b16 %v433
      %v3135 = vunpack.c.l.b16 %v434
      %v3136 = vunpack.c.h.b16 %v434
      %v3137 = vunpack.c.l.b16 %v435
      %v3138 = vunpack.c.h.b16 %v435
      %v3139 = vunpack.c.l.b16 %v436
      %v3140 = vunpack.c.h.b16 %v436
      %v3141 = vunpack.c.l.b16 %v437
      %v3142 = vunpack.c.h.b16 %v437
      %v3143 = vunpack.c.l.b16 %v438
      %v3144 = vunpack.c.h.b16 %v438
      %v3145 = vunpack.c.l.b16 %v439
      %v3146 = vunpack.c.h.b16 %v439
      %v3147 = vunpack.c.l.b16 %v440
      %v3148 = vunpack.c.h.b16 %v440
      %v3149 = vunpack.c.l.b16 %v441
      %v3150 = vunpack.c.h.b16 %v441
      %v3151 = vunpack.c.l.b16 %v442
      %v3152 = vunpack.c.h.b16 %v442
      %v3153 = vunpack.c.l.b16 %v443
      %v3154 = vunpack.c.h.b16 %v443
      %v3155 = vunpack.c.l.b16 %v444
      %v3156 = vunpack.c.h.b16 %v444
      %v3157 = vunpack.c.l.b16 %v445
      %v3158 = vunpack.c.h.b16 %v445
      %v3159 = vunpack.c.l.b16 %v446
      %v3160 = vunpack.c.h.b16 %v446
      %v3161 = vunpack.c.l.b16 %v447
      %v3162 = vunpack.c.h.b16 %v447
      %v3163 = vunpack.c.l.b16 %v448
      %v3164 = vunpack.c.h.b16 %v448
      %v3165 = vunpack.c.l.b16 %v449
      %v3166 = vunpack.c.h.b16 %v449
      %v3167 = vunpack.c.l.b16 %v450
      %v3168 = vunpack.c.h.b16 %v450
      %v3169 = vunpack.c.l.b16 %v451
      %v3170 = vunpack.c.h.b16 %v451
      %v3171 = vunpack.c.l.b16 %v452
      %v3172 = vunpack.c.h.b16 %v452
      %v3173 = vunpack.c.l.b16 %v453
      %v3174 = vunpack.c.h.b16 %v453
      %v3175 = vunpack.c.l.b16 %v454
      %v3176 = vunpack.c.h.b16 %v454
      %v3177 = vunpack.c.l.b16 %v455
      %v3178 = vunpack.c.h.b16 %v455
      %v3179 = vunpack.c.l.b16 %v456
      %v3180 = vunpack.c.h.b16 %v456
      %v3181 = vunpack.c.l.b16 %v457
      %v3182 = vunpack.c.h.b16 %v457
      %v3183 = vunpack.c.l.b16 %v458
      %v3184 = vunpack.c.h.b16 %v458
      %v3185 = vunpack.c.l.b16 %v459
      %v3186 = vunpack.c.h.b16 %v459
      %v3187 = vunpack.c.l.b16 %v460
      %v3188 = vunpack.c.h.b16 %v460
      %v3189 = vunpack.c.l.b16 %v461
      %v3190 = vunpack.c.h.b16 %v461
      %v3191 = vunpack.c.l.b16 %v462
      %v3192 = vunpack.c.h.b16 %v462
      %v3193 = vunpack.c.l.b16 %v463
      %v3194 = vunpack.c.h.b16 %v463
      %v3195 = vunpack.c.l.b16 %v464
      %v3196 = vunpack.c.h.b16 %v464
      %v3197 = vunpack.c.l.b16 %v465
      %v3198 = vunpack.c.h.b16 %v465
      %v3199 = vunpack.c.l.b16 %v466
      %v3200 = vunpack.c.h.b16 %v466
      %v3201 = vunpack.c.l.b16 %v467
      %v3202 = vunpack.c.h.b16 %v467
      %v3203 = vunpack.c.l.b16 %v468
      %v3204 = vunpack.c.h.b16 %v468
      %v3205 = vunpack.c.l.b16 %v469
      %v3206 = vunpack.c.h.b16 %v469
      %v3207 = vunpack.c.l.b16 %v470
      %v3208 = vunpack.c.h.b16 %v470
      %v3209 = vunpack.c.l.b16 %v471
      %v3210 = vunpack.c.h.b16 %v471
      %v3211 = vunpack.c.l.b16 %v472
      %v3212 = vunpack.c.h.b16 %v472
      %v3213 = vunpack.c.l.b16 %v473
      %v3214 = vunpack.c.h.b16 %v473
      %v3215 = vunpack.c.l.b16 %v474
      %v3216 = vunpack.c.h.b16 %v474
      %v3217 = vunpack.c.l.b16 %v475
      %v3218 = vunpack.c.h.b16 %v475
      %v3219 = vunpack.c.l.b16 %v476
      %v3220 = vunpack.c.h.b16 %v476
      %v3221 = vunpack.c.l.b16 %v477
      %v3222 = vunpack.c.h.b16 %v477
      %v3223 = vunpack.c.l.b16 %v478
      %v3224 = vunpack.c.h.b16 %v478
      %v3225 = vunpack.c.l.b16 %v479
      %v3226 = vunpack.c.h.b16 %v479
      %v3227 = vunpack.c.l.b16 %v480
      %v3228 = vunpack.c.h.b16 %v480
      %v3229 = vunpack.c.l.b16 %v481
      %v3230 = vunpack.c.h.b16 %v481
      %v3231 = vunpack.c.l.b16 %v482
      %v3232 = vunpack.c.h.b16 %v482
      %v3233 = vunpack.c.l.b16 %v483
      %v3234 = vunpack.c.h.b16 %v483
      %v3235 = vunpack.c.l.b16 %v484
      %v3236 = vunpack.c.h.b16 %v484
      %v3237 = vunpack.c.l.b16 %v485
      %v3238 = vunpack.c.h.b16 %v485
      %v3239 = vunpack.c.l.b16 %v486
      %v3240 = vunpack.c.h.b16 %v486
      %v3241 = vunpack.c.l.b16 %v487
      %v3242 = vunpack.c.h.b16 %v487
      %v3243 = vunpack.c.l.b16 %v488
      %v3244 = vunpack.c.h.b16 %v488
      %v3245 = vunpack.c.l.b16 %v489
      %v3246 = vunpack.c.h.b16 %v489
      %v3247 = vunpack.c.l.b16 %v490
      %v3248 = vunpack.c.h.b16 %v490
      %v3249 = vunpack.c.l.b16 %v491
      %v3250 = vunpack.c.h.b16 %v491
      %v3251 = vunpack.c.l.b16 %v492
      %v3252 = vunpack.c.h.b16 %v492
      %v3253 = vunpack.c.l.b16 %v493
      %v3254 = vunpack.c.h.b16 %v493
      %v3255 = vunpack.c.l.b16 %v494
      %v3256 = vunpack.c.h.b16 %v494
      %v3257 = vunpack.c.l.b16 %v495
      %v3258 = vunpack.c.h.b16 %v495
      %v3259 = vunpack.c.l.b16 %v496
      %v3260 = vunpack.c.h.b16 %v496
      %v3261 = vunpack.c.l.b16 %v497
      %v3262 = vunpack.c.h.b16 %v497
      %v3263 = vunpack.c.l.b16 %v498
      %v3264 = vunpack.c.h.b16 %v498
      %v3265 = vunpack.c.l.b16 %v499
      %v3266 = vunpack.c.h.b16 %v499
      %v3267 = vunpack.c.l.b16 %v500
      %v3268 = vunpack.c.h.b16 %v500
      %v3269 = vunpack.c.l.b16 %v501
      %v3270 = vunpack.c.h.b16 %v501
      %v3271 = vunpack.c.l.b16 %v502
      %v3272 = vunpack.c.h.b16 %v502
      %v3273 = vunpack.c.l.b16 %v503
      %v3274 = vunpack.c.h.b16 %v503
      %v3275 = vunpack.c.l.b16 %v504
      %v3276 = vunpack.c.h.b16 %v504
      %v3277 = vunpack.c.l.b16 %v505
      %v3278 = vunpack.c.h.b16 %v505
      %v3279 = vunpack.c.l.b16 %v506
      %v3280 = vunpack.c.h.b16 %v506
      %v3281 = vunpack.c.l.b16 %v507
      %v3282 = vunpack.c.h.b16 %v507
      %v3283 = vunpack.c.l.b16 %v508
      %v3284 = vunpack.c.h.b16 %v508
      %v3285 = vunpack.c.l.b16 %v509
      %v3286 = vunpack.c.h.b16 %v509
      %v3287 = vunpack.c.l.b16 %v510
      %v3288 = vunpack.c.h.b16 %v510
      %v3289 = vunpack.c.l.b16 %v511
      %v3290 = vunpack.c.h.b16 %v511
      %v3291 = vunpack.c.l.b16 %v512
      %v3292 = vunpack.c.h.b16 %v512
      %v3293 = vunpack.c.l.b16 %v513
      %v3294 = vunpack.c.h.b16 %v513
      %v3295 = vunpack.c.l.b16 %v514
      %v3296 = vunpack.c.h.b16 %v514
      %v3297 = vunpack.c.l.b16 %v515
      %v3298 = vunpack.c.h.b16 %v515
      %v3299 = vunpack.c.l.b16 %v516
      %v3300 = vunpack.c.h.b16 %v516
      %v3301 = vunpack.c.l.b16 %v517
      %v3302 = vunpack.c.h.b16 %v517
      %v3303 = vunpack.c.l.b16 %v518
      %v3304 = vunpack.c.h.b16 %v518
      %v3305 = vunpack.c.l.b16 %v519
      %v3306 = vunpack.c.h.b16 %v519
      %v3307 = vunpack.c.l.b16 %v520
      %v3308 = vunpack.c.h.b16 %v520
      %v3309 = vunpack.c.l.b16 %v521
      %v3310 = vunpack.c.h.b16 %v521
      %v3311 = vunpack.c.l.b16 %v522
      %v3312 = vunpack.c.h.b16 %v522
      %v3313 = vunpack.c.l.b16 %v523
      %v3314 = vunpack.c.h.b16 %v523
      %v3315 = vunpack.c.l.b16 %v524
      %v3316 = vunpack.c.h.b16 %v524
      %v3317 = vunpack.c.l.b16 %v525
      %v3318 = vunpack.c.h.b16 %v525
      %v3319 = vunpack.c.l.b16 %v526
      %v3320 = vunpack.c.h.b16 %v526
      %v3321 = vunpack.c.l.b16 %v527
      %v3322 = vunpack.c.h.b16 %v527
      %v3323 = vunpack.c.l.b16 %v528
      %v3324 = vunpack.c.h.b16 %v528
      %v3325 = vunpack.c.l.b16 %v529
      %v3326 = vunpack.c.h.b16 %v529
      %v3327 = vunpack.c.l.b16 %v530
      %v3328 = vunpack.c.h.b16 %v530
      %v3329 = vunpack.c.l.b16 %v531
      %v3330 = vunpack.c.h.b16 %v531
      %v3331 = vunpack.c.l.b16 %v532
      %v3332 = vunpack.c.h.b16 %v532
      %v3333 = vunpack.c.l.b16 %v533
      %v3334 = vunpack.c.h.b16 %v533
      %v3335 = vunpack.c.l.b16 %v534
      %v3336 = vunpack.c.h.b16 %v534
      %v3337 = vunpack.c.l.b16 %v535
      %v3338 = vunpack.c.h.b16 %v535
      %v3339 = vunpack.c.l.b16 %v536
      %v3340 = vunpack.c.h.b16 %v536
      %v3341 = vunpack.c.l.b16 %v537
      %v3342 = vunpack.c.h.b16 %v537
      %v3343 = vunpack.c.l.b16 %v538
      %v3344 = vunpack.c.h.b16 %v538
      %v3345 = vunpack.c.l.b16 %v539
      %v3346 = vunpack.c.h.b16 %v539
      %v3347 = vunpack.c.l.b16 %v540
      %v3348 = vunpack.c.h.b16 %v540
      %v3349 = vunpack.c.l.b16 %v541
      %v3350 = vunpack.c.h.b16 %v541
      %v3351 = vunpack.c.l.b16 %v542
      %v3352 = vunpack.c.h.b16 %v542
      %v3353 = vunpack.c.l.b16 %v543
      %v3354 = vunpack.c.h.b16 %v543
      %v3355 = vunpack.c.l.b16 %v544
      %v3356 = vunpack.c.h.b16 %v544
      %v3357 = vunpack.c.l.b16 %v545
      %v3358 = vunpack.c.h.b16 %v545
      %v3359 = vunpack.c.l.b16 %v546
      %v3360 = vunpack.c.h.b16 %v546
      %v3361 = vunpack.c.l.b16 %v547
      %v3362 = vunpack.c.h.b16 %v547
      %v3363 = vunpack.c.l.b16 %v548
      %v3364 = vunpack.c.h.b16 %v548
      %v3365 = vunpack.c.l.b16 %v549
      %v3366 = vunpack.c.h.b16 %v549
      %v3367 = vunpack.c.l.b16 %v550
      %v3368 = vunpack.c.h.b16 %v550
      %v3369 = vunpack.c.l.b16 %v551
      %v3370 = vunpack.c.h.b16 %v551
      %v3371 = vunpack.c.l.b16 %v552
      %v3372 = vunpack.c.h.b16 %v552
      %v3373 = vunpack.c.l.b16 %v553
      %v3374 = vunpack.c.h.b16 %v553
      %v3375 = vunpack.c.l.b16 %v554
      %v3376 = vunpack.c.h.b16 %v554
      %v3377 = vunpack.c.l.b16 %v555
      %v3378 = vunpack.c.h.b16 %v555
      %v3379 = vunpack.c.l.b16 %v556
      %v3380 = vunpack.c.h.b16 %v556
      %v3381 = vunpack.c.l.b16 %v557
      %v3382 = vunpack.c.h.b16 %v557
      %v3383 = vunpack.c.l.b16 %v558
      %v3384 = vunpack.c.h.b16 %v558
      %v3385 = vunpack.c.l.b16 %v559
      %v3386 = vunpack.c.h.b16 %v559
      %v3387 = vunpack.c.l.b16 %v560
      %v3388 = vunpack.c.h.b16 %v560
      %v3389 = vunpack.c.l.b16 %v561
      %v3390 = vunpack.c.h.b16 %v561
      %v3391 = vunpack.c.l.b16 %v562
      %v3392 = vunpack.c.h.b16 %v562
      %v3393 = vunpack.c.l.b16 %v563
      %v3394 = vunpack.c.h.b16 %v563
      %v3395 = vunpack.c.l.b16 %v564
      %v3396 = vunpack.c.h.b16 %v564
      %v3397 = vunpack.c.l.b16 %v565
      %v3398 = vunpack.c.h.b16 %v565
      %v3399 = vunpack.c.l.b16 %v566
      %v3400 = vunpack.c.h.b16 %v566
      %v3401 = vunpack.c.l.b16 %v567
      %v3402 = vunpack.c.h.b16 %v567
      %v3403 = vunpack.c.l.b16 %v568
      %v3404 = vunpack.c.h.b16 %v568
      %v3405 = vunpack.c.l.b16 %v569
      %v3406 = vunpack.c.h.b16 %v569
      %v3407 = vunpack.c.l.b16 %v570
      %v3408 = vunpack.c.h.b16 %v570
      %v3409 = vunpack.c.l.b16 %v571
      %v3410 = vunpack.c.h.b16 %v571
      %v3411 = vunpack.c.l.b16 %v572
      %v3412 = vunpack.c.h.b16 %v572
      %v3413 = vunpack.c.l.b16 %v573
      %v3414 = vunpack.c.h.b16 %v573
      %v3415 = vunpack.c.l.b16 %v574
      %v3416 = vunpack.c.h.b16 %v574
      %v3417 = vunpack.c.l.b16 %v575
      %v3418 = vunpack.c.h.b16 %v575
      %v3419 = vunpack.c.l.b16 %v576
      %v3420 = vunpack.c.h.b16 %v576
      %v3421 = vunpack.c.l.b16 %v577
      %v3422 = vunpack.c.h.b16 %v577
      %v3423 = vunpack.c.l.b16 %v578
      %v3424 = vunpack.c.h.b16 %v578
      %v3425 = vunpack.c.l.b16 %v579
      %v3426 = vunpack.c.h.b16 %v579
      %v3427 = vunpack.c.l.b16 %v580
      %v3428 = vunpack.c.h.b16 %v580
      %v3429 = vunpack.c.l.b16 %v581
      %v3430 = vunpack.c.h.b16 %v581
      %v3431 = vunpack.c.l.b16 %v582
      %v3432 = vunpack.c.h.b16 %v582
      %v3433 = vunpack.c.l.b16 %v583
      %v3434 = vunpack.c.h.b16 %v583
      %v3435 = vunpack.c.l.b16 %v584
      %v3436 = vunpack.c.h.b16 %v584
      %v3437 = vunpack.c.l.b16 %v585
      %v3438 = vunpack.c.h.b16 %v585
      %v3439 = vunpack.c.l.b16 %v586
      %v3440 = vunpack.c.h.b16 %v586
      %v3441 = vunpack.c.l.b16 %v587
      %v3442 = vunpack.c.h.b16 %v587
      %v3443 = vunpack.c.l.b16 %v588
      %v3444 = vunpack.c.h.b16 %v588
      %v3445 = vunpack.c.l.b16 %v589
      %v3446 = vunpack.c.h.b16 %v589
      %v3447 = vunpack.c.l.b16 %v590
      %v3448 = vunpack.c.h.b16 %v590
      %v3449 = vunpack.c.l.b16 %v591
      %v3450 = vunpack.c.h.b16 %v591
      %v3451 = vunpack.c.l.b16 %v592
      %v3452 = vunpack.c.h.b16 %v592
      %v3453 = vunpack.c.l.b16 %v593
      %v3454 = vunpack.c.h.b16 %v593
      %v3455 = vunpack.c.l.b16 %v594
      %v3456 = vunpack.c.h.b16 %v594
      %v3457 = vunpack.c.l.b16 %v595
      %v3458 = vunpack.c.h.b16 %v595
      %v3459 = vunpack.c.l.b16 %v596
      %v3460 = vunpack.c.h.b16 %v596
      %v3461 = vunpack.c.l.b16 %v597
      %v3462 = vunpack.c.h.b16 %v597
      %v3463 = vunpack.c.l.b16 %v598
      %v3464 = vunpack.c.h.b16 %v598
      %v3465 = vunpack.c.l.b16 %v599
      %v3466 = vunpack.c.h.b16 %v599
      %v3467 = vunpack.c.l.b16 %v600
      %v3468 = vunpack.c.h.b16 %v600
      %v3469 = vunpack.c.l.b16 %v601
      %v3470 = vunpack.c.h.b16 %v601
      %v3471 = vunpack.c.l.b16 %v602
      %v3472 = vunpack.c.h.b16 %v602
      %v3473 = vunpack.c.l.b16 %v603
      %v3474 = vunpack.c.h.b16 %v603
      %v3475 = vunpack.c.l.b16 %v604
      %v3476 = vunpack.c.h.b16 %v604
      %v3477 = vunpack.c.l.b16 %v605
      %v3478 = vunpack.c.h.b16 %v605
      %v3479 = vunpack.c.l.b16 %v606
      %v3480 = vunpack.c.h.b16 %v606
      %v3481 = vunpack.c.l.b16 %v607
      %v3482 = vunpack.c.h.b16 %v607
      %v3483 = vunpack.c.l.b16 %v608
      %v3484 = vunpack.c.h.b16 %v608
      %v3485 = vunpack.c.l.b16 %v609
      %v3486 = vunpack.c.h.b16 %v609
      %v3487 = vunpack.c.l.b16 %v610
      %v3488 = vunpack.c.h.b16 %v610
      %v3489 = vunpack.c.l.b16 %v611
      %v3490 = vunpack.c.h.b16 %v611
      %v3491 = vunpack.c.l.b16 %v612
      %v3492 = vunpack.c.h.b16 %v612
      %v3493 = vunpack.c.l.b16 %v613
      %v3494 = vunpack.c.h.b16 %v613
      %v3495 = vunpack.c.l.b16 %v614
      %v3496 = vunpack.c.h.b16 %v614
      %v3497 = vunpack.c.l.b16 %v615
      %v3498 = vunpack.c.h.b16 %v615
      %v3499 = vunpack.c.l.b16 %v616
      %v3500 = vunpack.c.h.b16 %v616
      %v3501 = vunpack.c.l.b16 %v617
      %v3502 = vunpack.c.h.b16 %v617
      %v3503 = vunpack.c.l.b16 %v618
      %v3504 = vunpack.c.h.b16 %v618
      %v3505 = vunpack.c.l.b16 %v619
      %v3506 = vunpack.c.h.b16 %v619
      %v3507 = vunpack.c.l.b16 %v620
      %v3508 = vunpack.c.h.b16 %v620
      %v3509 = vunpack.c.l.b16 %v621
      %v3510 = vunpack.c.h.b16 %v621
      %v3511 = vunpack.c.l.b16 %v622
      %v3512 = vunpack.c.h.b16 %v622
      %v3513 = vunpack.c.l.b16 %v623
      %v3514 = vunpack.c.h.b16 %v623
      %v3515 = vunpack.c.l.b16 %v624
      %v3516 = vunpack.c.h.b16 %v624
      %v3517 = vunpack.c.l.b16 %v625
      %v3518 = vunpack.c.h.b16 %v625
      %v3519 = vunpack.c.l.b16 %v626
      %v3520 = vunpack.c.h.b16 %v626
      %v3521 = vunpack.c.l.b16 %v627
      %v3522 = vunpack.c.h.b16 %v627
      %v3523 = vunpack.c.l.b16 %v628
      %v3524 = vunpack.c.h.b16 %v628
      %v3525 = vunpack.c.l.b16 %v629
      %v3526 = vunpack.c.h.b16 %v629
      %v3527 = vunpack.c.l.b16 %v630
      %v3528 = vunpack.c.h.b16 %v630
      %v3529 = vunpack.c.l.b16 %v631
      %v3530 = vunpack.c.h.b16 %v631
      %v3531 = vunpack.c.l.b16 %v632
      %v3532 = vunpack.c.h.b16 %v632
      %v3533 = vunpack.c.l.b16 %v633
      %v3534 = vunpack.c.h.b16 %v633
      %v3535 = vunpack.c.l.b16 %v634
      %v3536 = vunpack.c.h.b16 %v634
      %v3537 = vunpack.c.l.b16 %v635
      %v3538 = vunpack.c.h.b16 %v635
      %v3539 = vunpack.c.l.b16 %v636
      %v3540 = vunpack.c.h.b16 %v636
      %v3541 = vunpack.c.l.b16 %v637
      %v3542 = vunpack.c.h.b16 %v637
      %v3543 = vunpack.c.l.b16 %v638
      %v3544 = vunpack.c.h.b16 %v638
      %v3545 = vunpack.c.l.b16 %v639
      %v3546 = vunpack.c.h.b16 %v639
      %v3547 = vunpack.c.l.b16 %v640
      %v3548 = vunpack.c.h.b16 %v640
      %v3549 = vunpack.c.l.b16 %v641
      %v3550 = vunpack.c.h.b16 %v641
      %v3551 = vunpack.c.l.b16 %v642
      %v3552 = vunpack.c.h.b16 %v642
      %v3553 = vunpack.c.l.b16 %v643
      %v3554 = vunpack.c.h.b16 %v643
      %v3555 = vunpack.c.l.b16 %v644
      %v3556 = vunpack.c.h.b16 %v644
      %v3557 = vunpack.c.l.b16 %v645
      %v3558 = vunpack.c.h.b16 %v645
      %v3559 = vunpack.c.l.b16 %v646
      %v3560 = vunpack.c.h.b16 %v646
      %v3561 = vunpack.c.l.b16 %v647
      %v3562 = vunpack.c.h.b16 %v647
      %v3563 = vunpack.c.l.b16 %v648
      %v3564 = vunpack.c.h.b16 %v648
      %v3565 = vunpack.c.l.b16 %v649
      %v3566 = vunpack.c.h.b16 %v649
      %v3567 = vunpack.c.l.b16 %v650
      %v3568 = vunpack.c.h.b16 %v650
      %v3569 = vunpack.c.l.b16 %v651
      %v3570 = vunpack.c.h.b16 %v651
      %v3571 = vunpack.c.l.b16 %v652
      %v3572 = vunpack.c.h.b16 %v652
      %v3573 = vunpack.c.l.b16 %v653
      %v3574 = vunpack.c.h.b16 %v653
      %v3575 = vunpack.c.l.b16 %v654
      %v3576 = vunpack.c.h.b16 %v654
      %v3577 = vunpack.c.l.b16 %v655
      %v3578 = vunpack.c.h.b16 %v655
      %v3579 = vunpack.c.l.b16 %v656
      %v3580 = vunpack.c.h.b16 %v656
      %v3581 = vunpack.c.l.b16 %v657
      %v3582 = vunpack.c.h.b16 %v657
      %v3583 = vunpack.c.l.b16 %v658
      %v3584 = vunpack.c.h.b16 %v658
      %v3585 = vunpack.c.l.b16 %v659
      %v3586 = vunpack.c.h.b16 %v659
      %v3587 = vunpack.c.l.b16 %v660
      %v3588 = vunpack.c.h.b16 %v660
      %v3589 = vunpack.c.l.b16 %v661
      %v3590 = vunpack.c.h.b16 %v661
      %v3591 = vunpack.c.l.b16 %v662
      %v3592 = vunpack.c.h.b16 %v662
      %v3593 = vunpack.c.l.b16 %v663
      %v3594 = vunpack.c.h.b16 %v663
      %v3595 = vunpack.c.l.b16 %v664
      %v3596 = vunpack.c.h.b16 %v664
      %v3597 = vunpack.c.l.b16 %v665
      %v3598 = vunpack.c.h.b16 %v665
      %v3599 = vunpack.c.l.b16 %v666
      %v3600 = vunpack.c.h.b16 %v666
      %v3601 = vunpack.c.l.b16 %v667
      %v3602 = vunpack.c.h.b16 %v667
      %v3603 = vunpack.c.l.b16 %v668
      %v3604 = vunpack.c.h.b16 %v668
      %v3605 = vunpack.c.l.b16 %v669
      %v3606 = vunpack.c.h.b16 %v669
      %v3607 = vunpack.c.l.b16 %v670
      %v3608 = vunpack.c.h.b16 %v670
      %v3609 = vunpack.c.l.b16 %v671
      %v3610 = vunpack.c.h.b16 %v671
      %v3611 = vunpack.c.l.b16 %v672
      %v3612 = vunpack.c.h.b16 %v672
      %v3613 = vunpack.c.l.b16 %v673
      %v3614 = vunpack.c.h.b16 %v673
      %v3615 = vunpack.c.l.b16 %v674
      %v3616 = vunpack.c.h.b16 %v674
      %v3617 = vunpack.c.l.b16 %v675
      %v3618 = vunpack.c.h.b16 %v675
      %v3619 = vunpack.c.l.b16 %v676
      %v3620 = vunpack.c.h.b16 %v676
      %v3621 = vunpack.c.l.b16 %v677
      %v3622 = vunpack.c.h.b16 %v677
      %v3623 = vunpack.c.l.b16 %v678
      %v3624 = vunpack.c.h.b16 %v678
      %v3625 = vunpack.c.l.b16 %v679
      %v3626 = vunpack.c.h.b16 %v679
      %v3627 = vunpack.c.l.b16 %v680
      %v3628 = vunpack.c.h.b16 %v680
      %v3629 = vunpack.c.l.b16 %v681
      %v3630 = vunpack.c.h.b16 %v681
      %v3631 = vunpack.c.l.b16 %v682
      %v3632 = vunpack.c.h.b16 %v682
      %v3633 = vunpack.c.l.b16 %v683
      %v3634 = vunpack.c.h.b16 %v683
      %v3635 = vunpack.c.l.b16 %v684
      %v3636 = vunpack.c.h.b16 %v684
      %v3637 = vunpack.c.l.b16 %v685
      %v3638 = vunpack.c.h.b16 %v685
      %v3639 = vunpack.c.l.b16 %v686
      %v3640 = vunpack.c.h.b16 %v686
      %v3641 = vunpack.c.l.b16 %v687
      %v3642 = vunpack.c.h.b16 %v687
      %v3643 = vunpack.c.l.b16 %v688
      %v3644 = vunpack.c.h.b16 %v688
      %v3645 = vunpack.c.l.b16 %v689
      %v3646 = vunpack.c.h.b16 %v689
      %v3647 = vunpack.c.l.b16 %v690
      %v3648 = vunpack.c.h.b16 %v690
      %v3649 = vunpack.c.l.b16 %v691
      %v3650 = vunpack.c.h.b16 %v691
      %v3651 = vunpack.c.l.b16 %v692
      %v3652 = vunpack.c.h.b16 %v692
      %v3653 = vunpack.c.l.b16 %v693
      %v3654 = vunpack.c.h.b16 %v693
      %v3655 = vunpack.c.l.b16 %v694
      %v3656 = vunpack.c.h.b16 %v694
      %v3657 = vunpack.c.l.b16 %v695
      %v3658 = vunpack.c.h.b16 %v695
      %v3659 = vunpack.c.l.b16 %v696
      %v3660 = vunpack.c.h.b16 %v696
      %v3661 = vunpack.c.l.b16 %v697
      %v3662 = vunpack.c.h.b16 %v697
      %v3663 = vunpack.c.l.b16 %v698
      %v3664 = vunpack.c.h.b16 %v698
      %v3665 = vunpack.c.l.b16 %v699
      %v3666 = vunpack.c.h.b16 %v699
      %v3667 = vunpack.c.l.b16 %v700
      %v3668 = vunpack.c.h.b16 %v700
      %v3669 = vunpack.c.l.b16 %v701
      %v3670 = vunpack.c.h.b16 %v701
      %v3671 = vunpack.c.l.b16 %v702
      %v3672 = vunpack.c.h.b16 %v702
      %v3673 = vunpack.c.l.b16 %v703
      %v3674 = vunpack.c.h.b16 %v703
      %v3675 = vunpack.c.l.b16 %v704
      %v3676 = vunpack.c.h.b16 %v704
      %v3677 = vunpack.c.l.b16 %v705
      %v3678 = vunpack.c.h.b16 %v705
      %v3679 = vunpack.c.l.b16 %v706
      %v3680 = vunpack.c.h.b16 %v706
      %v3681 = vunpack.c.l.b16 %v707
      %v3682 = vunpack.c.h.b16 %v707
      %v3683 = vunpack.c.l.b16 %v708
      %v3684 = vunpack.c.h.b16 %v708
      %v3685 = vunpack.c.l.b16 %v709
      %v3686 = vunpack.c.h.b16 %v709
      %v3687 = vunpack.c.l.b16 %v710
      %v3688 = vunpack.c.h.b16 %v710
      %v3689 = vunpack.c.l.b16 %v711
      %v3690 = vunpack.c.h.b16 %v711
      %v3691 = vunpack.c.l.b16 %v712
      %v3692 = vunpack.c.h.b16 %v712
      %v3693 = vunpack.c.l.b16 %v713
      %v3694 = vunpack.c.h.b16 %v713
      %v3695 = vunpack.c.l.b16 %v714
      %v3696 = vunpack.c.h.b16 %v714
      %v3697 = vunpack.c.l.b16 %v715
      %v3698 = vunpack.c.h.b16 %v715
      %v3699 = vunpack.c.l.b16 %v716
      %v3700 = vunpack.c.h.b16 %v716
      %v3701 = vunpack.c.l.b16 %v717
      %v3702 = vunpack.c.h.b16 %v717
      %v3703 = vunpack.c.l.b16 %v718
      %v3704 = vunpack.c.h.b16 %v718
      %v3705 = vunpack.c.l.b16 %v719
      %v3706 = vunpack.c.h.b16 %v719
      %v3707 = vunpack.c.l.b16 %v720
      %v3708 = vunpack.c.h.b16 %v720
      %v3709 = vunpack.c.l.b16 %v721
      %v3710 = vunpack.c.h.b16 %v721
      %v3711 = vunpack.c.l.b16 %v722
      %v3712 = vunpack.c.h.b16 %v722
      %v3713 = vunpack.c.l.b16 %v723
      %v3714 = vunpack.c.h.b16 %v723
      %v3715 = vunpack.c.l.b16 %v724
      %v3716 = vunpack.c.h.b16 %v724
      %v3717 = vunpack.c.l.b16 %v725
      %v3718 = vunpack.c.h.b16 %v725
      %v3719 = vunpack.c.l.b16 %v726
      %v3720 = vunpack.c.h.b16 %v726
      %v3721 = vunpack.c.l.b16 %v727
      %v3722 = vunpack.c.h.b16 %v727
      %v3723 = vunpack.c.l.b16 %v728
      %v3724 = vunpack.c.h.b16 %v728
      %v3725 = vunpack.c.l.b16 %v729
      %v3726 = vunpack.c.h.b16 %v729
      %v3727 = vunpack.c.l.b16 %v730
      %v3728 = vunpack.c.h.b16 %v730
      %v3729 = vunpack.c.l.b16 %v731
      %v3730 = vunpack.c.h.b16 %v731
      %v3731 = vunpack.c.l.b16 %v732
      %v3732 = vunpack.c.h.b16 %v732
      %v3733 = vunpack.c.l.b16 %v733
      %v3734 = vunpack.c.h.b16 %v733
      %v3735 = vunpack.c.l.b16 %v734
      %v3736 = vunpack.c.h.b16 %v734
      %v3737 = vunpack.c.l.b16 %v735
      %v3738 = vunpack.c.h.b16 %v735
      %v3739 = vunpack.c.l.b16 %v736
      %v3740 = vunpack.c.h.b16 %v736
      %v3741 = vunpack.c.l.b16 %v737
      %v3742 = vunpack.c.h.b16 %v737
      %v3743 = vunpack.c.l.b16 %v738
      %v3744 = vunpack.c.h.b16 %v738
      %v3745 = vunpack.c.l.b16 %v739
      %v3746 = vunpack.c.h.b16 %v739
      %v3747 = vunpack.c.l.b16 %v740
      %v3748 = vunpack.c.h.b16 %v740
      %v3749 = vunpack.c.l.b16 %v741
      %v3750 = vunpack.c.h.b16 %v741
      %v3751 = vunpack.c.l.b16 %v742
      %v3752 = vunpack.c.h.b16 %v742
      %v3753 = vunpack.c.l.b16 %v743
      %v3754 = vunpack.c.h.b16 %v743
      %v3755 = vunpack.c.l.b16 %v744
      %v3756 = vunpack.c.h.b16 %v744
      %v3757 = vunpack.c.l.b16 %v745
      %v3758 = vunpack.c.h.b16 %v745
      %v3759 = vunpack.c.l.b16 %v746
      %v3760 = vunpack.c.h.b16 %v746
      %v3761 = vunpack.c.l.b16 %v747
      %v3762 = vunpack.c.h.b16 %v747
      %v3763 = vunpack.c.l.b16 %v748
      %v3764 = vunpack.c.h.b16 %v748
      %v3765 = vunpack.c.l.b16 %v749
      %v3766 = vunpack.c.h.b16 %v749
      %v3767 = vunpack.c.l.b16 %v750
      %v3768 = vunpack.c.h.b16 %v750
      %v3769 = vunpack.c.l.b16 %v751
      %v3770 = vunpack.c.h.b16 %v751
      %v3771 = vunpack.c.l.b16 %v752
      %v3772 = vunpack.c.h.b16 %v752
      %v3773 = vunpack.c.l.b16 %v753
      %v3774 = vunpack.c.h.b16 %v753
      %v3775 = vunpack.c.l.b16 %v754
      %v3776 = vunpack.c.h.b16 %v754
      %v3777 = vunpack.c.l.b16 %v755
      %v3778 = vunpack.c.h.b16 %v755
      %v3779 = vunpack.c.l.b16 %v756
      %v3780 = vunpack.c.h.b16 %v756
      %v3781 = vunpack.c.l.b16 %v757
      %v3782 = vunpack.c.h.b16 %v757
      %v3783 = vunpack.c.l.b16 %v758
      %v3784 = vunpack.c.h.b16 %v758
      %v3785 = vunpack.c.l.b16 %v759
      %v3786 = vunpack.c.h.b16 %v759
      %v3787 = vunpack.c.l.b16 %v760
      %v3788 = vunpack.c.h.b16 %v760
      %v3789 = vunpack.c.l.b16 %v761
      %v3790 = vunpack.c.h.b16 %v761
      %v3791 = vunpack.c.l.b16 %v762
      %v3792 = vunpack.c.h.b16 %v762
      %v3793 = vunpack.c.l.b16 %v763
      %v3794 = vunpack.c.h.b16 %v763
      %v3795 = vunpack.c.l.b16 %v764
      %v3796 = vunpack.c.h.b16 %v764
      %v3797 = vunpack.c.l.b16 %v765
      %v3798 = vunpack.c.h.b16 %v765
      %v3799 = vunpack.c.l.b16 %v766
      %v3800 = vunpack.c.h.b16 %v766
      %v3801 = vunpack.c.l.b16 %v767
      %v3802 = vunpack.c.h.b16 %v767
      %v3803 = vunpack.c.l.b16 %v768
      %v3804 = vunpack.c.h.b16 %v768
      %v3805 = vunpack.c.l.b16 %v769
      %v3806 = vunpack.c.h.b16 %v769
      %v3807 = vunpack.c.l.b16 %v770
      %v3808 = vunpack.c.h.b16 %v770
      %v3809 = vunpack.c.l.b16 %v771
      %v3810 = vunpack.c.h.b16 %v771
      %v3811 = vunpack.c.l.b16 %v772
      %v3812 = vunpack.c.h.b16 %v772
      %v3813 = vunpack.c.l.b16 %v773
      %v3814 = vunpack.c.h.b16 %v773
      %v3815 = vunpack.c.l.b16 %v774
      %v3816 = vunpack.c.h.b16 %v774
      %v3817 = vunpack.c.l.b16 %v775
      %v3818 = vunpack.c.h.b16 %v775
      %v3819 = vunpack.c.l.b16 %v776
      %v3820 = vunpack.c.h.b16 %v776
      %v3821 = vunpack.c.l.b16 %v777
      %v3822 = vunpack.c.h.b16 %v777
      %v3823 = vunpack.c.l.b16 %v778
      %v3824 = vunpack.c.h.b16 %v778
      %v3825 = vunpack.c.l.b16 %v779
      %v3826 = vunpack.c.h.b16 %v779
      %v3827 = vunpack.c.l.b16 %v780
      %v3828 = vunpack.c.h.b16 %v780
      %v3829 = vunpack.c.l.b16 %v781
      %v3830 = vunpack.c.h.b16 %v781
      %v3831 = vunpack.c.l.b16 %v782
      %v3832 = vunpack.c.h.b16 %v782
      %v3833 = vunpack.c.l.b16 %v783
      %v3834 = vunpack.c.h.b16 %v783
      %v3835 = vunpack.c.l.b16 %v784
      %v3836 = vunpack.c.h.b16 %v784
      %v3837 = vunpack.c.l.b16 %v785
      %v3838 = vunpack.c.h.b16 %v785
      %v3839 = vunpack.c.l.b16 %v786
      %v3840 = vunpack.c.h.b16 %v786
      %v3841 = vunpack.c.l.b16 %v787
      %v3842 = vunpack.c.h.b16 %v787
      %v3843 = vunpack.c.l.b16 %v788
      %v3844 = vunpack.c.h.b16 %v788
      %v3845 = vunpack.c.l.b16 %v789
      %v3846 = vunpack.c.h.b16 %v789
      %v3847 = vunpack.c.l.b16 %v790
      %v3848 = vunpack.c.h.b16 %v790
      %v3849 = vunpack.c.l.b16 %v791
      %v3850 = vunpack.c.h.b16 %v791
      %v3851 = vunpack.c.l.b16 %v792
      %v3852 = vunpack.c.h.b16 %v792
      %v3853 = vunpack.c.l.b16 %v793
      %v3854 = vunpack.c.h.b16 %v793
      %v3855 = vunpack.c.l.b16 %v794
      %v3856 = vunpack.c.h.b16 %v794
      %v3857 = vunpack.c.l.b16 %v795
      %v3858 = vunpack.c.h.b16 %v795
      %v3859 = vunpack.c.l.b16 %v796
      %v3860 = vunpack.c.h.b16 %v796
      %v3861 = vunpack.c.l.b16 %v797
      %v3862 = vunpack.c.h.b16 %v797
      %v3863 = vunpack.c.l.b16 %v798
      %v3864 = vunpack.c.h.b16 %v798
      %v3865 = vunpack.c.l.b16 %v799
      %v3866 = vunpack.c.h.b16 %v799
      %v3867 = vunpack.c.l.b16 %v800
      %v3868 = vunpack.c.h.b16 %v800
      %v3869 = vunpack.c.l.b16 %v801
      %v3870 = vunpack.c.h.b16 %v801
      %v3871 = vunpack.c.l.b16 %v802
      %v3872 = vunpack.c.h.b16 %v802
      %v3873 = vunpack.c.l.b16 %v803
      %v3874 = vunpack.c.h.b16 %v803
      %v3875 = vunpack.c.l.b16 %v804
      %v3876 = vunpack.c.h.b16 %v804
      %v3877 = vunpack.c.l.b16 %v805
      %v3878 = vunpack.c.h.b16 %v805
      %v3879 = vunpack.c.l.b16 %v806
      %v3880 = vunpack.c.h.b16 %v806
      %v3881 = vunpack.c.l.b16 %v807
      %v3882 = vunpack.c.h.b16 %v807
      %v3883 = vunpack.c.l.b16 %v808
      %v3884 = vunpack.c.h.b16 %v808
      %v3885 = vunpack.c.l.b16 %v809
      %v3886 = vunpack.c.h.b16 %v809
      %v3887 = vunpack.c.l.b16 %v810
      %v3888 = vunpack.c.h.b16 %v810
      %v3889 = vunpack.c.l.b16 %v811
      %v3890 = vunpack.c.h.b16 %v811
      %v3891 = vunpack.c.l.b16 %v812
      %v3892 = vunpack.c.h.b16 %v812
      %v3893 = vunpack.c.l.b16 %v813
      %v3894 = vunpack.c.h.b16 %v813
      %v3895 = vunpack.c.l.b16 %v814
      %v3896 = vunpack.c.h.b16 %v814
      %v3897 = vunpack.c.l.b16 %v815
      %v3898 = vunpack.c.h.b16 %v815
      %v3899 = vunpack.c.l.b16 %v816
      %v3900 = vunpack.c.h.b16 %v816
      %v3901 = vunpack.c.l.b16 %v817
      %v3902 = vunpack.c.h.b16 %v817
      %v3903 = vunpack.c.l.b16 %v818
      %v3904 = vunpack.c.h.b16 %v818
      %v3905 = vunpack.c.l.b16 %v819
      %v3906 = vunpack.c.h.b16 %v819
      %v3907 = vunpack.c.l.b16 %v820
      %v3908 = vunpack.c.h.b16 %v820
      %v3909 = vunpack.c.l.b16 %v821
      %v3910 = vunpack.c.h.b16 %v821
      %v3911 = vunpack.c.l.b16 %v822
      %v3912 = vunpack.c.h.b16 %v822
      %v3913 = vunpack.c.l.b16 %v823
      %v3914 = vunpack.c.h.b16 %v823
      %v3915 = vunpack.c.l.b16 %v824
      %v3916 = vunpack.c.h.b16 %v824
      %v3917 = vunpack.c.l.b16 %v825
      %v3918 = vunpack.c.h.b16 %v825
      %v3919 = vunpack.c.l.b16 %v826
      %v3920 = vunpack.c.h.b16 %v826
      %v3921 = vunpack.c.l.b16 %v827
      %v3922 = vunpack.c.h.b16 %v827
      %v3923 = vunpack.c.l.b16 %v828
      %v3924 = vunpack.c.h.b16 %v828
      %v3925 = vunpack.c.l.b16 %v829
      %v3926 = vunpack.c.h.b16 %v829
      %v3927 = vunpack.c.l.b16 %v830
      %v3928 = vunpack.c.h.b16 %v830
      %v3929 = vunpack.c.l.b16 %v831
      %v3930 = vunpack.c.h.b16 %v831
      %v3931 = vunpack.c.l.b16 %v832
      %v3932 = vunpack.c.h.b16 %v832
      %v3933 = vunpack.c.l.b16 %v833
      %v3934 = vunpack.c.h.b16 %v833
      %v3935 = vunpack.c.l.b16 %v834
      %v3936 = vunpack.c.h.b16 %v834
      %v3937 = vunpack.c.l.b16 %v835
      %v3938 = vunpack.c.h.b16 %v835
      %v3939 = vunpack.c.l.b16 %v836
      %v3940 = vunpack.c.h.b16 %v836
      %v3941 = vunpack.c.l.b16 %v837
      %v3942 = vunpack.c.h.b16 %v837
      %v3943 = vunpack.c.l.b16 %v838
      %v3944 = vunpack.c.h.b16 %v838
      %v3945 = vunpack.c.l.b16 %v839
      %v3946 = vunpack.c.h.b16 %v839
      %v3947 = vunpack.c.l.b16 %v840
      %v3948 = vunpack.c.h.b16 %v840
      %v3949 = vunpack.c.l.b16 %v841
      %v3950 = vunpack.c.h.b16 %v841
      %v3951 = vunpack.c.l.b16 %v842
      %v3952 = vunpack.c.h.b16 %v842
      %v3953 = vunpack.c.l.b16 %v843
      %v3954 = vunpack.c.h.b16 %v843
      %v3955 = vunpack.c.l.b16 %v844
      %v3956 = vunpack.c.h.b16 %v844
      %v3957 = vunpack.c.l.b16 %v845
      %v3958 = vunpack.c.h.b16 %v845
      %v3959 = vunpack.c.l.b16 %v846
      %v3960 = vunpack.c.h.b16 %v846
      %v3961 = vunpack.c.l.b16 %v847
      %v3962 = vunpack.c.h.b16 %v847
      %v3963 = vunpack.c.l.b16 %v848
      %v3964 = vunpack.c.h.b16 %v848
      %v3965 = vunpack.c.l.b16 %v849
      %v3966 = vunpack.c.h.b16 %v849
      %v3967 = vunpack.c.l.b16 %v850
      %v3968 = vunpack.c.h.b16 %v850
      %v3969 = vunpack.c.l.b16 %v851
      %v3970 = vunpack.c.h.b16 %v851
      %v3971 = vunpack.c.l.b16 %v852
      %v3972 = vunpack.c.h.b16 %v852
      %v3973 = vunpack.c.l.b16 %v853
      %v3974 = vunpack.c.h.b16 %v853
      %v3975 = vunpack.c.l.b16 %v854
      %v3976 = vunpack.c.h.b16 %v854
      %v3977 = vunpack.c.l.b16 %v855
      %v3978 = vunpack.c.h.b16 %v855
      %v3979 = vunpack.c.l.b16 %v856
      %v3980 = vunpack.c.h.b16 %v856
      %v3981 = vunpack.c.l.b16 %v857
      %v3982 = vunpack.c.h.b16 %v857
      %v3983 = vunpack.c.l.b16 %v858
      %v3984 = vunpack.c.h.b16 %v858
      %v3985 = vunpack.c.l.b16 %v859
      %v3986 = vunpack.c.h.b16 %v859
      %v3987 = vunpack.c.l.b16 %v860
      %v3988 = vunpack.c.h.b16 %v860
      %v3989 = vunpack.c.l.b16 %v861
      %v3990 = vunpack.c.h.b16 %v861
      %v3991 = vunpack.c.l.b16 %v862
      %v3992 = vunpack.c.h.b16 %v862
      %v3993 = vunpack.c.l.b16 %v863
      %v3994 = vunpack.c.h.b16 %v863
      %v3995 = vunpack.c.l.b16 %v864
      %v3996 = vunpack.c.h.b16 %v864
      %v3997 = vunpack.c.l.b16 %v865
      %v3998 = vunpack.c.h.b16 %v865
      %v3999 = vunpack.c.l.b16 %v866
      %v4000 = vunpack.c.h.b16 %v866
      %v4001 = vunpack.c.l.b16 %v867
      %v4002 = vunpack.c.h.b16 %v867
      %v4003 = vunpack.c.l.b16 %v868
      %v4004 = vunpack.c.h.b16 %v868
      %v4005 = vunpack.c.l.b16 %v869
      %v4006 = vunpack.c.h.b16 %v869
      %v4007 = vunpack.c.l.b16 %v870
      %v4008 = vunpack.c.h.b16 %v870
      %v4009 = vunpack.c.l.b16 %v871
      %v4010 = vunpack.c.h.b16 %v871
      %v4011 = vunpack.c.l.b16 %v872
      %v4012 = vunpack.c.h.b16 %v872
      %v4013 = vunpack.c.l.b16 %v873
      %v4014 = vunpack.c.h.b16 %v873
      %v4015 = vunpack.c.l.b16 %v874
      %v4016 = vunpack.c.h.b16 %v874
      %v4017 = vunpack.c.l.b16 %v875
      %v4018 = vunpack.c.h.b16 %v875
      %v4019 = vunpack.c.l.b16 %v876
      %v4020 = vunpack.c.h.b16 %v876
      %v4021 = vunpack.c.l.b16 %v877
      %v4022 = vunpack.c.h.b16 %v877
      %v4023 = vunpack.c.l.b16 %v878
      %v4024 = vunpack.c.h.b16 %v878
      %v4025 = vunpack.c.l.b16 %v879
      %v4026 = vunpack.c.h.b16 %v879
      %v4027 = vunpack.c.l.b16 %v880
      %v4028 = vunpack.c.h.b16 %v880
      %v4029 = vunpack.c.l.b16 %v881
      %v4030 = vunpack.c.h.b16 %v881
      %v4031 = vunpack.c.l.b16 %v882
      %v4032 = vunpack.c.h.b16 %v882
      %v4033 = vunpack.c.l.b16 %v883
      %v4034 = vunpack.c.h.b16 %v883
      %v4035 = vunpack.c.l.b16 %v884
      %v4036 = vunpack.c.h.b16 %v884
      %v4037 = vunpack.c.l.b16 %v885
      %v4038 = vunpack.c.h.b16 %v885
      %v4039 = vunpack.c.l.b16 %v886
      %v4040 = vunpack.c.h.b16 %v886
      %v4041 = vunpack.c.l.b16 %v887
      %v4042 = vunpack.c.h.b16 %v887
      %v4043 = vunpack.c.l.b16 %v888
      %v4044 = vunpack.c.h.b16 %v888
      %v4045 = vunpack.c.l.b16 %v889
      %v4046 = vunpack.c.h.b16 %v889
      %v4047 = vunpack.c.l.b16 %v890
      %v4048 = vunpack.c.h.b16 %v890
      %v4049 = vunpack.c.l.b16 %v891
      %v4050 = vunpack.c.h.b16 %v891
      %v4051 = vunpack.c.l.b16 %v892
      %v4052 = vunpack.c.h.b16 %v892
      %v4053 = vunpack.c.l.b16 %v893
      %v4054 = vunpack.c.h.b16 %v893
      %v4055 = vunpack.c.l.b16 %v894
      %v4056 = vunpack.c.h.b16 %v894
      %v4057 = vunpack.c.l.b16 %v895
      %v4058 = vunpack.c.h.b16 %v895
      %v4059 = vunpack.c.l.b16 %v896
      %v4060 = vunpack.c.h.b16 %v896
      %v4061 = vunpack.c.l.b16 %v897
      %v4062 = vunpack.c.h.b16 %v897
      %v4063 = vunpack.c.l.b16 %v898
      %v4064 = vunpack.c.h.b16 %v898
      %v4065 = vunpack.c.l.b16 %v899
      %v4066 = vunpack.c.h.b16 %v899
      %v4067 = vunpack.c.l.b16 %v900
      %v4068 = vunpack.c.h.b16 %v900
      %v4069 = vunpack.c.l.b16 %v901
      %v4070 = vunpack.c.h.b16 %v901
      %v4071 = vunpack.c.l.b16 %v902
      %v4072 = vunpack.c.h.b16 %v902
      %v4073 = vunpack.c.l.b16 %v903
      %v4074 = vunpack.c.h.b16 %v903
      %v4075 = vunpack.c.l.b16 %v904
      %v4076 = vunpack.c.h.b16 %v904
      %v4077 = vunpack.c.l.b16 %v905
      %v4078 = vunpack.c.h.b16 %v905
      %v4079 = vunpack.c.l.b16 %v906
      %v4080 = vunpack.c.h.b16 %v906
      %v4081 = vunpack.c.l.b16 %v907
      %v4082 = vunpack.c.h.b16 %v907
      %v4083 = vunpack.c.l.b16 %v908
      %v4084 = vunpack.c.h.b16 %v908
      %v4085 = vunpack.c.l.b16 %v909
      %v4086 = vunpack.c.h.b16 %v909
      %v4087 = vunpack.c.l.b16 %v910
      %v4088 = vunpack.c.h.b16 %v910
      %v4089 = vunpack.c.l.b16 %v911
      %v4090 = vunpack.c.h.b16 %v911
      %v4091 = vunpack.c.l.b16 %v912
      %v4092 = vunpack.c.h.b16 %v912
      %v4093 = vunpack.c.l.b16 %v913
      %v4094 = vunpack.c.h.b16 %v913
      %v4095 = vunpack.c.l.b16 %v914
      %v4096 = vunpack.c.h.b16 %v914
      %v4097 = vunpack.c.l.b16 %v915
      %v4098 = vunpack.c.h.b16 %v915
      %v4099 = vunpack.c.l.b16 %v916
      %v4100 = vunpack.c.h.b16 %v916
      %v4101 = vunpack.c.l.b16 %v917
      %v4102 = vunpack.c.h.b16 %v917
      %v4103 = vunpack.c.l.b16 %v918
      %v4104 = vunpack.c.h.b16 %v918
      %v4105 = vunpack.c.l.b16 %v919
      %v4106 = vunpack.c.h.b16 %v919
      %v4107 = vunpack.c.l.b16 %v920
      %v4108 = vunpack.c.h.b16 %v920
      %v4109 = vunpack.c.l.b16 %v921
      %v4110 = vunpack.c.h.b16 %v921
      %v4111 = vunpack.c.l.b16 %v922
      %v4112 = vunpack.c.h.b16 %v922
      %v4113 = vunpack.c.l.b16 %v923
      %v4114 = vunpack.c.h.b16 %v923
      %v4115 = vunpack.c.l.b16 %v924
      %v4116 = vunpack.c.h.b16 %v924
      %v4117 = vunpack.c.l.b16 %v925
      %v4118 = vunpack.c.h.b16 %v925
      %v4119 = vunpack.c.l.b16 %v926
      %v4120 = vunpack.c.h.b16 %v926
      %v4121 = vunpack.c.l.b16 %v927
      %v4122 = vunpack.c.h.b16 %v927
      %v4123 = vunpack.c.l.b16 %v928
      %v4124 = vunpack.c.h.b16 %v928
      %v4125 = vunpack.c.l.b16 %v929
      %v4126 = vunpack.c.h.b16 %v929
      %v4127 = vunpack.c.l.b16 %v930
      %v4128 = vunpack.c.h.b16 %v930
      %v4129 = vunpack.c.l.b16 %v931
      %v4130 = vunpack.c.h.b16 %v931
      %v4131 = vunpack.c.l.b16 %v932
      %v4132 = vunpack.c.h.b16 %v932
      %v4133 = vunpack.c.l.b16 %v933
      %v4134 = vunpack.c.h.b16 %v933
      %v4135 = vunpack.c.l.b16 %v934
      %v4136 = vunpack.c.h.b16 %v934
      %v4137 = vunpack.c.l.b16 %v935
      %v4138 = vunpack.c.h.b16 %v935
      %v4139 = vunpack.c.l.b16 %v936
      %v4140 = vunpack.c.h.b16 %v936
      %v4141 = vunpack.c.l.b16 %v937
      %v4142 = vunpack.c.h.b16 %v937
      %v4143 = vunpack.c.l.b16 %v938
      %v4144 = vunpack.c.h.b16 %v938
      %v4145 = vunpack.c.l.b16 %v939
      %v4146 = vunpack.c.h.b16 %v939
      %v4147 = vunpack.c.l.b16 %v940
      %v4148 = vunpack.c.h.b16 %v940
      %v4149 = vunpack.c.l.b16 %v941
      %v4150 = vunpack.c.h.b16 %v941
      %v4151 = vunpack.c.l.b16 %v942
      %v4152 = vunpack.c.h.b16 %v942
      %v4153 = vunpack.c.l.b16 %v943
      %v4154 = vunpack.c.h.b16 %v943
      %v4155 = vunpack.c.l.b16 %v944
      %v4156 = vunpack.c.h.b16 %v944
      %v4157 = vunpack.c.l.b16 %v945
      %v4158 = vunpack.c.h.b16 %v945
      %v4159 = vunpack.c.l.b16 %v946
      %v4160 = vunpack.c.h.b16 %v946
      %v4161 = vunpack.c.l.b16 %v947
      %v4162 = vunpack.c.h.b16 %v947
      %v4163 = vunpack.c.l.b16 %v948
      %v4164 = vunpack.c.h.b16 %v948
      %v4165 = vunpack.c.l.b16 %v949
      %v4166 = vunpack.c.h.b16 %v949
      %v4167 = vunpack.c.l.b16 %v950
      %v4168 = vunpack.c.h.b16 %v950
      %v4169 = vunpack.c.l.b16 %v951
      %v4170 = vunpack.c.h.b16 %v951
      %v4171 = vunpack.c.l.b16 %v952
      %v4172 = vunpack.c.h.b16 %v952
      %v4173 = vunpack.c.l.b16 %v953
      %v4174 = vunpack.c.h.b16 %v953
      %v4175 = vunpack.c.l.b16 %v954
      %v4176 = vunpack.c.h.b16 %v954
      %v4177 = vunpack.c.l.b16 %v955
      %v4178 = vunpack.c.h.b16 %v955
      %v4179 = vunpack.c.l.b16 %v956
      %v4180 = vunpack.c.h.b16 %v956
      %v4181 = vunpack.c.l.b16 %v957
      %v4182 = vunpack.c.h.b16 %v957
      %v4183 = vunpack.c.l.b16 %v958
      %v4184 = vunpack.c.h.b16 %v958
      %v4185 = vunpack.c.l.b16 %v959
      %v4186 = vunpack.c.h.b16 %v959
      %v4187 = vunpack.c.l.b16 %v960
      %v4188 = vunpack.c.h.b16 %v960
      %v4189 = vunpack.c.l.b16 %v961
      %v4190 = vunpack.c.h.b16 %v961
      %v4191 = vunpack.c.l.b16 %v962
      %v4192 = vunpack.c.h.b16 %v962
      %v4193 = vunpack.c.l.b16 %v963
      %v4194 = vunpack.c.h.b16 %v963
      %v4195 = vunpack.c.l.b16 %v964
      %v4196 = vunpack.c.h.b16 %v964
      %v4197 = vunpack.c.l.b16 %v965
      %v4198 = vunpack.c.h.b16 %v965
      %v4199 = vunpack.c.l.b16 %v966
      %v4200 = vunpack.c.h.b16 %v966
      %v4201 = vunpack.c.l.b16 %v967
      %v4202 = vunpack.c.h.b16 %v967
      %v4203 = vunpack.c.l.b16 %v968
      %v4204 = vunpack.c.h.b16 %v968
      %v4205 = vunpack.c.l.b16 %v969
      %v4206 = vunpack.c.h.b16 %v969
      %v4207 = vunpack.c.l.b16 %v970
      %v4208 = vunpack.c.h.b16 %v970
      %v4209 = vunpack.c.l.b16 %v971
      %v4210 = vunpack.c.h.b16 %v971
      %v4211 = vunpack.c.l.b16 %v972
      %v4212 = vunpack.c.h.b16 %v972
      %v4213 = vunpack.c.l.b16 %v973
      %v4214 = vunpack.c.h.b16 %v973
      %v4215 = vunpack.c.l.b16 %v974
      %v4216 = vunpack.c.h.b16 %v974
      %v4217 = vunpack.c.l.b16 %v975
      %v4218 = vunpack.c.h.b16 %v975
      %v4219 = vunpack.c.l.b16 %v976
      %v4220 = vunpack.c.h.b16 %v976
      %v4221 = vunpack.c.l.b16 %v977
      %v4222 = vunpack.c.h.b16 %v977
      %v4223 = vunpack.c.l.b16 %v978
      %v4224 = vunpack.c.h.b16 %v978
      %v4225 = vunpack.c.l.b16 %v979
      %v4226 = vunpack.c.h.b16 %v979
      %v4227 = vunpack.c.l.b16 %v980
      %v4228 = vunpack.c.h.b16 %v980
      %v4229 = vunpack.c.l.b16 %v981
      %v4230 = vunpack.c.h.b16 %v981
      %v4231 = vunpack.c.l.b16 %v982
      %v4232 = vunpack.c.h.b16 %v982
      %v4233 = vunpack.c.l.b16 %v983
      %v4234 = vunpack.c.h.b16 %v983
      %v4235 = vunpack.c.l.b16 %v984
      %v4236 = vunpack.c.h.b16 %v984
      %v4237 = vunpack.c.l.b16 %v985
      %v4238 = vunpack.c.h.b16 %v985
      %v4239 = vunpack.c.l.b16 %v986
      %v4240 = vunpack.c.h.b16 %v986
      %v4241 = vunpack.c.l.b16 %v987
      %v4242 = vunpack.c.h.b16 %v987
      %v4243 = vunpack.c.l.b16 %v988
      %v4244 = vunpack.c.h.b16 %v988
      %v4245 = vunpack.c.l.b16 %v989
      %v4246 = vunpack.c.h.b16 %v989
      %v4247 = vunpack.c.l.b16 %v990
      %v4248 = vunpack.c.h.b16 %v990
      %v4249 = vunpack.c.l.b16 %v991
      %v4250 = vunpack.c.h.b16 %v991
      %v4251 = vunpack.c.l.b16 %v992
      %v4252 = vunpack.c.h.b16 %v992
      %v4253 = vunpack.c.l.b16 %v993
      %v4254 = vunpack.c.h.b16 %v993
      %v4255 = vunpack.c.l.b16 %v994
      %v4256 = vunpack.c.h.b16 %v994
      %v4257 = vunpack.c.l.b16 %v995
      %v4258 = vunpack.c.h.b16 %v995
      %v4259 = vunpack.c.l.b16 %v996
      %v4260 = vunpack.c.h.b16 %v996
      %v4261 = vunpack.c.l.b16 %v997
      %v4262 = vunpack.c.h.b16 %v997
      %v4263 = vunpack.c.l.b16 %v998
      %v4264 = vunpack.c.h.b16 %v998
      %v4265 = vunpack.c.l.b16 %v999
      %v4266 = vunpack.c.h.b16 %v999
      %v4267 = vunpack.c.l.b16 %v1000
      %v4268 = vunpack.c.h.b16 %v1000
      %v4269 = vunpack.c.l.b16 %v1001
      %v4270 = vunpack.c.h.b16 %v1001
      %v4271 = vunpack.c.l.b16 %v1002
      %v4272 = vunpack.c.h.b16 %v1002
      %v4273 = vunpack.c.l.b16 %v1003
      %v4274 = vunpack.c.h.b16 %v1003
      %v4275 = vunpack.c.l.b16 %v1004
      %v4276 = vunpack.c.h.b16 %v1004
      %v4277 = vunpack.c.l.b16 %v1005
      %v4278 = vunpack.c.h.b16 %v1005
      %v4279 = vunpack.c.l.b16 %v1006
      %v4280 = vunpack.c.h.b16 %v1006
      %v4281 = vunpack.c.l.b16 %v1007
      %v4282 = vunpack.c.h.b16 %v1007
      %v4283 = vunpack.c.l.b16 %v1008
      %v4284 = vunpack.c.h.b16 %v1008
      %v4285 = vunpack.c.l.b16 %v1009
      %v4286 = vunpack.c.h.b16 %v1009
      %v4287 = vunpack.c.l.b16 %v1010
      %v4288 = vunpack.c.h.b16 %v1010
      %v4289 = vunpack.c.l.b16 %v1011
      %v4290 = vunpack.c.h.b16 %v1011
      %v4291 = vunpack.c.l.b16 %v1012
      %v4292 = vunpack.c.h.b16 %v1012
      %v4293 = vunpack.c.l.b16 %v1013
      %v4294 = vunpack.c.h.b16 %v1013
      %v4295 = vunpack.c.l.b16 %v1014
      %v4296 = vunpack.c.h.b16 %v1014
      %v4297 = vunpack.c.l.b16 %v1015
      %v4298 = vunpack.c.h.b16 %v1015
      %v4299 = vunpack.c.l.b16 %v1016
      %v4300 = vunpack.c.h.b16 %v1016
      %v4301 = vunpack.c.l.b16 %v1017
      %v4302 = vunpack.c.h.b16 %v1017
      %v4303 = vunpack.c.l.b16 %v1018
      %v4304 = vunpack.c.h.b16 %v1018
      %v4305 = vunpack.c.l.b16 %v1019
      %v4306 = vunpack.c.h.b16 %v1019
      %v4307 = vunpack.c.l.b16 %v1020
      %v4308 = vunpack.c.h.b16 %v1020
      %v4309 = vunpack.c.l.b16 %v1021
      %v4310 = vunpack.c.h.b16 %v1021
      %v4311 = vunpack.c.l.b16 %v1022
      %v4312 = vunpack.c.h.b16 %v1022
      %v4313 = vunpack.c.l.b16 %v1023
      %v4314 = vunpack.c.h.b16 %v1023
      %v4315 = vunpack.c.l.b16 %v1024
      %v4316 = vunpack.c.h.b16 %v1024
      %v4317 = vunpack.c.l.b16 %v1025
      %v4318 = vunpack.c.h.b16 %v1025
      %v4319 = vunpack.c.l.b16 %v1026
      %v4320 = vunpack.c.h.b16 %v1026
      %v4321 = vunpack.c.l.b16 %v1027
      %v4322 = vunpack.c.h.b16 %v1027
      %v4323 = vunpack.c.l.b16 %v1028
      %v4324 = vunpack.c.h.b16 %v1028
      %v4325 = vunpack.c.l.b16 %v1029
      %v4326 = vunpack.c.h.b16 %v1029
      %v4327 = vunpack.c.l.b16 %v1030
      %v4328 = vunpack.c.h.b16 %v1030
      %v4329 = vunpack.c.l.b16 %v1031
      %v4330 = vunpack.c.h.b16 %v1031
      %v4331 = vunpack.c.l.b16 %v1032
      %v4332 = vunpack.c.h.b16 %v1032
      %v4333 = vunpack.c.l.b16 %v1033
      %v4334 = vunpack.c.h.b16 %v1033
      %v4335 = vunpack.c.l.b16 %v1034
      %v4336 = vunpack.c.h.b16 %v1034
      %v4337 = vunpack.c.l.b16 %v1035
      %v4338 = vunpack.c.h.b16 %v1035
      %v4339 = vunpack.c.l.b16 %v1036
      %v4340 = vunpack.c.h.b16 %v1036
      %v4341 = vunpack.c.l.b16 %v1037
      %v4342 = vunpack.c.h.b16 %v1037
      %v4343 = vunpack.c.l.b16 %v1038
      %v4344 = vunpack.c.h.b16 %v1038
      %v4345 = vunpack.c.l.b16 %v1039
      %v4346 = vunpack.c.h.b16 %v1039
      %v4347 = vunpack.c.l.b16 %v1040
      %v4348 = vunpack.c.h.b16 %v1040
      %v4349 = vunpack.c.l.b16 %v1041
      %v4350 = vunpack.c.h.b16 %v1041
      %v4351 = vunpack.c.l.b16 %v1042
      %v4352 = vunpack.c.h.b16 %v1042
      %v4353 = vunpack.c.l.b16 %v1043
      %v4354 = vunpack.c.h.b16 %v1043
      %v4355 = vunpack.c.l.b16 %v1044
      %v4356 = vunpack.c.h.b16 %v1044
      %v4357 = vunpack.c.l.b16 %v1045
      %v4358 = vunpack.c.h.b16 %v1045
      %v4359 = vunpack.c.l.b16 %v1046
      %v4360 = vunpack.c.h.b16 %v1046
      %v4361 = vunpack.c.l.b16 %v1047
      %v4362 = vunpack.c.h.b16 %v1047
      %v4363 = vunpack.c.l.b16 %v1048
      %v4364 = vunpack.c.h.b16 %v1048
      %v4365 = vunpack.c.l.b16 %v1049
      %v4366 = vunpack.c.h.b16 %v1049
      %v4367 = vunpack.c.l.b16 %v1050
      %v4368 = vunpack.c.h.b16 %v1050
      %v4369 = vunpack.c.l.b16 %v1051
      %v4370 = vunpack.c.h.b16 %v1051
      %v4371 = vunpack.c.l.b16 %v1052
      %v4372 = vunpack.c.h.b16 %v1052
      %v4373 = vunpack.c.l.b16 %v1053
      %v4374 = vunpack.c.h.b16 %v1053
      %v4375 = vunpack.c.l.b16 %v1054
      %v4376 = vunpack.c.h.b16 %v1054
      %v4377 = vunpack.c.l.b16 %v1055
      %v4378 = vunpack.c.h.b16 %v1055
      %v4379 = vunpack.c.l.b16 %v1056
      %v4380 = vunpack.c.h.b16 %v1056
      %v4381 = vunpack.c.l.b16 %v1057
      %v4382 = vunpack.c.h.b16 %v1057
      %v4383 = vunpack.c.l.b16 %v1058
      %v4384 = vunpack.c.h.b16 %v1058
      %v4385 = vunpack.c.l.b16 %v1059
      %v4386 = vunpack.c.h.b16 %v1059
      %v4387 = vunpack.c.l.b16 %v1060
      %v4388 = vunpack.c.h.b16 %v1060
      %v4389 = vunpack.c.l.b16 %v1061
      %v4390 = vunpack.c.h.b16 %v1061
      %v4391 = vunpack.c.l.b16 %v1062
      %v4392 = vunpack.c.h.b16 %v1062
      %v4393 = vunpack.c.l.b16 %v1063
      %v4394 = vunpack.c.h.b16 %v1063
      %v4395 = vunpack.c.l.b16 %v1064
      %v4396 = vunpack.c.h.b16 %v1064
      %v4397 = vunpack.c.l.b16 %v1065
      %v4398 = vunpack.c.h.b16 %v1065
      %v4399 = vunpack.c.l.b16 %v1066
      %v4400 = vunpack.c.h.b16 %v1066
      %v4401 = vunpack.c.l.b16 %v1067
      %v4402 = vunpack.c.h.b16 %v1067
      %v4403 = vunpack.c.l.b16 %v1068
      %v4404 = vunpack.c.h.b16 %v1068
      %v4405 = vunpack.c.l.b16 %v1069
      %v4406 = vunpack.c.h.b16 %v1069
      %v4407 = vunpack.c.l.b16 %v1070
      %v4408 = vunpack.c.h.b16 %v1070
      %v4409 = vunpack.c.l.b16 %v1071
      %v4410 = vunpack.c.h.b16 %v1071
      %v4411 = vunpack.c.l.b16 %v1072
      %v4412 = vunpack.c.h.b16 %v1072
      %v4413 = vunpack.c.l.b16 %v1073
      %v4414 = vunpack.c.h.b16 %v1073
      %v4415 = vunpack.c.l.b16 %v1074
      %v4416 = vunpack.c.h.b16 %v1074
      %v4417 = vunpack.c.l.b16 %v1075
      %v4418 = vunpack.c.h.b16 %v1075
      %v4419 = vunpack.c.l.b16 %v1076
      %v4420 = vunpack.c.h.b16 %v1076
      %v4421 = vunpack.c.l.b16 %v1077
      %v4422 = vunpack.c.h.b16 %v1077
      %v4423 = vunpack.c.l.b16 %v1078
      %v4424 = vunpack.c.h.b16 %v1078
      %v4425 = vunpack.c.l.b16 %v1079
      %v4426 = vunpack.c.h.b16 %v1079
      %v4427 = vunpack.c.l.b16 %v1080
      %v4428 = vunpack.c.h.b16 %v1080
      %v4429 = vunpack.c.l.b16 %v1081
      %v4430 = vunpack.c.h.b16 %v1081
      %v4431 = vunpack.c.l.b16 %v1082
      %v4432 = vunpack.c.h.b16 %v1082
      %v4433 = vunpack.c.l.b16 %v1083
      %v4434 = vunpack.c.h.b16 %v1083
      %v4435 = vunpack.c.l.b16 %v1084
      %v4436 = vunpack.c.h.b16 %v1084
      %v4437 = vunpack.c.l.b16 %v1085
      %v4438 = vunpack.c.h.b16 %v1085
      %v4439 = vunpack.c.l.b16 %v1086
      %v4440 = vunpack.c.h.b16 %v1086
      %v4441 = vunpack.c.l.b16 %v1087
      %v4442 = vunpack.c.h.b16 %v1087
      %v4443 = vunpack.c.l.b16 %v1088
      %v4444 = vunpack.c.h.b16 %v1088
      %v4445 = vunpack.c.l.b16 %v1089
      %v4446 = vunpack.c.h.b16 %v1089
      %v4447 = vunpack.c.l.b16 %v1090
      %v4448 = vunpack.c.h.b16 %v1090
      %v4449 = vunpack.c.l.b16 %v1091
      %v4450 = vunpack.c.h.b16 %v1091
      %v4451 = vunpack.c.l.b16 %v1092
      %v4452 = vunpack.c.h.b16 %v1092
      %v4453 = vunpack.c.l.b16 %v1093
      %v4454 = vunpack.c.h.b16 %v1093
      %v4455 = vunpack.c.l.b16 %v1094
      %v4456 = vunpack.c.h.b16 %v1094
      %v4457 = vunpack.c.l.b16 %v1095
      %v4458 = vunpack.c.h.b16 %v1095
      %v4459 = vunpack.c.l.b16 %v1096
      %v4460 = vunpack.c.h.b16 %v1096
      %v4461 = vunpack.c.l.b16 %v1097
      %v4462 = vunpack.c.h.b16 %v1097
      %v4463 = vunpack.c.l.b16 %v1098
      %v4464 = vunpack.c.h.b16 %v1098
      %v4465 = vunpack.c.l.b16 %v1099
      %v4466 = vunpack.c.h.b16 %v1099
      %v4467 = vunpack.c.l.b16 %v1100
      %v4468 = vunpack.c.h.b16 %v1100
      %v4469 = vunpack.c.l.b16 %v1101
      %v4470 = vunpack.c.h.b16 %v1101
      %v4471 = vunpack.c.l.b16 %v1102
      %v4472 = vunpack.c.h.b16 %v1102
      %v4473 = vunpack.c.l.b16 %v1103
      %v4474 = vunpack.c.h.b16 %v1103
      %v4475 = vunpack.c.l.b16 %v1104
      %v4476 = vunpack.c.h.b16 %v1104
      %v4477 = vunpack.c.l.b16 %v1105
      %v4478 = vunpack.c.h.b16 %v1105
      %v4479 = vunpack.c.l.b16 %v1106
      %v4480 = vunpack.c.h.b16 %v1106
      %v4481 = vunpack.c.l.b16 %v1107
      %v4482 = vunpack.c.h.b16 %v1107
      %v4483 = vunpack.c.l.b16 %v1108
      %v4484 = vunpack.c.h.b16 %v1108
      %v4485 = vunpack.c.l.b16 %v1109
      %v4486 = vunpack.c.h.b16 %v1109
      %v4487 = vunpack.c.l.b16 %v1110
      %v4488 = vunpack.c.h.b16 %v1110
      %v4489 = vunpack.c.l.b16 %v1111
      %v4490 = vunpack.c.h.b16 %v1111
      %v4491 = vunpack.c.l.b16 %v1112
      %v4492 = vunpack.c.h.b16 %v1112
      %v4493 = vunpack.c.l.b16 %v1113
      %v4494 = vunpack.c.h.b16 %v1113
      %v4495 = vunpack.c.l.b16 %v1114
      %v4496 = vunpack.c.h.b16 %v1114
      %v4497 = vunpack.c.l.b16 %v1115
      %v4498 = vunpack.c.h.b16 %v1115
      %v4499 = vunpack.c.l.b16 %v1116
      %v4500 = vunpack.c.h.b16 %v1116
      %v4501 = vunpack.c.l.b16 %v1117
      %v4502 = vunpack.c.h.b16 %v1117
      %v4503 = vunpack.c.l.b16 %v1118
      %v4504 = vunpack.c.h.b16 %v1118
      %v4505 = vunpack.c.l.b16 %v1119
      %v4506 = vunpack.c.h.b16 %v1119
      %v4507 = vunpack.c.l.b16 %v1120
      %v4508 = vunpack.c.h.b16 %v1120
      %v4509 = vunpack.c.l.b16 %v1121
      %v4510 = vunpack.c.h.b16 %v1121
      %v4511 = vunpack.c.l.b16 %v1122
      %v4512 = vunpack.c.h.b16 %v1122
      %v4513 = vunpack.c.l.b16 %v1123
      %v4514 = vunpack.c.h.b16 %v1123
      %v4515 = vunpack.c.l.b16 %v1124
      %v4516 = vunpack.c.h.b16 %v1124
      %v4517 = vunpack.c.l.b16 %v1125
      %v4518 = vunpack.c.h.b16 %v1125
      %v4519 = vunpack.c.l.b16 %v1126
      %v4520 = vunpack.c.h.b16 %v1126
      %v4521 = vunpack.c.l.b16 %v1127
      %v4522 = vunpack.c.h.b16 %v1127
      %v4523 = vunpack.c.l.b16 %v1128
      %v4524 = vunpack.c.h.b16 %v1128
      %v4525 = vunpack.c.l.b16 %v1129
      %v4526 = vunpack.c.h.b16 %v1129
      %v4527 = vunpack.c.l.b16 %v1130
      %v4528 = vunpack.c.h.b16 %v1130
      %v4529 = vunpack.c.l.b16 %v1131
      %v4530 = vunpack.c.h.b16 %v1131
      %v4531 = vunpack.c.l.b16 %v1132
      %v4532 = vunpack.c.h.b16 %v1132
      %v4533 = vunpack.c.l.b16 %v1133
      %v4534 = vunpack.c.h.b16 %v1133
      %v4535 = vunpack.c.l.b16 %v1134
      %v4536 = vunpack.c.h.b16 %v1134
      %v4537 = vunpack.c.l.b16 %v1135
      %v4538 = vunpack.c.h.b16 %v1135
      %v4539 = vunpack.c.l.b16 %v1136
      %v4540 = vunpack.c.h.b16 %v1136
      %v4541 = vunpack.c.l.b16 %v1137
      %v4542 = vunpack.c.h.b16 %v1137
      %v4543 = vunpack.c.l.b16 %v1138
      %v4544 = vunpack.c.h.b16 %v1138
      %v4545 = vunpack.c.l.b16 %v1139
      %v4546 = vunpack.c.h.b16 %v1139
      %v4547 = vunpack.c.l.b16 %v1140
      %v4548 = vunpack.c.h.b16 %v1140
      %v4549 = vunpack.c.l.b16 %v1141
      %v4550 = vunpack.c.h.b16 %v1141
      %v4551 = vunpack.c.l.b16 %v1142
      %v4552 = vunpack.c.h.b16 %v1142
      %v4553 = vunpack.c.l.b16 %v1143
      %v4554 = vunpack.c.h.b16 %v1143
      %v4555 = vunpack.c.l.b16 %v1144
      %v4556 = vunpack.c.h.b16 %v1144
      %v4557 = vunpack.c.l.b16 %v1145
      %v4558 = vunpack.c.h.b16 %v1145
      %v4559 = vunpack.c.l.b16 %v1146
      %v4560 = vunpack.c.h.b16 %v1146
      %v4561 = vunpack.c.l.b16 %v1147
      %v4562 = vunpack.c.h.b16 %v1147
      %v4563 = vunpack.c.l.b16 %v1148
      %v4564 = vunpack.c.h.b16 %v1148
      %v4565 = vunpack.c.l.b16 %v1149
      %v4566 = vunpack.c.h.b16 %v1149
      %v4567 = vunpack.c.l.b16 %v1150
      %v4568 = vunpack.c.h.b16 %v1150
      %v4569 = vunpack.c.l.b16 %v1151
      %v4570 = vunpack.c.h.b16 %v1151
      %v4571 = vunpack.c.l.b16 %v1152
      %v4572 = vunpack.c.h.b16 %v1152
      %v4573 = vunpack.c.l.b16 %v1153
      %v4574 = vunpack.c.h.b16 %v1153
      %v4575 = vunpack.c.l.b16 %v1154
      %v4576 = vunpack.c.h.b16 %v1154
      %v4577 = vunpack.c.l.b16 %v1155
      %v4578 = vunpack.c.h.b16 %v1155
      %v4579 = vunpack.c.l.b16 %v1156
      %v4580 = vunpack.c.h.b16 %v1156
      %v4581 = vunpack.c.l.b16 %v1157
      %v4582 = vunpack.c.h.b16 %v1157
      %v4583 = vunpack.c.l.b16 %v1158
      %v4584 = vunpack.c.h.b16 %v1158
      %v4585 = vunpack.c.l.b16 %v1159
      %v4586 = vunpack.c.h.b16 %v1159
      %v4587 = vunpack.c.l.b16 %v1160
      %v4588 = vunpack.c.h.b16 %v1160
      %v4589 = vunpack.c.l.b16 %v1161
      %v4590 = vunpack.c.h.b16 %v1161
      %v4591 = vunpack.c.l.b16 %v1162
      %v4592 = vunpack.c.h.b16 %v1162
      %v4593 = vunpack.c.l.b16 %v1163
      %v4594 = vunpack.c.h.b16 %v1163
      %v4595 = vunpack.c.l.b16 %v1164
      %v4596 = vunpack.c.h.b16 %v1164
      %v4597 = vunpack.c.l.b16 %v1165
      %v4598 = vunpack.c.h.b16 %v1165
      %v4599 = vunpack.c.l.b16 %v1166
      %v4600 = vunpack.c.h.b16 %v1166
      %v4601 = vunpack.c.l.b16 %v1167
      %v4602 = vunpack.c.h.b16 %v1167
      %v4603 = vunpack.c.l.b16 %v1168
      %v4604 = vunpack.c.h.b16 %v1168
      %v4605 = vunpack.c.l.b16 %v1169
      %v4606 = vunpack.c.h.b16 %v1169
      %v4607 = vunpack.c.l.b16 %v1170
      %v4608 = vunpack.c.h.b16 %v1170
      %v4609 = vunpack.c.l.b16 %v1171
      %v4610 = vunpack.c.h.b16 %v1171
      %v4611 = vunpack.c.l.b16 %v1172
      %v4612 = vunpack.c.h.b16 %v1172
      %v4613 = vunpack.c.l.b16 %v1173
      %v4614 = vunpack.c.h.b16 %v1173
      %v4615 = vunpack.c.l.b16 %v1174
      %v4616 = vunpack.c.h.b16 %v1174
      %v4617 = vunpack.c.l.b16 %v1175
      %v4618 = vunpack.c.h.b16 %v1175
      %v4619 = vunpack.c.l.b16 %v1176
      %v4620 = vunpack.c.h.b16 %v1176
      %v4621 = vunpack.c.l.b16 %v1177
      %v4622 = vunpack.c.h.b16 %v1177
      %v4623 = vunpack.c.l.b16 %v1178
      %v4624 = vunpack.c.h.b16 %v1178
      %v4625 = vunpack.c.l.b16 %v1179
      %v4626 = vunpack.c.h.b16 %v1179
      %v4627 = vunpack.c.l.b16 %v1180
      %v4628 = vunpack.c.h.b16 %v1180
      %v4629 = vunpack.c.l.b16 %v1181
      %v4630 = vunpack.c.h.b16 %v1181
      %v4631 = vunpack.c.l.b16 %v1182
      %v4632 = vunpack.c.h.b16 %v1182
      %v4633 = vunpack.c.l.b16 %v1183
      %v4634 = vunpack.c.h.b16 %v1183
      %v4635 = vunpack.c.l.b16 %v1184
      %v4636 = vunpack.c.h.b16 %v1184
      %v4637 = vunpack.c.l.b16 %v1185
      %v4638 = vunpack.c.h.b16 %v1185
      %v4639 = vunpack.c.l.b16 %v1186
      %v4640 = vunpack.c.h.b16 %v1186
      %v4641 = vunpack.c.l.b16 %v1187
      %v4642 = vunpack.c.h.b16 %v1187
      %v4643 = vunpack.c.l.b16 %v1188
      %v4644 = vunpack.c.h.b16 %v1188
      %v4645 = vunpack.c.l.b16 %v1189
      %v4646 = vunpack.c.h.b16 %v1189
      %v4647 = vunpack.c.l.b16 %v1190
      %v4648 = vunpack.c.h.b16 %v1190
      %v4649 = vunpack.c.l.b16 %v1191
      %v4650 = vunpack.c.h.b16 %v1191
      %v4651 = vunpack.c.l.b16 %v1192
      %v4652 = vunpack.c.h.b16 %v1192
      %v4653 = vunpack.c.l.b16 %v1193
      %v4654 = vunpack.c.h.b16 %v1193
      %v4655 = vunpack.c.l.b16 %v1194
      %v4656 = vunpack.c.h.b16 %v1194
      %v4657 = vunpack.c.l.b16 %v1195
      %v4658 = vunpack.c.h.b16 %v1195
      %v4659 = vunpack.c.l.b16 %v1196
      %v4660 = vunpack.c.h.b16 %v1196
      %v4661 = vunpack.c.l.b16 %v1197
      %v4662 = vunpack.c.h.b16 %v1197
      %v4663 = vunpack.c.l.b16 %v1198
      %v4664 = vunpack.c.h.b16 %v1198
      %v4665 = vunpack.c.l.b16 %v1199
      %v4666 = vunpack.c.h.b16 %v1199
      %v4667 = vunpack.c.l.b16 %v1200
      %v4668 = vunpack.c.h.b16 %v1200
      %v4669 = vunpack.c.l.b16 %v1201
      %v4670 = vunpack.c.h.b16 %v1201
      %v4671 = vunpack.c.l.b16 %v1202
      %v4672 = vunpack.c.h.b16 %v1202
      %v4673 = vunpack.c.l.b16 %v1203
      %v4674 = vunpack.c.h.b16 %v1203
      %v4675 = vunpack.c.l.b16 %v1204
      %v4676 = vunpack.c.h.b16 %v1204
      %v4677 = vunpack.c.l.b16 %v1205
      %v4678 = vunpack.c.h.b16 %v1205
      %v4679 = vunpack.c.l.b16 %v1206
      %v4680 = vunpack.c.h.b16 %v1206
      %v4681 = vunpack.c.l.b16 %v1207
      %v4682 = vunpack.c.h.b16 %v1207
      %v4683 = vunpack.c.l.b16 %v1208
      %v4684 = vunpack.c.h.b16 %v1208
      %v4685 = vunpack.c.l.b16 %v1209
      %v4686 = vunpack.c.h.b16 %v1209
      %v4687 = vunpack.c.l.b16 %v1210
      %v4688 = vunpack.c.h.b16 %v1210
      %v4689 = vunpack.c.l.b16 %v1211
      %v4690 = vunpack.c.h.b16 %v1211
      %v4691 = vunpack.c.l.b16 %v1212
      %v4692 = vunpack.c.h.b16 %v1212
      %v4693 = vunpack.c.l.b16 %v1213
      %v4694 = vunpack.c.h.b16 %v1213
      %v4695 = vunpack.c.l.b16 %v1214
      %v4696 = vunpack.c.h.b16 %v1214
      %v4697 = vunpack.c.l.b16 %v1215
      %v4698 = vunpack.c.h.b16 %v1215
      %v4699 = vunpack.c.l.b16 %v1216
      %v4700 = vunpack.c.h.b16 %v1216
      %v4701 = vunpack.c.l.b16 %v1217
      %v4702 = vunpack.c.h.b16 %v1217
      %v4703 = vunpack.c.l.b16 %v1218
      %v4704 = vunpack.c.h.b16 %v1218
      %v4705 = vunpack.c.l.b16 %v1219
      %v4706 = vunpack.c.h.b16 %v1219
      %v4707 = vunpack.c.l.b16 %v1220
      %v4708 = vunpack.c.h.b16 %v1220
      %v4709 = vunpack.c.l.b16 %v1221
      %v4710 = vunpack.c.h.b16 %v1221
      %v4711 = vunpack.c.l.b16 %v1222
      %v4712 = vunpack.c.h.b16 %v1222
      %v4713 = vunpack.c.l.b16 %v1223
      %v4714 = vunpack.c.h.b16 %v1223
      %v4715 = vunpack.c.l.b16 %v1224
      %v4716 = vunpack.c.h.b16 %v1224
      %v4717 = vunpack.c.l.b16 %v1225
      %v4718 = vunpack.c.h.b16 %v1225
      %v4719 = vunpack.c.l.b16 %v1226
      %v4720 = vunpack.c.h.b16 %v1226
      %v4721 = vunpack.c.l.b16 %v1227
      %v4722 = vunpack.c.h.b16 %v1227
      %v4723 = vunpack.c.l.b16 %v1228
      %v4724 = vunpack.c.h.b16 %v1228
      %v4725 = vunpack.c.l.b16 %v1229
      %v4726 = vunpack.c.h.b16 %v1229
      %v4727 = vunpack.c.l.b16 %v1230
      %v4728 = vunpack.c.h.b16 %v1230
      %v4729 = vunpack.c.l.b16 %v1231
      %v4730 = vunpack.c.h.b16 %v1231
      %v4731 = vunpack.c.l.b16 %v1232
      %v4732 = vunpack.c.h.b16 %v1232
      %v4733 = vunpack.c.l.b16 %v1233
      %v4734 = vunpack.c.h.b16 %v1233
      %v4735 = vunpack.c.l.b16 %v1234
      %v4736 = vunpack.c.h.b16 %v1234
      %v4737 = vunpack.c.l.b16 %v1235
      %v4738 = vunpack.c.h.b16 %v1235
      %v4739 = vunpack.c.l.b16 %v1236
      %v4740 = vunpack.c.h.b16 %v1236
      %v4741 = vunpack.c.l.b16 %v1237
      %v4742 = vunpack.c.h.b16 %v1237
      %v4743 = vunpack.c.l.b16 %v1238
      %v4744 = vunpack.c.h.b16 %v1238
      %v4745 = vunpack.c.l.b16 %v1239
      %v4746 = vunpack.c.h.b16 %v1239
      %v4747 = vunpack.c.l.b16 %v1240
      %v4748 = vunpack.c.h.b16 %v1240
      %v4749 = vunpack.c.l.b16 %v1241
      %v4750 = vunpack.c.h.b16 %v1241
      %v4751 = vunpack.c.l.b16 %v1242
      %v4752 = vunpack.c.h.b16 %v1242
      %v4753 = vunpack.c.l.b16 %v1243
      %v4754 = vunpack.c.h.b16 %v1243
      %v4755 = vunpack.c.l.b16 %v1244
      %v4756 = vunpack.c.h.b16 %v1244
      %v4757 = vunpack.c.l.b16 %v1245
      %v4758 = vunpack.c.h.b16 %v1245
      %v4759 = vunpack.c.l.b16 %v1246
      %v4760 = vunpack.c.h.b16 %v1246
      %v4761 = vunpack.c.l.b16 %v1247
      %v4762 = vunpack.c.h.b16 %v1247
      %v4763 = vunpack.c.l.b16 %v1248
      %v4764 = vunpack.c.h.b16 %v1248
      %v4765 = vunpack.c.l.b16 %v1249
      %v4766 = vunpack.c.h.b16 %v1249
      %v4767 = vunpack.c.l.b16 %v1250
      %v4768 = vunpack.c.h.b16 %v1250
      %v4769 = vunpack.c.l.b16 %v1251
      %v4770 = vunpack.c.h.b16 %v1251
      %v4771 = vunpack.c.l.b16 %v1252
      %v4772 = vunpack.c.h.b16 %v1252
      %v4773 = vunpack.c.l.b16 %v1253
      %v4774 = vunpack.c.h.b16 %v1253
      %v4775 = vunpack.c.l.b16 %v1254
      %v4776 = vunpack.c.h.b16 %v1254
      %v4777 = vunpack.c.l.b16 %v1255
      %v4778 = vunpack.c.h.b16 %v1255
      %v4779 = vunpack.c.l.b16 %v1256
      %v4780 = vunpack.c.h.b16 %v1256
      %v4781 = vunpack.c.l.b16 %v1257
      %v4782 = vunpack.c.h.b16 %v1257
      %v4783 = vunpack.c.l.b16 %v1258
      %v4784 = vunpack.c.h.b16 %v1258
      %v4785 = vunpack.c.l.b16 %v1259
      %v4786 = vunpack.c.h.b16 %v1259
      %v4787 = vunpack.c.l.b16 %v1260
      %v4788 = vunpack.c.h.b16 %v1260
      %v4789 = vunpack.c.l.b16 %v1261
      %v4790 = vunpack.c.h.b16 %v1261
      %v4791 = vunpack.c.l.b16 %v1262
      %v4792 = vunpack.c.h.b16 %v1262
      %v4793 = vunpack.c.l.b16 %v1263
      %v4794 = vunpack.c.h.b16 %v1263
      %v4795 = vunpack.c.l.b16 %v1264
      %v4796 = vunpack.c.h.b16 %v1264
      %v4797 = vunpack.c.l.b16 %v1265
      %v4798 = vunpack.c.h.b16 %v1265
      %v4799 = vunpack.c.l.b16 %v1266
      %v4800 = vunpack.c.h.b16 %v1266
      %v4801 = vunpack.c.l.b16 %v1267
      %v4802 = vunpack.c.h.b16 %v1267
      %v4803 = vunpack.c.l.b16 %v1268
      %v4804 = vunpack.c.h.b16 %v1268
      %v4805 = vunpack.c.l.b16 %v1269
      %v4806 = vunpack.c.h.b16 %v1269
      %v4807 = vunpack.c.l.b16 %v1270
      %v4808 = vunpack.c.h.b16 %v1270
      %v4809 = vunpack.c.l.b16 %v1271
      %v4810 = vunpack.c.h.b16 %v1271
      %v4811 = vunpack.c.l.b16 %v1272
      %v4812 = vunpack.c.h.b16 %v1272
      %v4813 = vunpack.c.l.b16 %v1273
      %v4814 = vunpack.c.h.b16 %v1273
      %v4815 = vunpack.c.l.b16 %v1274
      %v4816 = vunpack.c.h.b16 %v1274
      %v4817 = vunpack.c.l.b16 %v1275
      %v4818 = vunpack.c.h.b16 %v1275
      %v4819 = vunpack.c.l.b16 %v1276
      %v4820 = vunpack.c.h.b16 %v1276
      %v4821 = vunpack.c.l.b16 %v1277
      %v4822 = vunpack.c.h.b16 %v1277
      %v4823 = vunpack.c.l.b16 %v1278
      %v4824 = vunpack.c.h.b16 %v1278
      %v4825 = vunpack.c.l.b16 %v1279
      %v4826 = vunpack.c.h.b16 %v1279
      %v4827 = vunpack.c.l.b16 %v1280
      %v4828 = vunpack.c.h.b16 %v1280
      %v4829 = vunpack.c.l.b16 %v1281
      %v4830 = vunpack.c.h.b16 %v1281
      %v4831 = vunpack.c.l.b16 %v1282
      %v4832 = vunpack.c.h.b16 %v1282
      %v4833 = vunpack.c.l.b16 %v1283
      %v4834 = vunpack.c.h.b16 %v1283
      %v4835 = vunpack.c.l.b16 %v1284
      %v4836 = vunpack.c.h.b16 %v1284
      %v4837 = vunpack.c.l.b16 %v1285
      %v4838 = vunpack.c.h.b16 %v1285
      %v4839 = vunpack.c.l.b16 %v1286
      %v4840 = vunpack.c.h.b16 %v1286
      %v4841 = vunpack.c.l.b16 %v1287
      %v4842 = vunpack.c.h.b16 %v1287
      %v4843 = vunpack.c.l.b16 %v1288
      %v4844 = vunpack.c.h.b16 %v1288
      %v4845 = vunpack.c.l.b16 %v1289
      %v4846 = vunpack.c.h.b16 %v1289
      %v4847 = vunpack.c.l.b16 %v1290
      %v4848 = vunpack.c.h.b16 %v1290
      %v4849 = vunpack.c.l.b16 %v1291
      %v4850 = vunpack.c.h.b16 %v1291
      %v4851 = vunpack.c.l.b16 %v1292
      %v4852 = vunpack.c.h.b16 %v1292
      %v4853 = vunpack.c.l.b16 %v1293
      %v4854 = vunpack.c.h.b16 %v1293
      %v4855 = vunpack.c.l.b16 %v1294
      %v4856 = vunpack.c.h.b16 %v1294
      %v4857 = vunpack.c.l.b16 %v1295
      %v4858 = vunpack.c.h.b16 %v1295
      %v4859 = vunpack.c.l.b16 %v1296
      %v4860 = vunpack.c.h.b16 %v1296
      %v4861 = vunpack.c.l.b16 %v1297
      %v4862 = vunpack.c.h.b16 %v1297
      %v4863 = vunpack.c.l.b16 %v1298
      %v4864 = vunpack.c.h.b16 %v1298
      %v4865 = vunpack.c.l.b16 %v1299
      %v4866 = vunpack.c.h.b16 %v1299
      %v4867 = vunpack.c.l.b16 %v1300
      %v4868 = vunpack.c.h.b16 %v1300
      %v4869 = vunpack.c.l.b16 %v1301
      %v4870 = vunpack.c.h.b16 %v1301
      %v4871 = vunpack.c.l.b16 %v1302
      %v4872 = vunpack.c.h.b16 %v1302
      %v4873 = vunpack.c.l.b16 %v1303
      %v4874 = vunpack.c.h.b16 %v1303
      %v4875 = vunpack.c.l.b16 %v1304
      %v4876 = vunpack.c.h.b16 %v1304
      %v4877 = vunpack.c.l.b16 %v1305
      %v4878 = vunpack.c.h.b16 %v1305
      %v4879 = vunpack.c.l.b16 %v1306
      %v4880 = vunpack.c.h.b16 %v1306
      %v4881 = vunpack.c.l.b16 %v1307
      %v4882 = vunpack.c.h.b16 %v1307
      %v4883 = vunpack.c.l.b16 %v1308
      %v4884 = vunpack.c.h.b16 %v1308
      %v4885 = vunpack.c.l.b16 %v1309
      %v4886 = vunpack.c.h.b16 %v1309
      %v4887 = vunpack.c.l.b16 %v1310
      %v4888 = vunpack.c.h.b16 %v1310
      %v4889 = vunpack.c.l.b16 %v1311
      %v4890 = vunpack.c.h.b16 %v1311
      %v4891 = vunpack.c.l.b16 %v1312
      %v4892 = vunpack.c.h.b16 %v1312
      %v4893 = vunpack.c.l.b16 %v1313
      %v4894 = vunpack.c.h.b16 %v1313
      %v4895 = vunpack.c.l.b16 %v1314
      %v4896 = vunpack.c.h.b16 %v1314
      %v4897 = vunpack.c.l.b16 %v1315
      %v4898 = vunpack.c.h.b16 %v1315
      %v4899 = vunpack.c.l.b16 %v1316
      %v4900 = vunpack.c.h.b16 %v1316
      %v4901 = vunpack.c.l.b16 %v1317
      %v4902 = vunpack.c.h.b16 %v1317
      %v4903 = vunpack.c.l.b16 %v1318
      %v4904 = vunpack.c.h.b16 %v1318
      %v4905 = vunpack.c.l.b16 %v1319
      %v4906 = vunpack.c.h.b16 %v1319
      %v4907 = vunpack.c.l.b16 %v1320
      %v4908 = vunpack.c.h.b16 %v1320
      %v4909 = vunpack.c.l.b16 %v1321
      %v4910 = vunpack.c.h.b16 %v1321
      %v4911 = vunpack.c.l.b16 %v1322
      %v4912 = vunpack.c.h.b16 %v1322
      %v4913 = vunpack.c.l.b16 %v1323
      %v4914 = vunpack.c.h.b16 %v1323
      %v4915 = vunpack.c.l.b16 %v1324
      %v4916 = vunpack.c.h.b16 %v1324
      %v4917 = vunpack.c.l.b16 %v1325
      %v4918 = vunpack.c.h.b16 %v1325
      %v4919 = vunpack.c.l.b16 %v1326
      %v4920 = vunpack.c.h.b16 %v1326
      %v4921 = vunpack.c.l.b16 %v1327
      %v4922 = vunpack.c.h.b16 %v1327
      %v4923 = vunpack.c.l.b16 %v1328
      %v4924 = vunpack.c.h.b16 %v1328
      %v4925 = vunpack.c.l.b16 %v1329
      %v4926 = vunpack.c.h.b16 %v1329
      %v4927 = vunpack.c.l.b16 %v1330
      %v4928 = vunpack.c.h.b16 %v1330
      %v4929 = vunpack.c.l.b16 %v1331
      %v4930 = vunpack.c.h.b16 %v1331
      %v4931 = vunpack.c.l.b16 %v1332
      %v4932 = vunpack.c.h.b16 %v1332
      %v4933 = vunpack.c.l.b16 %v1333
      %v4934 = vunpack.c.h.b16 %v1333
      %v4935 = vunpack.c.l.b16 %v1334
      %v4936 = vunpack.c.h.b16 %v1334
      %v4937 = vunpack.c.l.b16 %v1335
      %v4938 = vunpack.c.h.b16 %v1335
      %v4939 = vunpack.c.l.b16 %v1336
      %v4940 = vunpack.c.h.b16 %v1336
      %v4941 = vunpack.c.l.b16 %v1337
      %v4942 = vunpack.c.h.b16 %v1337
      %v4943 = vunpack.c.l.b16 %v1338
      %v4944 = vunpack.c.h.b16 %v1338
      %v4945 = vunpack.c.l.b16 %v1339
      %v4946 = vunpack.c.h.b16 %v1339
      %v4947 = vunpack.c.l.b16 %v1340
      %v4948 = vunpack.c.h.b16 %v1340
      %v4949 = vunpack.c.l.b16 %v1341
      %v4950 = vunpack.c.h.b16 %v1341
      %v4951 = vunpack.c.l.b16 %v1342
      %v4952 = vunpack.c.h.b16 %v1342
      %v4953 = vunpack.c.l.b16 %v1343
      %v4954 = vunpack.c.h.b16 %v1343
      %v4955 = vunpack.c.l.b16 %v1344
      %v4956 = vunpack.c.h.b16 %v1344
      %v4957 = vunpack.c.l.b16 %v1345
      %v4958 = vunpack.c.h.b16 %v1345
      %v4959 = vunpack.c.l.b16 %v1346
      %v4960 = vunpack.c.h.b16 %v1346
      %v4961 = vunpack.c.l.b16 %v1347
      %v4962 = vunpack.c.h.b16 %v1347
      %v4963 = vunpack.c.l.b16 %v1348
      %v4964 = vunpack.c.h.b16 %v1348
      %v4965 = vunpack.c.l.b16 %v1349
      %v4966 = vunpack.c.h.b16 %v1349
      %v4967 = vunpack.c.l.b16 %v1350
      %v4968 = vunpack.c.h.b16 %v1350
      %v4969 = vunpack.c.l.b16 %v1351
      %v4970 = vunpack.c.h.b16 %v1351
      %v4971 = vunpack.c.l.b16 %v1352
      %v4972 = vunpack.c.h.b16 %v1352
      %v4973 = vunpack.c.l.b16 %v1353
      %v4974 = vunpack.c.h.b16 %v1353
      %v4975 = vunpack.c.l.b16 %v1354
      %v4976 = vunpack.c.h.b16 %v1354
      %v4977 = vunpack.c.l.b16 %v1355
      %v4978 = vunpack.c.h.b16 %v1355
      %v4979 = vunpack.c.l.b16 %v1356
      %v4980 = vunpack.c.h.b16 %v1356
      %v4981 = vunpack.c.l.b16 %v1357
      %v4982 = vunpack.c.h.b16 %v1357
      %v4983 = vunpack.c.l.b16 %v1358
      %v4984 = vunpack.c.h.b16 %v1358
      %v4985 = vunpack.c.l.b16 %v1359
      %v4986 = vunpack.c.h.b16 %v1359
      %v4987 = vunpack.c.l.b16 %v1360
      %v4988 = vunpack.c.h.b16 %v1360
      %v4989 = vunpack.c.l.b16 %v1361
      %v4990 = vunpack.c.h.b16 %v1361
      %v4991 = vunpack.c.l.b16 %v1362
      %v4992 = vunpack.c.h.b16 %v1362
      %v4993 = vunpack.c.l.b16 %v1363
      %v4994 = vunpack.c.h.b16 %v1363
      %v4995 = vunpack.c.l.b16 %v1364
      %v4996 = vunpack.c.h.b16 %v1364
      %v4997 = vunpack.c.l.b16 %v1365
      %v4998 = vunpack.c.h.b16 %v1365
      %v4999 = vunpack.c.l.b16 %v1366
      %v5000 = vunpack.c.h.b16 %v1366
      %v5001 = vunpack.c.l.b16 %v1367
      %v5002 = vunpack.c.h.b16 %v1367
      %v5003 = vunpack.c.l.b16 %v1368
      %v5004 = vunpack.c.h.b16 %v1368
      %v5005 = vunpack.c.l.b16 %v1369
      %v5006 = vunpack.c.h.b16 %v1369
      %v5007 = vunpack.c.l.b16 %v1370
      %v5008 = vunpack.c.h.b16 %v1370
      %v5009 = vunpack.c.l.b16 %v1371
      %v5010 = vunpack.c.h.b16 %v1371
      %v5011 = vunpack.c.l.b16 %v1372
      %v5012 = vunpack.c.h.b16 %v1372
      %v5013 = vunpack.c.l.b16 %v1373
      %v5014 = vunpack.c.h.b16 %v1373
      %v5015 = vunpack.c.l.b16 %v1374
      %v5016 = vunpack.c.h.b16 %v1374
      %v5017 = vunpack.c.l.b16 %v1375
      %v5018 = vunpack.c.h.b16 %v1375
      %v5019 = vunpack.c.l.b16 %v1376
      %v5020 = vunpack.c.h.b16 %v1376
      %v5021 = vunpack.c.l.b16 %v1377
      %v5022 = vunpack.c.h.b16 %v1377
      %v5023 = vunpack.c.l.b16 %v1378
      %v5024 = vunpack.c.h.b16 %v1378
      %v5025 = vunpack.c.l.b16 %v1379
      %v5026 = vunpack.c.h.b16 %v1379
      %v5027 = vunpack.c.l.b16 %v1380
      %v5028 = vunpack.c.h.b16 %v1380
      %v5029 = vunpack.c.l.b16 %v1381
      %v5030 = vunpack.c.h.b16 %v1381
      %v5031 = vunpack.c.l.b16 %v1382
      %v5032 = vunpack.c.h.b16 %v1382
      %v5033 = vunpack.c.l.b16 %v1383
      %v5034 = vunpack.c.h.b16 %v1383
      %v5035 = vunpack.c.l.b16 %v1384
      %v5036 = vunpack.c.h.b16 %v1384
      %v5037 = vunpack.c.l.b16 %v1385
      %v5038 = vunpack.c.h.b16 %v1385
      %v5039 = vunpack.c.l.b16 %v1386
      %v5040 = vunpack.c.h.b16 %v1386
      %v5041 = vunpack.c.l.b16 %v1387
      %v5042 = vunpack.c.h.b16 %v1387
      %v5043 = vunpack.c.l.b16 %v1388
      %v5044 = vunpack.c.h.b16 %v1388
      %v5045 = vunpack.c.l.b16 %v1389
      %v5046 = vunpack.c.h.b16 %v1389
      %v5047 = vunpack.c.l.b16 %v1390
      %v5048 = vunpack.c.h.b16 %v1390
      %v5049 = vunpack.c.l.b16 %v1391
      %v5050 = vunpack.c.h.b16 %v1391
      %v5051 = vunpack.c.l.b16 %v1392
      %v5052 = vunpack.c.h.b16 %v1392
      %v5053 = vunpack.c.l.b16 %v1393
      %v5054 = vunpack.c.h.b16 %v1393
      %v5055 = vunpack.c.l.b16 %v1394
      %v5056 = vunpack.c.h.b16 %v1394
      %v5057 = vunpack.c.l.b16 %v1395
      %v5058 = vunpack.c.h.b16 %v1395
      %v5059 = vunpack.c.l.b16 %v1396
      %v5060 = vunpack.c.h.b16 %v1396
      %v5061 = vunpack.c.l.b16 %v1397
      %v5062 = vunpack.c.h.b16 %v1397
      %v5063 = vunpack.c.l.b16 %v1398
      %v5064 = vunpack.c.h.b16 %v1398
      %v5065 = vunpack.c.l.b16 %v1399
      %v5066 = vunpack.c.h.b16 %v1399
      %v5067 = vunpack.c.l.b16 %v1400
      %v5068 = vunpack.c.h.b16 %v1400
      %v5069 = vunpack.c.l.b16 %v1401
      %v5070 = vunpack.c.h.b16 %v1401
      %v5071 = vunpack.c.l.b16 %v1402
      %v5072 = vunpack.c.h.b16 %v1402
      %v5073 = vunpack.c.l.b16 %v1403
      %v5074 = vunpack.c.h.b16 %v1403
      %v5075 = vunpack.c.l.b16 %v1404
      %v5076 = vunpack.c.h.b16 %v1404
      %v5077 = vunpack.c.l.b16 %v1405
      %v5078 = vunpack.c.h.b16 %v1405
      %v5079 = vunpack.c.l.b16 %v1406
      %v5080 = vunpack.c.h.b16 %v1406
      %v5081 = vunpack.c.l.b16 %v1407
      %v5082 = vunpack.c.h.b16 %v1407
      %v5083 = vunpack.c.l.b16 %v1408
      %v5084 = vunpack.c.h.b16 %v1408
      %v5085 = vunpack.c.l.b16 %v1409
      %v5086 = vunpack.c.h.b16 %v1409
      %v5087 = vunpack.c.l.b16 %v1410
      %v5088 = vunpack.c.h.b16 %v1410
      %v5089 = vunpack.c.l.b16 %v1411
      %v5090 = vunpack.c.h.b16 %v1411
      %v5091 = vunpack.c.l.b16 %v1412
      %v5092 = vunpack.c.h.b16 %v1412
      %v5093 = vunpack.c.l.b16 %v1413
      %v5094 = vunpack.c.h.b16 %v1413
      %v5095 = vunpack.c.l.b16 %v1414
      %v5096 = vunpack.c.h.b16 %v1414
      %v5097 = vunpack.c.l.b16 %v1415
      %v5098 = vunpack.c.h.b16 %v1415
      %v5099 = vunpack.c.l.b16 %v1416
      %v5100 = vunpack.c.h.b16 %v1416
      %v5101 = vunpack.c.l.b16 %v1417
      %v5102 = vunpack.c.h.b16 %v1417
      %v5103 = vunpack.c.l.b16 %v1418
      %v5104 = vunpack.c.h.b16 %v1418
      %v5105 = vunpack.c.l.b16 %v1419
      %v5106 = vunpack.c.h.b16 %v1419
      %v5107 = vunpack.c.l.b16 %v1420
      %v5108 = vunpack.c.h.b16 %v1420
      %v5109 = vunpack.c.l.b16 %v1421
      %v5110 = vunpack.c.h.b16 %v1421
      %v5111 = vunpack.c.l.b16 %v1422
      %v5112 = vunpack.c.h.b16 %v1422
      %v5113 = vunpack.c.l.b16 %v1423
      %v5114 = vunpack.c.h.b16 %v1423
      %v5115 = vunpack.c.l.b16 %v1424
      %v5116 = vunpack.c.h.b16 %v1424
      %v5117 = vunpack.c.l.b16 %v1425
      %v5118 = vunpack.c.h.b16 %v1425
      %v5119 = vunpack.c.l.b16 %v1426
      %v5120 = vunpack.c.h.b16 %v1426
      %v5121 = vunpack.c.l.b16 %v1427
      %v5122 = vunpack.c.h.b16 %v1427
      %v5123 = vunpack.c.l.b16 %v1428
      %v5124 = vunpack.c.h.b16 %v1428
      %v5125 = vunpack.c.l.b16 %v1429
      %v5126 = vunpack.c.h.b16 %v1429
      %v5127 = vunpack.c.l.b16 %v1430
      %v5128 = vunpack.c.h.b16 %v1430
      %v5129 = vunpack.c.l.b16 %v1431
      %v5130 = vunpack.c.h.b16 %v1431
      %v5131 = vunpack.c.l.b16 %v1432
      %v5132 = vunpack.c.h.b16 %v1432
      %v5133 = vunpack.c.l.b16 %v1433
      %v5134 = vunpack.c.h.b16 %v1433
      %v5135 = vunpack.c.l.b16 %v1434
      %v5136 = vunpack.c.h.b16 %v1434
      %v5137 = vunpack.c.l.b16 %v1435
      %v5138 = vunpack.c.h.b16 %v1435
      %v5139 = vunpack.c.l.b16 %v1436
      %v5140 = vunpack.c.h.b16 %v1436
      %v5141 = vunpack.c.l.b16 %v1437
      %v5142 = vunpack.c.h.b16 %v1437
      %v5143 = vunpack.c.l.b16 %v1438
      %v5144 = vunpack.c.h.b16 %v1438
      %v5145 = vunpack.c.l.b16 %v1439
      %v5146 = vunpack.c.h.b16 %v1439
      %v5147 = vunpack.c.l.b16 %v1440
      %v5148 = vunpack.c.h.b16 %v1440
      %v5149 = vunpack.c.l.b16 %v1441
      %v5150 = vunpack.c.h.b16 %v1441
      %v5151 = vunpack.c.l.b16 %v1442
      %v5152 = vunpack.c.h.b16 %v1442
      %v5153 = vunpack.c.l.b16 %v1443
      %v5154 = vunpack.c.h.b16 %v1443
      %v5155 = vunpack.c.l.b16 %v1444
      %v5156 = vunpack.c.h.b16 %v1444
      %v5157 = vunpack.c.l.b16 %v1445
      %v5158 = vunpack.c.h.b16 %v1445
      %v5159 = vunpack.c.l.b16 %v1446
      %v5160 = vunpack.c.h.b16 %v1446
      %v5161 = vunpack.c.l.b16 %v1447
      %v5162 = vunpack.c.h.b16 %v1447
      %v5163 = vunpack.c.l.b16 %v1448
      %v5164 = vunpack.c.h.b16 %v1448
      %v5165 = vunpack.c.l.b16 %v1449
      %v5166 = vunpack.c.h.b16 %v1449
      %v5167 = vunpack.c.l.b16 %v1450
      %v5168 = vunpack.c.h.b16 %v1450
      %v5169 = vunpack.c.l.b16 %v1451
      %v5170 = vunpack.c.h.b16 %v1451
      %v5171 = vunpack.c.l.b16 %v1452
      %v5172 = vunpack.c.h.b16 %v1452
      %v5173 = vunpack.c.l.b16 %v1453
      %v5174 = vunpack.c.h.b16 %v1453
      %v5175 = vunpack.c.l.b16 %v1454
      %v5176 = vunpack.c.h.b16 %v1454
      %v5177 = vunpack.c.l.b16 %v1455
      %v5178 = vunpack.c.h.b16 %v1455
      %v5179 = vunpack.c.l.b16 %v1456
      %v5180 = vunpack.c.h.b16 %v1456
      %v5181 = vunpack.c.l.b16 %v1457
      %v5182 = vunpack.c.h.b16 %v1457
      %v5183 = vunpack.c.l.b16 %v1458
      %v5184 = vunpack.c.h.b16 %v1458
      %v5185 = vunpack.c.l.b16 %v1459
      %v5186 = vunpack.c.h.b16 %v1459
      %v5187 = vunpack.c.l.b16 %v1460
      %v5188 = vunpack.c.h.b16 %v1460
      %v5189 = vunpack.c.l.b16 %v1461
      %v5190 = vunpack.c.h.b16 %v1461
      %v5191 = vunpack.c.l.b16 %v1462
      %v5192 = vunpack.c.h.b16 %v1462
      %v5193 = vunpack.c.l.b16 %v1463
      %v5194 = vunpack.c.h.b16 %v1463
      %v5195 = vunpack.c.l.b16 %v1464
      %v5196 = vunpack.c.h.b16 %v1464
      %v5197 = vunpack.c.l.b16 %v1465
      %v5198 = vunpack.c.h.b16 %v1465
      %v5199 = vunpack.c.l.b16 %v1466
      %v5200 = vunpack.c.h.b16 %v1466
      %v5201 = vunpack.c.l.b16 %v1467
      %v5202 = vunpack.c.h.b16 %v1467
      %v5203 = vunpack.c.l.b16 %v1468
      %v5204 = vunpack.c.h.b16 %v1468
      %v5205 = vunpack.c.l.b16 %v1469
      %v5206 = vunpack.c.h.b16 %v1469
      %v5207 = vunpack.c.l.b16 %v1470
      %v5208 = vunpack.c.h.b16 %v1470
      %v5209 = vunpack.c.l.b16 %v1471
      %v5210 = vunpack.c.h.b16 %v1471
      %v5211 = vunpack.c.l.b16 %v1472
      %v5212 = vunpack.c.h.b16 %v1472
      %v5213 = vunpack.c.l.b16 %v1473
      %v5214 = vunpack.c.h.b16 %v1473
      %v5215 = vunpack.c.l.b16 %v1474
      %v5216 = vunpack.c.h.b16 %v1474
      %v5217 = vunpack.c.l.b16 %v1475
      %v5218 = vunpack.c.h.b16 %v1475
      %v5219 = vunpack.c.l.b16 %v1476
      %v5220 = vunpack.c.h.b16 %v1476
      %v5221 = vunpack.c.l.b16 %v1477
      %v5222 = vunpack.c.h.b16 %v1477
      %v5223 = vunpack.c.l.b16 %v1478
      %v5224 = vunpack.c.h.b16 %v1478
      %v5225 = vunpack.c.l.b16 %v1479
      %v5226 = vunpack.c.h.b16 %v1479
      %v5227 = vunpack.c.l.b16 %v1480
      %v5228 = vunpack.c.h.b16 %v1480
      %v5229 = vunpack.c.l.b16 %v1481
      %v5230 = vunpack.c.h.b16 %v1481
      %v5231 = vunpack.c.l.b16 %v1482
      %v5232 = vunpack.c.h.b16 %v1482
      %v5233 = vunpack.c.l.b16 %v1483
      %v5234 = vunpack.c.h.b16 %v1483
      %v5235 = vunpack.c.l.b16 %v1484
      %v5236 = vunpack.c.h.b16 %v1484
      %v5237 = vunpack.c.l.b16 %v1485
      %v5238 = vunpack.c.h.b16 %v1485
      %v5239 = vunpack.c.l.b16 %v1486
      %v5240 = vunpack.c.h.b16 %v1486
      %v5241 = vunpack.c.l.b16 %v1487
      %v5242 = vunpack.c.h.b16 %v1487
      %v5243 = vunpack.c.l.b16 %v1488
      %v5244 = vunpack.c.h.b16 %v1488
      %v5245 = vunpack.c.l.b16 %v1489
      %v5246 = vunpack.c.h.b16 %v1489
      %v5247 = vunpack.c.l.b16 %v1490
      %v5248 = vunpack.c.h.b16 %v1490
      %v5249 = vunpack.c.l.b16 %v1491
      %v5250 = vunpack.c.h.b16 %v1491
      %v5251 = vunpack.c.l.b16 %v1492
      %v5252 = vunpack.c.h.b16 %v1492
      %v5253 = vunpack.c.l.b16 %v1493
      %v5254 = vunpack.c.h.b16 %v1493
      %v5255 = vunpack.c.l.b16 %v1494
      %v5256 = vunpack.c.h.b16 %v1494
      %v5257 = vunpack.c.l.b16 %v1495
      %v5258 = vunpack.c.h.b16 %v1495
      %v5259 = vunpack.c.l.b16 %v1496
      %v5260 = vunpack.c.h.b16 %v1496
      %v5261 = vunpack.c.l.b16 %v1497
      %v5262 = vunpack.c.h.b16 %v1497
      %v5263 = vunpack.c.l.b16 %v1498
      %v5264 = vunpack.c.h.b16 %v1498
      %v5265 = vunpack.c.l.b16 %v1499
      %v5266 = vunpack.c.h.b16 %v1499
      %v5267 = vunpack.c.l.b16 %v1500
      %v5268 = vunpack.c.h.b16 %v1500
      %v5269 = vunpack.c.l.b16 %v1501
      %v5270 = vunpack.c.h.b16 %v1501
      %v5271 = vunpack.c.l.b16 %v1502
      %v5272 = vunpack.c.h.b16 %v1502
      %v5273 = vunpack.c.l.b16 %v1503
      %v5274 = vunpack.c.h.b16 %v1503
      %v5275 = vunpack.c.l.b16 %v1504
      %v5276 = vunpack.c.h.b16 %v1504
      %v5277 = vunpack.c.l.b16 %v1505
      %v5278 = vunpack.c.h.b16 %v1505
      %v5279 = vunpack.c.l.b16 %v1506
      %v5280 = vunpack.c.h.b16 %v1506
      %v5281 = vunpack.c.l.b16 %v1507
      %v5282 = vunpack.c.h.b16 %v1507
      %v5283 = vunpack.c.l.b16 %v1508
      %v5284 = vunpack.c.h.b16 %v1508
      %v5285 = vunpack.c.l.b16 %v1509
      %v5286 = vunpack.c.h.b16 %v1509
      %v5287 = vunpack.c.l.b16 %v1510
      %v5288 = vunpack.c.h.b16 %v1510
      %v5289 = vunpack.c.l.b16 %v1511
      %v5290 = vunpack.c.h.b16 %v1511
      %v5291 = vunpack.c.l.b16 %v1512
      %v5292 = vunpack.c.h.b16 %v1512
      %v5293 = vunpack.c.l.b16 %v1513
      %v5294 = vunpack.c.h.b16 %v1513
      %v5295 = vunpack.c.l.b16 %v1514
      %v5296 = vunpack.c.h.b16 %v1514
      %v5297 = vunpack.c.l.b16 %v1515
      %v5298 = vunpack.c.h.b16 %v1515
      %v5299 = vunpack.c.l.b16 %v1516
      %v5300 = vunpack.c.h.b16 %v1516
      %v5301 = vunpack.c.l.b16 %v1517
      %v5302 = vunpack.c.h.b16 %v1517
      %v5303 = vunpack.c.l.b16 %v1518
      %v5304 = vunpack.c.h.b16 %v1518
      %v5305 = vunpack.c.l.b16 %v1519
      %v5306 = vunpack.c.h.b16 %v1519
      %v5307 = vunpack.c.l.b16 %v1520
      %v5308 = vunpack.c.h.b16 %v1520
      %v5309 = vunpack.c.l.b16 %v1521
      %v5310 = vunpack.c.h.b16 %v1521
      %v5311 = vunpack.c.l.b16 %v1522
      %v5312 = vunpack.c.h.b16 %v1522
      %v5313 = vunpack.c.l.b16 %v1523
      %v5314 = vunpack.c.h.b16 %v1523
      %v5315 = vunpack.c.l.b16 %v1524
      %v5316 = vunpack.c.h.b16 %v1524
      %v5317 = vunpack.c.l.b16 %v1525
      %v5318 = vunpack.c.h.b16 %v1525
      %v5319 = vunpack.c.l.b16 %v1526
      %v5320 = vunpack.c.h.b16 %v1526
      %v5321 = vunpack.c.l.b16 %v1527
      %v5322 = vunpack.c.h.b16 %v1527
      %v5323 = vunpack.c.l.b16 %v1528
      %v5324 = vunpack.c.h.b16 %v1528
      %v5325 = vunpack.c.l.b16 %v1529
      %v5326 = vunpack.c.h.b16 %v1529
      %v5327 = vunpack.c.l.b16 %v1530
      %v5328 = vunpack.c.h.b16 %v1530
      %v5329 = vunpack.c.l.b16 %v1531
      %v5330 = vunpack.c.h.b16 %v1531
      %v5331 = vunpack.c.l.b16 %v1532
      %v5332 = vunpack.c.h.b16 %v1532
      %v5333 = vunpack.c.l.b16 %v1533
      %v5334 = vunpack.c.h.b16 %v1533
      %v5335 = vunpack.c.l.b16 %v1534
      %v5336 = vunpack.c.h.b16 %v1534
      %v5337 = vunpack.c.l.b16 %v1535
      %v5338 = vunpack.c.h.b16 %v1535
      %v5339 = vunpack.c.l.b16 %v1536
      %v5340 = vunpack.c.h.b16 %v1536
      %v5341 = vunpack.c.l.b16 %v1537
      %v5342 = vunpack.c.h.b16 %v1537
      %v5343 = vunpack.c.l.b16 %v1538
      %v5344 = vunpack.c.h.b16 %v1538
      %v5345 = vunpack.c.l.b16 %v1539
      %v5346 = vunpack.c.h.b16 %v1539
      %v5347 = vunpack.c.l.b16 %v1540
      %v5348 = vunpack.c.h.b16 %v1540
      %v5349 = vunpack.c.l.b16 %v1541
      %v5350 = vunpack.c.h.b16 %v1541
      %v5351 = vunpack.c.l.b16 %v1542
      %v5352 = vunpack.c.h.b16 %v1542
      %v5353 = vunpack.c.l.b16 %v1543
      %v5354 = vunpack.c.h.b16 %v1543
      %v5355 = vunpack.c.l.b16 %v1544
      %v5356 = vunpack.c.h.b16 %v1544
      %v5357 = vunpack.c.l.b16 %v1545
      %v5358 = vunpack.c.h.b16 %v1545
      %v5359 = vunpack.c.l.b16 %v1546
      %v5360 = vunpack.c.h.b16 %v1546
      %v5361 = vunpack.c.l.b16 %v1547
      %v5362 = vunpack.c.h.b16 %v1547
      %v5363 = vunpack.c.l.b16 %v1548
      %v5364 = vunpack.c.h.b16 %v1548
      %v5365 = vunpack.c.l.b16 %v1549
      %v5366 = vunpack.c.h.b16 %v1549
      %v5367 = vunpack.c.l.b16 %v1550
      %v5368 = vunpack.c.h.b16 %v1550
      %v5369 = vunpack.c.l.b16 %v1551
      %v5370 = vunpack.c.h.b16 %v1551
      %v5371 = vunpack.c.l.b16 %v1552
      %v5372 = vunpack.c.h.b16 %v1552
      %v5373 = vunpack.c.l.b16 %v1553
      %v5374 = vunpack.c.h.b16 %v1553
      %v5375 = vunpack.c.l.b16 %v1554
      %v5376 = vunpack.c.h.b16 %v1554
      %v5377 = vunpack.c.l.b16 %v1555
      %v5378 = vunpack.c.h.b16 %v1555
      %v5379 = vunpack.c.l.b16 %v1556
      %v5380 = vunpack.c.h.b16 %v1556
      %v5381 = vunpack.c.l.b16 %v1557
      %v5382 = vunpack.c.h.b16 %v1557
      %v5383 = vunpack.c.l.b16 %v1558
      %v5384 = vunpack.c.h.b16 %v1558
      %v5385 = vunpack.c.l.b16 %v1559
      %v5386 = vunpack.c.h.b16 %v1559
      %v5387 = vunpack.c.l.b16 %v1560
      %v5388 = vunpack.c.h.b16 %v1560
      %v5389 = vunpack.c.l.b16 %v1561
      %v5390 = vunpack.c.h.b16 %v1561
      %v5391 = vunpack.c.l.b16 %v1562
      %v5392 = vunpack.c.h.b16 %v1562
      %v5393 = vunpack.c.l.b16 %v1563
      %v5394 = vunpack.c.h.b16 %v1563
      %v5395 = vunpack.c.l.b16 %v1564
      %v5396 = vunpack.c.h.b16 %v1564
      %v5397 = vunpack.c.l.b16 %v1565
      %v5398 = vunpack.c.h.b16 %v1565
      %v5399 = vunpack.c.l.b16 %v1566
      %v5400 = vunpack.c.h.b16 %v1566
      %v5401 = vunpack.c.l.b16 %v1567
      %v5402 = vunpack.c.h.b16 %v1567
      %v5403 = vunpack.c.l.b16 %v1568
      %v5404 = vunpack.c.h.b16 %v1568
      %v5405 = vunpack.c.l.b16 %v1569
      %v5406 = vunpack.c.h.b16 %v1569
      %v5407 = vunpack.c.l.b16 %v1570
      %v5408 = vunpack.c.h.b16 %v1570
      %v5409 = vunpack.c.l.b16 %v1571
      %v5410 = vunpack.c.h.b16 %v1571
      %v5411 = vunpack.c.l.b16 %v1572
      %v5412 = vunpack.c.h.b16 %v1572
      %v5413 = vunpack.c.l.b16 %v1573
      %v5414 = vunpack.c.h.b16 %v1573
      %v5415 = vunpack.c.l.b16 %v1574
      %v5416 = vunpack.c.h.b16 %v1574
      %v5417 = vunpack.c.l.b16 %v1575
      %v5418 = vunpack.c.h.b16 %v1575
      %v5419 = vunpack.c.l.b16 %v1576
      %v5420 = vunpack.c.h.b16 %v1576
      %v5421 = vunpack.c.l.b16 %v1577
      %v5422 = vunpack.c.h.b16 %v1577
      %v5423 = vunpack.c.l.b16 %v1578
      %v5424 = vunpack.c.h.b16 %v1578
      %v5425 = vunpack.c.l.b16 %v1579
      %v5426 = vunpack.c.h.b16 %v1579
      %v5427 = vunpack.c.l.b16 %v1580
      %v5428 = vunpack.c.h.b16 %v1580
      %v5429 = vunpack.c.l.b16 %v1581
      %v5430 = vunpack.c.h.b16 %v1581
      %v5431 = vunpack.c.l.b16 %v1582
      %v5432 = vunpack.c.h.b16 %v1582
      %v5433 = vunpack.c.l.b16 %v1583
      %v5434 = vunpack.c.h.b16 %v1583
      %v5435 = vunpack.c.l.b16 %v1584
      %v5436 = vunpack.c.h.b16 %v1584
      %v5437 = vunpack.c.l.b16 %v1585
      %v5438 = vunpack.c.h.b16 %v1585
      %v5439 = vunpack.c.l.b16 %v1586
      %v5440 = vunpack.c.h.b16 %v1586
      %v5441 = vunpack.c.l.b16 %v1587
      %v5442 = vunpack.c.h.b16 %v1587
      %v5443 = vunpack.c.l.b16 %v1588
      %v5444 = vunpack.c.h.b16 %v1588
      %v5445 = vunpack.c.l.b16 %v1589
      %v5446 = vunpack.c.h.b16 %v1589
      %v5447 = vunpack.c.l.b16 %v1590
      %v5448 = vunpack.c.h.b16 %v1590
      %v5449 = vunpack.c.l.b16 %v1591
      %v5450 = vunpack.c.h.b16 %v1591
      %v5451 = vunpack.c.l.b16 %v1592
      %v5452 = vunpack.c.h.b16 %v1592
      %v5453 = vunpack.c.l.b16 %v1593
      %v5454 = vunpack.c.h.b16 %v1593
      %v5455 = vunpack.c.l.b16 %v1594
      %v5456 = vunpack.c.h.b16 %v1594
      %v5457 = vunpack.c.l.b16 %v1595
      %v5458 = vunpack.c.h.b16 %v1595
      %v5459 = vunpack.c.l.b16 %v1596
      %v5460 = vunpack.c.h.b16 %v1596
      %v5461 = vunpack.c.l.b16 %v1597
      %v5462 = vunpack.c.h.b16 %v1597
      %v5463 = vunpack.c.l.b16 %v1598
      %v5464 = vunpack.c.h.b16 %v1598
      %v5465 = vunpack.c.l.b16 %v1599
      %v5466 = vunpack.c.h.b16 %v1599
      %v5467 = vunpack.c.l.b16 %v1600
      %v5468 = vunpack.c.h.b16 %v1600
      %v5469 = vunpack.c.l.b16 %v1601
      %v5470 = vunpack.c.h.b16 %v1601
      %v5471 = vunpack.c.l.b16 %v1602
      %v5472 = vunpack.c.h.b16 %v1602
      %v5473 = vunpack.c.l.b16 %v1603
      %v5474 = vunpack.c.h.b16 %v1603
      %v5475 = vunpack.c.l.b16 %v1604
      %v5476 = vunpack.c.h.b16 %v1604
      %v5477 = vunpack.c.l.b16 %v1605
      %v5478 = vunpack.c.h.b16 %v1605
      %v5479 = vunpack.c.l.b16 %v1606
      %v5480 = vunpack.c.h.b16 %v1606
      %v5481 = vunpack.c.l.b16 %v1607
      %v5482 = vunpack.c.h.b16 %v1607
      %v5483 = vunpack.c.l.b16 %v1608
      %v5484 = vunpack.c.h.b16 %v1608
      %v5485 = vunpack.c.l.b16 %v1609
      %v5486 = vunpack.c.h.b16 %v1609
      %v5487 = vunpack.c.l.b16 %v1610
      %v5488 = vunpack.c.h.b16 %v1610
      %v5489 = vunpack.c.l.b16 %v1611
      %v5490 = vunpack.c.h.b16 %v1611
      %v5491 = vunpack.c.l.b16 %v1612
      %v5492 = vunpack.c.h.b16 %v1612
      %v5493 = vunpack.c.l.b16 %v1613
      %v5494 = vunpack.c.h.b16 %v1613
      %v5495 = vunpack.c.l.b16 %v1614
      %v5496 = vunpack.c.h.b16 %v1614
      %v5497 = vunpack.c.l.b16 %v1615
      %v5498 = vunpack.c.h.b16 %v1615
      %v5499 = vunpack.c.l.b16 %v1616
      %v5500 = vunpack.c.h.b16 %v1616
      %v5501 = vunpack.c.l.b16 %v1617
      %v5502 = vunpack.c.h.b16 %v1617
      %v5503 = vunpack.c.l.b16 %v1618
      %v5504 = vunpack.c.h.b16 %v1618
      %v5505 = vunpack.c.l.b16 %v1619
      %v5506 = vunpack.c.h.b16 %v1619
      %v5507 = vunpack.c.l.b16 %v1620
      %v5508 = vunpack.c.h.b16 %v1620
      %v5509 = vunpack.c.l.b16 %v1621
      %v5510 = vunpack.c.h.b16 %v1621
      %v5511 = vunpack.c.l.b16 %v1622
      %v5512 = vunpack.c.h.b16 %v1622
      %v5513 = vunpack.c.l.b16 %v1623
      %v5514 = vunpack.c.h.b16 %v1623
      %v5515 = vunpack.c.l.b16 %v1624
      %v5516 = vunpack.c.h.b16 %v1624
      %v5517 = vunpack.c.l.b16 %v1625
      %v5518 = vunpack.c.h.b16 %v1625
      %v5519 = vunpack.c.l.b16 %v1626
      %v5520 = vunpack.c.h.b16 %v1626
      %v5521 = vunpack.c.l.b16 %v1627
      %v5522 = vunpack.c.h.b16 %v1627
      %v5523 = vunpack.c.l.b16 %v1628
      %v5524 = vunpack.c.h.b16 %v1628
      %v5525 = vunpack.c.l.b16 %v1629
      %v5526 = vunpack.c.h.b16 %v1629
      %v5527 = vunpack.c.l.b16 %v1630
      %v5528 = vunpack.c.h.b16 %v1630
      %v5529 = vunpack.c.l.b16 %v1631
      %v5530 = vunpack.c.h.b16 %v1631
      %v5531 = vunpack.c.l.b16 %v1632
      %v5532 = vunpack.c.h.b16 %v1632
      %v5533 = vunpack.c.l.b16 %v1633
      %v5534 = vunpack.c.h.b16 %v1633
      %v5535 = vunpack.c.l.b16 %v1634
      %v5536 = vunpack.c.h.b16 %v1634
      %v5537 = vunpack.c.l.b16 %v1635
      %v5538 = vunpack.c.h.b16 %v1635
      %v5539 = vunpack.c.l.b16 %v1636
      %v5540 = vunpack.c.h.b16 %v1636
      %v5541 = vunpack.c.l.b16 %v1637
      %v5542 = vunpack.c.h.b16 %v1637
      %v5543 = vunpack.c.l.b16 %v1638
      %v5544 = vunpack.c.h.b16 %v1638
      %v5545 = vunpack.c.l.b16 %v1639
      %v5546 = vunpack.c.h.b16 %v1639
      %v5547 = vunpack.c.l.b16 %v1640
      %v5548 = vunpack.c.h.b16 %v1640
      %v5549 = vunpack.c.l.b16 %v1641
      %v5550 = vunpack.c.h.b16 %v1641
      %v5551 = vunpack.c.l.b16 %v1642
      %v5552 = vunpack.c.h.b16 %v1642
      %v5553 = vunpack.c.l.b16 %v1643
      %v5554 = vunpack.c.h.b16 %v1643
      %v5555 = vunpack.c.l.b16 %v1644
      %v5556 = vunpack.c.h.b16 %v1644
      %v5557 = vunpack.c.l.b16 %v1645
      %v5558 = vunpack.c.h.b16 %v1645
      %v5559 = vunpack.c.l.b16 %v1646
      %v5560 = vunpack.c.h.b16 %v1646
      %v5561 = vunpack.c.l.b16 %v1647
      %v5562 = vunpack.c.h.b16 %v1647
      %v5563 = vunpack.c.l.b16 %v1648
      %v5564 = vunpack.c.h.b16 %v1648
      %v5565 = vunpack.c.l.b16 %v1649
      %v5566 = vunpack.c.h.b16 %v1649
      %v5567 = vunpack.c.l.b16 %v1650
      %v5568 = vunpack.c.h.b16 %v1650
      %v5569 = vunpack.c.l.b16 %v1651
      %v5570 = vunpack.c.h.b16 %v1651
      %v5571 = vunpack.c.l.b16 %v1652
      %v5572 = vunpack.c.h.b16 %v1652
      %v5573 = vunpack.c.l.b16 %v1653
      %v5574 = vunpack.c.h.b16 %v1653
      %v5575 = vunpack.c.l.b16 %v1654
      %v5576 = vunpack.c.h.b16 %v1654
      %v5577 = vunpack.c.l.b16 %v1655
      %v5578 = vunpack.c.h.b16 %v1655
      %v5579 = vunpack.c.l.b16 %v1656
      %v5580 = vunpack.c.h.b16 %v1656
      %v5581 = vunpack.c.l.b16 %v1657
      %v5582 = vunpack.c.h.b16 %v1657
      %v5583 = vunpack.c.l.b16 %v1658
      %v5584 = vunpack.c.h.b16 %v1658
      %v5585 = vunpack.c.l.b16 %v1659
      %v5586 = vunpack.c.h.b16 %v1659
      %v5587 = vunpack.c.l.b16 %v1660
      %v5588 = vunpack.c.h.b16 %v1660
      %v5589 = vunpack.c.l.b16 %v1661
      %v5590 = vunpack.c.h.b16 %v1661
      %v5591 = vunpack.c.l.b16 %v1662
      %v5592 = vunpack.c.h.b16 %v1662
      %v5593 = vunpack.c.l.b16 %v1663
      %v5594 = vunpack.c.h.b16 %v1663
      %v5595 = vunpack.c.l.b16 %v1664
      %v5596 = vunpack.c.h.b16 %v1664
      %v5597 = vunpack.c.l.b16 %v1665
      %v5598 = vunpack.c.h.b16 %v1665
      %v5599 = vunpack.c.l.b16 %v1666
      %v5600 = vunpack.c.h.b16 %v1666
      %v5601 = vunpack.c.l.b16 %v1667
      %v5602 = vunpack.c.h.b16 %v1667
      %v5603 = vunpack.c.l.b16 %v1668
      %v5604 = vunpack.c.h.b16 %v1668
      %v5605 = vunpack.c.l.b16 %v1669
      %v5606 = vunpack.c.h.b16 %v1669
      %v5607 = vunpack.c.l.b16 %v1670
      %v5608 = vunpack.c.h.b16 %v1670
      %v5609 = vunpack.c.l.b16 %v1671
      %v5610 = vunpack.c.h.b16 %v1671
      %v5611 = vunpack.c.l.b16 %v1672
      %v5612 = vunpack.c.h.b16 %v1672
      %v5613 = vunpack.c.l.b16 %v1673
      %v5614 = vunpack.c.h.b16 %v1673
      %v5615 = vunpack.c.l.b16 %v1674
      %v5616 = vunpack.c.h.b16 %v1674
      %v5617 = vunpack.c.l.b16 %v1675
      %v5618 = vunpack.c.h.b16 %v1675
      %v5619 = vunpack.c.l.b16 %v1676
      %v5620 = vunpack.c.h.b16 %v1676
      %v5621 = vunpack.c.l.b16 %v1677
      %v5622 = vunpack.c.h.b16 %v1677
      %v5623 = vunpack.c.l.b16 %v1678
      %v5624 = vunpack.c.h.b16 %v1678
      %v5625 = vunpack.c.l.b16 %v1679
      %v5626 = vunpack.c.h.b16 %v1679
      %v5627 = vunpack.c.l.b16 %v1680
      %v5628 = vunpack.c.h.b16 %v1680
      %v5629 = vunpack.c.l.b16 %v1681
      %v5630 = vunpack.c.h.b16 %v1681
      %v5631 = vunpack.c.l.b16 %v1682
      %v5632 = vunpack.c.h.b16 %v1682
      %v5633 = vunpack.c.l.b16 %v1683
      %v5634 = vunpack.c.h.b16 %v1683
      %v5635 = vunpack.c.l.b16 %v1684
      %v5636 = vunpack.c.h.b16 %v1684
      %v5637 = vunpack.c.l.b16 %v1685
      %v5638 = vunpack.c.h.b16 %v1685
      %v5639 = vunpack.c.l.b16 %v1686
      %v5640 = vunpack.c.h.b16 %v1686
      %v5641 = vunpack.c.l.b16 %v1687
      %v5642 = vunpack.c.h.b16 %v1687
      %v5643 = vunpack.c.l.b16 %v1688
      %v5644 = vunpack.c.h.b16 %v1688
      %v5645 = vunpack.c.l.b16 %v1689
      %v5646 = vunpack.c.h.b16 %v1689
      %v5647 = vunpack.c.l.b16 %v1690
      %v5648 = vunpack.c.h.b16 %v1690
      %v5649 = vunpack.c.l.b16 %v1691
      %v5650 = vunpack.c.h.b16 %v1691
      %v5651 = vunpack.c.l.b16 %v1692
      %v5652 = vunpack.c.h.b16 %v1692
      %v5653 = vunpack.c.l.b16 %v1693
      %v5654 = vunpack.c.h.b16 %v1693
      %v5655 = vunpack.c.l.b16 %v1694
      %v5656 = vunpack.c.h.b16 %v1694
      %v5657 = vunpack.c.l.b16 %v1695
      %v5658 = vunpack.c.h.b16 %v1695
      %v5659 = vunpack.c.l.b16 %v1696
      %v5660 = vunpack.c.h.b16 %v1696
      %v5661 = vunpack.c.l.b16 %v1697
      %v5662 = vunpack.c.h.b16 %v1697
      %v5663 = vunpack.c.l.b16 %v1698
      %v5664 = vunpack.c.h.b16 %v1698
      %v5665 = vunpack.c.l.b16 %v1699
      %v5666 = vunpack.c.h.b16 %v1699
      %v5667 = vunpack.c.l.b16 %v1700
      %v5668 = vunpack.c.h.b16 %v1700
      %v5669 = vunpack.c.l.b16 %v1701
      %v5670 = vunpack.c.h.b16 %v1701
      %v5671 = vunpack.c.l.b16 %v1702
      %v5672 = vunpack.c.h.b16 %v1702
      %v5673 = vunpack.c.l.b16 %v1703
      %v5674 = vunpack.c.h.b16 %v1703
      %v5675 = vunpack.c.l.b16 %v1704
      %v5676 = vunpack.c.h.b16 %v1704
      %v5677 = vunpack.c.l.b16 %v1705
      %v5678 = vunpack.c.h.b16 %v1705
      %v5679 = vunpack.c.l.b16 %v1706
      %v5680 = vunpack.c.h.b16 %v1706
      %v5681 = vunpack.c.l.b16 %v1707
      %v5682 = vunpack.c.h.b16 %v1707
      %v5683 = vpack.c.b16 %v3123, %v3115
      %v5684 = vpack.c.b16 %v3124, %v3116
      %v5685 = vpack.c.b16 %v3125, %v3117
      %v5686 = vpack.c.b16 %v3126, %v3118
      %v5687 = vpack.c.b16 %v3127, %v3119
      %v5688 = vpack.c.b16 %v3128, %v3120
      %v5689 = vpack.c.b16 %v3129, %v3121
      %v5690 = vpack.c.b16 %v3130, %v3122
      %v5691 = vpack.c.b16 %v3139, %v3131
      %v5692 = vpack.c.b16 %v3140, %v3132
      %v5693 = vpack.c.b16 %v3141, %v3133
      %v5694 = vpack.c.b16 %v3142, %v3134
      %v5695 = vpack.c.b16 %v3143, %v3135
      %v5696 = vpack.c.b16 %v3144, %v3136
      %v5697 = vpack.c.b16 %v3145, %v3137
      %v5698 = vpack.c.b16 %v3146, %v3138
      %v5699 = vpack.c.b16 %v3155, %v3147
      %v5700 = vpack.c.b16 %v3156, %v3148
      %v5701 = vpack.c.b16 %v3157, %v3149
      %v5702 = vpack.c.b16 %v3158, %v3150
      %v5703 = vpack.c.b16 %v3159, %v3151
      %v5704 = vpack.c.b16 %v3160, %v3152
      %v5705 = vpack.c.b16 %v3161, %v3153
      %v5706 = vpack.c.b16 %v3162, %v3154
      %v5707 = vpack.c.b16 %v3171, %v3163
      %v5708 = vpack.c.b16 %v3172, %v3164
      %v5709 = vpack.c.b16 %v3173, %v3165
      %v5710 = vpack.c.b16 %v3174, %v3166
      %v5711 = vpack.c.b16 %v3175, %v3167
      %v5712 = vpack.c.b16 %v3176, %v3168
      %v5713 = vpack.c.b16 %v3177, %v3169
      %v5714 = vpack.c.b16 %v3178, %v3170
      %v5715 = vpack.c.b16 %v3187, %v3179
      %v5716 = vpack.c.b16 %v3188, %v3180
      %v5717 = vpack.c.b16 %v3189, %v3181
      %v5718 = vpack.c.b16 %v3190, %v3182
      %v5719 = vpack.c.b16 %v3191, %v3183
      %v5720 = vpack.c.b16 %v3192, %v3184
      %v5721 = vpack.c.b16 %v3193, %v3185
      %v5722 = vpack.c.b16 %v3194, %v3186
      %v5723 = vpack.c.b16 %v3203, %v3195
      %v5724 = vpack.c.b16 %v3204, %v3196
      %v5725 = vpack.c.b16 %v3205, %v3197
      %v5726 = vpack.c.b16 %v3206, %v3198
      %v5727 = vpack.c.b16 %v3207, %v3199
      %v5728 = vpack.c.b16 %v3208, %v3200
      %v5729 = vpack.c.b16 %v3209, %v3201
      %v5730 = vpack.c.b16 %v3210, %v3202
      %v5731 = vpack.c.b16 %v3219, %v3211
      %v5732 = vpack.c.b16 %v3220, %v3212
      %v5733 = vpack.c.b16 %v3221, %v3213
      %v5734 = vpack.c.b16 %v3222, %v3214
      %v5735 = vpack.c.b16 %v3223, %v3215
      %v5736 = vpack.c.b16 %v3224, %v3216
      %v5737 = vpack.c.b16 %v3225, %v3217
      %v5738 = vpack.c.b16 %v3226, %v3218
      %v5739 = vpack.c.b16 %v3235, %v3227
      %v5740 = vpack.c.b16 %v3236, %v3228
      %v5741 = vpack.c.b16 %v3237, %v3229
      %v5742 = vpack.c.b16 %v3238, %v3230
      %v5743 = vpack.c.b16 %v3239, %v3231
      %v5744 = vpack.c.b16 %v3240, %v3232
      %v5745 = vpack.c.b16 %v3241, %v3233
      %v5746 = vpack.c.b16 %v3242, %v3234
      %v5747 = vpack.c.b16 %v3251, %v3243
      %v5748 = vpack.c.b16 %v3252, %v3244
      %v5749 = vpack.c.b16 %v3253, %v3245
      %v5750 = vpack.c.b16 %v3254, %v3246
      %v5751 = vpack.c.b16 %v3255, %v3247
      %v5752 = vpack.c.b16 %v3256, %v3248
      %v5753 = vpack.c.b16 %v3257, %v3249
      %v5754 = vpack.c.b16 %v3258, %v3250
      %v5755 = vpack.c.b16 %v3267, %v3259
      %v5756 = vpack.c.b16 %v3268, %v3260
      %v5757 = vpack.c.b16 %v3269, %v3261
      %v5758 = vpack.c.b16 %v3270, %v3262
      %v5759 = vpack.c.b16 %v3271, %v3263
      %v5760 = vpack.c.b16 %v3272, %v3264
      %v5761 = vpack.c.b16 %v3273, %v3265
      %v5762 = vpack.c.b16 %v3274, %v3266
      %v5763 = vpack.c.b16 %v3283, %v3275
      %v5764 = vpack.c.b16 %v3284, %v3276
      %v5765 = vpack.c.b16 %v3285, %v3277
      %v5766 = vpack.c.b16 %v3286, %v3278
      %v5767 = vpack.c.b16 %v3287, %v3279
      %v5768 = vpack.c.b16 %v3288, %v3280
      %v5769 = vpack.c.b16 %v3289, %v3281
      %v5770 = vpack.c.b16 %v3290, %v3282
      %v5771 = vpack.c.b16 %v3299, %v3291
      %v5772 = vpack.c.b16 %v3300, %v3292
      %v5773 = vpack.c.b16 %v3301, %v3293
      %v5774 = vpack.c.b16 %v3302, %v3294
      %v5775 = vpack.c.b16 %v3303, %v3295
      %v5776 = vpack.c.b16 %v3304, %v3296
      %v5777 = vpack.c.b16 %v3305, %v3297
      %v5778 = vpack.c.b16 %v3306, %v3298
      %v5779 = vpack.c.b16 %v3315, %v3307
      %v5780 = vpack.c.b16 %v3316, %v3308
      %v5781 = vpack.c.b16 %v3317, %v3309
      %v5782 = vpack.c.b16 %v3318, %v3310
      %v5783 = vpack.c.b16 %v3319, %v3311
      %v5784 = vpack.c.b16 %v3320, %v3312
      %v5785 = vpack.c.b16 %v3321, %v3313
      %v5786 = vpack.c.b16 %v3322, %v3314
      %v5787 = vpack.c.b16 %v3331, %v3323
      %v5788 = vpack.c.b16 %v3332, %v3324
      %v5789 = vpack.c.b16 %v3333, %v3325
      %v5790 = vpack.c.b16 %v3334, %v3326
      %v5791 = vpack.c.b16 %v3335, %v3327
      %v5792 = vpack.c.b16 %v3336, %v3328
      %v5793 = vpack.c.b16 %v3337, %v3329
      %v5794 = vpack.c.b16 %v3338, %v3330
      %v5795 = vpack.c.b16 %v3347, %v3339
      %v5796 = vpack.c.b16 %v3348, %v3340
      %v5797 = vpack.c.b16 %v3349, %v3341
      %v5798 = vpack.c.b16 %v3350, %v3342
      %v5799 = vpack.c.b16 %v3351, %v3343
      %v5800 = vpack.c.b16 %v3352, %v3344
      %v5801 = vpack.c.b16 %v3353, %v3345
      %v5802 = vpack.c.b16 %v3354, %v3346
      %v5803 = vpack.c.b16 %v3363, %v3355
      %v5804 = vpack.c.b16 %v3364, %v3356
      %v5805 = vpack.c.b16 %v3365, %v3357
      %v5806 = vpack.c.b16 %v3366, %v3358
      %v5807 = vpack.c.b16 %v3367, %v3359
      %v5808 = vpack.c.b16 %v3368, %v3360
      %v5809 = vpack.c.b16 %v3369, %v3361
      %v5810 = vpack.c.b16 %v3370, %v3362
      %v5811 = vpack.c.b16 %v3379, %v3371
      %v5812 = vpack.c.b16 %v3380, %v3372
      %v5813 = vpack.c.b16 %v3381, %v3373
      %v5814 = vpack.c.b16 %v3382, %v3374
      %v5815 = vpack.c.b16 %v3383, %v3375
      %v5816 = vpack.c.b16 %v3384, %v3376
      %v5817 = vpack.c.b16 %v3385, %v3377
      %v5818 = vpack.c.b16 %v3386, %v3378
      %v5819 = vpack.c.b16 %v3395, %v3387
      %v5820 = vpack.c.b16 %v3396, %v3388
      %v5821 = vpack.c.b16 %v3397, %v3389
      %v5822 = vpack.c.b16 %v3398, %v3390
      %v5823 = vpack.c.b16 %v3399, %v3391
      %v5824 = vpack.c.b16 %v3400, %v3392
      %v5825 = vpack.c.b16 %v3401, %v3393
      %v5826 = vpack.c.b16 %v3402, %v3394
      %v5827 = vpack.c.b16 %v3411, %v3403
      %v5828 = vpack.c.b16 %v3412, %v3404
      %v5829 = vpack.c.b16 %v3413, %v3405
      %v5830 = vpack.c.b16 %v3414, %v3406
      %v5831 = vpack.c.b16 %v3415, %v3407
      %v5832 = vpack.c.b16 %v3416, %v3408
      %v5833 = vpack.c.b16 %v3417, %v3409
      %v5834 = vpack.c.b16 %v3418, %v3410
      %v5835 = vpack.c.b16 %v3427, %v3419
      %v5836 = vpack.c.b16 %v3428, %v3420
      %v5837 = vpack.c.b16 %v3429, %v3421
      %v5838 = vpack.c.b16 %v3430, %v3422
      %v5839 = vpack.c.b16 %v3431, %v3423
      %v5840 = vpack.c.b16 %v3432, %v3424
      %v5841 = vpack.c.b16 %v3433, %v3425
      %v5842 = vpack.c.b16 %v3434, %v3426
      %v5843 = vpack.c.b16 %v3443, %v3435
      %v5844 = vpack.c.b16 %v3444, %v3436
      %v5845 = vpack.c.b16 %v3445, %v3437
      %v5846 = vpack.c.b16 %v3446, %v3438
      %v5847 = vpack.c.b16 %v3447, %v3439
      %v5848 = vpack.c.b16 %v3448, %v3440
      %v5849 = vpack.c.b16 %v3449, %v3441
      %v5850 = vpack.c.b16 %v3450, %v3442
      %v5851 = vpack.c.b16 %v3459, %v3451
      %v5852 = vpack.c.b16 %v3460, %v3452
      %v5853 = vpack.c.b16 %v3461, %v3453
      %v5854 = vpack.c.b16 %v3462, %v3454
      %v5855 = vpack.c.b16 %v3463, %v3455
      %v5856 = vpack.c.b16 %v3464, %v3456
      %v5857 = vpack.c.b16 %v3465, %v3457
      %v5858 = vpack.c.b16 %v3466, %v3458
      %v5859 = vpack.c.b16 %v3475, %v3467
      %v5860 = vpack.c.b16 %v3476, %v3468
      %v5861 = vpack.c.b16 %v3477, %v3469
      %v5862 = vpack.c.b16 %v3478, %v3470
      %v5863 = vpack.c.b16 %v3479, %v3471
      %v5864 = vpack.c.b16 %v3480, %v3472
      %v5865 = vpack.c.b16 %v3481, %v3473
      %v5866 = vpack.c.b16 %v3482, %v3474
      %v5867 = vpack.c.b16 %v3491, %v3483
      %v5868 = vpack.c.b16 %v3492, %v3484
      %v5869 = vpack.c.b16 %v3493, %v3485
      %v5870 = vpack.c.b16 %v3494, %v3486
      %v5871 = vpack.c.b16 %v3495, %v3487
      %v5872 = vpack.c.b16 %v3496, %v3488
      %v5873 = vpack.c.b16 %v3497, %v3489
      %v5874 = vpack.c.b16 %v3498, %v3490
      %v5875 = vpack.c.b16 %v3507, %v3499
      %v5876 = vpack.c.b16 %v3508, %v3500
      %v5877 = vpack.c.b16 %v3509, %v3501
      %v5878 = vpack.c.b16 %v3510, %v3502
      %v5879 = vpack.c.b16 %v3511, %v3503
      %v5880 = vpack.c.b16 %v3512, %v3504
      %v5881 = vpack.c.b16 %v3513, %v3505
      %v5882 = vpack.c.b16 %v3514, %v3506
      %v5883 = vpack.c.b16 %v3523, %v3515
      %v5884 = vpack.c.b16 %v3524, %v3516
      %v5885 = vpack.c.b16 %v3525, %v3517
      %v5886 = vpack.c.b16 %v3526, %v3518
      %v5887 = vpack.c.b16 %v3527, %v3519
      %v5888 = vpack.c.b16 %v3528, %v3520
      %v5889 = vpack.c.b16 %v3529, %v3521
      %v5890 = vpack.c.b16 %v3530, %v3522
      %v5891 = vpack.c.b16 %v3539, %v3531
      %v5892 = vpack.c.b16 %v3540, %v3532
      %v5893 = vpack.c.b16 %v3541, %v3533
      %v5894 = vpack.c.b16 %v3542, %v3534
      %v5895 = vpack.c.b16 %v3543, %v3535
      %v5896 = vpack.c.b16 %v3544, %v3536
      %v5897 = vpack.c.b16 %v3545, %v3537
      %v5898 = vpack.c.b16 %v3546, %v3538
      %v5899 = vpack.c.b16 %v3555, %v3547
      %v5900 = vpack.c.b16 %v3556, %v3548
      %v5901 = vpack.c.b16 %v3557, %v3549
      %v5902 = vpack.c.b16 %v3558, %v3550
      %v5903 = vpack.c.b16 %v3559, %v3551
      %v5904 = vpack.c.b16 %v3560, %v3552
      %v5905 = vpack.c.b16 %v3561, %v3553
      %v5906 = vpack.c.b16 %v3562, %v3554
      %v5907 = vpack.c.b16 %v3571, %v3563
      %v5908 = vpack.c.b16 %v3572, %v3564
      %v5909 = vpack.c.b16 %v3573, %v3565
      %v5910 = vpack.c.b16 %v3574, %v3566
      %v5911 = vpack.c.b16 %v3575, %v3567
      %v5912 = vpack.c.b16 %v3576, %v3568
      %v5913 = vpack.c.b16 %v3577, %v3569
      %v5914 = vpack.c.b16 %v3578, %v3570
      %v5915 = vpack.c.b16 %v3587, %v3579
      %v5916 = vpack.c.b16 %v3588, %v3580
      %v5917 = vpack.c.b16 %v3589, %v3581
      %v5918 = vpack.c.b16 %v3590, %v3582
      %v5919 = vpack.c.b16 %v3591, %v3583
      %v5920 = vpack.c.b16 %v3592, %v3584
      %v5921 = vpack.c.b16 %v3593, %v3585
      %v5922 = vpack.c.b16 %v3594, %v3586
      %v5923 = vpack.c.b16 %v3603, %v3595
      %v5924 = vpack.c.b16 %v3604, %v3596
      %v5925 = vpack.c.b16 %v3605, %v3597
      %v5926 = vpack.c.b16 %v3606, %v3598
      %v5927 = vpack.c.b16 %v3607, %v3599
      %v5928 = vpack.c.b16 %v3608, %v3600
      %v5929 = vpack.c.b16 %v3609, %v3601
      %v5930 = vpack.c.b16 %v3610, %v3602
      %v5931 = vpack.c.b16 %v3619, %v3611
      %v5932 = vpack.c.b16 %v3620, %v3612
      %v5933 = vpack.c.b16 %v3621, %v3613
      %v5934 = vpack.c.b16 %v3622, %v3614
      %v5935 = vpack.c.b16 %v3623, %v3615
      %v5936 = vpack.c.b16 %v3624, %v3616
      %v5937 = vpack.c.b16 %v3625, %v3617
      %v5938 = vpack.c.b16 %v3626, %v3618
      %v5939 = vpack.c.b16 %v3635, %v3627
      %v5940 = vpack.c.b16 %v3636, %v3628
      %v5941 = vpack.c.b16 %v3637, %v3629
      %v5942 = vpack.c.b16 %v3638, %v3630
      %v5943 = vpack.c.b16 %v3639, %v3631
      %v5944 = vpack.c.b16 %v3640, %v3632
      %v5945 = vpack.c.b16 %v3641, %v3633
      %v5946 = vpack.c.b16 %v3642, %v3634
      %v5947 = vpack.c.b16 %v3651, %v3643
      %v5948 = vpack.c.b16 %v3652, %v3644
      %v5949 = vpack.c.b16 %v3653, %v3645
      %v5950 = vpack.c.b16 %v3654, %v3646
      %v5951 = vpack.c.b16 %v3655, %v3647
      %v5952 = vpack.c.b16 %v3656, %v3648
      %v5953 = vpack.c.b16 %v3657, %v3649
      %v5954 = vpack.c.b16 %v3658, %v3650
      %v5955 = vpack.c.b16 %v3667, %v3659
      %v5956 = vpack.c.b16 %v3668, %v3660
      %v5957 = vpack.c.b16 %v3669, %v3661
      %v5958 = vpack.c.b16 %v3670, %v3662
      %v5959 = vpack.c.b16 %v3671, %v3663
      %v5960 = vpack.c.b16 %v3672, %v3664
      %v5961 = vpack.c.b16 %v3673, %v3665
      %v5962 = vpack.c.b16 %v3674, %v3666
      %v5963 = vpack.c.b16 %v3683, %v3675
      %v5964 = vpack.c.b16 %v3684, %v3676
      %v5965 = vpack.c.b16 %v3685, %v3677
      %v5966 = vpack.c.b16 %v3686, %v3678
      %v5967 = vpack.c.b16 %v3687, %v3679
      %v5968 = vpack.c.b16 %v3688, %v3680
      %v5969 = vpack.c.b16 %v3689, %v3681
      %v5970 = vpack.c.b16 %v3690, %v3682
      %v5971 = vpack.c.b16 %v3699, %v3691
      %v5972 = vpack.c.b16 %v3700, %v3692
      %v5973 = vpack.c.b16 %v3701, %v3693
      %v5974 = vpack.c.b16 %v3702, %v3694
      %v5975 = vpack.c.b16 %v3703, %v3695
      %v5976 = vpack.c.b16 %v3704, %v3696
      %v5977 = vpack.c.b16 %v3705, %v3697
      %v5978 = vpack.c.b16 %v3706, %v3698
      %v5979 = vpack.c.b16 %v3715, %v3707
      %v5980 = vpack.c.b16 %v3716, %v3708
      %v5981 = vpack.c.b16 %v3717, %v3709
      %v5982 = vpack.c.b16 %v3718, %v3710
      %v5983 = vpack.c.b16 %v3719, %v3711
      %v5984 = vpack.c.b16 %v3720, %v3712
      %v5985 = vpack.c.b16 %v3721, %v3713
      %v5986 = vpack.c.b16 %v3722, %v3714
      %v5987 = vpack.c.b16 %v3731, %v3723
      %v5988 = vpack.c.b16 %v3732, %v3724
      %v5989 = vpack.c.b16 %v3733, %v3725
      %v5990 = vpack.c.b16 %v3734, %v3726
      %v5991 = vpack.c.b16 %v3735, %v3727
      %v5992 = vpack.c.b16 %v3736, %v3728
      %v5993 = vpack.c.b16 %v3737, %v3729
      %v5994 = vpack.c.b16 %v3738, %v3730
      %v5995 = vpack.c.b16 %v3747, %v3739
      %v5996 = vpack.c.b16 %v3748, %v3740
      %v5997 = vpack.c.b16 %v3749, %v3741
      %v5998 = vpack.c.b16 %v3750, %v3742
      %v5999 = vpack.c.b16 %v3751, %v3743
      %v6000 = vpack.c.b16 %v3752, %v3744
      %v6001 = vpack.c.b16 %v3753, %v3745
      %v6002 = vpack.c.b16 %v3754, %v3746
      %v6003 = vpack.c.b16 %v3763, %v3755
      %v6004 = vpack.c.b16 %v3764, %v3756
      %v6005 = vpack.c.b16 %v3765, %v3757
      %v6006 = vpack.c.b16 %v3766, %v3758
      %v6007 = vpack.c.b16 %v3767, %v3759
      %v6008 = vpack.c.b16 %v3768, %v3760
      %v6009 = vpack.c.b16 %v3769, %v3761
      %v6010 = vpack.c.b16 %v3770, %v3762
      %v6011 = vpack.c.b16 %v3779, %v3771
      %v6012 = vpack.c.b16 %v3780, %v3772
      %v6013 = vpack.c.b16 %v3781, %v3773
      %v6014 = vpack.c.b16 %v3782, %v3774
      %v6015 = vpack.c.b16 %v3783, %v3775
      %v6016 = vpack.c.b16 %v3784, %v3776
      %v6017 = vpack.c.b16 %v3785, %v3777
      %v6018 = vpack.c.b16 %v3786, %v3778
      %v6019 = vpack.c.b16 %v3795, %v3787
      %v6020 = vpack.c.b16 %v3796, %v3788
      %v6021 = vpack.c.b16 %v3797, %v3789
      %v6022 = vpack.c.b16 %v3798, %v3790
      %v6023 = vpack.c.b16 %v3799, %v3791
      %v6024 = vpack.c.b16 %v3800, %v3792
      %v6025 = vpack.c.b16 %v3801, %v3793
      %v6026 = vpack.c.b16 %v3802, %v3794
      %v6027 = vpack.c.b16 %v3811, %v3803
      %v6028 = vpack.c.b16 %v3812, %v3804
      %v6029 = vpack.c.b16 %v3813, %v3805
      %v6030 = vpack.c.b16 %v3814, %v3806
      %v6031 = vpack.c.b16 %v3815, %v3807
      %v6032 = vpack.c.b16 %v3816, %v3808
      %v6033 = vpack.c.b16 %v3817, %v3809
      %v6034 = vpack.c.b16 %v3818, %v3810
      %v6035 = vpack.c.b16 %v3827, %v3819
      %v6036 = vpack.c.b16 %v3828, %v3820
      %v6037 = vpack.c.b16 %v3829, %v3821
      %v6038 = vpack.c.b16 %v3830, %v3822
      %v6039 = vpack.c.b16 %v3831, %v3823
      %v6040 = vpack.c.b16 %v3832, %v3824
      %v6041 = vpack.c.b16 %v3833, %v3825
      %v6042 = vpack.c.b16 %v3834, %v3826
      %v6043 = vpack.c.b16 %v3843, %v3835
      %v6044 = vpack.c.b16 %v3844, %v3836
      %v6045 = vpack.c.b16 %v3845, %v3837
      %v6046 = vpack.c.b16 %v3846, %v3838
      %v6047 = vpack.c.b16 %v3847, %v3839
      %v6048 = vpack.c.b16 %v3848, %v3840
      %v6049 = vpack.c.b16 %v3849, %v3841
      %v6050 = vpack.c.b16 %v3850, %v3842
      %v6051 = vpack.c.b16 %v3859, %v3851
      %v6052 = vpack.c.b16 %v3860, %v3852
      %v6053 = vpack.c.b16 %v3861, %v3853
      %v6054 = vpack.c.b16 %v3862, %v3854
      %v6055 = vpack.c.b16 %v3863, %v3855
      %v6056 = vpack.c.b16 %v3864, %v3856
      %v6057 = vpack.c.b16 %v3865, %v3857
      %v6058 = vpack.c.b16 %v3866, %v3858
      %v6059 = vpack.c.b16 %v3875, %v3867
      %v6060 = vpack.c.b16 %v3876, %v3868
      %v6061 = vpack.c.b16 %v3877, %v3869
      %v6062 = vpack.c.b16 %v3878, %v3870
      %v6063 = vpack.c.b16 %v3879, %v3871
      %v6064 = vpack.c.b16 %v3880, %v3872
      %v6065 = vpack.c.b16 %v3881, %v3873
      %v6066 = vpack.c.b16 %v3882, %v3874
      %v6067 = vpack.c.b16 %v3891, %v3883
      %v6068 = vpack.c.b16 %v3892, %v3884
      %v6069 = vpack.c.b16 %v3893, %v3885
      %v6070 = vpack.c.b16 %v3894, %v3886
      %v6071 = vpack.c.b16 %v3895, %v3887
      %v6072 = vpack.c.b16 %v3896, %v3888
      %v6073 = vpack.c.b16 %v3897, %v3889
      %v6074 = vpack.c.b16 %v3898, %v3890
      %v6075 = vpack.c.b16 %v3907, %v3899
      %v6076 = vpack.c.b16 %v3908, %v3900
      %v6077 = vpack.c.b16 %v3909, %v3901
      %v6078 = vpack.c.b16 %v3910, %v3902
      %v6079 = vpack.c.b16 %v3911, %v3903
      %v6080 = vpack.c.b16 %v3912, %v3904
      %v6081 = vpack.c.b16 %v3913, %v3905
      %v6082 = vpack.c.b16 %v3914, %v3906
      %v6083 = vpack.c.b16 %v3923, %v3915
      %v6084 = vpack.c.b16 %v3924, %v3916
      %v6085 = vpack.c.b16 %v3925, %v3917
      %v6086 = vpack.c.b16 %v3926, %v3918
      %v6087 = vpack.c.b16 %v3927, %v3919
      %v6088 = vpack.c.b16 %v3928, %v3920
      %v6089 = vpack.c.b16 %v3929, %v3921
      %v6090 = vpack.c.b16 %v3930, %v3922
      %v6091 = vpack.c.b16 %v3939, %v3931
      %v6092 = vpack.c.b16 %v3940, %v3932
      %v6093 = vpack.c.b16 %v3941, %v3933
      %v6094 = vpack.c.b16 %v3942, %v3934
      %v6095 = vpack.c.b16 %v3943, %v3935
      %v6096 = vpack.c.b16 %v3944, %v3936
      %v6097 = vpack.c.b16 %v3945, %v3937
      %v6098 = vpack.c.b16 %v3946, %v3938
      %v6099 = vpack.c.b16 %v3955, %v3947
      %v6100 = vpack.c.b16 %v3956, %v3948
      %v6101 = vpack.c.b16 %v3957, %v3949
      %v6102 = vpack.c.b16 %v3958, %v3950
      %v6103 = vpack.c.b16 %v3959, %v3951
      %v6104 = vpack.c.b16 %v3960, %v3952
      %v6105 = vpack.c.b16 %v3961, %v3953
      %v6106 = vpack.c.b16 %v3962, %v3954
      %v6107 = vpack.c.b16 %v3971, %v3963
      %v6108 = vpack.c.b16 %v3972, %v3964
      %v6109 = vpack.c.b16 %v3973, %v3965
      %v6110 = vpack.c.b16 %v3974, %v3966
      %v6111 = vpack.c.b16 %v3975, %v3967
      %v6112 = vpack.c.b16 %v3976, %v3968
      %v6113 = vpack.c.b16 %v3977, %v3969
      %v6114 = vpack.c.b16 %v3978, %v3970
      %v6115 = vpack.c.b16 %v3987, %v3979
      %v6116 = vpack.c.b16 %v3988, %v3980
      %v6117 = vpack.c.b16 %v3989, %v3981
      %v6118 = vpack.c.b16 %v3990, %v3982
      %v6119 = vpack.c.b16 %v3991, %v3983
      %v6120 = vpack.c.b16 %v3992, %v3984
      %v6121 = vpack.c.b16 %v3993, %v3985
      %v6122 = vpack.c.b16 %v3994, %v3986
      %v6123 = vpack.c.b16 %v4003, %v3995
      %v6124 = vpack.c.b16 %v4004, %v3996
      %v6125 = vpack.c.b16 %v4005, %v3997
      %v6126 = vpack.c.b16 %v4006, %v3998
      %v6127 = vpack.c.b16 %v4007, %v3999
      %v6128 = vpack.c.b16 %v4008, %v4000
      %v6129 = vpack.c.b16 %v4009, %v4001
      %v6130 = vpack.c.b16 %v4010, %v4002
      %v6131 = vpack.c.b16 %v4019, %v4011
      %v6132 = vpack.c.b16 %v4020, %v4012
      %v6133 = vpack.c.b16 %v4021, %v4013
      %v6134 = vpack.c.b16 %v4022, %v4014
      %v6135 = vpack.c.b16 %v4023, %v4015
      %v6136 = vpack.c.b16 %v4024, %v4016
      %v6137 = vpack.c.b16 %v4025, %v4017
      %v6138 = vpack.c.b16 %v4026, %v4018
      %v6139 = vpack.c.b16 %v4035, %v4027
      %v6140 = vpack.c.b16 %v4036, %v4028
      %v6141 = vpack.c.b16 %v4037, %v4029
      %v6142 = vpack.c.b16 %v4038, %v4030
      %v6143 = vpack.c.b16 %v4039, %v4031
      %v6144 = vpack.c.b16 %v4040, %v4032
      %v6145 = vpack.c.b16 %v4041, %v4033
      %v6146 = vpack.c.b16 %v4042, %v4034
      %v6147 = vpack.c.b16 %v4051, %v4043
      %v6148 = vpack.c.b16 %v4052, %v4044
      %v6149 = vpack.c.b16 %v4053, %v4045
      %v6150 = vpack.c.b16 %v4054, %v4046
      %v6151 = vpack.c.b16 %v4055, %v4047
      %v6152 = vpack.c.b16 %v4056, %v4048
      %v6153 = vpack.c.b16 %v4057, %v4049
      %v6154 = vpack.c.b16 %v4058, %v4050
      %v6155 = vpack.c.b16 %v4067, %v4059
      %v6156 = vpack.c.b16 %v4068, %v4060
      %v6157 = vpack.c.b16 %v4069, %v4061
      %v6158 = vpack.c.b16 %v4070, %v4062
      %v6159 = vpack.c.b16 %v4071, %v4063
      %v6160 = vpack.c.b16 %v4072, %v4064
      %v6161 = vpack.c.b16 %v4073, %v4065
      %v6162 = vpack.c.b16 %v4074, %v4066
      %v6163 = vpack.c.b16 %v4083, %v4075
      %v6164 = vpack.c.b16 %v4084, %v4076
      %v6165 = vpack.c.b16 %v4085, %v4077
      %v6166 = vpack.c.b16 %v4086, %v4078
      %v6167 = vpack.c.b16 %v4087, %v4079
      %v6168 = vpack.c.b16 %v4088, %v4080
      %v6169 = vpack.c.b16 %v4089, %v4081
      %v6170 = vpack.c.b16 %v4090, %v4082
      %v6171 = vpack.c.b16 %v4099, %v4091
      %v6172 = vpack.c.b16 %v4100, %v4092
      %v6173 = vpack.c.b16 %v4101, %v4093
      %v6174 = vpack.c.b16 %v4102, %v4094
      %v6175 = vpack.c.b16 %v4103, %v4095
      %v6176 = vpack.c.b16 %v4104, %v4096
      %v6177 = vpack.c.b16 %v4105, %v4097
      %v6178 = vpack.c.b16 %v4106, %v4098
      %v6179 = vpack.c.b16 %v4115, %v4107
      %v6180 = vpack.c.b16 %v4116, %v4108
      %v6181 = vpack.c.b16 %v4117, %v4109
      %v6182 = vpack.c.b16 %v4118, %v4110
      %v6183 = vpack.c.b16 %v4119, %v4111
      %v6184 = vpack.c.b16 %v4120, %v4112
      %v6185 = vpack.c.b16 %v4121, %v4113
      %v6186 = vpack.c.b16 %v4122, %v4114
      %v6187 = vpack.c.b16 %v4131, %v4123
      %v6188 = vpack.c.b16 %v4132, %v4124
      %v6189 = vpack.c.b16 %v4133, %v4125
      %v6190 = vpack.c.b16 %v4134, %v4126
      %v6191 = vpack.c.b16 %v4135, %v4127
      %v6192 = vpack.c.b16 %v4136, %v4128
      %v6193 = vpack.c.b16 %v4137, %v4129
      %v6194 = vpack.c.b16 %v4138, %v4130
      %v6195 = vpack.c.b16 %v4147, %v4139
      %v6196 = vpack.c.b16 %v4148, %v4140
      %v6197 = vpack.c.b16 %v4149, %v4141
      %v6198 = vpack.c.b16 %v4150, %v4142
      %v6199 = vpack.c.b16 %v4151, %v4143
      %v6200 = vpack.c.b16 %v4152, %v4144
      %v6201 = vpack.c.b16 %v4153, %v4145
      %v6202 = vpack.c.b16 %v4154, %v4146
      %v6203 = vpack.c.b16 %v4163, %v4155
      %v6204 = vpack.c.b16 %v4164, %v4156
      %v6205 = vpack.c.b16 %v4165, %v4157
      %v6206 = vpack.c.b16 %v4166, %v4158
      %v6207 = vpack.c.b16 %v4167, %v4159
      %v6208 = vpack.c.b16 %v4168, %v4160
      %v6209 = vpack.c.b16 %v4169, %v4161
      %v6210 = vpack.c.b16 %v4170, %v4162
      %v6211 = vpack.c.b16 %v4179, %v4171
      %v6212 = vpack.c.b16 %v4180, %v4172
      %v6213 = vpack.c.b16 %v4181, %v4173
      %v6214 = vpack.c.b16 %v4182, %v4174
      %v6215 = vpack.c.b16 %v4183, %v4175
      %v6216 = vpack.c.b16 %v4184, %v4176
      %v6217 = vpack.c.b16 %v4185, %v4177
      %v6218 = vpack.c.b16 %v4186, %v4178
      %v6219 = vpack.c.b16 %v4195, %v4187
      %v6220 = vpack.c.b16 %v4196, %v4188
      %v6221 = vpack.c.b16 %v4197, %v4189
      %v6222 = vpack.c.b16 %v4198, %v4190
      %v6223 = vpack.c.b16 %v4199, %v4191
      %v6224 = vpack.c.b16 %v4200, %v4192
      %v6225 = vpack.c.b16 %v4201, %v4193
      %v6226 = vpack.c.b16 %v4202, %v4194
      %v6227 = vpack.c.b16 %v4211, %v4203
      %v6228 = vpack.c.b16 %v4212, %v4204
      %v6229 = vpack.c.b16 %v4213, %v4205
      %v6230 = vpack.c.b16 %v4214, %v4206
      %v6231 = vpack.c.b16 %v4215, %v4207
      %v6232 = vpack.c.b16 %v4216, %v4208
      %v6233 = vpack.c.b16 %v4217, %v4209
      %v6234 = vpack.c.b16 %v4218, %v4210
      %v6235 = vpack.c.b16 %v4227, %v4219
      %v6236 = vpack.c.b16 %v4228, %v4220
      %v6237 = vpack.c.b16 %v4229, %v4221
      %v6238 = vpack.c.b16 %v4230, %v4222
      %v6239 = vpack.c.b16 %v4231, %v4223
      %v6240 = vpack.c.b16 %v4232, %v4224
      %v6241 = vpack.c.b16 %v4233, %v4225
      %v6242 = vpack.c.b16 %v4234, %v4226
      %v6243 = vpack.c.b16 %v4243, %v4235
      %v6244 = vpack.c.b16 %v4244, %v4236
      %v6245 = vpack.c.b16 %v4245, %v4237
      %v6246 = vpack.c.b16 %v4246, %v4238
      %v6247 = vpack.c.b16 %v4247, %v4239
      %v6248 = vpack.c.b16 %v4248, %v4240
      %v6249 = vpack.c.b16 %v4249, %v4241
      %v6250 = vpack.c.b16 %v4250, %v4242
      %v6251 = vpack.c.b16 %v4259, %v4251
      %v6252 = vpack.c.b16 %v4260, %v4252
      %v6253 = vpack.c.b16 %v4261, %v4253
      %v6254 = vpack.c.b16 %v4262, %v4254
      %v6255 = vpack.c.b16 %v4263, %v4255
      %v6256 = vpack.c.b16 %v4264, %v4256
      %v6257 = vpack.c.b16 %v4265, %v4257
      %v6258 = vpack.c.b16 %v4266, %v4258
      %v6259 = vpack.c.b16 %v4275, %v4267
      %v6260 = vpack.c.b16 %v4276, %v4268
      %v6261 = vpack.c.b16 %v4277, %v4269
      %v6262 = vpack.c.b16 %v4278, %v4270
      %v6263 = vpack.c.b16 %v4279, %v4271
      %v6264 = vpack.c.b16 %v4280, %v4272
      %v6265 = vpack.c.b16 %v4281, %v4273
      %v6266 = vpack.c.b16 %v4282, %v4274
      %v6267 = vpack.c.b16 %v4291, %v4283
      %v6268 = vpack.c.b16 %v4292, %v4284
      %v6269 = vpack.c.b16 %v4293, %v4285
      %v6270 = vpack.c.b16 %v4294, %v4286
      %v6271 = vpack.c.b16 %v4295, %v4287
      %v6272 = vpack.c.b16 %v4296, %v4288
      %v6273 = vpack.c.b16 %v4297, %v4289
      %v6274 = vpack.c.b16 %v4298, %v4290
      %v6275 = vpack.c.b16 %v4307, %v4299
      %v6276 = vpack.c.b16 %v4308, %v4300
      %v6277 = vpack.c.b16 %v4309, %v4301
      %v6278 = vpack.c.b16 %v4310, %v4302
      %v6279 = vpack.c.b16 %v4311, %v4303
      %v6280 = vpack.c.b16 %v4312, %v4304
      %v6281 = vpack.c.b16 %v4313, %v4305
      %v6282 = vpack.c.b16 %v4314, %v4306
      %v6283 = vpack.c.b16 %v4323, %v4315
      %v6284 = vpack.c.b16 %v4324, %v4316
      %v6285 = vpack.c.b16 %v4325, %v4317
      %v6286 = vpack.c.b16 %v4326, %v4318
      %v6287 = vpack.c.b16 %v4327, %v4319
      %v6288 = vpack.c.b16 %v4328, %v4320
      %v6289 = vpack.c.b16 %v4329, %v4321
      %v6290 = vpack.c.b16 %v4330, %v4322
      %v6291 = vpack.c.b16 %v4339, %v4331
      %v6292 = vpack.c.b16 %v4340, %v4332
      %v6293 = vpack.c.b16 %v4341, %v4333
      %v6294 = vpack.c.b16 %v4342, %v4334
      %v6295 = vpack.c.b16 %v4343, %v4335
      %v6296 = vpack.c.b16 %v4344, %v4336
      %v6297 = vpack.c.b16 %v4345, %v4337
      %v6298 = vpack.c.b16 %v4346, %v4338
      %v6299 = vpack.c.b16 %v4355, %v4347
      %v6300 = vpack.c.b16 %v4356, %v4348
      %v6301 = vpack.c.b16 %v4357, %v4349
      %v6302 = vpack.c.b16 %v4358, %v4350
      %v6303 = vpack.c.b16 %v4359, %v4351
      %v6304 = vpack.c.b16 %v4360, %v4352
      %v6305 = vpack.c.b16 %v4361, %v4353
      %v6306 = vpack.c.b16 %v4362, %v4354
      %v6307 = vpack.c.b16 %v4371, %v4363
      %v6308 = vpack.c.b16 %v4372, %v4364
      %v6309 = vpack.c.b16 %v4373, %v4365
      %v6310 = vpack.c.b16 %v4374, %v4366
      %v6311 = vpack.c.b16 %v4375, %v4367
      %v6312 = vpack.c.b16 %v4376, %v4368
      %v6313 = vpack.c.b16 %v4377, %v4369
      %v6314 = vpack.c.b16 %v4378, %v4370
      %v6315 = vpack.c.b16 %v4387, %v4379
      %v6316 = vpack.c.b16 %v4388, %v4380
      %v6317 = vpack.c.b16 %v4389, %v4381
      %v6318 = vpack.c.b16 %v4390, %v4382
      %v6319 = vpack.c.b16 %v4391, %v4383
      %v6320 = vpack.c.b16 %v4392, %v4384
      %v6321 = vpack.c.b16 %v4393, %v4385
      %v6322 = vpack.c.b16 %v4394, %v4386
      %v6323 = vpack.c.b16 %v4403, %v4395
      %v6324 = vpack.c.b16 %v4404, %v4396
      %v6325 = vpack.c.b16 %v4405, %v4397
      %v6326 = vpack.c.b16 %v4406, %v4398
      %v6327 = vpack.c.b16 %v4407, %v4399
      %v6328 = vpack.c.b16 %v4408, %v4400
      %v6329 = vpack.c.b16 %v4409, %v4401
      %v6330 = vpack.c.b16 %v4410, %v4402
      %v6331 = vpack.c.b16 %v4419, %v4411
      %v6332 = vpack.c.b16 %v4420, %v4412
      %v6333 = vpack.c.b16 %v4421, %v4413
      %v6334 = vpack.c.b16 %v4422, %v4414
      %v6335 = vpack.c.b16 %v4423, %v4415
      %v6336 = vpack.c.b16 %v4424, %v4416
      %v6337 = vpack.c.b16 %v4425, %v4417
      %v6338 = vpack.c.b16 %v4426, %v4418
      %v6339 = vpack.c.b16 %v4435, %v4427
      %v6340 = vpack.c.b16 %v4436, %v4428
      %v6341 = vpack.c.b16 %v4437, %v4429
      %v6342 = vpack.c.b16 %v4438, %v4430
      %v6343 = vpack.c.b16 %v4439, %v4431
      %v6344 = vpack.c.b16 %v4440, %v4432
      %v6345 = vpack.c.b16 %v4441, %v4433
      %v6346 = vpack.c.b16 %v4442, %v4434
      %v6347 = vpack.c.b16 %v4451, %v4443
      %v6348 = vpack.c.b16 %v4452, %v4444
      %v6349 = vpack.c.b16 %v4453, %v4445
      %v6350 = vpack.c.b16 %v4454, %v4446
      %v6351 = vpack.c.b16 %v4455, %v4447
      %v6352 = vpack.c.b16 %v4456, %v4448
      %v6353 = vpack.c.b16 %v4457, %v4449
      %v6354 = vpack.c.b16 %v4458, %v4450
      %v6355 = vpack.c.b16 %v4467, %v4459
      %v6356 = vpack.c.b16 %v4468, %v4460
      %v6357 = vpack.c.b16 %v4469, %v4461
      %v6358 = vpack.c.b16 %v4470, %v4462
      %v6359 = vpack.c.b16 %v4471, %v4463
      %v6360 = vpack.c.b16 %v4472, %v4464
      %v6361 = vpack.c.b16 %v4473, %v4465
      %v6362 = vpack.c.b16 %v4474, %v4466
      %v6363 = vpack.c.b16 %v4483, %v4475
      %v6364 = vpack.c.b16 %v4484, %v4476
      %v6365 = vpack.c.b16 %v4485, %v4477
      %v6366 = vpack.c.b16 %v4486, %v4478
      %v6367 = vpack.c.b16 %v4487, %v4479
      %v6368 = vpack.c.b16 %v4488, %v4480
      %v6369 = vpack.c.b16 %v4489, %v4481
      %v6370 = vpack.c.b16 %v4490, %v4482
      %v6371 = vpack.c.b16 %v4499, %v4491
      %v6372 = vpack.c.b16 %v4500, %v4492
      %v6373 = vpack.c.b16 %v4501, %v4493
      %v6374 = vpack.c.b16 %v4502, %v4494
      %v6375 = vpack.c.b16 %v4503, %v4495
      %v6376 = vpack.c.b16 %v4504, %v4496
      %v6377 = vpack.c.b16 %v4505, %v4497
      %v6378 = vpack.c.b16 %v4506, %v4498
      %v6379 = vpack.c.b16 %v4515, %v4507
      %v6380 = vpack.c.b16 %v4516, %v4508
      %v6381 = vpack.c.b16 %v4517, %v4509
      %v6382 = vpack.c.b16 %v4518, %v4510
      %v6383 = vpack.c.b16 %v4519, %v4511
      %v6384 = vpack.c.b16 %v4520, %v4512
      %v6385 = vpack.c.b16 %v4521, %v4513
      %v6386 = vpack.c.b16 %v4522, %v4514
      %v6387 = vpack.c.b16 %v4531, %v4523
      %v6388 = vpack.c.b16 %v4532, %v4524
      %v6389 = vpack.c.b16 %v4533, %v4525
      %v6390 = vpack.c.b16 %v4534, %v4526
      %v6391 = vpack.c.b16 %v4535, %v4527
      %v6392 = vpack.c.b16 %v4536, %v4528
      %v6393 = vpack.c.b16 %v4537, %v4529
      %v6394 = vpack.c.b16 %v4538, %v4530
      %v6395 = vpack.c.b16 %v4547, %v4539
      %v6396 = vpack.c.b16 %v4548, %v4540
      %v6397 = vpack.c.b16 %v4549, %v4541
      %v6398 = vpack.c.b16 %v4550, %v4542
      %v6399 = vpack.c.b16 %v4551, %v4543
      %v6400 = vpack.c.b16 %v4552, %v4544
      %v6401 = vpack.c.b16 %v4553, %v4545
      %v6402 = vpack.c.b16 %v4554, %v4546
      %v6403 = vpack.c.b16 %v4563, %v4555
      %v6404 = vpack.c.b16 %v4564, %v4556
      %v6405 = vpack.c.b16 %v4565, %v4557
      %v6406 = vpack.c.b16 %v4566, %v4558
      %v6407 = vpack.c.b16 %v4567, %v4559
      %v6408 = vpack.c.b16 %v4568, %v4560
      %v6409 = vpack.c.b16 %v4569, %v4561
      %v6410 = vpack.c.b16 %v4570, %v4562
      %v6411 = vpack.c.b16 %v4579, %v4571
      %v6412 = vpack.c.b16 %v4580, %v4572
      %v6413 = vpack.c.b16 %v4581, %v4573
      %v6414 = vpack.c.b16 %v4582, %v4574
      %v6415 = vpack.c.b16 %v4583, %v4575
      %v6416 = vpack.c.b16 %v4584, %v4576
      %v6417 = vpack.c.b16 %v4585, %v4577
      %v6418 = vpack.c.b16 %v4586, %v4578
      %v6419 = vpack.c.b16 %v4595, %v4587
      %v6420 = vpack.c.b16 %v4596, %v4588
      %v6421 = vpack.c.b16 %v4597, %v4589
      %v6422 = vpack.c.b16 %v4598, %v4590
      %v6423 = vpack.c.b16 %v4599, %v4591
      %v6424 = vpack.c.b16 %v4600, %v4592
      %v6425 = vpack.c.b16 %v4601, %v4593
      %v6426 = vpack.c.b16 %v4602, %v4594
      %v6427 = vpack.c.b16 %v4611, %v4603
      %v6428 = vpack.c.b16 %v4612, %v4604
      %v6429 = vpack.c.b16 %v4613, %v4605
      %v6430 = vpack.c.b16 %v4614, %v4606
      %v6431 = vpack.c.b16 %v4615, %v4607
      %v6432 = vpack.c.b16 %v4616, %v4608
      %v6433 = vpack.c.b16 %v4617, %v4609
      %v6434 = vpack.c.b16 %v4618, %v4610
      %v6435 = vpack.c.b16 %v4627, %v4619
      %v6436 = vpack.c.b16 %v4628, %v4620
      %v6437 = vpack.c.b16 %v4629, %v4621
      %v6438 = vpack.c.b16 %v4630, %v4622
      %v6439 = vpack.c.b16 %v4631, %v4623
      %v6440 = vpack.c.b16 %v4632, %v4624
      %v6441 = vpack.c.b16 %v4633, %v4625
      %v6442 = vpack.c.b16 %v4634, %v4626
      %v6443 = vpack.c.b16 %v4643, %v4635
      %v6444 = vpack.c.b16 %v4644, %v4636
      %v6445 = vpack.c.b16 %v4645, %v4637
      %v6446 = vpack.c.b16 %v4646, %v4638
      %v6447 = vpack.c.b16 %v4647, %v4639
      %v6448 = vpack.c.b16 %v4648, %v4640
      %v6449 = vpack.c.b16 %v4649, %v4641
      %v6450 = vpack.c.b16 %v4650, %v4642
      %v6451 = vpack.c.b16 %v4659, %v4651
      %v6452 = vpack.c.b16 %v4660, %v4652
      %v6453 = vpack.c.b16 %v4661, %v4653
      %v6454 = vpack.c.b16 %v4662, %v4654
      %v6455 = vpack.c.b16 %v4663, %v4655
      %v6456 = vpack.c.b16 %v4664, %v4656
      %v6457 = vpack.c.b16 %v4665, %v4657
      %v6458 = vpack.c.b16 %v4666, %v4658
      %v6459 = vpack.c.b16 %v4675, %v4667
      %v6460 = vpack.c.b16 %v4676, %v4668
      %v6461 = vpack.c.b16 %v4677, %v4669
      %v6462 = vpack.c.b16 %v4678, %v4670
      %v6463 = vpack.c.b16 %v4679, %v4671
      %v6464 = vpack.c.b16 %v4680, %v4672
      %v6465 = vpack.c.b16 %v4681, %v4673
      %v6466 = vpack.c.b16 %v4682, %v4674
      %v6467 = vpack.c.b16 %v4691, %v4683
      %v6468 = vpack.c.b16 %v4692, %v4684
      %v6469 = vpack.c.b16 %v4693, %v4685
      %v6470 = vpack.c.b16 %v4694, %v4686
      %v6471 = vpack.c.b16 %v4695, %v4687
      %v6472 = vpack.c.b16 %v4696, %v4688
      %v6473 = vpack.c.b16 %v4697, %v4689
      %v6474 = vpack.c.b16 %v4698, %v4690
      %v6475 = vpack.c.b16 %v4707, %v4699
      %v6476 = vpack.c.b16 %v4708, %v4700
      %v6477 = vpack.c.b16 %v4709, %v4701
      %v6478 = vpack.c.b16 %v4710, %v4702
      %v6479 = vpack.c.b16 %v4711, %v4703
      %v6480 = vpack.c.b16 %v4712, %v4704
      %v6481 = vpack.c.b16 %v4713, %v4705
      %v6482 = vpack.c.b16 %v4714, %v4706
      %v6483 = vpack.c.b16 %v4723, %v4715
      %v6484 = vpack.c.b16 %v4724, %v4716
      %v6485 = vpack.c.b16 %v4725, %v4717
      %v6486 = vpack.c.b16 %v4726, %v4718
      %v6487 = vpack.c.b16 %v4727, %v4719
      %v6488 = vpack.c.b16 %v4728, %v4720
      %v6489 = vpack.c.b16 %v4729, %v4721
      %v6490 = vpack.c.b16 %v4730, %v4722
      %v6491 = vpack.c.b16 %v4739, %v4731
      %v6492 = vpack.c.b16 %v4740, %v4732
      %v6493 = vpack.c.b16 %v4741, %v4733
      %v6494 = vpack.c.b16 %v4742, %v4734
      %v6495 = vpack.c.b16 %v4743, %v4735
      %v6496 = vpack.c.b16 %v4744, %v4736
      %v6497 = vpack.c.b16 %v4745, %v4737
      %v6498 = vpack.c.b16 %v4746, %v4738
      %v6499 = vpack.c.b16 %v4755, %v4747
      %v6500 = vpack.c.b16 %v4756, %v4748
      %v6501 = vpack.c.b16 %v4757, %v4749
      %v6502 = vpack.c.b16 %v4758, %v4750
      %v6503 = vpack.c.b16 %v4759, %v4751
      %v6504 = vpack.c.b16 %v4760, %v4752
      %v6505 = vpack.c.b16 %v4761, %v4753
      %v6506 = vpack.c.b16 %v4762, %v4754
      %v6507 = vpack.c.b16 %v4771, %v4763
      %v6508 = vpack.c.b16 %v4772, %v4764
      %v6509 = vpack.c.b16 %v4773, %v4765
      %v6510 = vpack.c.b16 %v4774, %v4766
      %v6511 = vpack.c.b16 %v4775, %v4767
      %v6512 = vpack.c.b16 %v4776, %v4768
      %v6513 = vpack.c.b16 %v4777, %v4769
      %v6514 = vpack.c.b16 %v4778, %v4770
      %v6515 = vpack.c.b16 %v4787, %v4779
      %v6516 = vpack.c.b16 %v4788, %v4780
      %v6517 = vpack.c.b16 %v4789, %v4781
      %v6518 = vpack.c.b16 %v4790, %v4782
      %v6519 = vpack.c.b16 %v4791, %v4783
      %v6520 = vpack.c.b16 %v4792, %v4784
      %v6521 = vpack.c.b16 %v4793, %v4785
      %v6522 = vpack.c.b16 %v4794, %v4786
      %v6523 = vpack.c.b16 %v4803, %v4795
      %v6524 = vpack.c.b16 %v4804, %v4796
      %v6525 = vpack.c.b16 %v4805, %v4797
      %v6526 = vpack.c.b16 %v4806, %v4798
      %v6527 = vpack.c.b16 %v4807, %v4799
      %v6528 = vpack.c.b16 %v4808, %v4800
      %v6529 = vpack.c.b16 %v4809, %v4801
      %v6530 = vpack.c.b16 %v4810, %v4802
      %v6531 = vpack.c.b16 %v4819, %v4811
      %v6532 = vpack.c.b16 %v4820, %v4812
      %v6533 = vpack.c.b16 %v4821, %v4813
      %v6534 = vpack.c.b16 %v4822, %v4814
      %v6535 = vpack.c.b16 %v4823, %v4815
      %v6536 = vpack.c.b16 %v4824, %v4816
      %v6537 = vpack.c.b16 %v4825, %v4817
      %v6538 = vpack.c.b16 %v4826, %v4818
      %v6539 = vpack.c.b16 %v4835, %v4827
      %v6540 = vpack.c.b16 %v4836, %v4828
      %v6541 = vpack.c.b16 %v4837, %v4829
      %v6542 = vpack.c.b16 %v4838, %v4830
      %v6543 = vpack.c.b16 %v4839, %v4831
      %v6544 = vpack.c.b16 %v4840, %v4832
      %v6545 = vpack.c.b16 %v4841, %v4833
      %v6546 = vpack.c.b16 %v4842, %v4834
      %v6547 = vpack.c.b16 %v4851, %v4843
      %v6548 = vpack.c.b16 %v4852, %v4844
      %v6549 = vpack.c.b16 %v4853, %v4845
      %v6550 = vpack.c.b16 %v4854, %v4846
      %v6551 = vpack.c.b16 %v4855, %v4847
      %v6552 = vpack.c.b16 %v4856, %v4848
      %v6553 = vpack.c.b16 %v4857, %v4849
      %v6554 = vpack.c.b16 %v4858, %v4850
      %v6555 = vpack.c.b16 %v4867, %v4859
      %v6556 = vpack.c.b16 %v4868, %v4860
      %v6557 = vpack.c.b16 %v4869, %v4861
      %v6558 = vpack.c.b16 %v4870, %v4862
      %v6559 = vpack.c.b16 %v4871, %v4863
      %v6560 = vpack.c.b16 %v4872, %v4864
      %v6561 = vpack.c.b16 %v4873, %v4865
      %v6562 = vpack.c.b16 %v4874, %v4866
      %v6563 = vpack.c.b16 %v4883, %v4875
      %v6564 = vpack.c.b16 %v4884, %v4876
      %v6565 = vpack.c.b16 %v4885, %v4877
      %v6566 = vpack.c.b16 %v4886, %v4878
      %v6567 = vpack.c.b16 %v4887, %v4879
      %v6568 = vpack.c.b16 %v4888, %v4880
      %v6569 = vpack.c.b16 %v4889, %v4881
      %v6570 = vpack.c.b16 %v4890, %v4882
      %v6571 = vpack.c.b16 %v4899, %v4891
      %v6572 = vpack.c.b16 %v4900, %v4892
      %v6573 = vpack.c.b16 %v4901, %v4893
      %v6574 = vpack.c.b16 %v4902, %v4894
      %v6575 = vpack.c.b16 %v4903, %v4895
      %v6576 = vpack.c.b16 %v4904, %v4896
      %v6577 = vpack.c.b16 %v4905, %v4897
      %v6578 = vpack.c.b16 %v4906, %v4898
      %v6579 = vpack.c.b16 %v4915, %v4907
      %v6580 = vpack.c.b16 %v4916, %v4908
      %v6581 = vpack.c.b16 %v4917, %v4909
      %v6582 = vpack.c.b16 %v4918, %v4910
      %v6583 = vpack.c.b16 %v4919, %v4911
      %v6584 = vpack.c.b16 %v4920, %v4912
      %v6585 = vpack.c.b16 %v4921, %v4913
      %v6586 = vpack.c.b16 %v4922, %v4914
      %v6587 = vpack.c.b16 %v4931, %v4923
      %v6588 = vpack.c.b16 %v4932, %v4924
      %v6589 = vpack.c.b16 %v4933, %v4925
      %v6590 = vpack.c.b16 %v4934, %v4926
      %v6591 = vpack.c.b16 %v4935, %v4927
      %v6592 = vpack.c.b16 %v4936, %v4928
      %v6593 = vpack.c.b16 %v4937, %v4929
      %v6594 = vpack.c.b16 %v4938, %v4930
      %v6595 = vpack.c.b16 %v4947, %v4939
      %v6596 = vpack.c.b16 %v4948, %v4940
      %v6597 = vpack.c.b16 %v4949, %v4941
      %v6598 = vpack.c.b16 %v4950, %v4942
      %v6599 = vpack.c.b16 %v4951, %v4943
      %v6600 = vpack.c.b16 %v4952, %v4944
      %v6601 = vpack.c.b16 %v4953, %v4945
      %v6602 = vpack.c.b16 %v4954, %v4946
      %v6603 = vpack.c.b16 %v4963, %v4955
      %v6604 = vpack.c.b16 %v4964, %v4956
      %v6605 = vpack.c.b16 %v4965, %v4957
      %v6606 = vpack.c.b16 %v4966, %v4958
      %v6607 = vpack.c.b16 %v4967, %v4959
      %v6608 = vpack.c.b16 %v4968, %v4960
      %v6609 = vpack.c.b16 %v4969, %v4961
      %v6610 = vpack.c.b16 %v4970, %v4962
      %v6611 = vpack.c.b16 %v4979, %v4971
      %v6612 = vpack.c.b16 %v4980, %v4972
      %v6613 = vpack.c.b16 %v4981, %v4973
      %v6614 = vpack.c.b16 %v4982, %v4974
      %v6615 = vpack.c.b16 %v4983, %v4975
      %v6616 = vpack.c.b16 %v4984, %v4976
      %v6617 = vpack.c.b16 %v4985, %v4977
      %v6618 = vpack.c.b16 %v4986, %v4978
      %v6619 = vpack.c.b16 %v4995, %v4987
      %v6620 = vpack.c.b16 %v4996, %v4988
      %v6621 = vpack.c.b16 %v4997, %v4989
      %v6622 = vpack.c.b16 %v4998, %v4990
      %v6623 = vpack.c.b16 %v4999, %v4991
      %v6624 = vpack.c.b16 %v5000, %v4992
      %v6625 = vpack.c.b16 %v5001, %v4993
      %v6626 = vpack.c.b16 %v5002, %v4994
      %v6627 = vpack.c.b16 %v5011, %v5003
      %v6628 = vpack.c.b16 %v5012, %v5004
      %v6629 = vpack.c.b16 %v5013, %v5005
      %v6630 = vpack.c.b16 %v5014, %v5006
      %v6631 = vpack.c.b16 %v5015, %v5007
      %v6632 = vpack.c.b16 %v5016, %v5008
      %v6633 = vpack.c.b16 %v5017, %v5009
      %v6634 = vpack.c.b16 %v5018, %v5010
      %v6635 = vpack.c.b16 %v5027, %v5019
      %v6636 = vpack.c.b16 %v5028, %v5020
      %v6637 = vpack.c.b16 %v5029, %v5021
      %v6638 = vpack.c.b16 %v5030, %v5022
      %v6639 = vpack.c.b16 %v5031, %v5023
      %v6640 = vpack.c.b16 %v5032, %v5024
      %v6641 = vpack.c.b16 %v5033, %v5025
      %v6642 = vpack.c.b16 %v5034, %v5026
      %v6643 = vpack.c.b16 %v5043, %v5035
      %v6644 = vpack.c.b16 %v5044, %v5036
      %v6645 = vpack.c.b16 %v5045, %v5037
      %v6646 = vpack.c.b16 %v5046, %v5038
      %v6647 = vpack.c.b16 %v5047, %v5039
      %v6648 = vpack.c.b16 %v5048, %v5040
      %v6649 = vpack.c.b16 %v5049, %v5041
      %v6650 = vpack.c.b16 %v5050, %v5042
      %v6651 = vpack.c.b16 %v5059, %v5051
      %v6652 = vpack.c.b16 %v5060, %v5052
      %v6653 = vpack.c.b16 %v5061, %v5053
      %v6654 = vpack.c.b16 %v5062, %v5054
      %v6655 = vpack.c.b16 %v5063, %v5055
      %v6656 = vpack.c.b16 %v5064, %v5056
      %v6657 = vpack.c.b16 %v5065, %v5057
      %v6658 = vpack.c.b16 %v5066, %v5058
      %v6659 = vpack.c.b16 %v5075, %v5067
      %v6660 = vpack.c.b16 %v5076, %v5068
      %v6661 = vpack.c.b16 %v5077, %v5069
      %v6662 = vpack.c.b16 %v5078, %v5070
      %v6663 = vpack.c.b16 %v5079, %v5071
      %v6664 = vpack.c.b16 %v5080, %v5072
      %v6665 = vpack.c.b16 %v5081, %v5073
      %v6666 = vpack.c.b16 %v5082, %v5074
      %v6667 = vpack.c.b16 %v5091, %v5083
      %v6668 = vpack.c.b16 %v5092, %v5084
      %v6669 = vpack.c.b16 %v5093, %v5085
      %v6670 = vpack.c.b16 %v5094, %v5086
      %v6671 = vpack.c.b16 %v5095, %v5087
      %v6672 = vpack.c.b16 %v5096, %v5088
      %v6673 = vpack.c.b16 %v5097, %v5089
      %v6674 = vpack.c.b16 %v5098, %v5090
      %v6675 = vpack.c.b16 %v5107, %v5099
      %v6676 = vpack.c.b16 %v5108, %v5100
      %v6677 = vpack.c.b16 %v5109, %v5101
      %v6678 = vpack.c.b16 %v5110, %v5102
      %v6679 = vpack.c.b16 %v5111, %v5103
      %v6680 = vpack.c.b16 %v5112, %v5104
      %v6681 = vpack.c.b16 %v5113, %v5105
      %v6682 = vpack.c.b16 %v5114, %v5106
      %v6683 = vpack.c.b16 %v5123, %v5115
      %v6684 = vpack.c.b16 %v5124, %v5116
      %v6685 = vpack.c.b16 %v5125, %v5117
      %v6686 = vpack.c.b16 %v5126, %v5118
      %v6687 = vpack.c.b16 %v5127, %v5119
      %v6688 = vpack.c.b16 %v5128, %v5120
      %v6689 = vpack.c.b16 %v5129, %v5121
      %v6690 = vpack.c.b16 %v5130, %v5122
      %v6691 = vpack.c.b16 %v5139, %v5131
      %v6692 = vpack.c.b16 %v5140, %v5132
      %v6693 = vpack.c.b16 %v5141, %v5133
      %v6694 = vpack.c.b16 %v5142, %v5134
      %v6695 = vpack.c.b16 %v5143, %v5135
      %v6696 = vpack.c.b16 %v5144, %v5136
      %v6697 = vpack.c.b16 %v5145, %v5137
      %v6698 = vpack.c.b16 %v5146, %v5138
      %v6699 = vpack.c.b16 %v5155, %v5147
      %v6700 = vpack.c.b16 %v5156, %v5148
      %v6701 = vpack.c.b16 %v5157, %v5149
      %v6702 = vpack.c.b16 %v5158, %v5150
      %v6703 = vpack.c.b16 %v5159, %v5151
      %v6704 = vpack.c.b16 %v5160, %v5152
      %v6705 = vpack.c.b16 %v5161, %v5153
      %v6706 = vpack.c.b16 %v5162, %v5154
      %v6707 = vpack.c.b16 %v5171, %v5163
      %v6708 = vpack.c.b16 %v5172, %v5164
      %v6709 = vpack.c.b16 %v5173, %v5165
      %v6710 = vpack.c.b16 %v5174, %v5166
      %v6711 = vpack.c.b16 %v5175, %v5167
      %v6712 = vpack.c.b16 %v5176, %v5168
      %v6713 = vpack.c.b16 %v5177, %v5169
      %v6714 = vpack.c.b16 %v5178, %v5170
      %v6715 = vpack.c.b16 %v5187, %v5179
      %v6716 = vpack.c.b16 %v5188, %v5180
      %v6717 = vpack.c.b16 %v5189, %v5181
      %v6718 = vpack.c.b16 %v5190, %v5182
      %v6719 = vpack.c.b16 %v5191, %v5183
      %v6720 = vpack.c.b16 %v5192, %v5184
      %v6721 = vpack.c.b16 %v5193, %v5185
      %v6722 = vpack.c.b16 %v5194, %v5186
      %v6723 = vpack.c.b16 %v5203, %v5195
      %v6724 = vpack.c.b16 %v5204, %v5196
      %v6725 = vpack.c.b16 %v5205, %v5197
      %v6726 = vpack.c.b16 %v5206, %v5198
      %v6727 = vpack.c.b16 %v5207, %v5199
      %v6728 = vpack.c.b16 %v5208, %v5200
      %v6729 = vpack.c.b16 %v5209, %v5201
      %v6730 = vpack.c.b16 %v5210, %v5202
      %v6731 = vpack.c.b16 %v5219, %v5211
      %v6732 = vpack.c.b16 %v5220, %v5212
      %v6733 = vpack.c.b16 %v5221, %v5213
      %v6734 = vpack.c.b16 %v5222, %v5214
      %v6735 = vpack.c.b16 %v5223, %v5215
      %v6736 = vpack.c.b16 %v5224, %v5216
      %v6737 = vpack.c.b16 %v5225, %v5217
      %v6738 = vpack.c.b16 %v5226, %v5218
      %v6739 = vpack.c.b16 %v5235, %v5227
      %v6740 = vpack.c.b16 %v5236, %v5228
      %v6741 = vpack.c.b16 %v5237, %v5229
      %v6742 = vpack.c.b16 %v5238, %v5230
      %v6743 = vpack.c.b16 %v5239, %v5231
      %v6744 = vpack.c.b16 %v5240, %v5232
      %v6745 = vpack.c.b16 %v5241, %v5233
      %v6746 = vpack.c.b16 %v5242, %v5234
      %v6747 = vpack.c.b16 %v5251, %v5243
      %v6748 = vpack.c.b16 %v5252, %v5244
      %v6749 = vpack.c.b16 %v5253, %v5245
      %v6750 = vpack.c.b16 %v5254, %v5246
      %v6751 = vpack.c.b16 %v5255, %v5247
      %v6752 = vpack.c.b16 %v5256, %v5248
      %v6753 = vpack.c.b16 %v5257, %v5249
      %v6754 = vpack.c.b16 %v5258, %v5250
      %v6755 = vpack.c.b16 %v5267, %v5259
      %v6756 = vpack.c.b16 %v5268, %v5260
      %v6757 = vpack.c.b16 %v5269, %v5261
      %v6758 = vpack.c.b16 %v5270, %v5262
      %v6759 = vpack.c.b16 %v5271, %v5263
      %v6760 = vpack.c.b16 %v5272, %v5264
      %v6761 = vpack.c.b16 %v5273, %v5265
      %v6762 = vpack.c.b16 %v5274, %v5266
      %v6763 = vpack.c.b16 %v5283, %v5275
      %v6764 = vpack.c.b16 %v5284, %v5276
      %v6765 = vpack.c.b16 %v5285, %v5277
      %v6766 = vpack.c.b16 %v5286, %v5278
      %v6767 = vpack.c.b16 %v5287, %v5279
      %v6768 = vpack.c.b16 %v5288, %v5280
      %v6769 = vpack.c.b16 %v5289, %v5281
      %v6770 = vpack.c.b16 %v5290, %v5282
      %v6771 = vpack.c.b16 %v5299, %v5291
      %v6772 = vpack.c.b16 %v5300, %v5292
      %v6773 = vpack.c.b16 %v5301, %v5293
      %v6774 = vpack.c.b16 %v5302, %v5294
      %v6775 = vpack.c.b16 %v5303, %v5295
      %v6776 = vpack.c.b16 %v5304, %v5296
      %v6777 = vpack.c.b16 %v5305, %v5297
      %v6778 = vpack.c.b16 %v5306, %v5298
      %v6779 = vpack.c.b16 %v5315, %v5307
      %v6780 = vpack.c.b16 %v5316, %v5308
      %v6781 = vpack.c.b16 %v5317, %v5309
      %v6782 = vpack.c.b16 %v5318, %v5310
      %v6783 = vpack.c.b16 %v5319, %v5311
      %v6784 = vpack.c.b16 %v5320, %v5312
      %v6785 = vpack.c.b16 %v5321, %v5313
      %v6786 = vpack.c.b16 %v5322, %v5314
      %v6787 = vpack.c.b16 %v5331, %v5323
      %v6788 = vpack.c.b16 %v5332, %v5324
      %v6789 = vpack.c.b16 %v5333, %v5325
      %v6790 = vpack.c.b16 %v5334, %v5326
      %v6791 = vpack.c.b16 %v5335, %v5327
      %v6792 = vpack.c.b16 %v5336, %v5328
      %v6793 = vpack.c.b16 %v5337, %v5329
      %v6794 = vpack.c.b16 %v5338, %v5330
      %v6795 = vpack.c.b16 %v5347, %v5339
      %v6796 = vpack.c.b16 %v5348, %v5340
      %v6797 = vpack.c.b16 %v5349, %v5341
      %v6798 = vpack.c.b16 %v5350, %v5342
      %v6799 = vpack.c.b16 %v5351, %v5343
      %v6800 = vpack.c.b16 %v5352, %v5344
      %v6801 = vpack.c.b16 %v5353, %v5345
      %v6802 = vpack.c.b16 %v5354, %v5346
      %v6803 = vpack.c.b16 %v5363, %v5355
      %v6804 = vpack.c.b16 %v5364, %v5356
      %v6805 = vpack.c.b16 %v5365, %v5357
      %v6806 = vpack.c.b16 %v5366, %v5358
      %v6807 = vpack.c.b16 %v5367, %v5359
      %v6808 = vpack.c.b16 %v5368, %v5360
      %v6809 = vpack.c.b16 %v5369, %v5361
      %v6810 = vpack.c.b16 %v5370, %v5362
      %v6811 = vpack.c.b16 %v5379, %v5371
      %v6812 = vpack.c.b16 %v5380, %v5372
      %v6813 = vpack.c.b16 %v5381, %v5373
      %v6814 = vpack.c.b16 %v5382, %v5374
      %v6815 = vpack.c.b16 %v5383, %v5375
      %v6816 = vpack.c.b16 %v5384, %v5376
      %v6817 = vpack.c.b16 %v5385, %v5377
      %v6818 = vpack.c.b16 %v5386, %v5378
      %v6819 = vpack.c.b16 %v5395, %v5387
      %v6820 = vpack.c.b16 %v5396, %v5388
      %v6821 = vpack.c.b16 %v5397, %v5389
      %v6822 = vpack.c.b16 %v5398, %v5390
      %v6823 = vpack.c.b16 %v5399, %v5391
      %v6824 = vpack.c.b16 %v5400, %v5392
      %v6825 = vpack.c.b16 %v5401, %v5393
      %v6826 = vpack.c.b16 %v5402, %v5394
      %v6827 = vpack.c.b16 %v5411, %v5403
      %v6828 = vpack.c.b16 %v5412, %v5404
      %v6829 = vpack.c.b16 %v5413, %v5405
      %v6830 = vpack.c.b16 %v5414, %v5406
      %v6831 = vpack.c.b16 %v5415, %v5407
      %v6832 = vpack.c.b16 %v5416, %v5408
      %v6833 = vpack.c.b16 %v5417, %v5409
      %v6834 = vpack.c.b16 %v5418, %v5410
      %v6835 = vpack.c.b16 %v5427, %v5419
      %v6836 = vpack.c.b16 %v5428, %v5420
      %v6837 = vpack.c.b16 %v5429, %v5421
      %v6838 = vpack.c.b16 %v5430, %v5422
      %v6839 = vpack.c.b16 %v5431, %v5423
      %v6840 = vpack.c.b16 %v5432, %v5424
      %v6841 = vpack.c.b16 %v5433, %v5425
      %v6842 = vpack.c.b16 %v5434, %v5426
      %v6843 = vpack.c.b16 %v5443, %v5435
      %v6844 = vpack.c.b16 %v5444, %v5436
      %v6845 = vpack.c.b16 %v5445, %v5437
      %v6846 = vpack.c.b16 %v5446, %v5438
      %v6847 = vpack.c.b16 %v5447, %v5439
      %v6848 = vpack.c.b16 %v5448, %v5440
      %v6849 = vpack.c.b16 %v5449, %v5441
      %v6850 = vpack.c.b16 %v5450, %v5442
      %v6851 = vpack.c.b16 %v5459, %v5451
      %v6852 = vpack.c.b16 %v5460, %v5452
      %v6853 = vpack.c.b16 %v5461, %v5453
      %v6854 = vpack.c.b16 %v5462, %v5454
      %v6855 = vpack.c.b16 %v5463, %v5455
      %v6856 = vpack.c.b16 %v5464, %v5456
      %v6857 = vpack.c.b16 %v5465, %v5457
      %v6858 = vpack.c.b16 %v5466, %v5458
      %v6859 = vpack.c.b16 %v5475, %v5467
      %v6860 = vpack.c.b16 %v5476, %v5468
      %v6861 = vpack.c.b16 %v5477, %v5469
      %v6862 = vpack.c.b16 %v5478, %v5470
      %v6863 = vpack.c.b16 %v5479, %v5471
      %v6864 = vpack.c.b16 %v5480, %v5472
      %v6865 = vpack.c.b16 %v5481, %v5473
      %v6866 = vpack.c.b16 %v5482, %v5474
      %v6867 = vpack.c.b16 %v5491, %v5483
      %v6868 = vpack.c.b16 %v5492, %v5484
      %v6869 = vpack.c.b16 %v5493, %v5485
      %v6870 = vpack.c.b16 %v5494, %v5486
      %v6871 = vpack.c.b16 %v5495, %v5487
      %v6872 = vpack.c.b16 %v5496, %v5488
      %v6873 = vpack.c.b16 %v5497, %v5489
      %v6874 = vpack.c.b16 %v5498, %v5490
      %v6875 = vpack.c.b16 %v5507, %v5499
      %v6876 = vpack.c.b16 %v5508, %v5500
      %v6877 = vpack.c.b16 %v5509, %v5501
      %v6878 = vpack.c.b16 %v5510, %v5502
      %v6879 = vpack.c.b16 %v5511, %v5503
      %v6880 = vpack.c.b16 %v5512, %v5504
      %v6881 = vpack.c.b16 %v5513, %v5505
      %v6882 = vpack.c.b16 %v5514, %v5506
      %v6883 = vpack.c.b16 %v5523, %v5515
      %v6884 = vpack.c.b16 %v5524, %v5516
      %v6885 = vpack.c.b16 %v5525, %v5517
      %v6886 = vpack.c.b16 %v5526, %v5518
      %v6887 = vpack.c.b16 %v5527, %v5519
      %v6888 = vpack.c.b16 %v5528, %v5520
      %v6889 = vpack.c.b16 %v5529, %v5521
      %v6890 = vpack.c.b16 %v5530, %v5522
      %v6891 = vpack.c.b16 %v5539, %v5531
      %v6892 = vpack.c.b16 %v5540, %v5532
      %v6893 = vpack.c.b16 %v5541, %v5533
      %v6894 = vpack.c.b16 %v5542, %v5534
      %v6895 = vpack.c.b16 %v5543, %v5535
      %v6896 = vpack.c.b16 %v5544, %v5536
      %v6897 = vpack.c.b16 %v5545, %v5537
      %v6898 = vpack.c.b16 %v5546, %v5538
      %v6899 = vpack.c.b16 %v5555, %v5547
      %v6900 = vpack.c.b16 %v5556, %v5548
      %v6901 = vpack.c.b16 %v5557, %v5549
      %v6902 = vpack.c.b16 %v5558, %v5550
      %v6903 = vpack.c.b16 %v5559, %v5551
      %v6904 = vpack.c.b16 %v5560, %v5552
      %v6905 = vpack.c.b16 %v5561, %v5553
      %v6906 = vpack.c.b16 %v5562, %v5554
      %v6907 = vpack.c.b16 %v5571, %v5563
      %v6908 = vpack.c.b16 %v5572, %v5564
      %v6909 = vpack.c.b16 %v5573, %v5565
      %v6910 = vpack.c.b16 %v5574, %v5566
      %v6911 = vpack.c.b16 %v5575, %v5567
      %v6912 = vpack.c.b16 %v5576, %v5568
      %v6913 = vpack.c.b16 %v5577, %v5569
      %v6914 = vpack.c.b16 %v5578, %v5570
      %v6915 = vpack.c.b16 %v5587, %v5579
      %v6916 = vpack.c.b16 %v5588, %v5580
      %v6917 = vpack.c.b16 %v5589, %v5581
      %v6918 = vpack.c.b16 %v5590, %v5582
      %v6919 = vpack.c.b16 %v5591, %v5583
      %v6920 = vpack.c.b16 %v5592, %v5584
      %v6921 = vpack.c.b16 %v5593, %v5585
      %v6922 = vpack.c.b16 %v5594, %v5586
      %v6923 = vpack.c.b16 %v5603, %v5595
      %v6924 = vpack.c.b16 %v5604, %v5596
      %v6925 = vpack.c.b16 %v5605, %v5597
      %v6926 = vpack.c.b16 %v5606, %v5598
      %v6927 = vpack.c.b16 %v5607, %v5599
      %v6928 = vpack.c.b16 %v5608, %v5600
      %v6929 = vpack.c.b16 %v5609, %v5601
      %v6930 = vpack.c.b16 %v5610, %v5602
      %v6931 = vpack.c.b16 %v5619, %v5611
      %v6932 = vpack.c.b16 %v5620, %v5612
      %v6933 = vpack.c.b16 %v5621, %v5613
      %v6934 = vpack.c.b16 %v5622, %v5614
      %v6935 = vpack.c.b16 %v5623, %v5615
      %v6936 = vpack.c.b16 %v5624, %v5616
      %v6937 = vpack.c.b16 %v5625, %v5617
      %v6938 = vpack.c.b16 %v5626, %v5618
      %v6939 = vpack.c.b16 %v5635, %v5627
      %v6940 = vpack.c.b16 %v5636, %v5628
      %v6941 = vpack.c.b16 %v5637, %v5629
      %v6942 = vpack.c.b16 %v5638, %v5630
      %v6943 = vpack.c.b16 %v5639, %v5631
      %v6944 = vpack.c.b16 %v5640, %v5632
      %v6945 = vpack.c.b16 %v5641, %v5633
      %v6946 = vpack.c.b16 %v5642, %v5634
      %v6947 = vpack.c.b16 %v5651, %v5643
      %v6948 = vpack.c.b16 %v5652, %v5644
      %v6949 = vpack.c.b16 %v5653, %v5645
      %v6950 = vpack.c.b16 %v5654, %v5646
      %v6951 = vpack.c.b16 %v5655, %v5647
      %v6952 = vpack.c.b16 %v5656, %v5648
      %v6953 = vpack.c.b16 %v5657, %v5649
      %v6954 = vpack.c.b16 %v5658, %v5650
      %v6955 = vpack.c.b16 %v5667, %v5659
      %v6956 = vpack.c.b16 %v5668, %v5660
      %v6957 = vpack.c.b16 %v5669, %v5661
      %v6958 = vpack.c.b16 %v5670, %v5662
      %v6959 = vpack.c.b16 %v5671, %v5663
      %v6960 = vpack.c.b16 %v5672, %v5664
      %v6961 = vpack.c.b16 %v5673, %v5665
      %v6962 = vpack.c.b16 %v5674, %v5666
      %v6963 = vpack.c.b16 %v5675, %v5675
      %v6964 = vpack.c.b16 %v5676, %v5676
      %v6965 = vpack.c.b16 %v5677, %v5677
      %v6966 = vpack.c.b16 %v5678, %v5678
      %v6967 = vpack.c.b16 %v5679, %v5679
      %v6968 = vpack.c.b16 %v5680, %v5680
      %v6969 = vpack.c.b16 %v5681, %v5681
      %v6970 = vpack.c.b16 %v5682, %v5682
      %vm8251 = vcmask 31744
      %v8253 = vsel %vm8251, %v1810, 0
      %vm8255 = vcmask 1041408
      %v8257 = vsel %vm8255, %v6963, 0
      %v8260 = vsel %vm8255, %v6964, 0
      %v8263 = vsel %vm8255, %v6965, 0
      %v8266 = vsel %vm8255, %v6966, 0
      %v8269 = vsel %vm8255, %v6967, 0
      %v8272 = vsel %vm8255, %v6968, 0
      %v8275 = vsel %vm8255, %v6969, 0
      %v8278 = vsel %vm8255, %v6970, 0
      %8280 = vmatpush.bf16.msra.mxu0 %v5739
      %8281 = vmatpush.bf16.msra.mxu0 %v5731
      %8282 = vmatpush.bf16.msra.mxu0 %v5723
      %8283 = vmatpush.bf16.msra.mxu0 %v5715
      %8284 = vmatpush.bf16.msra.mxu0 %v5707
      %8285 = vmatpush.bf16.msra.mxu0 %v5699
      %8286 = vmatpush.bf16.msra.mxu0 %v5691
      %8287 = vmatpush.bf16.msra.mxu0 %v5683
      %8288 = vmatmul.bf16.gmra.mxu0 %v1790
      %v8289 = vpop.f32.mrf.mxu0
      %v8290 = vadd.f32 %v1710, %v8289
      %v8291 = vpop.f32.mrf.mxu0
      %v8292 = vadd.f32 %v1710, %v8291
      %8293 = vdwg.mxu0
      %8294 = vmatpush.bf16.msra.mxu0 %v5803
      %8295 = vmatpush.bf16.msra.mxu0 %v5795
      %8296 = vmatpush.bf16.msra.mxu0 %v5787
      %8297 = vmatpush.bf16.msra.mxu0 %v5779
      %8298 = vmatpush.bf16.msra.mxu0 %v5771
      %8299 = vmatpush.bf16.msra.mxu0 %v5763
      %8300 = vmatpush.bf16.msra.mxu0 %v5755
      %8301 = vmatpush.bf16.msra.mxu0 %v5747
      %8302 = vmatmul.bf16.gmra.mxu0 %v1791
      %v8303 = vpop.f32.mrf.mxu0
      %v8304 = vadd.f32 %v8290, %v8303
      %v8305 = vpop.f32.mrf.mxu0
      %v8306 = vadd.f32 %v8292, %v8305
      %8307 = vdwg.mxu0
      %8308 = vmatpush.bf16.msra.mxu0 %v5867
      %8309 = vmatpush.bf16.msra.mxu0 %v5859
      %8310 = vmatpush.bf16.msra.mxu0 %v5851
      %8311 = vmatpush.bf16.msra.mxu0 %v5843
      %8312 = vmatpush.bf16.msra.mxu0 %v5835
      %8313 = vmatpush.bf16.msra.mxu0 %v5827
      %8314 = vmatpush.bf16.msra.mxu0 %v5819
      %8315 = vmatpush.bf16.msra.mxu0 %v5811
      %8316 = vmatmul.bf16.gmra.mxu0 %v1792
      %v8317 = vpop.f32.mrf.mxu0
      %v8318 = vadd.f32 %v8304, %v8317
      %v8319 = vpop.f32.mrf.mxu0
      %v8320 = vadd.f32 %v8306, %v8319
      %8321 = vdwg.mxu0
      %8322 = vmatpush.bf16.msra.mxu0 %v5931
      %8323 = vmatpush.bf16.msra.mxu0 %v5923
      %8324 = vmatpush.bf16.msra.mxu0 %v5915
      %8325 = vmatpush.bf16.msra.mxu0 %v5907
      %8326 = vmatpush.bf16.msra.mxu0 %v5899
      %8327 = vmatpush.bf16.msra.mxu0 %v5891
      %8328 = vmatpush.bf16.msra.mxu0 %v5883
      %8329 = vmatpush.bf16.msra.mxu0 %v5875
      %8330 = vmatmul.bf16.gmra.mxu0 %v1793
      %v8331 = vpop.f32.mrf.mxu0
      %v8332 = vadd.f32 %v8318, %v8331
      %v8333 = vpop.f32.mrf.mxu0
      %v8334 = vadd.f32 %v8320, %v8333
      %8335 = vdwg.mxu0
      %8336 = vmatpush.bf16.msra.mxu0 %v5995
      %8337 = vmatpush.bf16.msra.mxu0 %v5987
      %8338 = vmatpush.bf16.msra.mxu0 %v5979
      %8339 = vmatpush.bf16.msra.mxu0 %v5971
      %8340 = vmatpush.bf16.msra.mxu0 %v5963
      %8341 = vmatpush.bf16.msra.mxu0 %v5955
      %8342 = vmatpush.bf16.msra.mxu0 %v5947
      %8343 = vmatpush.bf16.msra.mxu0 %v5939
      %8344 = vmatmul.bf16.gmra.mxu0 %v1794
      %v8345 = vpop.f32.mrf.mxu0
      %v8346 = vadd.f32 %v8332, %v8345
      %v8347 = vpop.f32.mrf.mxu0
      %v8348 = vadd.f32 %v8334, %v8347
      %8349 = vdwg.mxu0
      %8350 = vmatpush.bf16.msra.mxu0 %v6059
      %8351 = vmatpush.bf16.msra.mxu0 %v6051
      %8352 = vmatpush.bf16.msra.mxu0 %v6043
      %8353 = vmatpush.bf16.msra.mxu0 %v6035
      %8354 = vmatpush.bf16.msra.mxu0 %v6027
      %8355 = vmatpush.bf16.msra.mxu0 %v6019
      %8356 = vmatpush.bf16.msra.mxu0 %v6011
      %8357 = vmatpush.bf16.msra.mxu0 %v6003
      %8358 = vmatmul.bf16.gmra.mxu0 %v1795
      %v8359 = vpop.f32.mrf.mxu0
      %v8360 = vadd.f32 %v8346, %v8359
      %v8361 = vpop.f32.mrf.mxu0
      %v8362 = vadd.f32 %v8348, %v8361
      %8363 = vdwg.mxu0
      %8364 = vmatpush.bf16.msra.mxu0 %v6123
      %8365 = vmatpush.bf16.msra.mxu0 %v6115
      %8366 = vmatpush.bf16.msra.mxu0 %v6107
      %8367 = vmatpush.bf16.msra.mxu0 %v6099
      %8368 = vmatpush.bf16.msra.mxu0 %v6091
      %8369 = vmatpush.bf16.msra.mxu0 %v6083
      %8370 = vmatpush.bf16.msra.mxu0 %v6075
      %8371 = vmatpush.bf16.msra.mxu0 %v6067
      %8372 = vmatmul.bf16.gmra.mxu0 %v1796
      %v8373 = vpop.f32.mrf.mxu0
      %v8374 = vadd.f32 %v8360, %v8373
      %v8375 = vpop.f32.mrf.mxu0
      %v8376 = vadd.f32 %v8362, %v8375
      %8377 = vdwg.mxu0
      %8378 = vmatpush.bf16.msra.mxu0 %v6187
      %8379 = vmatpush.bf16.msra.mxu0 %v6179
      %8380 = vmatpush.bf16.msra.mxu0 %v6171
      %8381 = vmatpush.bf16.msra.mxu0 %v6163
      %8382 = vmatpush.bf16.msra.mxu0 %v6155
      %8383 = vmatpush.bf16.msra.mxu0 %v6147
      %8384 = vmatpush.bf16.msra.mxu0 %v6139
      %8385 = vmatpush.bf16.msra.mxu0 %v6131
      %8386 = vmatmul.bf16.gmra.mxu0 %v1797
      %v8387 = vpop.f32.mrf.mxu0
      %v8388 = vadd.f32 %v8374, %v8387
      %v8389 = vpop.f32.mrf.mxu0
      %v8390 = vadd.f32 %v8376, %v8389
      %8391 = vdwg.mxu0
      %8392 = vmatpush.bf16.msra.mxu0 %v6251
      %8393 = vmatpush.bf16.msra.mxu0 %v6243
      %8394 = vmatpush.bf16.msra.mxu0 %v6235
      %8395 = vmatpush.bf16.msra.mxu0 %v6227
      %8396 = vmatpush.bf16.msra.mxu0 %v6219
      %8397 = vmatpush.bf16.msra.mxu0 %v6211
      %8398 = vmatpush.bf16.msra.mxu0 %v6203
      %8399 = vmatpush.bf16.msra.mxu0 %v6195
      %8400 = vmatmul.bf16.gmra.mxu0 %v1798
      %v8401 = vpop.f32.mrf.mxu0
      %v8402 = vadd.f32 %v8388, %v8401
      %v8403 = vpop.f32.mrf.mxu0
      %v8404 = vadd.f32 %v8390, %v8403
      %8405 = vdwg.mxu0
      %8406 = vmatpush.bf16.msra.mxu0 %v6315
      %8407 = vmatpush.bf16.msra.mxu0 %v6307
      %8408 = vmatpush.bf16.msra.mxu0 %v6299
      %8409 = vmatpush.bf16.msra.mxu0 %v6291
      %8410 = vmatpush.bf16.msra.mxu0 %v6283
      %8411 = vmatpush.bf16.msra.mxu0 %v6275
      %8412 = vmatpush.bf16.msra.mxu0 %v6267
      %8413 = vmatpush.bf16.msra.mxu0 %v6259
      %8414 = vmatmul.bf16.gmra.mxu0 %v1799
      %v8415 = vpop.f32.mrf.mxu0
      %v8416 = vadd.f32 %v8402, %v8415
      %v8417 = vpop.f32.mrf.mxu0
      %v8418 = vadd.f32 %v8404, %v8417
      %8419 = vdwg.mxu0
      %8420 = vmatpush.bf16.msra.mxu0 %v6379
      %8421 = vmatpush.bf16.msra.mxu0 %v6371
      %8422 = vmatpush.bf16.msra.mxu0 %v6363
      %8423 = vmatpush.bf16.msra.mxu0 %v6355
      %8424 = vmatpush.bf16.msra.mxu0 %v6347
      %8425 = vmatpush.bf16.msra.mxu0 %v6339
      %8426 = vmatpush.bf16.msra.mxu0 %v6331
      %8427 = vmatpush.bf16.msra.mxu0 %v6323
      %8428 = vmatmul.bf16.gmra.mxu0 %v1800
      %v8429 = vpop.f32.mrf.mxu0
      %v8430 = vadd.f32 %v8416, %v8429
      %v8431 = vpop.f32.mrf.mxu0
      %v8432 = vadd.f32 %v8418, %v8431
      %8433 = vdwg.mxu0
      %8434 = vmatpush.bf16.msra.mxu0 %v6443
      %8435 = vmatpush.bf16.msra.mxu0 %v6435
      %8436 = vmatpush.bf16.msra.mxu0 %v6427
      %8437 = vmatpush.bf16.msra.mxu0 %v6419
      %8438 = vmatpush.bf16.msra.mxu0 %v6411
      %8439 = vmatpush.bf16.msra.mxu0 %v6403
      %8440 = vmatpush.bf16.msra.mxu0 %v6395
      %8441 = vmatpush.bf16.msra.mxu0 %v6387
      %8442 = vmatmul.bf16.gmra.mxu0 %v1801
      %v8443 = vpop.f32.mrf.mxu0
      %v8444 = vadd.f32 %v8430, %v8443
      %v8445 = vpop.f32.mrf.mxu0
      %v8446 = vadd.f32 %v8432, %v8445
      %8447 = vdwg.mxu0
      %8448 = vmatpush.bf16.msra.mxu0 %v6507
      %8449 = vmatpush.bf16.msra.mxu0 %v6499
      %8450 = vmatpush.bf16.msra.mxu0 %v6491
      %8451 = vmatpush.bf16.msra.mxu0 %v6483
      %8452 = vmatpush.bf16.msra.mxu0 %v6475
      %8453 = vmatpush.bf16.msra.mxu0 %v6467
      %8454 = vmatpush.bf16.msra.mxu0 %v6459
      %8455 = vmatpush.bf16.msra.mxu0 %v6451
      %8456 = vmatmul.bf16.gmra.mxu0 %v1802
      %v8457 = vpop.f32.mrf.mxu0
      %v8458 = vadd.f32 %v8444, %v8457
      %v8459 = vpop.f32.mrf.mxu0
      %v8460 = vadd.f32 %v8446, %v8459
      %8461 = vdwg.mxu0
      %8462 = vmatpush.bf16.msra.mxu0 %v6571
      %8463 = vmatpush.bf16.msra.mxu0 %v6563
      %8464 = vmatpush.bf16.msra.mxu0 %v6555
      %8465 = vmatpush.bf16.msra.mxu0 %v6547
      %8466 = vmatpush.bf16.msra.mxu0 %v6539
      %8467 = vmatpush.bf16.msra.mxu0 %v6531
      %8468 = vmatpush.bf16.msra.mxu0 %v6523
      %8469 = vmatpush.bf16.msra.mxu0 %v6515
      %8470 = vmatmul.bf16.gmra.mxu0 %v1803
      %v8471 = vpop.f32.mrf.mxu0
      %v8472 = vadd.f32 %v8458, %v8471
      %v8473 = vpop.f32.mrf.mxu0
      %v8474 = vadd.f32 %v8460, %v8473
      %8475 = vdwg.mxu0
      %8476 = vmatpush.bf16.msra.mxu0 %v6635
      %8477 = vmatpush.bf16.msra.mxu0 %v6627
      %8478 = vmatpush.bf16.msra.mxu0 %v6619
      %8479 = vmatpush.bf16.msra.mxu0 %v6611
      %8480 = vmatpush.bf16.msra.mxu0 %v6603
      %8481 = vmatpush.bf16.msra.mxu0 %v6595
      %8482 = vmatpush.bf16.msra.mxu0 %v6587
      %8483 = vmatpush.bf16.msra.mxu0 %v6579
      %8484 = vmatmul.bf16.gmra.mxu0 %v1804
      %v8485 = vpop.f32.mrf.mxu0
      %v8486 = vadd.f32 %v8472, %v8485
      %v8487 = vpop.f32.mrf.mxu0
      %v8488 = vadd.f32 %v8474, %v8487
      %8489 = vdwg.mxu0
      %8490 = vmatpush.bf16.msra.mxu0 %v6699
      %8491 = vmatpush.bf16.msra.mxu0 %v6691
      %8492 = vmatpush.bf16.msra.mxu0 %v6683
      %8493 = vmatpush.bf16.msra.mxu0 %v6675
      %8494 = vmatpush.bf16.msra.mxu0 %v6667
      %8495 = vmatpush.bf16.msra.mxu0 %v6659
      %8496 = vmatpush.bf16.msra.mxu0 %v6651
      %8497 = vmatpush.bf16.msra.mxu0 %v6643
      %8498 = vmatmul.bf16.gmra.mxu0 %v1805
      %v8499 = vpop.f32.mrf.mxu0
      %v8500 = vadd.f32 %v8486, %v8499
      %v8501 = vpop.f32.mrf.mxu0
      %v8502 = vadd.f32 %v8488, %v8501
      %8503 = vdwg.mxu0
      %8504 = vmatpush.bf16.msra.mxu0 %v6763
      %8505 = vmatpush.bf16.msra.mxu0 %v6755
      %8506 = vmatpush.bf16.msra.mxu0 %v6747
      %8507 = vmatpush.bf16.msra.mxu0 %v6739
      %8508 = vmatpush.bf16.msra.mxu0 %v6731
      %8509 = vmatpush.bf16.msra.mxu0 %v6723
      %8510 = vmatpush.bf16.msra.mxu0 %v6715
      %8511 = vmatpush.bf16.msra.mxu0 %v6707
      %8512 = vmatmul.bf16.gmra.mxu0 %v1806
      %v8513 = vpop.f32.mrf.mxu0
      %v8514 = vadd.f32 %v8500, %v8513
      %v8515 = vpop.f32.mrf.mxu0
      %v8516 = vadd.f32 %v8502, %v8515
      %8517 = vdwg.mxu0
      %8518 = vmatpush.bf16.msra.mxu0 %v6827
      %8519 = vmatpush.bf16.msra.mxu0 %v6819
      %8520 = vmatpush.bf16.msra.mxu0 %v6811
      %8521 = vmatpush.bf16.msra.mxu0 %v6803
      %8522 = vmatpush.bf16.msra.mxu0 %v6795
      %8523 = vmatpush.bf16.msra.mxu0 %v6787
      %8524 = vmatpush.bf16.msra.mxu0 %v6779
      %8525 = vmatpush.bf16.msra.mxu0 %v6771
      %8526 = vmatmul.bf16.gmra.mxu0 %v1807
      %v8527 = vpop.f32.mrf.mxu0
      %v8528 = vadd.f32 %v8514, %v8527
      %v8529 = vpop.f32.mrf.mxu0
      %v8530 = vadd.f32 %v8516, %v8529
      %8531 = vdwg.mxu0
      %8532 = vmatpush.bf16.msra.mxu0 %v6891
      %8533 = vmatpush.bf16.msra.mxu0 %v6883
      %8534 = vmatpush.bf16.msra.mxu0 %v6875
      %8535 = vmatpush.bf16.msra.mxu0 %v6867
      %8536 = vmatpush.bf16.msra.mxu0 %v6859
      %8537 = vmatpush.bf16.msra.mxu0 %v6851
      %8538 = vmatpush.bf16.msra.mxu0 %v6843
      %8539 = vmatpush.bf16.msra.mxu0 %v6835
      %8540 = vmatmul.bf16.gmra.mxu0 %v1808
      %v8541 = vpop.f32.mrf.mxu0
      %v8542 = vadd.f32 %v8528, %v8541
      %v8543 = vpop.f32.mrf.mxu0
      %v8544 = vadd.f32 %v8530, %v8543
      %8545 = vdwg.mxu0
      %8546 = vmatpush.bf16.msra.mxu0 %v6955
      %8547 = vmatpush.bf16.msra.mxu0 %v6947
      %8548 = vmatpush.bf16.msra.mxu0 %v6939
      %8549 = vmatpush.bf16.msra.mxu0 %v6931
      %8550 = vmatpush.bf16.msra.mxu0 %v6923
      %8551 = vmatpush.bf16.msra.mxu0 %v6915
      %8552 = vmatpush.bf16.msra.mxu0 %v6907
      %8553 = vmatpush.bf16.msra.mxu0 %v6899
      %8554 = vmatmul.bf16.gmra.mxu0 %v1809
      %v8555 = vpop.f32.mrf.mxu0
      %v8556 = vadd.f32 %v8542, %v8555
      %v8557 = vpop.f32.mrf.mxu0
      %v8558 = vadd.f32 %v8544, %v8557
      %8559 = vdwg.mxu0
      %8560 = vmatpush.bf16.msra.mxu0 0
      %8561 = vmatpush.bf16.msra.mxu0 0
      %8562 = vmatpush.bf16.msra.mxu0 0
      %8563 = vmatpush.bf16.msra.mxu0 0
      %8564 = vmatpush.bf16.msra.mxu0 0
      %8565 = vmatpush.bf16.msra.mxu0 0
      %8566 = vmatpush.bf16.msra.mxu0 0
      %8567 = vmatpush.bf16.msra.mxu0 %v8257
      %8568 = vmatmul.bf16.gmra.mxu0 %v8253
      %v8569 = vpop.f32.mrf.mxu0
      %v8570 = vadd.f32 %v8556, %v8569
      %v8571 = vpop.f32.mrf.mxu0
      %v8572 = vadd.f32 %v8558, %v8571
      %8573 = vdwg.mxu0
      %8574 = vmatpush.bf16.msra.mxu0 %v5740
      %8575 = vmatpush.bf16.msra.mxu0 %v5732
      %8576 = vmatpush.bf16.msra.mxu0 %v5724
      %8577 = vmatpush.bf16.msra.mxu0 %v5716
      %8578 = vmatpush.bf16.msra.mxu0 %v5708
      %8579 = vmatpush.bf16.msra.mxu0 %v5700
      %8580 = vmatpush.bf16.msra.mxu0 %v5692
      %8581 = vmatpush.bf16.msra.mxu0 %v5684
      %8582 = vmatmul.bf16.gmra.mxu0 %v1790
      %v8583 = vpop.f32.mrf.mxu0
      %v8584 = vadd.f32 %v1711, %v8583
      %v8585 = vpop.f32.mrf.mxu0
      %v8586 = vadd.f32 %v1711, %v8585
      %8587 = vdwg.mxu0
      %8588 = vmatpush.bf16.msra.mxu0 %v5804
      %8589 = vmatpush.bf16.msra.mxu0 %v5796
      %8590 = vmatpush.bf16.msra.mxu0 %v5788
      %8591 = vmatpush.bf16.msra.mxu0 %v5780
      %8592 = vmatpush.bf16.msra.mxu0 %v5772
      %8593 = vmatpush.bf16.msra.mxu0 %v5764
      %8594 = vmatpush.bf16.msra.mxu0 %v5756
      %8595 = vmatpush.bf16.msra.mxu0 %v5748
      %8596 = vmatmul.bf16.gmra.mxu0 %v1791
      %v8597 = vpop.f32.mrf.mxu0
      %v8598 = vadd.f32 %v8584, %v8597
      %v8599 = vpop.f32.mrf.mxu0
      %v8600 = vadd.f32 %v8586, %v8599
      %8601 = vdwg.mxu0
      %8602 = vmatpush.bf16.msra.mxu0 %v5868
      %8603 = vmatpush.bf16.msra.mxu0 %v5860
      %8604 = vmatpush.bf16.msra.mxu0 %v5852
      %8605 = vmatpush.bf16.msra.mxu0 %v5844
      %8606 = vmatpush.bf16.msra.mxu0 %v5836
      %8607 = vmatpush.bf16.msra.mxu0 %v5828
      %8608 = vmatpush.bf16.msra.mxu0 %v5820
      %8609 = vmatpush.bf16.msra.mxu0 %v5812
      %8610 = vmatmul.bf16.gmra.mxu0 %v1792
      %v8611 = vpop.f32.mrf.mxu0
      %v8612 = vadd.f32 %v8598, %v8611
      %v8613 = vpop.f32.mrf.mxu0
      %v8614 = vadd.f32 %v8600, %v8613
      %8615 = vdwg.mxu0
      %8616 = vmatpush.bf16.msra.mxu0 %v5932
      %8617 = vmatpush.bf16.msra.mxu0 %v5924
      %8618 = vmatpush.bf16.msra.mxu0 %v5916
      %8619 = vmatpush.bf16.msra.mxu0 %v5908
      %8620 = vmatpush.bf16.msra.mxu0 %v5900
      %8621 = vmatpush.bf16.msra.mxu0 %v5892
      %8622 = vmatpush.bf16.msra.mxu0 %v5884
      %8623 = vmatpush.bf16.msra.mxu0 %v5876
      %8624 = vmatmul.bf16.gmra.mxu0 %v1793
      %v8625 = vpop.f32.mrf.mxu0
      %v8626 = vadd.f32 %v8612, %v8625
      %v8627 = vpop.f32.mrf.mxu0
      %v8628 = vadd.f32 %v8614, %v8627
      %8629 = vdwg.mxu0
      %8630 = vmatpush.bf16.msra.mxu0 %v5996
      %8631 = vmatpush.bf16.msra.mxu0 %v5988
      %8632 = vmatpush.bf16.msra.mxu0 %v5980
      %8633 = vmatpush.bf16.msra.mxu0 %v5972
      %8634 = vmatpush.bf16.msra.mxu0 %v5964
      %8635 = vmatpush.bf16.msra.mxu0 %v5956
      %8636 = vmatpush.bf16.msra.mxu0 %v5948
      %8637 = vmatpush.bf16.msra.mxu0 %v5940
      %8638 = vmatmul.bf16.gmra.mxu0 %v1794
      %v8639 = vpop.f32.mrf.mxu0
      %v8640 = vadd.f32 %v8626, %v8639
      %v8641 = vpop.f32.mrf.mxu0
      %v8642 = vadd.f32 %v8628, %v8641
      %8643 = vdwg.mxu0
      %8644 = vmatpush.bf16.msra.mxu0 %v6060
      %8645 = vmatpush.bf16.msra.mxu0 %v6052
      %8646 = vmatpush.bf16.msra.mxu0 %v6044
      %8647 = vmatpush.bf16.msra.mxu0 %v6036
      %8648 = vmatpush.bf16.msra.mxu0 %v6028
      %8649 = vmatpush.bf16.msra.mxu0 %v6020
      %8650 = vmatpush.bf16.msra.mxu0 %v6012
      %8651 = vmatpush.bf16.msra.mxu0 %v6004
      %8652 = vmatmul.bf16.gmra.mxu0 %v1795
      %v8653 = vpop.f32.mrf.mxu0
      %v8654 = vadd.f32 %v8640, %v8653
      %v8655 = vpop.f32.mrf.mxu0
      %v8656 = vadd.f32 %v8642, %v8655
      %8657 = vdwg.mxu0
      %8658 = vmatpush.bf16.msra.mxu0 %v6124
      %8659 = vmatpush.bf16.msra.mxu0 %v6116
      %8660 = vmatpush.bf16.msra.mxu0 %v6108
      %8661 = vmatpush.bf16.msra.mxu0 %v6100
      %8662 = vmatpush.bf16.msra.mxu0 %v6092
      %8663 = vmatpush.bf16.msra.mxu0 %v6084
      %8664 = vmatpush.bf16.msra.mxu0 %v6076
      %8665 = vmatpush.bf16.msra.mxu0 %v6068
      %8666 = vmatmul.bf16.gmra.mxu0 %v1796
      %v8667 = vpop.f32.mrf.mxu0
      %v8668 = vadd.f32 %v8654, %v8667
      %v8669 = vpop.f32.mrf.mxu0
      %v8670 = vadd.f32 %v8656, %v8669
      %8671 = vdwg.mxu0
      %8672 = vmatpush.bf16.msra.mxu0 %v6188
      %8673 = vmatpush.bf16.msra.mxu0 %v6180
      %8674 = vmatpush.bf16.msra.mxu0 %v6172
      %8675 = vmatpush.bf16.msra.mxu0 %v6164
      %8676 = vmatpush.bf16.msra.mxu0 %v6156
      %8677 = vmatpush.bf16.msra.mxu0 %v6148
      %8678 = vmatpush.bf16.msra.mxu0 %v6140
      %8679 = vmatpush.bf16.msra.mxu0 %v6132
      %8680 = vmatmul.bf16.gmra.mxu0 %v1797
      %v8681 = vpop.f32.mrf.mxu0
      %v8682 = vadd.f32 %v8668, %v8681
      %v8683 = vpop.f32.mrf.mxu0
      %v8684 = vadd.f32 %v8670, %v8683
      %8685 = vdwg.mxu0
      %8686 = vmatpush.bf16.msra.mxu0 %v6252
      %8687 = vmatpush.bf16.msra.mxu0 %v6244
      %8688 = vmatpush.bf16.msra.mxu0 %v6236
      %8689 = vmatpush.bf16.msra.mxu0 %v6228
      %8690 = vmatpush.bf16.msra.mxu0 %v6220
      %8691 = vmatpush.bf16.msra.mxu0 %v6212
      %8692 = vmatpush.bf16.msra.mxu0 %v6204
      %8693 = vmatpush.bf16.msra.mxu0 %v6196
      %8694 = vmatmul.bf16.gmra.mxu0 %v1798
      %v8695 = vpop.f32.mrf.mxu0
      %v8696 = vadd.f32 %v8682, %v8695
      %v8697 = vpop.f32.mrf.mxu0
      %v8698 = vadd.f32 %v8684, %v8697
      %8699 = vdwg.mxu0
      %8700 = vmatpush.bf16.msra.mxu0 %v6316
      %8701 = vmatpush.bf16.msra.mxu0 %v6308
      %8702 = vmatpush.bf16.msra.mxu0 %v6300
      %8703 = vmatpush.bf16.msra.mxu0 %v6292
      %8704 = vmatpush.bf16.msra.mxu0 %v6284
      %8705 = vmatpush.bf16.msra.mxu0 %v6276
      %8706 = vmatpush.bf16.msra.mxu0 %v6268
      %8707 = vmatpush.bf16.msra.mxu0 %v6260
      %8708 = vmatmul.bf16.gmra.mxu0 %v1799
      %v8709 = vpop.f32.mrf.mxu0
      %v8710 = vadd.f32 %v8696, %v8709
      %v8711 = vpop.f32.mrf.mxu0
      %v8712 = vadd.f32 %v8698, %v8711
      %8713 = vdwg.mxu0
      %8714 = vmatpush.bf16.msra.mxu0 %v6380
      %8715 = vmatpush.bf16.msra.mxu0 %v6372
      %8716 = vmatpush.bf16.msra.mxu0 %v6364
      %8717 = vmatpush.bf16.msra.mxu0 %v6356
      %8718 = vmatpush.bf16.msra.mxu0 %v6348
      %8719 = vmatpush.bf16.msra.mxu0 %v6340
      %8720 = vmatpush.bf16.msra.mxu0 %v6332
      %8721 = vmatpush.bf16.msra.mxu0 %v6324
      %8722 = vmatmul.bf16.gmra.mxu0 %v1800
      %v8723 = vpop.f32.mrf.mxu0
      %v8724 = vadd.f32 %v8710, %v8723
      %v8725 = vpop.f32.mrf.mxu0
      %v8726 = vadd.f32 %v8712, %v8725
      %8727 = vdwg.mxu0
      %8728 = vmatpush.bf16.msra.mxu0 %v6444
      %8729 = vmatpush.bf16.msra.mxu0 %v6436
      %8730 = vmatpush.bf16.msra.mxu0 %v6428
      %8731 = vmatpush.bf16.msra.mxu0 %v6420
      %8732 = vmatpush.bf16.msra.mxu0 %v6412
      %8733 = vmatpush.bf16.msra.mxu0 %v6404
      %8734 = vmatpush.bf16.msra.mxu0 %v6396
      %8735 = vmatpush.bf16.msra.mxu0 %v6388
      %8736 = vmatmul.bf16.gmra.mxu0 %v1801
      %v8737 = vpop.f32.mrf.mxu0
      %v8738 = vadd.f32 %v8724, %v8737
      %v8739 = vpop.f32.mrf.mxu0
      %v8740 = vadd.f32 %v8726, %v8739
      %8741 = vdwg.mxu0
      %8742 = vmatpush.bf16.msra.mxu0 %v6508
      %8743 = vmatpush.bf16.msra.mxu0 %v6500
      %8744 = vmatpush.bf16.msra.mxu0 %v6492
      %8745 = vmatpush.bf16.msra.mxu0 %v6484
      %8746 = vmatpush.bf16.msra.mxu0 %v6476
      %8747 = vmatpush.bf16.msra.mxu0 %v6468
      %8748 = vmatpush.bf16.msra.mxu0 %v6460
      %8749 = vmatpush.bf16.msra.mxu0 %v6452
      %8750 = vmatmul.bf16.gmra.mxu0 %v1802
      %v8751 = vpop.f32.mrf.mxu0
      %v8752 = vadd.f32 %v8738, %v8751
      %v8753 = vpop.f32.mrf.mxu0
      %v8754 = vadd.f32 %v8740, %v8753
      %8755 = vdwg.mxu0
      %8756 = vmatpush.bf16.msra.mxu0 %v6572
      %8757 = vmatpush.bf16.msra.mxu0 %v6564
      %8758 = vmatpush.bf16.msra.mxu0 %v6556
      %8759 = vmatpush.bf16.msra.mxu0 %v6548
      %8760 = vmatpush.bf16.msra.mxu0 %v6540
      %8761 = vmatpush.bf16.msra.mxu0 %v6532
      %8762 = vmatpush.bf16.msra.mxu0 %v6524
      %8763 = vmatpush.bf16.msra.mxu0 %v6516
      %8764 = vmatmul.bf16.gmra.mxu0 %v1803
      %v8765 = vpop.f32.mrf.mxu0
      %v8766 = vadd.f32 %v8752, %v8765
      %v8767 = vpop.f32.mrf.mxu0
      %v8768 = vadd.f32 %v8754, %v8767
      %8769 = vdwg.mxu0
      %8770 = vmatpush.bf16.msra.mxu0 %v6636
      %8771 = vmatpush.bf16.msra.mxu0 %v6628
      %8772 = vmatpush.bf16.msra.mxu0 %v6620
      %8773 = vmatpush.bf16.msra.mxu0 %v6612
      %8774 = vmatpush.bf16.msra.mxu0 %v6604
      %8775 = vmatpush.bf16.msra.mxu0 %v6596
      %8776 = vmatpush.bf16.msra.mxu0 %v6588
      %8777 = vmatpush.bf16.msra.mxu0 %v6580
      %8778 = vmatmul.bf16.gmra.mxu0 %v1804
      %v8779 = vpop.f32.mrf.mxu0
      %v8780 = vadd.f32 %v8766, %v8779
      %v8781 = vpop.f32.mrf.mxu0
      %v8782 = vadd.f32 %v8768, %v8781
      %8783 = vdwg.mxu0
      %8784 = vmatpush.bf16.msra.mxu0 %v6700
      %8785 = vmatpush.bf16.msra.mxu0 %v6692
      %8786 = vmatpush.bf16.msra.mxu0 %v6684
      %8787 = vmatpush.bf16.msra.mxu0 %v6676
      %8788 = vmatpush.bf16.msra.mxu0 %v6668
      %8789 = vmatpush.bf16.msra.mxu0 %v6660
      %8790 = vmatpush.bf16.msra.mxu0 %v6652
      %8791 = vmatpush.bf16.msra.mxu0 %v6644
      %8792 = vmatmul.bf16.gmra.mxu0 %v1805
      %v8793 = vpop.f32.mrf.mxu0
      %v8794 = vadd.f32 %v8780, %v8793
      %v8795 = vpop.f32.mrf.mxu0
      %v8796 = vadd.f32 %v8782, %v8795
      %8797 = vdwg.mxu0
      %8798 = vmatpush.bf16.msra.mxu0 %v6764
      %8799 = vmatpush.bf16.msra.mxu0 %v6756
      %8800 = vmatpush.bf16.msra.mxu0 %v6748
      %8801 = vmatpush.bf16.msra.mxu0 %v6740
      %8802 = vmatpush.bf16.msra.mxu0 %v6732
      %8803 = vmatpush.bf16.msra.mxu0 %v6724
      %8804 = vmatpush.bf16.msra.mxu0 %v6716
      %8805 = vmatpush.bf16.msra.mxu0 %v6708
      %8806 = vmatmul.bf16.gmra.mxu0 %v1806
      %v8807 = vpop.f32.mrf.mxu0
      %v8808 = vadd.f32 %v8794, %v8807
      %v8809 = vpop.f32.mrf.mxu0
      %v8810 = vadd.f32 %v8796, %v8809
      %8811 = vdwg.mxu0
      %8812 = vmatpush.bf16.msra.mxu0 %v6828
      %8813 = vmatpush.bf16.msra.mxu0 %v6820
      %8814 = vmatpush.bf16.msra.mxu0 %v6812
      %8815 = vmatpush.bf16.msra.mxu0 %v6804
      %8816 = vmatpush.bf16.msra.mxu0 %v6796
      %8817 = vmatpush.bf16.msra.mxu0 %v6788
      %8818 = vmatpush.bf16.msra.mxu0 %v6780
      %8819 = vmatpush.bf16.msra.mxu0 %v6772
      %8820 = vmatmul.bf16.gmra.mxu0 %v1807
      %v8821 = vpop.f32.mrf.mxu0
      %v8822 = vadd.f32 %v8808, %v8821
      %v8823 = vpop.f32.mrf.mxu0
      %v8824 = vadd.f32 %v8810, %v8823
      %8825 = vdwg.mxu0
      %8826 = vmatpush.bf16.msra.mxu0 %v6892
      %8827 = vmatpush.bf16.msra.mxu0 %v6884
      %8828 = vmatpush.bf16.msra.mxu0 %v6876
      %8829 = vmatpush.bf16.msra.mxu0 %v6868
      %8830 = vmatpush.bf16.msra.mxu0 %v6860
      %8831 = vmatpush.bf16.msra.mxu0 %v6852
      %8832 = vmatpush.bf16.msra.mxu0 %v6844
      %8833 = vmatpush.bf16.msra.mxu0 %v6836
      %8834 = vmatmul.bf16.gmra.mxu0 %v1808
      %v8835 = vpop.f32.mrf.mxu0
      %v8836 = vadd.f32 %v8822, %v8835
      %v8837 = vpop.f32.mrf.mxu0
      %v8838 = vadd.f32 %v8824, %v8837
      %8839 = vdwg.mxu0
      %8840 = vmatpush.bf16.msra.mxu0 %v6956
      %8841 = vmatpush.bf16.msra.mxu0 %v6948
      %8842 = vmatpush.bf16.msra.mxu0 %v6940
      %8843 = vmatpush.bf16.msra.mxu0 %v6932
      %8844 = vmatpush.bf16.msra.mxu0 %v6924
      %8845 = vmatpush.bf16.msra.mxu0 %v6916
      %8846 = vmatpush.bf16.msra.mxu0 %v6908
      %8847 = vmatpush.bf16.msra.mxu0 %v6900
      %8848 = vmatmul.bf16.gmra.mxu0 %v1809
      %v8849 = vpop.f32.mrf.mxu0
      %v8850 = vadd.f32 %v8836, %v8849
      %v8851 = vpop.f32.mrf.mxu0
      %v8852 = vadd.f32 %v8838, %v8851
      %8853 = vdwg.mxu0
      %8854 = vmatpush.bf16.msra.mxu0 0
      %8855 = vmatpush.bf16.msra.mxu0 0
      %8856 = vmatpush.bf16.msra.mxu0 0
      %8857 = vmatpush.bf16.msra.mxu0 0
      %8858 = vmatpush.bf16.msra.mxu0 0
      %8859 = vmatpush.bf16.msra.mxu0 0
      %8860 = vmatpush.bf16.msra.mxu0 0
      %8861 = vmatpush.bf16.msra.mxu0 %v8260
      %8862 = vmatmul.bf16.gmra.mxu0 %v8253
      %v8863 = vpop.f32.mrf.mxu0
      %v8864 = vadd.f32 %v8850, %v8863
      %v8865 = vpop.f32.mrf.mxu0
      %v8866 = vadd.f32 %v8852, %v8865
      %8867 = vdwg.mxu0
      %8868 = vmatpush.bf16.msra.mxu0 %v5741
      %8869 = vmatpush.bf16.msra.mxu0 %v5733
      %8870 = vmatpush.bf16.msra.mxu0 %v5725
      %8871 = vmatpush.bf16.msra.mxu0 %v5717
      %8872 = vmatpush.bf16.msra.mxu0 %v5709
      %8873 = vmatpush.bf16.msra.mxu0 %v5701
      %8874 = vmatpush.bf16.msra.mxu0 %v5693
      %8875 = vmatpush.bf16.msra.mxu0 %v5685
      %8876 = vmatmul.bf16.gmra.mxu0 %v1790
      %v8877 = vpop.f32.mrf.mxu0
      %v8878 = vadd.f32 %v1712, %v8877
      %v8879 = vpop.f32.mrf.mxu0
      %v8880 = vadd.f32 %v1712, %v8879
      %8881 = vdwg.mxu0
      %8882 = vmatpush.bf16.msra.mxu0 %v5805
      %8883 = vmatpush.bf16.msra.mxu0 %v5797
      %8884 = vmatpush.bf16.msra.mxu0 %v5789
      %8885 = vmatpush.bf16.msra.mxu0 %v5781
      %8886 = vmatpush.bf16.msra.mxu0 %v5773
      %8887 = vmatpush.bf16.msra.mxu0 %v5765
      %8888 = vmatpush.bf16.msra.mxu0 %v5757
      %8889 = vmatpush.bf16.msra.mxu0 %v5749
      %8890 = vmatmul.bf16.gmra.mxu0 %v1791
      %v8891 = vpop.f32.mrf.mxu0
      %v8892 = vadd.f32 %v8878, %v8891
      %v8893 = vpop.f32.mrf.mxu0
      %v8894 = vadd.f32 %v8880, %v8893
      %8895 = vdwg.mxu0
      %8896 = vmatpush.bf16.msra.mxu0 %v5869
      %8897 = vmatpush.bf16.msra.mxu0 %v5861
      %8898 = vmatpush.bf16.msra.mxu0 %v5853
      %8899 = vmatpush.bf16.msra.mxu0 %v5845
      %8900 = vmatpush.bf16.msra.mxu0 %v5837
      %8901 = vmatpush.bf16.msra.mxu0 %v5829
      %8902 = vmatpush.bf16.msra.mxu0 %v5821
      %8903 = vmatpush.bf16.msra.mxu0 %v5813
      %8904 = vmatmul.bf16.gmra.mxu0 %v1792
      %v8905 = vpop.f32.mrf.mxu0
      %v8906 = vadd.f32 %v8892, %v8905
      %v8907 = vpop.f32.mrf.mxu0
      %v8908 = vadd.f32 %v8894, %v8907
      %8909 = vdwg.mxu0
      %8910 = vmatpush.bf16.msra.mxu0 %v5933
      %8911 = vmatpush.bf16.msra.mxu0 %v5925
      %8912 = vmatpush.bf16.msra.mxu0 %v5917
      %8913 = vmatpush.bf16.msra.mxu0 %v5909
      %8914 = vmatpush.bf16.msra.mxu0 %v5901
      %8915 = vmatpush.bf16.msra.mxu0 %v5893
      %8916 = vmatpush.bf16.msra.mxu0 %v5885
      %8917 = vmatpush.bf16.msra.mxu0 %v5877
      %8918 = vmatmul.bf16.gmra.mxu0 %v1793
      %v8919 = vpop.f32.mrf.mxu0
      %v8920 = vadd.f32 %v8906, %v8919
      %v8921 = vpop.f32.mrf.mxu0
      %v8922 = vadd.f32 %v8908, %v8921
      %8923 = vdwg.mxu0
      %8924 = vmatpush.bf16.msra.mxu0 %v5997
      %8925 = vmatpush.bf16.msra.mxu0 %v5989
      %8926 = vmatpush.bf16.msra.mxu0 %v5981
      %8927 = vmatpush.bf16.msra.mxu0 %v5973
      %8928 = vmatpush.bf16.msra.mxu0 %v5965
      %8929 = vmatpush.bf16.msra.mxu0 %v5957
      %8930 = vmatpush.bf16.msra.mxu0 %v5949
      %8931 = vmatpush.bf16.msra.mxu0 %v5941
      %8932 = vmatmul.bf16.gmra.mxu0 %v1794
      %v8933 = vpop.f32.mrf.mxu0
      %v8934 = vadd.f32 %v8920, %v8933
      %v8935 = vpop.f32.mrf.mxu0
      %v8936 = vadd.f32 %v8922, %v8935
      %8937 = vdwg.mxu0
      %8938 = vmatpush.bf16.msra.mxu0 %v6061
      %8939 = vmatpush.bf16.msra.mxu0 %v6053
      %8940 = vmatpush.bf16.msra.mxu0 %v6045
      %8941 = vmatpush.bf16.msra.mxu0 %v6037
      %8942 = vmatpush.bf16.msra.mxu0 %v6029
      %8943 = vmatpush.bf16.msra.mxu0 %v6021
      %8944 = vmatpush.bf16.msra.mxu0 %v6013
      %8945 = vmatpush.bf16.msra.mxu0 %v6005
      %8946 = vmatmul.bf16.gmra.mxu0 %v1795
      %v8947 = vpop.f32.mrf.mxu0
      %v8948 = vadd.f32 %v8934, %v8947
      %v8949 = vpop.f32.mrf.mxu0
      %v8950 = vadd.f32 %v8936, %v8949
      %8951 = vdwg.mxu0
      %8952 = vmatpush.bf16.msra.mxu0 %v6125
      %8953 = vmatpush.bf16.msra.mxu0 %v6117
      %8954 = vmatpush.bf16.msra.mxu0 %v6109
      %8955 = vmatpush.bf16.msra.mxu0 %v6101
      %8956 = vmatpush.bf16.msra.mxu0 %v6093
      %8957 = vmatpush.bf16.msra.mxu0 %v6085
      %8958 = vmatpush.bf16.msra.mxu0 %v6077
      %8959 = vmatpush.bf16.msra.mxu0 %v6069
      %8960 = vmatmul.bf16.gmra.mxu0 %v1796
      %v8961 = vpop.f32.mrf.mxu0
      %v8962 = vadd.f32 %v8948, %v8961
      %v8963 = vpop.f32.mrf.mxu0
      %v8964 = vadd.f32 %v8950, %v8963
      %8965 = vdwg.mxu0
      %8966 = vmatpush.bf16.msra.mxu0 %v6189
      %8967 = vmatpush.bf16.msra.mxu0 %v6181
      %8968 = vmatpush.bf16.msra.mxu0 %v6173
      %8969 = vmatpush.bf16.msra.mxu0 %v6165
      %8970 = vmatpush.bf16.msra.mxu0 %v6157
      %8971 = vmatpush.bf16.msra.mxu0 %v6149
      %8972 = vmatpush.bf16.msra.mxu0 %v6141
      %8973 = vmatpush.bf16.msra.mxu0 %v6133
      %8974 = vmatmul.bf16.gmra.mxu0 %v1797
      %v8975 = vpop.f32.mrf.mxu0
      %v8976 = vadd.f32 %v8962, %v8975
      %v8977 = vpop.f32.mrf.mxu0
      %v8978 = vadd.f32 %v8964, %v8977
      %8979 = vdwg.mxu0
      %8980 = vmatpush.bf16.msra.mxu0 %v6253
      %8981 = vmatpush.bf16.msra.mxu0 %v6245
      %8982 = vmatpush.bf16.msra.mxu0 %v6237
      %8983 = vmatpush.bf16.msra.mxu0 %v6229
      %8984 = vmatpush.bf16.msra.mxu0 %v6221
      %8985 = vmatpush.bf16.msra.mxu0 %v6213
      %8986 = vmatpush.bf16.msra.mxu0 %v6205
      %8987 = vmatpush.bf16.msra.mxu0 %v6197
      %8988 = vmatmul.bf16.gmra.mxu0 %v1798
      %v8989 = vpop.f32.mrf.mxu0
      %v8990 = vadd.f32 %v8976, %v8989
      %v8991 = vpop.f32.mrf.mxu0
      %v8992 = vadd.f32 %v8978, %v8991
      %8993 = vdwg.mxu0
      %8994 = vmatpush.bf16.msra.mxu0 %v6317
      %8995 = vmatpush.bf16.msra.mxu0 %v6309
      %8996 = vmatpush.bf16.msra.mxu0 %v6301
      %8997 = vmatpush.bf16.msra.mxu0 %v6293
      %8998 = vmatpush.bf16.msra.mxu0 %v6285
      %8999 = vmatpush.bf16.msra.mxu0 %v6277
      %9000 = vmatpush.bf16.msra.mxu0 %v6269
      %9001 = vmatpush.bf16.msra.mxu0 %v6261
      %9002 = vmatmul.bf16.gmra.mxu0 %v1799
      %v9003 = vpop.f32.mrf.mxu0
      %v9004 = vadd.f32 %v8990, %v9003
      %v9005 = vpop.f32.mrf.mxu0
      %v9006 = vadd.f32 %v8992, %v9005
      %9007 = vdwg.mxu0
      %9008 = vmatpush.bf16.msra.mxu0 %v6381
      %9009 = vmatpush.bf16.msra.mxu0 %v6373
      %9010 = vmatpush.bf16.msra.mxu0 %v6365
      %9011 = vmatpush.bf16.msra.mxu0 %v6357
      %9012 = vmatpush.bf16.msra.mxu0 %v6349
      %9013 = vmatpush.bf16.msra.mxu0 %v6341
      %9014 = vmatpush.bf16.msra.mxu0 %v6333
      %9015 = vmatpush.bf16.msra.mxu0 %v6325
      %9016 = vmatmul.bf16.gmra.mxu0 %v1800
      %v9017 = vpop.f32.mrf.mxu0
      %v9018 = vadd.f32 %v9004, %v9017
      %v9019 = vpop.f32.mrf.mxu0
      %v9020 = vadd.f32 %v9006, %v9019
      %9021 = vdwg.mxu0
      %9022 = vmatpush.bf16.msra.mxu0 %v6445
      %9023 = vmatpush.bf16.msra.mxu0 %v6437
      %9024 = vmatpush.bf16.msra.mxu0 %v6429
      %9025 = vmatpush.bf16.msra.mxu0 %v6421
      %9026 = vmatpush.bf16.msra.mxu0 %v6413
      %9027 = vmatpush.bf16.msra.mxu0 %v6405
      %9028 = vmatpush.bf16.msra.mxu0 %v6397
      %9029 = vmatpush.bf16.msra.mxu0 %v6389
      %9030 = vmatmul.bf16.gmra.mxu0 %v1801
      %v9031 = vpop.f32.mrf.mxu0
      %v9032 = vadd.f32 %v9018, %v9031
      %v9033 = vpop.f32.mrf.mxu0
      %v9034 = vadd.f32 %v9020, %v9033
      %9035 = vdwg.mxu0
      %9036 = vmatpush.bf16.msra.mxu0 %v6509
      %9037 = vmatpush.bf16.msra.mxu0 %v6501
      %9038 = vmatpush.bf16.msra.mxu0 %v6493
      %9039 = vmatpush.bf16.msra.mxu0 %v6485
      %9040 = vmatpush.bf16.msra.mxu0 %v6477
      %9041 = vmatpush.bf16.msra.mxu0 %v6469
      %9042 = vmatpush.bf16.msra.mxu0 %v6461
      %9043 = vmatpush.bf16.msra.mxu0 %v6453
      %9044 = vmatmul.bf16.gmra.mxu0 %v1802
      %v9045 = vpop.f32.mrf.mxu0
      %v9046 = vadd.f32 %v9032, %v9045
      %v9047 = vpop.f32.mrf.mxu0
      %v9048 = vadd.f32 %v9034, %v9047
      %9049 = vdwg.mxu0
      %9050 = vmatpush.bf16.msra.mxu0 %v6573
      %9051 = vmatpush.bf16.msra.mxu0 %v6565
      %9052 = vmatpush.bf16.msra.mxu0 %v6557
      %9053 = vmatpush.bf16.msra.mxu0 %v6549
      %9054 = vmatpush.bf16.msra.mxu0 %v6541
      %9055 = vmatpush.bf16.msra.mxu0 %v6533
      %9056 = vmatpush.bf16.msra.mxu0 %v6525
      %9057 = vmatpush.bf16.msra.mxu0 %v6517
      %9058 = vmatmul.bf16.gmra.mxu0 %v1803
      %v9059 = vpop.f32.mrf.mxu0
      %v9060 = vadd.f32 %v9046, %v9059
      %v9061 = vpop.f32.mrf.mxu0
      %v9062 = vadd.f32 %v9048, %v9061
      %9063 = vdwg.mxu0
      %9064 = vmatpush.bf16.msra.mxu0 %v6637
      %9065 = vmatpush.bf16.msra.mxu0 %v6629
      %9066 = vmatpush.bf16.msra.mxu0 %v6621
      %9067 = vmatpush.bf16.msra.mxu0 %v6613
      %9068 = vmatpush.bf16.msra.mxu0 %v6605
      %9069 = vmatpush.bf16.msra.mxu0 %v6597
      %9070 = vmatpush.bf16.msra.mxu0 %v6589
      %9071 = vmatpush.bf16.msra.mxu0 %v6581
      %9072 = vmatmul.bf16.gmra.mxu0 %v1804
      %v9073 = vpop.f32.mrf.mxu0
      %v9074 = vadd.f32 %v9060, %v9073
      %v9075 = vpop.f32.mrf.mxu0
      %v9076 = vadd.f32 %v9062, %v9075
      %9077 = vdwg.mxu0
      %9078 = vmatpush.bf16.msra.mxu0 %v6701
      %9079 = vmatpush.bf16.msra.mxu0 %v6693
      %9080 = vmatpush.bf16.msra.mxu0 %v6685
      %9081 = vmatpush.bf16.msra.mxu0 %v6677
      %9082 = vmatpush.bf16.msra.mxu0 %v6669
      %9083 = vmatpush.bf16.msra.mxu0 %v6661
      %9084 = vmatpush.bf16.msra.mxu0 %v6653
      %9085 = vmatpush.bf16.msra.mxu0 %v6645
      %9086 = vmatmul.bf16.gmra.mxu0 %v1805
      %v9087 = vpop.f32.mrf.mxu0
      %v9088 = vadd.f32 %v9074, %v9087
      %v9089 = vpop.f32.mrf.mxu0
      %v9090 = vadd.f32 %v9076, %v9089
      %9091 = vdwg.mxu0
      %9092 = vmatpush.bf16.msra.mxu0 %v6765
      %9093 = vmatpush.bf16.msra.mxu0 %v6757
      %9094 = vmatpush.bf16.msra.mxu0 %v6749
      %9095 = vmatpush.bf16.msra.mxu0 %v6741
      %9096 = vmatpush.bf16.msra.mxu0 %v6733
      %9097 = vmatpush.bf16.msra.mxu0 %v6725
      %9098 = vmatpush.bf16.msra.mxu0 %v6717
      %9099 = vmatpush.bf16.msra.mxu0 %v6709
      %9100 = vmatmul.bf16.gmra.mxu0 %v1806
      %v9101 = vpop.f32.mrf.mxu0
      %v9102 = vadd.f32 %v9088, %v9101
      %v9103 = vpop.f32.mrf.mxu0
      %v9104 = vadd.f32 %v9090, %v9103
      %9105 = vdwg.mxu0
      %9106 = vmatpush.bf16.msra.mxu0 %v6829
      %9107 = vmatpush.bf16.msra.mxu0 %v6821
      %9108 = vmatpush.bf16.msra.mxu0 %v6813
      %9109 = vmatpush.bf16.msra.mxu0 %v6805
      %9110 = vmatpush.bf16.msra.mxu0 %v6797
      %9111 = vmatpush.bf16.msra.mxu0 %v6789
      %9112 = vmatpush.bf16.msra.mxu0 %v6781
      %9113 = vmatpush.bf16.msra.mxu0 %v6773
      %9114 = vmatmul.bf16.gmra.mxu0 %v1807
      %v9115 = vpop.f32.mrf.mxu0
      %v9116 = vadd.f32 %v9102, %v9115
      %v9117 = vpop.f32.mrf.mxu0
      %v9118 = vadd.f32 %v9104, %v9117
      %9119 = vdwg.mxu0
      %9120 = vmatpush.bf16.msra.mxu0 %v6893
      %9121 = vmatpush.bf16.msra.mxu0 %v6885
      %9122 = vmatpush.bf16.msra.mxu0 %v6877
      %9123 = vmatpush.bf16.msra.mxu0 %v6869
      %9124 = vmatpush.bf16.msra.mxu0 %v6861
      %9125 = vmatpush.bf16.msra.mxu0 %v6853
      %9126 = vmatpush.bf16.msra.mxu0 %v6845
      %9127 = vmatpush.bf16.msra.mxu0 %v6837
      %9128 = vmatmul.bf16.gmra.mxu0 %v1808
      %v9129 = vpop.f32.mrf.mxu0
      %v9130 = vadd.f32 %v9116, %v9129
      %v9131 = vpop.f32.mrf.mxu0
      %v9132 = vadd.f32 %v9118, %v9131
      %9133 = vdwg.mxu0
      %9134 = vmatpush.bf16.msra.mxu0 %v6957
      %9135 = vmatpush.bf16.msra.mxu0 %v6949
      %9136 = vmatpush.bf16.msra.mxu0 %v6941
      %9137 = vmatpush.bf16.msra.mxu0 %v6933
      %9138 = vmatpush.bf16.msra.mxu0 %v6925
      %9139 = vmatpush.bf16.msra.mxu0 %v6917
      %9140 = vmatpush.bf16.msra.mxu0 %v6909
      %9141 = vmatpush.bf16.msra.mxu0 %v6901
      %9142 = vmatmul.bf16.gmra.mxu0 %v1809
      %v9143 = vpop.f32.mrf.mxu0
      %v9144 = vadd.f32 %v9130, %v9143
      %v9145 = vpop.f32.mrf.mxu0
      %v9146 = vadd.f32 %v9132, %v9145
      %9147 = vdwg.mxu0
      %9148 = vmatpush.bf16.msra.mxu0 0
      %9149 = vmatpush.bf16.msra.mxu0 0
      %9150 = vmatpush.bf16.msra.mxu0 0
      %9151 = vmatpush.bf16.msra.mxu0 0
      %9152 = vmatpush.bf16.msra.mxu0 0
      %9153 = vmatpush.bf16.msra.mxu0 0
      %9154 = vmatpush.bf16.msra.mxu0 0
      %9155 = vmatpush.bf16.msra.mxu0 %v8263
      %9156 = vmatmul.bf16.gmra.mxu0 %v8253
      %v9157 = vpop.f32.mrf.mxu0
      %v9158 = vadd.f32 %v9144, %v9157
      %v9159 = vpop.f32.mrf.mxu0
      %v9160 = vadd.f32 %v9146, %v9159
      %9161 = vdwg.mxu0
      %9162 = vmatpush.bf16.msra.mxu0 %v5742
      %9163 = vmatpush.bf16.msra.mxu0 %v5734
      %9164 = vmatpush.bf16.msra.mxu0 %v5726
      %9165 = vmatpush.bf16.msra.mxu0 %v5718
      %9166 = vmatpush.bf16.msra.mxu0 %v5710
      %9167 = vmatpush.bf16.msra.mxu0 %v5702
      %9168 = vmatpush.bf16.msra.mxu0 %v5694
      %9169 = vmatpush.bf16.msra.mxu0 %v5686
      %9170 = vmatmul.bf16.gmra.mxu0 %v1790
      %v9171 = vpop.f32.mrf.mxu0
      %v9172 = vadd.f32 %v1713, %v9171
      %v9173 = vpop.f32.mrf.mxu0
      %v9174 = vadd.f32 %v1713, %v9173
      %9175 = vdwg.mxu0
      %9176 = vmatpush.bf16.msra.mxu0 %v5806
      %9177 = vmatpush.bf16.msra.mxu0 %v5798
      %9178 = vmatpush.bf16.msra.mxu0 %v5790
      %9179 = vmatpush.bf16.msra.mxu0 %v5782
      %9180 = vmatpush.bf16.msra.mxu0 %v5774
      %9181 = vmatpush.bf16.msra.mxu0 %v5766
      %9182 = vmatpush.bf16.msra.mxu0 %v5758
      %9183 = vmatpush.bf16.msra.mxu0 %v5750
      %9184 = vmatmul.bf16.gmra.mxu0 %v1791
      %v9185 = vpop.f32.mrf.mxu0
      %v9186 = vadd.f32 %v9172, %v9185
      %v9187 = vpop.f32.mrf.mxu0
      %v9188 = vadd.f32 %v9174, %v9187
      %9189 = vdwg.mxu0
      %9190 = vmatpush.bf16.msra.mxu0 %v5870
      %9191 = vmatpush.bf16.msra.mxu0 %v5862
      %9192 = vmatpush.bf16.msra.mxu0 %v5854
      %9193 = vmatpush.bf16.msra.mxu0 %v5846
      %9194 = vmatpush.bf16.msra.mxu0 %v5838
      %9195 = vmatpush.bf16.msra.mxu0 %v5830
      %9196 = vmatpush.bf16.msra.mxu0 %v5822
      %9197 = vmatpush.bf16.msra.mxu0 %v5814
      %9198 = vmatmul.bf16.gmra.mxu0 %v1792
      %v9199 = vpop.f32.mrf.mxu0
      %v9200 = vadd.f32 %v9186, %v9199
      %v9201 = vpop.f32.mrf.mxu0
      %v9202 = vadd.f32 %v9188, %v9201
      %9203 = vdwg.mxu0
      %9204 = vmatpush.bf16.msra.mxu0 %v5934
      %9205 = vmatpush.bf16.msra.mxu0 %v5926
      %9206 = vmatpush.bf16.msra.mxu0 %v5918
      %9207 = vmatpush.bf16.msra.mxu0 %v5910
      %9208 = vmatpush.bf16.msra.mxu0 %v5902
      %9209 = vmatpush.bf16.msra.mxu0 %v5894
      %9210 = vmatpush.bf16.msra.mxu0 %v5886
      %9211 = vmatpush.bf16.msra.mxu0 %v5878
      %9212 = vmatmul.bf16.gmra.mxu0 %v1793
      %v9213 = vpop.f32.mrf.mxu0
      %v9214 = vadd.f32 %v9200, %v9213
      %v9215 = vpop.f32.mrf.mxu0
      %v9216 = vadd.f32 %v9202, %v9215
      %9217 = vdwg.mxu0
      %9218 = vmatpush.bf16.msra.mxu0 %v5998
      %9219 = vmatpush.bf16.msra.mxu0 %v5990
      %9220 = vmatpush.bf16.msra.mxu0 %v5982
      %9221 = vmatpush.bf16.msra.mxu0 %v5974
      %9222 = vmatpush.bf16.msra.mxu0 %v5966
      %9223 = vmatpush.bf16.msra.mxu0 %v5958
      %9224 = vmatpush.bf16.msra.mxu0 %v5950
      %9225 = vmatpush.bf16.msra.mxu0 %v5942
      %9226 = vmatmul.bf16.gmra.mxu0 %v1794
      %v9227 = vpop.f32.mrf.mxu0
      %v9228 = vadd.f32 %v9214, %v9227
      %v9229 = vpop.f32.mrf.mxu0
      %v9230 = vadd.f32 %v9216, %v9229
      %9231 = vdwg.mxu0
      %9232 = vmatpush.bf16.msra.mxu0 %v6062
      %9233 = vmatpush.bf16.msra.mxu0 %v6054
      %9234 = vmatpush.bf16.msra.mxu0 %v6046
      %9235 = vmatpush.bf16.msra.mxu0 %v6038
      %9236 = vmatpush.bf16.msra.mxu0 %v6030
      %9237 = vmatpush.bf16.msra.mxu0 %v6022
      %9238 = vmatpush.bf16.msra.mxu0 %v6014
      %9239 = vmatpush.bf16.msra.mxu0 %v6006
      %9240 = vmatmul.bf16.gmra.mxu0 %v1795
      %v9241 = vpop.f32.mrf.mxu0
      %v9242 = vadd.f32 %v9228, %v9241
      %v9243 = vpop.f32.mrf.mxu0
      %v9244 = vadd.f32 %v9230, %v9243
      %9245 = vdwg.mxu0
      %9246 = vmatpush.bf16.msra.mxu0 %v6126
      %9247 = vmatpush.bf16.msra.mxu0 %v6118
      %9248 = vmatpush.bf16.msra.mxu0 %v6110
      %9249 = vmatpush.bf16.msra.mxu0 %v6102
      %9250 = vmatpush.bf16.msra.mxu0 %v6094
      %9251 = vmatpush.bf16.msra.mxu0 %v6086
      %9252 = vmatpush.bf16.msra.mxu0 %v6078
      %9253 = vmatpush.bf16.msra.mxu0 %v6070
      %9254 = vmatmul.bf16.gmra.mxu0 %v1796
      %v9255 = vpop.f32.mrf.mxu0
      %v9256 = vadd.f32 %v9242, %v9255
      %v9257 = vpop.f32.mrf.mxu0
      %v9258 = vadd.f32 %v9244, %v9257
      %9259 = vdwg.mxu0
      %9260 = vmatpush.bf16.msra.mxu0 %v6190
      %9261 = vmatpush.bf16.msra.mxu0 %v6182
      %9262 = vmatpush.bf16.msra.mxu0 %v6174
      %9263 = vmatpush.bf16.msra.mxu0 %v6166
      %9264 = vmatpush.bf16.msra.mxu0 %v6158
      %9265 = vmatpush.bf16.msra.mxu0 %v6150
      %9266 = vmatpush.bf16.msra.mxu0 %v6142
      %9267 = vmatpush.bf16.msra.mxu0 %v6134
      %9268 = vmatmul.bf16.gmra.mxu0 %v1797
      %v9269 = vpop.f32.mrf.mxu0
      %v9270 = vadd.f32 %v9256, %v9269
      %v9271 = vpop.f32.mrf.mxu0
      %v9272 = vadd.f32 %v9258, %v9271
      %9273 = vdwg.mxu0
      %9274 = vmatpush.bf16.msra.mxu0 %v6254
      %9275 = vmatpush.bf16.msra.mxu0 %v6246
      %9276 = vmatpush.bf16.msra.mxu0 %v6238
      %9277 = vmatpush.bf16.msra.mxu0 %v6230
      %9278 = vmatpush.bf16.msra.mxu0 %v6222
      %9279 = vmatpush.bf16.msra.mxu0 %v6214
      %9280 = vmatpush.bf16.msra.mxu0 %v6206
      %9281 = vmatpush.bf16.msra.mxu0 %v6198
      %9282 = vmatmul.bf16.gmra.mxu0 %v1798
      %v9283 = vpop.f32.mrf.mxu0
      %v9284 = vadd.f32 %v9270, %v9283
      %v9285 = vpop.f32.mrf.mxu0
      %v9286 = vadd.f32 %v9272, %v9285
      %9287 = vdwg.mxu0
      %9288 = vmatpush.bf16.msra.mxu0 %v6318
      %9289 = vmatpush.bf16.msra.mxu0 %v6310
      %9290 = vmatpush.bf16.msra.mxu0 %v6302
      %9291 = vmatpush.bf16.msra.mxu0 %v6294
      %9292 = vmatpush.bf16.msra.mxu0 %v6286
      %9293 = vmatpush.bf16.msra.mxu0 %v6278
      %9294 = vmatpush.bf16.msra.mxu0 %v6270
      %9295 = vmatpush.bf16.msra.mxu0 %v6262
      %9296 = vmatmul.bf16.gmra.mxu0 %v1799
      %v9297 = vpop.f32.mrf.mxu0
      %v9298 = vadd.f32 %v9284, %v9297
      %v9299 = vpop.f32.mrf.mxu0
      %v9300 = vadd.f32 %v9286, %v9299
      %9301 = vdwg.mxu0
      %9302 = vmatpush.bf16.msra.mxu0 %v6382
      %9303 = vmatpush.bf16.msra.mxu0 %v6374
      %9304 = vmatpush.bf16.msra.mxu0 %v6366
      %9305 = vmatpush.bf16.msra.mxu0 %v6358
      %9306 = vmatpush.bf16.msra.mxu0 %v6350
      %9307 = vmatpush.bf16.msra.mxu0 %v6342
      %9308 = vmatpush.bf16.msra.mxu0 %v6334
      %9309 = vmatpush.bf16.msra.mxu0 %v6326
      %9310 = vmatmul.bf16.gmra.mxu0 %v1800
      %v9311 = vpop.f32.mrf.mxu0
      %v9312 = vadd.f32 %v9298, %v9311
      %v9313 = vpop.f32.mrf.mxu0
      %v9314 = vadd.f32 %v9300, %v9313
      %9315 = vdwg.mxu0
      %9316 = vmatpush.bf16.msra.mxu0 %v6446
      %9317 = vmatpush.bf16.msra.mxu0 %v6438
      %9318 = vmatpush.bf16.msra.mxu0 %v6430
      %9319 = vmatpush.bf16.msra.mxu0 %v6422
      %9320 = vmatpush.bf16.msra.mxu0 %v6414
      %9321 = vmatpush.bf16.msra.mxu0 %v6406
      %9322 = vmatpush.bf16.msra.mxu0 %v6398
      %9323 = vmatpush.bf16.msra.mxu0 %v6390
      %9324 = vmatmul.bf16.gmra.mxu0 %v1801
      %v9325 = vpop.f32.mrf.mxu0
      %v9326 = vadd.f32 %v9312, %v9325
      %v9327 = vpop.f32.mrf.mxu0
      %v9328 = vadd.f32 %v9314, %v9327
      %9329 = vdwg.mxu0
      %9330 = vmatpush.bf16.msra.mxu0 %v6510
      %9331 = vmatpush.bf16.msra.mxu0 %v6502
      %9332 = vmatpush.bf16.msra.mxu0 %v6494
      %9333 = vmatpush.bf16.msra.mxu0 %v6486
      %9334 = vmatpush.bf16.msra.mxu0 %v6478
      %9335 = vmatpush.bf16.msra.mxu0 %v6470
      %9336 = vmatpush.bf16.msra.mxu0 %v6462
      %9337 = vmatpush.bf16.msra.mxu0 %v6454
      %9338 = vmatmul.bf16.gmra.mxu0 %v1802
      %v9339 = vpop.f32.mrf.mxu0
      %v9340 = vadd.f32 %v9326, %v9339
      %v9341 = vpop.f32.mrf.mxu0
      %v9342 = vadd.f32 %v9328, %v9341
      %9343 = vdwg.mxu0
      %9344 = vmatpush.bf16.msra.mxu0 %v6574
      %9345 = vmatpush.bf16.msra.mxu0 %v6566
      %9346 = vmatpush.bf16.msra.mxu0 %v6558
      %9347 = vmatpush.bf16.msra.mxu0 %v6550
      %9348 = vmatpush.bf16.msra.mxu0 %v6542
      %9349 = vmatpush.bf16.msra.mxu0 %v6534
      %9350 = vmatpush.bf16.msra.mxu0 %v6526
      %9351 = vmatpush.bf16.msra.mxu0 %v6518
      %9352 = vmatmul.bf16.gmra.mxu0 %v1803
      %v9353 = vpop.f32.mrf.mxu0
      %v9354 = vadd.f32 %v9340, %v9353
      %v9355 = vpop.f32.mrf.mxu0
      %v9356 = vadd.f32 %v9342, %v9355
      %9357 = vdwg.mxu0
      %9358 = vmatpush.bf16.msra.mxu0 %v6638
      %9359 = vmatpush.bf16.msra.mxu0 %v6630
      %9360 = vmatpush.bf16.msra.mxu0 %v6622
      %9361 = vmatpush.bf16.msra.mxu0 %v6614
      %9362 = vmatpush.bf16.msra.mxu0 %v6606
      %9363 = vmatpush.bf16.msra.mxu0 %v6598
      %9364 = vmatpush.bf16.msra.mxu0 %v6590
      %9365 = vmatpush.bf16.msra.mxu0 %v6582
      %9366 = vmatmul.bf16.gmra.mxu0 %v1804
      %v9367 = vpop.f32.mrf.mxu0
      %v9368 = vadd.f32 %v9354, %v9367
      %v9369 = vpop.f32.mrf.mxu0
      %v9370 = vadd.f32 %v9356, %v9369
      %9371 = vdwg.mxu0
      %9372 = vmatpush.bf16.msra.mxu0 %v6702
      %9373 = vmatpush.bf16.msra.mxu0 %v6694
      %9374 = vmatpush.bf16.msra.mxu0 %v6686
      %9375 = vmatpush.bf16.msra.mxu0 %v6678
      %9376 = vmatpush.bf16.msra.mxu0 %v6670
      %9377 = vmatpush.bf16.msra.mxu0 %v6662
      %9378 = vmatpush.bf16.msra.mxu0 %v6654
      %9379 = vmatpush.bf16.msra.mxu0 %v6646
      %9380 = vmatmul.bf16.gmra.mxu0 %v1805
      %v9381 = vpop.f32.mrf.mxu0
      %v9382 = vadd.f32 %v9368, %v9381
      %v9383 = vpop.f32.mrf.mxu0
      %v9384 = vadd.f32 %v9370, %v9383
      %9385 = vdwg.mxu0
      %9386 = vmatpush.bf16.msra.mxu0 %v6766
      %9387 = vmatpush.bf16.msra.mxu0 %v6758
      %9388 = vmatpush.bf16.msra.mxu0 %v6750
      %9389 = vmatpush.bf16.msra.mxu0 %v6742
      %9390 = vmatpush.bf16.msra.mxu0 %v6734
      %9391 = vmatpush.bf16.msra.mxu0 %v6726
      %9392 = vmatpush.bf16.msra.mxu0 %v6718
      %9393 = vmatpush.bf16.msra.mxu0 %v6710
      %9394 = vmatmul.bf16.gmra.mxu0 %v1806
      %v9395 = vpop.f32.mrf.mxu0
      %v9396 = vadd.f32 %v9382, %v9395
      %v9397 = vpop.f32.mrf.mxu0
      %v9398 = vadd.f32 %v9384, %v9397
      %9399 = vdwg.mxu0
      %9400 = vmatpush.bf16.msra.mxu0 %v6830
      %9401 = vmatpush.bf16.msra.mxu0 %v6822
      %9402 = vmatpush.bf16.msra.mxu0 %v6814
      %9403 = vmatpush.bf16.msra.mxu0 %v6806
      %9404 = vmatpush.bf16.msra.mxu0 %v6798
      %9405 = vmatpush.bf16.msra.mxu0 %v6790
      %9406 = vmatpush.bf16.msra.mxu0 %v6782
      %9407 = vmatpush.bf16.msra.mxu0 %v6774
      %9408 = vmatmul.bf16.gmra.mxu0 %v1807
      %v9409 = vpop.f32.mrf.mxu0
      %v9410 = vadd.f32 %v9396, %v9409
      %v9411 = vpop.f32.mrf.mxu0
      %v9412 = vadd.f32 %v9398, %v9411
      %9413 = vdwg.mxu0
      %9414 = vmatpush.bf16.msra.mxu0 %v6894
      %9415 = vmatpush.bf16.msra.mxu0 %v6886
      %9416 = vmatpush.bf16.msra.mxu0 %v6878
      %9417 = vmatpush.bf16.msra.mxu0 %v6870
      %9418 = vmatpush.bf16.msra.mxu0 %v6862
      %9419 = vmatpush.bf16.msra.mxu0 %v6854
      %9420 = vmatpush.bf16.msra.mxu0 %v6846
      %9421 = vmatpush.bf16.msra.mxu0 %v6838
      %9422 = vmatmul.bf16.gmra.mxu0 %v1808
      %v9423 = vpop.f32.mrf.mxu0
      %v9424 = vadd.f32 %v9410, %v9423
      %v9425 = vpop.f32.mrf.mxu0
      %v9426 = vadd.f32 %v9412, %v9425
      %9427 = vdwg.mxu0
      %9428 = vmatpush.bf16.msra.mxu0 %v6958
      %9429 = vmatpush.bf16.msra.mxu0 %v6950
      %9430 = vmatpush.bf16.msra.mxu0 %v6942
      %9431 = vmatpush.bf16.msra.mxu0 %v6934
      %9432 = vmatpush.bf16.msra.mxu0 %v6926
      %9433 = vmatpush.bf16.msra.mxu0 %v6918
      %9434 = vmatpush.bf16.msra.mxu0 %v6910
      %9435 = vmatpush.bf16.msra.mxu0 %v6902
      %9436 = vmatmul.bf16.gmra.mxu0 %v1809
      %v9437 = vpop.f32.mrf.mxu0
      %v9438 = vadd.f32 %v9424, %v9437
      %v9439 = vpop.f32.mrf.mxu0
      %v9440 = vadd.f32 %v9426, %v9439
      %9441 = vdwg.mxu0
      %9442 = vmatpush.bf16.msra.mxu0 0
      %9443 = vmatpush.bf16.msra.mxu0 0
      %9444 = vmatpush.bf16.msra.mxu0 0
      %9445 = vmatpush.bf16.msra.mxu0 0
      %9446 = vmatpush.bf16.msra.mxu0 0
      %9447 = vmatpush.bf16.msra.mxu0 0
      %9448 = vmatpush.bf16.msra.mxu0 0
      %9449 = vmatpush.bf16.msra.mxu0 %v8266
      %9450 = vmatmul.bf16.gmra.mxu0 %v8253
      %v9451 = vpop.f32.mrf.mxu0
      %v9452 = vadd.f32 %v9438, %v9451
      %v9453 = vpop.f32.mrf.mxu0
      %v9454 = vadd.f32 %v9440, %v9453
      %9455 = vdwg.mxu0
      %9456 = vmatpush.bf16.msra.mxu0 %v5743
      %9457 = vmatpush.bf16.msra.mxu0 %v5735
      %9458 = vmatpush.bf16.msra.mxu0 %v5727
      %9459 = vmatpush.bf16.msra.mxu0 %v5719
      %9460 = vmatpush.bf16.msra.mxu0 %v5711
      %9461 = vmatpush.bf16.msra.mxu0 %v5703
      %9462 = vmatpush.bf16.msra.mxu0 %v5695
      %9463 = vmatpush.bf16.msra.mxu0 %v5687
      %9464 = vmatmul.bf16.gmra.mxu0 %v1790
      %v9465 = vpop.f32.mrf.mxu0
      %v9466 = vadd.f32 %v1714, %v9465
      %v9467 = vpop.f32.mrf.mxu0
      %v9468 = vadd.f32 %v1714, %v9467
      %9469 = vdwg.mxu0
      %9470 = vmatpush.bf16.msra.mxu0 %v5807
      %9471 = vmatpush.bf16.msra.mxu0 %v5799
      %9472 = vmatpush.bf16.msra.mxu0 %v5791
      %9473 = vmatpush.bf16.msra.mxu0 %v5783
      %9474 = vmatpush.bf16.msra.mxu0 %v5775
      %9475 = vmatpush.bf16.msra.mxu0 %v5767
      %9476 = vmatpush.bf16.msra.mxu0 %v5759
      %9477 = vmatpush.bf16.msra.mxu0 %v5751
      %9478 = vmatmul.bf16.gmra.mxu0 %v1791
      %v9479 = vpop.f32.mrf.mxu0
      %v9480 = vadd.f32 %v9466, %v9479
      %v9481 = vpop.f32.mrf.mxu0
      %v9482 = vadd.f32 %v9468, %v9481
      %9483 = vdwg.mxu0
      %9484 = vmatpush.bf16.msra.mxu0 %v5871
      %9485 = vmatpush.bf16.msra.mxu0 %v5863
      %9486 = vmatpush.bf16.msra.mxu0 %v5855
      %9487 = vmatpush.bf16.msra.mxu0 %v5847
      %9488 = vmatpush.bf16.msra.mxu0 %v5839
      %9489 = vmatpush.bf16.msra.mxu0 %v5831
      %9490 = vmatpush.bf16.msra.mxu0 %v5823
      %9491 = vmatpush.bf16.msra.mxu0 %v5815
      %9492 = vmatmul.bf16.gmra.mxu0 %v1792
      %v9493 = vpop.f32.mrf.mxu0
      %v9494 = vadd.f32 %v9480, %v9493
      %v9495 = vpop.f32.mrf.mxu0
      %v9496 = vadd.f32 %v9482, %v9495
      %9497 = vdwg.mxu0
      %9498 = vmatpush.bf16.msra.mxu0 %v5935
      %9499 = vmatpush.bf16.msra.mxu0 %v5927
      %9500 = vmatpush.bf16.msra.mxu0 %v5919
      %9501 = vmatpush.bf16.msra.mxu0 %v5911
      %9502 = vmatpush.bf16.msra.mxu0 %v5903
      %9503 = vmatpush.bf16.msra.mxu0 %v5895
      %9504 = vmatpush.bf16.msra.mxu0 %v5887
      %9505 = vmatpush.bf16.msra.mxu0 %v5879
      %9506 = vmatmul.bf16.gmra.mxu0 %v1793
      %v9507 = vpop.f32.mrf.mxu0
      %v9508 = vadd.f32 %v9494, %v9507
      %v9509 = vpop.f32.mrf.mxu0
      %v9510 = vadd.f32 %v9496, %v9509
      %9511 = vdwg.mxu0
      %9512 = vmatpush.bf16.msra.mxu0 %v5999
      %9513 = vmatpush.bf16.msra.mxu0 %v5991
      %9514 = vmatpush.bf16.msra.mxu0 %v5983
      %9515 = vmatpush.bf16.msra.mxu0 %v5975
      %9516 = vmatpush.bf16.msra.mxu0 %v5967
      %9517 = vmatpush.bf16.msra.mxu0 %v5959
      %9518 = vmatpush.bf16.msra.mxu0 %v5951
      %9519 = vmatpush.bf16.msra.mxu0 %v5943
      %9520 = vmatmul.bf16.gmra.mxu0 %v1794
      %v9521 = vpop.f32.mrf.mxu0
      %v9522 = vadd.f32 %v9508, %v9521
      %v9523 = vpop.f32.mrf.mxu0
      %v9524 = vadd.f32 %v9510, %v9523
      %9525 = vdwg.mxu0
      %9526 = vmatpush.bf16.msra.mxu0 %v6063
      %9527 = vmatpush.bf16.msra.mxu0 %v6055
      %9528 = vmatpush.bf16.msra.mxu0 %v6047
      %9529 = vmatpush.bf16.msra.mxu0 %v6039
      %9530 = vmatpush.bf16.msra.mxu0 %v6031
      %9531 = vmatpush.bf16.msra.mxu0 %v6023
      %9532 = vmatpush.bf16.msra.mxu0 %v6015
      %9533 = vmatpush.bf16.msra.mxu0 %v6007
      %9534 = vmatmul.bf16.gmra.mxu0 %v1795
      %v9535 = vpop.f32.mrf.mxu0
      %v9536 = vadd.f32 %v9522, %v9535
      %v9537 = vpop.f32.mrf.mxu0
      %v9538 = vadd.f32 %v9524, %v9537
      %9539 = vdwg.mxu0
      %9540 = vmatpush.bf16.msra.mxu0 %v6127
      %9541 = vmatpush.bf16.msra.mxu0 %v6119
      %9542 = vmatpush.bf16.msra.mxu0 %v6111
      %9543 = vmatpush.bf16.msra.mxu0 %v6103
      %9544 = vmatpush.bf16.msra.mxu0 %v6095
      %9545 = vmatpush.bf16.msra.mxu0 %v6087
      %9546 = vmatpush.bf16.msra.mxu0 %v6079
      %9547 = vmatpush.bf16.msra.mxu0 %v6071
      %9548 = vmatmul.bf16.gmra.mxu0 %v1796
      %v9549 = vpop.f32.mrf.mxu0
      %v9550 = vadd.f32 %v9536, %v9549
      %v9551 = vpop.f32.mrf.mxu0
      %v9552 = vadd.f32 %v9538, %v9551
      %9553 = vdwg.mxu0
      %9554 = vmatpush.bf16.msra.mxu0 %v6191
      %9555 = vmatpush.bf16.msra.mxu0 %v6183
      %9556 = vmatpush.bf16.msra.mxu0 %v6175
      %9557 = vmatpush.bf16.msra.mxu0 %v6167
      %9558 = vmatpush.bf16.msra.mxu0 %v6159
      %9559 = vmatpush.bf16.msra.mxu0 %v6151
      %9560 = vmatpush.bf16.msra.mxu0 %v6143
      %9561 = vmatpush.bf16.msra.mxu0 %v6135
      %9562 = vmatmul.bf16.gmra.mxu0 %v1797
      %v9563 = vpop.f32.mrf.mxu0
      %v9564 = vadd.f32 %v9550, %v9563
      %v9565 = vpop.f32.mrf.mxu0
      %v9566 = vadd.f32 %v9552, %v9565
      %9567 = vdwg.mxu0
      %9568 = vmatpush.bf16.msra.mxu0 %v6255
      %9569 = vmatpush.bf16.msra.mxu0 %v6247
      %9570 = vmatpush.bf16.msra.mxu0 %v6239
      %9571 = vmatpush.bf16.msra.mxu0 %v6231
      %9572 = vmatpush.bf16.msra.mxu0 %v6223
      %9573 = vmatpush.bf16.msra.mxu0 %v6215
      %9574 = vmatpush.bf16.msra.mxu0 %v6207
      %9575 = vmatpush.bf16.msra.mxu0 %v6199
      %9576 = vmatmul.bf16.gmra.mxu0 %v1798
      %v9577 = vpop.f32.mrf.mxu0
      %v9578 = vadd.f32 %v9564, %v9577
      %v9579 = vpop.f32.mrf.mxu0
      %v9580 = vadd.f32 %v9566, %v9579
      %9581 = vdwg.mxu0
      %9582 = vmatpush.bf16.msra.mxu0 %v6319
      %9583 = vmatpush.bf16.msra.mxu0 %v6311
      %9584 = vmatpush.bf16.msra.mxu0 %v6303
      %9585 = vmatpush.bf16.msra.mxu0 %v6295
      %9586 = vmatpush.bf16.msra.mxu0 %v6287
      %9587 = vmatpush.bf16.msra.mxu0 %v6279
      %9588 = vmatpush.bf16.msra.mxu0 %v6271
      %9589 = vmatpush.bf16.msra.mxu0 %v6263
      %9590 = vmatmul.bf16.gmra.mxu0 %v1799
      %v9591 = vpop.f32.mrf.mxu0
      %v9592 = vadd.f32 %v9578, %v9591
      %v9593 = vpop.f32.mrf.mxu0
      %v9594 = vadd.f32 %v9580, %v9593
      %9595 = vdwg.mxu0
      %9596 = vmatpush.bf16.msra.mxu0 %v6383
      %9597 = vmatpush.bf16.msra.mxu0 %v6375
      %9598 = vmatpush.bf16.msra.mxu0 %v6367
      %9599 = vmatpush.bf16.msra.mxu0 %v6359
      %9600 = vmatpush.bf16.msra.mxu0 %v6351
      %9601 = vmatpush.bf16.msra.mxu0 %v6343
      %9602 = vmatpush.bf16.msra.mxu0 %v6335
      %9603 = vmatpush.bf16.msra.mxu0 %v6327
      %9604 = vmatmul.bf16.gmra.mxu0 %v1800
      %v9605 = vpop.f32.mrf.mxu0
      %v9606 = vadd.f32 %v9592, %v9605
      %v9607 = vpop.f32.mrf.mxu0
      %v9608 = vadd.f32 %v9594, %v9607
      %9609 = vdwg.mxu0
      %9610 = vmatpush.bf16.msra.mxu0 %v6447
      %9611 = vmatpush.bf16.msra.mxu0 %v6439
      %9612 = vmatpush.bf16.msra.mxu0 %v6431
      %9613 = vmatpush.bf16.msra.mxu0 %v6423
      %9614 = vmatpush.bf16.msra.mxu0 %v6415
      %9615 = vmatpush.bf16.msra.mxu0 %v6407
      %9616 = vmatpush.bf16.msra.mxu0 %v6399
      %9617 = vmatpush.bf16.msra.mxu0 %v6391
      %9618 = vmatmul.bf16.gmra.mxu0 %v1801
      %v9619 = vpop.f32.mrf.mxu0
      %v9620 = vadd.f32 %v9606, %v9619
      %v9621 = vpop.f32.mrf.mxu0
      %v9622 = vadd.f32 %v9608, %v9621
      %9623 = vdwg.mxu0
      %9624 = vmatpush.bf16.msra.mxu0 %v6511
      %9625 = vmatpush.bf16.msra.mxu0 %v6503
      %9626 = vmatpush.bf16.msra.mxu0 %v6495
      %9627 = vmatpush.bf16.msra.mxu0 %v6487
      %9628 = vmatpush.bf16.msra.mxu0 %v6479
      %9629 = vmatpush.bf16.msra.mxu0 %v6471
      %9630 = vmatpush.bf16.msra.mxu0 %v6463
      %9631 = vmatpush.bf16.msra.mxu0 %v6455
      %9632 = vmatmul.bf16.gmra.mxu0 %v1802
      %v9633 = vpop.f32.mrf.mxu0
      %v9634 = vadd.f32 %v9620, %v9633
      %v9635 = vpop.f32.mrf.mxu0
      %v9636 = vadd.f32 %v9622, %v9635
      %9637 = vdwg.mxu0
      %9638 = vmatpush.bf16.msra.mxu0 %v6575
      %9639 = vmatpush.bf16.msra.mxu0 %v6567
      %9640 = vmatpush.bf16.msra.mxu0 %v6559
      %9641 = vmatpush.bf16.msra.mxu0 %v6551
      %9642 = vmatpush.bf16.msra.mxu0 %v6543
      %9643 = vmatpush.bf16.msra.mxu0 %v6535
      %9644 = vmatpush.bf16.msra.mxu0 %v6527
      %9645 = vmatpush.bf16.msra.mxu0 %v6519
      %9646 = vmatmul.bf16.gmra.mxu0 %v1803
      %v9647 = vpop.f32.mrf.mxu0
      %v9648 = vadd.f32 %v9634, %v9647
      %v9649 = vpop.f32.mrf.mxu0
      %v9650 = vadd.f32 %v9636, %v9649
      %9651 = vdwg.mxu0
      %9652 = vmatpush.bf16.msra.mxu0 %v6639
      %9653 = vmatpush.bf16.msra.mxu0 %v6631
      %9654 = vmatpush.bf16.msra.mxu0 %v6623
      %9655 = vmatpush.bf16.msra.mxu0 %v6615
      %9656 = vmatpush.bf16.msra.mxu0 %v6607
      %9657 = vmatpush.bf16.msra.mxu0 %v6599
      %9658 = vmatpush.bf16.msra.mxu0 %v6591
      %9659 = vmatpush.bf16.msra.mxu0 %v6583
      %9660 = vmatmul.bf16.gmra.mxu0 %v1804
      %v9661 = vpop.f32.mrf.mxu0
      %v9662 = vadd.f32 %v9648, %v9661
      %v9663 = vpop.f32.mrf.mxu0
      %v9664 = vadd.f32 %v9650, %v9663
      %9665 = vdwg.mxu0
      %9666 = vmatpush.bf16.msra.mxu0 %v6703
      %9667 = vmatpush.bf16.msra.mxu0 %v6695
      %9668 = vmatpush.bf16.msra.mxu0 %v6687
      %9669 = vmatpush.bf16.msra.mxu0 %v6679
      %9670 = vmatpush.bf16.msra.mxu0 %v6671
      %9671 = vmatpush.bf16.msra.mxu0 %v6663
      %9672 = vmatpush.bf16.msra.mxu0 %v6655
      %9673 = vmatpush.bf16.msra.mxu0 %v6647
      %9674 = vmatmul.bf16.gmra.mxu0 %v1805
      %v9675 = vpop.f32.mrf.mxu0
      %v9676 = vadd.f32 %v9662, %v9675
      %v9677 = vpop.f32.mrf.mxu0
      %v9678 = vadd.f32 %v9664, %v9677
      %9679 = vdwg.mxu0
      %9680 = vmatpush.bf16.msra.mxu0 %v6767
      %9681 = vmatpush.bf16.msra.mxu0 %v6759
      %9682 = vmatpush.bf16.msra.mxu0 %v6751
      %9683 = vmatpush.bf16.msra.mxu0 %v6743
      %9684 = vmatpush.bf16.msra.mxu0 %v6735
      %9685 = vmatpush.bf16.msra.mxu0 %v6727
      %9686 = vmatpush.bf16.msra.mxu0 %v6719
      %9687 = vmatpush.bf16.msra.mxu0 %v6711
      %9688 = vmatmul.bf16.gmra.mxu0 %v1806
      %v9689 = vpop.f32.mrf.mxu0
      %v9690 = vadd.f32 %v9676, %v9689
      %v9691 = vpop.f32.mrf.mxu0
      %v9692 = vadd.f32 %v9678, %v9691
      %9693 = vdwg.mxu0
      %9694 = vmatpush.bf16.msra.mxu0 %v6831
      %9695 = vmatpush.bf16.msra.mxu0 %v6823
      %9696 = vmatpush.bf16.msra.mxu0 %v6815
      %9697 = vmatpush.bf16.msra.mxu0 %v6807
      %9698 = vmatpush.bf16.msra.mxu0 %v6799
      %9699 = vmatpush.bf16.msra.mxu0 %v6791
      %9700 = vmatpush.bf16.msra.mxu0 %v6783
      %9701 = vmatpush.bf16.msra.mxu0 %v6775
      %9702 = vmatmul.bf16.gmra.mxu0 %v1807
      %v9703 = vpop.f32.mrf.mxu0
      %v9704 = vadd.f32 %v9690, %v9703
      %v9705 = vpop.f32.mrf.mxu0
      %v9706 = vadd.f32 %v9692, %v9705
      %9707 = vdwg.mxu0
      %9708 = vmatpush.bf16.msra.mxu0 %v6895
      %9709 = vmatpush.bf16.msra.mxu0 %v6887
      %9710 = vmatpush.bf16.msra.mxu0 %v6879
      %9711 = vmatpush.bf16.msra.mxu0 %v6871
      %9712 = vmatpush.bf16.msra.mxu0 %v6863
      %9713 = vmatpush.bf16.msra.mxu0 %v6855
      %9714 = vmatpush.bf16.msra.mxu0 %v6847
      %9715 = vmatpush.bf16.msra.mxu0 %v6839
      %9716 = vmatmul.bf16.gmra.mxu0 %v1808
      %v9717 = vpop.f32.mrf.mxu0
      %v9718 = vadd.f32 %v9704, %v9717
      %v9719 = vpop.f32.mrf.mxu0
      %v9720 = vadd.f32 %v9706, %v9719
      %9721 = vdwg.mxu0
      %9722 = vmatpush.bf16.msra.mxu0 %v6959
      %9723 = vmatpush.bf16.msra.mxu0 %v6951
      %9724 = vmatpush.bf16.msra.mxu0 %v6943
      %9725 = vmatpush.bf16.msra.mxu0 %v6935
      %9726 = vmatpush.bf16.msra.mxu0 %v6927
      %9727 = vmatpush.bf16.msra.mxu0 %v6919
      %9728 = vmatpush.bf16.msra.mxu0 %v6911
      %9729 = vmatpush.bf16.msra.mxu0 %v6903
      %9730 = vmatmul.bf16.gmra.mxu0 %v1809
      %v9731 = vpop.f32.mrf.mxu0
      %v9732 = vadd.f32 %v9718, %v9731
      %v9733 = vpop.f32.mrf.mxu0
      %v9734 = vadd.f32 %v9720, %v9733
      %9735 = vdwg.mxu0
      %9736 = vmatpush.bf16.msra.mxu0 0
      %9737 = vmatpush.bf16.msra.mxu0 0
      %9738 = vmatpush.bf16.msra.mxu0 0
      %9739 = vmatpush.bf16.msra.mxu0 0
      %9740 = vmatpush.bf16.msra.mxu0 0
      %9741 = vmatpush.bf16.msra.mxu0 0
      %9742 = vmatpush.bf16.msra.mxu0 0
      %9743 = vmatpush.bf16.msra.mxu0 %v8269
      %9744 = vmatmul.bf16.gmra.mxu0 %v8253
      %v9745 = vpop.f32.mrf.mxu0
      %v9746 = vadd.f32 %v9732, %v9745
      %v9747 = vpop.f32.mrf.mxu0
      %v9748 = vadd.f32 %v9734, %v9747
      %9749 = vdwg.mxu0
      %9750 = vmatpush.bf16.msra.mxu0 %v5744
      %9751 = vmatpush.bf16.msra.mxu0 %v5736
      %9752 = vmatpush.bf16.msra.mxu0 %v5728
      %9753 = vmatpush.bf16.msra.mxu0 %v5720
      %9754 = vmatpush.bf16.msra.mxu0 %v5712
      %9755 = vmatpush.bf16.msra.mxu0 %v5704
      %9756 = vmatpush.bf16.msra.mxu0 %v5696
      %9757 = vmatpush.bf16.msra.mxu0 %v5688
      %9758 = vmatmul.bf16.gmra.mxu0 %v1790
      %v9759 = vpop.f32.mrf.mxu0
      %v9760 = vadd.f32 %v1715, %v9759
      %v9761 = vpop.f32.mrf.mxu0
      %v9762 = vadd.f32 %v1715, %v9761
      %9763 = vdwg.mxu0
      %9764 = vmatpush.bf16.msra.mxu0 %v5808
      %9765 = vmatpush.bf16.msra.mxu0 %v5800
      %9766 = vmatpush.bf16.msra.mxu0 %v5792
      %9767 = vmatpush.bf16.msra.mxu0 %v5784
      %9768 = vmatpush.bf16.msra.mxu0 %v5776
      %9769 = vmatpush.bf16.msra.mxu0 %v5768
      %9770 = vmatpush.bf16.msra.mxu0 %v5760
      %9771 = vmatpush.bf16.msra.mxu0 %v5752
      %9772 = vmatmul.bf16.gmra.mxu0 %v1791
      %v9773 = vpop.f32.mrf.mxu0
      %v9774 = vadd.f32 %v9760, %v9773
      %v9775 = vpop.f32.mrf.mxu0
      %v9776 = vadd.f32 %v9762, %v9775
      %9777 = vdwg.mxu0
      %9778 = vmatpush.bf16.msra.mxu0 %v5872
      %9779 = vmatpush.bf16.msra.mxu0 %v5864
      %9780 = vmatpush.bf16.msra.mxu0 %v5856
      %9781 = vmatpush.bf16.msra.mxu0 %v5848
      %9782 = vmatpush.bf16.msra.mxu0 %v5840
      %9783 = vmatpush.bf16.msra.mxu0 %v5832
      %9784 = vmatpush.bf16.msra.mxu0 %v5824
      %9785 = vmatpush.bf16.msra.mxu0 %v5816
      %9786 = vmatmul.bf16.gmra.mxu0 %v1792
      %v9787 = vpop.f32.mrf.mxu0
      %v9788 = vadd.f32 %v9774, %v9787
      %v9789 = vpop.f32.mrf.mxu0
      %v9790 = vadd.f32 %v9776, %v9789
      %9791 = vdwg.mxu0
      %9792 = vmatpush.bf16.msra.mxu0 %v5936
      %9793 = vmatpush.bf16.msra.mxu0 %v5928
      %9794 = vmatpush.bf16.msra.mxu0 %v5920
      %9795 = vmatpush.bf16.msra.mxu0 %v5912
      %9796 = vmatpush.bf16.msra.mxu0 %v5904
      %9797 = vmatpush.bf16.msra.mxu0 %v5896
      %9798 = vmatpush.bf16.msra.mxu0 %v5888
      %9799 = vmatpush.bf16.msra.mxu0 %v5880
      %9800 = vmatmul.bf16.gmra.mxu0 %v1793
      %v9801 = vpop.f32.mrf.mxu0
      %v9802 = vadd.f32 %v9788, %v9801
      %v9803 = vpop.f32.mrf.mxu0
      %v9804 = vadd.f32 %v9790, %v9803
      %9805 = vdwg.mxu0
      %9806 = vmatpush.bf16.msra.mxu0 %v6000
      %9807 = vmatpush.bf16.msra.mxu0 %v5992
      %9808 = vmatpush.bf16.msra.mxu0 %v5984
      %9809 = vmatpush.bf16.msra.mxu0 %v5976
      %9810 = vmatpush.bf16.msra.mxu0 %v5968
      %9811 = vmatpush.bf16.msra.mxu0 %v5960
      %9812 = vmatpush.bf16.msra.mxu0 %v5952
      %9813 = vmatpush.bf16.msra.mxu0 %v5944
      %9814 = vmatmul.bf16.gmra.mxu0 %v1794
      %v9815 = vpop.f32.mrf.mxu0
      %v9816 = vadd.f32 %v9802, %v9815
      %v9817 = vpop.f32.mrf.mxu0
      %v9818 = vadd.f32 %v9804, %v9817
      %9819 = vdwg.mxu0
      %9820 = vmatpush.bf16.msra.mxu0 %v6064
      %9821 = vmatpush.bf16.msra.mxu0 %v6056
      %9822 = vmatpush.bf16.msra.mxu0 %v6048
      %9823 = vmatpush.bf16.msra.mxu0 %v6040
      %9824 = vmatpush.bf16.msra.mxu0 %v6032
      %9825 = vmatpush.bf16.msra.mxu0 %v6024
      %9826 = vmatpush.bf16.msra.mxu0 %v6016
      %9827 = vmatpush.bf16.msra.mxu0 %v6008
      %9828 = vmatmul.bf16.gmra.mxu0 %v1795
      %v9829 = vpop.f32.mrf.mxu0
      %v9830 = vadd.f32 %v9816, %v9829
      %v9831 = vpop.f32.mrf.mxu0
      %v9832 = vadd.f32 %v9818, %v9831
      %9833 = vdwg.mxu0
      %9834 = vmatpush.bf16.msra.mxu0 %v6128
      %9835 = vmatpush.bf16.msra.mxu0 %v6120
      %9836 = vmatpush.bf16.msra.mxu0 %v6112
      %9837 = vmatpush.bf16.msra.mxu0 %v6104
      %9838 = vmatpush.bf16.msra.mxu0 %v6096
      %9839 = vmatpush.bf16.msra.mxu0 %v6088
      %9840 = vmatpush.bf16.msra.mxu0 %v6080
      %9841 = vmatpush.bf16.msra.mxu0 %v6072
      %9842 = vmatmul.bf16.gmra.mxu0 %v1796
      %v9843 = vpop.f32.mrf.mxu0
      %v9844 = vadd.f32 %v9830, %v9843
      %v9845 = vpop.f32.mrf.mxu0
      %v9846 = vadd.f32 %v9832, %v9845
      %9847 = vdwg.mxu0
      %9848 = vmatpush.bf16.msra.mxu0 %v6192
      %9849 = vmatpush.bf16.msra.mxu0 %v6184
      %9850 = vmatpush.bf16.msra.mxu0 %v6176
      %9851 = vmatpush.bf16.msra.mxu0 %v6168
      %9852 = vmatpush.bf16.msra.mxu0 %v6160
      %9853 = vmatpush.bf16.msra.mxu0 %v6152
      %9854 = vmatpush.bf16.msra.mxu0 %v6144
      %9855 = vmatpush.bf16.msra.mxu0 %v6136
      %9856 = vmatmul.bf16.gmra.mxu0 %v1797
      %v9857 = vpop.f32.mrf.mxu0
      %v9858 = vadd.f32 %v9844, %v9857
      %v9859 = vpop.f32.mrf.mxu0
      %v9860 = vadd.f32 %v9846, %v9859
      %9861 = vdwg.mxu0
      %9862 = vmatpush.bf16.msra.mxu0 %v6256
      %9863 = vmatpush.bf16.msra.mxu0 %v6248
      %9864 = vmatpush.bf16.msra.mxu0 %v6240
      %9865 = vmatpush.bf16.msra.mxu0 %v6232
      %9866 = vmatpush.bf16.msra.mxu0 %v6224
      %9867 = vmatpush.bf16.msra.mxu0 %v6216
      %9868 = vmatpush.bf16.msra.mxu0 %v6208
      %9869 = vmatpush.bf16.msra.mxu0 %v6200
      %9870 = vmatmul.bf16.gmra.mxu0 %v1798
      %v9871 = vpop.f32.mrf.mxu0
      %v9872 = vadd.f32 %v9858, %v9871
      %v9873 = vpop.f32.mrf.mxu0
      %v9874 = vadd.f32 %v9860, %v9873
      %9875 = vdwg.mxu0
      %9876 = vmatpush.bf16.msra.mxu0 %v6320
      %9877 = vmatpush.bf16.msra.mxu0 %v6312
      %9878 = vmatpush.bf16.msra.mxu0 %v6304
      %9879 = vmatpush.bf16.msra.mxu0 %v6296
      %9880 = vmatpush.bf16.msra.mxu0 %v6288
      %9881 = vmatpush.bf16.msra.mxu0 %v6280
      %9882 = vmatpush.bf16.msra.mxu0 %v6272
      %9883 = vmatpush.bf16.msra.mxu0 %v6264
      %9884 = vmatmul.bf16.gmra.mxu0 %v1799
      %v9885 = vpop.f32.mrf.mxu0
      %v9886 = vadd.f32 %v9872, %v9885
      %v9887 = vpop.f32.mrf.mxu0
      %v9888 = vadd.f32 %v9874, %v9887
      %9889 = vdwg.mxu0
      %9890 = vmatpush.bf16.msra.mxu0 %v6384
      %9891 = vmatpush.bf16.msra.mxu0 %v6376
      %9892 = vmatpush.bf16.msra.mxu0 %v6368
      %9893 = vmatpush.bf16.msra.mxu0 %v6360
      %9894 = vmatpush.bf16.msra.mxu0 %v6352
      %9895 = vmatpush.bf16.msra.mxu0 %v6344
      %9896 = vmatpush.bf16.msra.mxu0 %v6336
      %9897 = vmatpush.bf16.msra.mxu0 %v6328
      %9898 = vmatmul.bf16.gmra.mxu0 %v1800
      %v9899 = vpop.f32.mrf.mxu0
      %v9900 = vadd.f32 %v9886, %v9899
      %v9901 = vpop.f32.mrf.mxu0
      %v9902 = vadd.f32 %v9888, %v9901
      %9903 = vdwg.mxu0
      %9904 = vmatpush.bf16.msra.mxu0 %v6448
      %9905 = vmatpush.bf16.msra.mxu0 %v6440
      %9906 = vmatpush.bf16.msra.mxu0 %v6432
      %9907 = vmatpush.bf16.msra.mxu0 %v6424
      %9908 = vmatpush.bf16.msra.mxu0 %v6416
      %9909 = vmatpush.bf16.msra.mxu0 %v6408
      %9910 = vmatpush.bf16.msra.mxu0 %v6400
      %9911 = vmatpush.bf16.msra.mxu0 %v6392
      %9912 = vmatmul.bf16.gmra.mxu0 %v1801
      %v9913 = vpop.f32.mrf.mxu0
      %v9914 = vadd.f32 %v9900, %v9913
      %v9915 = vpop.f32.mrf.mxu0
      %v9916 = vadd.f32 %v9902, %v9915
      %9917 = vdwg.mxu0
      %9918 = vmatpush.bf16.msra.mxu0 %v6512
      %9919 = vmatpush.bf16.msra.mxu0 %v6504
      %9920 = vmatpush.bf16.msra.mxu0 %v6496
      %9921 = vmatpush.bf16.msra.mxu0 %v6488
      %9922 = vmatpush.bf16.msra.mxu0 %v6480
      %9923 = vmatpush.bf16.msra.mxu0 %v6472
      %9924 = vmatpush.bf16.msra.mxu0 %v6464
      %9925 = vmatpush.bf16.msra.mxu0 %v6456
      %9926 = vmatmul.bf16.gmra.mxu0 %v1802
      %v9927 = vpop.f32.mrf.mxu0
      %v9928 = vadd.f32 %v9914, %v9927
      %v9929 = vpop.f32.mrf.mxu0
      %v9930 = vadd.f32 %v9916, %v9929
      %9931 = vdwg.mxu0
      %9932 = vmatpush.bf16.msra.mxu0 %v6576
      %9933 = vmatpush.bf16.msra.mxu0 %v6568
      %9934 = vmatpush.bf16.msra.mxu0 %v6560
      %9935 = vmatpush.bf16.msra.mxu0 %v6552
      %9936 = vmatpush.bf16.msra.mxu0 %v6544
      %9937 = vmatpush.bf16.msra.mxu0 %v6536
      %9938 = vmatpush.bf16.msra.mxu0 %v6528
      %9939 = vmatpush.bf16.msra.mxu0 %v6520
      %9940 = vmatmul.bf16.gmra.mxu0 %v1803
      %v9941 = vpop.f32.mrf.mxu0
      %v9942 = vadd.f32 %v9928, %v9941
      %v9943 = vpop.f32.mrf.mxu0
      %v9944 = vadd.f32 %v9930, %v9943
      %9945 = vdwg.mxu0
      %9946 = vmatpush.bf16.msra.mxu0 %v6640
      %9947 = vmatpush.bf16.msra.mxu0 %v6632
      %9948 = vmatpush.bf16.msra.mxu0 %v6624
      %9949 = vmatpush.bf16.msra.mxu0 %v6616
      %9950 = vmatpush.bf16.msra.mxu0 %v6608
      %9951 = vmatpush.bf16.msra.mxu0 %v6600
      %9952 = vmatpush.bf16.msra.mxu0 %v6592
      %9953 = vmatpush.bf16.msra.mxu0 %v6584
      %9954 = vmatmul.bf16.gmra.mxu0 %v1804
      %v9955 = vpop.f32.mrf.mxu0
      %v9956 = vadd.f32 %v9942, %v9955
      %v9957 = vpop.f32.mrf.mxu0
      %v9958 = vadd.f32 %v9944, %v9957
      %9959 = vdwg.mxu0
      %9960 = vmatpush.bf16.msra.mxu0 %v6704
      %9961 = vmatpush.bf16.msra.mxu0 %v6696
      %9962 = vmatpush.bf16.msra.mxu0 %v6688
      %9963 = vmatpush.bf16.msra.mxu0 %v6680
      %9964 = vmatpush.bf16.msra.mxu0 %v6672
      %9965 = vmatpush.bf16.msra.mxu0 %v6664
      %9966 = vmatpush.bf16.msra.mxu0 %v6656
      %9967 = vmatpush.bf16.msra.mxu0 %v6648
      %9968 = vmatmul.bf16.gmra.mxu0 %v1805
      %v9969 = vpop.f32.mrf.mxu0
      %v9970 = vadd.f32 %v9956, %v9969
      %v9971 = vpop.f32.mrf.mxu0
      %v9972 = vadd.f32 %v9958, %v9971
      %9973 = vdwg.mxu0
      %9974 = vmatpush.bf16.msra.mxu0 %v6768
      %9975 = vmatpush.bf16.msra.mxu0 %v6760
      %9976 = vmatpush.bf16.msra.mxu0 %v6752
      %9977 = vmatpush.bf16.msra.mxu0 %v6744
      %9978 = vmatpush.bf16.msra.mxu0 %v6736
      %9979 = vmatpush.bf16.msra.mxu0 %v6728
      %9980 = vmatpush.bf16.msra.mxu0 %v6720
      %9981 = vmatpush.bf16.msra.mxu0 %v6712
      %9982 = vmatmul.bf16.gmra.mxu0 %v1806
      %v9983 = vpop.f32.mrf.mxu0
      %v9984 = vadd.f32 %v9970, %v9983
      %v9985 = vpop.f32.mrf.mxu0
      %v9986 = vadd.f32 %v9972, %v9985
      %9987 = vdwg.mxu0
      %9988 = vmatpush.bf16.msra.mxu0 %v6832
      %9989 = vmatpush.bf16.msra.mxu0 %v6824
      %9990 = vmatpush.bf16.msra.mxu0 %v6816
      %9991 = vmatpush.bf16.msra.mxu0 %v6808
      %9992 = vmatpush.bf16.msra.mxu0 %v6800
      %9993 = vmatpush.bf16.msra.mxu0 %v6792
      %9994 = vmatpush.bf16.msra.mxu0 %v6784
      %9995 = vmatpush.bf16.msra.mxu0 %v6776
      %9996 = vmatmul.bf16.gmra.mxu0 %v1807
      %v9997 = vpop.f32.mrf.mxu0
      %v9998 = vadd.f32 %v9984, %v9997
      %v9999 = vpop.f32.mrf.mxu0
      %v10000 = vadd.f32 %v9986, %v9999
      %10001 = vdwg.mxu0
      %10002 = vmatpush.bf16.msra.mxu0 %v6896
      %10003 = vmatpush.bf16.msra.mxu0 %v6888
      %10004 = vmatpush.bf16.msra.mxu0 %v6880
      %10005 = vmatpush.bf16.msra.mxu0 %v6872
      %10006 = vmatpush.bf16.msra.mxu0 %v6864
      %10007 = vmatpush.bf16.msra.mxu0 %v6856
      %10008 = vmatpush.bf16.msra.mxu0 %v6848
      %10009 = vmatpush.bf16.msra.mxu0 %v6840
      %10010 = vmatmul.bf16.gmra.mxu0 %v1808
      %v10011 = vpop.f32.mrf.mxu0
      %v10012 = vadd.f32 %v9998, %v10011
      %v10013 = vpop.f32.mrf.mxu0
      %v10014 = vadd.f32 %v10000, %v10013
      %10015 = vdwg.mxu0
      %10016 = vmatpush.bf16.msra.mxu0 %v6960
      %10017 = vmatpush.bf16.msra.mxu0 %v6952
      %10018 = vmatpush.bf16.msra.mxu0 %v6944
      %10019 = vmatpush.bf16.msra.mxu0 %v6936
      %10020 = vmatpush.bf16.msra.mxu0 %v6928
      %10021 = vmatpush.bf16.msra.mxu0 %v6920
      %10022 = vmatpush.bf16.msra.mxu0 %v6912
      %10023 = vmatpush.bf16.msra.mxu0 %v6904
      %10024 = vmatmul.bf16.gmra.mxu0 %v1809
      %v10025 = vpop.f32.mrf.mxu0
      %v10026 = vadd.f32 %v10012, %v10025
      %v10027 = vpop.f32.mrf.mxu0
      %v10028 = vadd.f32 %v10014, %v10027
      %10029 = vdwg.mxu0
      %10030 = vmatpush.bf16.msra.mxu0 0
      %10031 = vmatpush.bf16.msra.mxu0 0
      %10032 = vmatpush.bf16.msra.mxu0 0
      %10033 = vmatpush.bf16.msra.mxu0 0
      %10034 = vmatpush.bf16.msra.mxu0 0
      %10035 = vmatpush.bf16.msra.mxu0 0
      %10036 = vmatpush.bf16.msra.mxu0 0
      %10037 = vmatpush.bf16.msra.mxu0 %v8272
      %10038 = vmatmul.bf16.gmra.mxu0 %v8253
      %v10039 = vpop.f32.mrf.mxu0
      %v10040 = vadd.f32 %v10026, %v10039
      %v10041 = vpop.f32.mrf.mxu0
      %v10042 = vadd.f32 %v10028, %v10041
      %10043 = vdwg.mxu0
      %10044 = vmatpush.bf16.msra.mxu0 %v5745
      %10045 = vmatpush.bf16.msra.mxu0 %v5737
      %10046 = vmatpush.bf16.msra.mxu0 %v5729
      %10047 = vmatpush.bf16.msra.mxu0 %v5721
      %10048 = vmatpush.bf16.msra.mxu0 %v5713
      %10049 = vmatpush.bf16.msra.mxu0 %v5705
      %10050 = vmatpush.bf16.msra.mxu0 %v5697
      %10051 = vmatpush.bf16.msra.mxu0 %v5689
      %10052 = vmatmul.bf16.gmra.mxu0 %v1790
      %v10053 = vpop.f32.mrf.mxu0
      %v10054 = vadd.f32 %v1716, %v10053
      %v10055 = vpop.f32.mrf.mxu0
      %v10056 = vadd.f32 %v1716, %v10055
      %10057 = vdwg.mxu0
      %10058 = vmatpush.bf16.msra.mxu0 %v5809
      %10059 = vmatpush.bf16.msra.mxu0 %v5801
      %10060 = vmatpush.bf16.msra.mxu0 %v5793
      %10061 = vmatpush.bf16.msra.mxu0 %v5785
      %10062 = vmatpush.bf16.msra.mxu0 %v5777
      %10063 = vmatpush.bf16.msra.mxu0 %v5769
      %10064 = vmatpush.bf16.msra.mxu0 %v5761
      %10065 = vmatpush.bf16.msra.mxu0 %v5753
      %10066 = vmatmul.bf16.gmra.mxu0 %v1791
      %v10067 = vpop.f32.mrf.mxu0
      %v10068 = vadd.f32 %v10054, %v10067
      %v10069 = vpop.f32.mrf.mxu0
      %v10070 = vadd.f32 %v10056, %v10069
      %10071 = vdwg.mxu0
      %10072 = vmatpush.bf16.msra.mxu0 %v5873
      %10073 = vmatpush.bf16.msra.mxu0 %v5865
      %10074 = vmatpush.bf16.msra.mxu0 %v5857
      %10075 = vmatpush.bf16.msra.mxu0 %v5849
      %10076 = vmatpush.bf16.msra.mxu0 %v5841
      %10077 = vmatpush.bf16.msra.mxu0 %v5833
      %10078 = vmatpush.bf16.msra.mxu0 %v5825
      %10079 = vmatpush.bf16.msra.mxu0 %v5817
      %10080 = vmatmul.bf16.gmra.mxu0 %v1792
      %v10081 = vpop.f32.mrf.mxu0
      %v10082 = vadd.f32 %v10068, %v10081
      %v10083 = vpop.f32.mrf.mxu0
      %v10084 = vadd.f32 %v10070, %v10083
      %10085 = vdwg.mxu0
      %10086 = vmatpush.bf16.msra.mxu0 %v5937
      %10087 = vmatpush.bf16.msra.mxu0 %v5929
      %10088 = vmatpush.bf16.msra.mxu0 %v5921
      %10089 = vmatpush.bf16.msra.mxu0 %v5913
      %10090 = vmatpush.bf16.msra.mxu0 %v5905
      %10091 = vmatpush.bf16.msra.mxu0 %v5897
      %10092 = vmatpush.bf16.msra.mxu0 %v5889
      %10093 = vmatpush.bf16.msra.mxu0 %v5881
      %10094 = vmatmul.bf16.gmra.mxu0 %v1793
      %v10095 = vpop.f32.mrf.mxu0
      %v10096 = vadd.f32 %v10082, %v10095
      %v10097 = vpop.f32.mrf.mxu0
      %v10098 = vadd.f32 %v10084, %v10097
      %10099 = vdwg.mxu0
      %10100 = vmatpush.bf16.msra.mxu0 %v6001
      %10101 = vmatpush.bf16.msra.mxu0 %v5993
      %10102 = vmatpush.bf16.msra.mxu0 %v5985
      %10103 = vmatpush.bf16.msra.mxu0 %v5977
      %10104 = vmatpush.bf16.msra.mxu0 %v5969
      %10105 = vmatpush.bf16.msra.mxu0 %v5961
      %10106 = vmatpush.bf16.msra.mxu0 %v5953
      %10107 = vmatpush.bf16.msra.mxu0 %v5945
      %10108 = vmatmul.bf16.gmra.mxu0 %v1794
      %v10109 = vpop.f32.mrf.mxu0
      %v10110 = vadd.f32 %v10096, %v10109
      %v10111 = vpop.f32.mrf.mxu0
      %v10112 = vadd.f32 %v10098, %v10111
      %10113 = vdwg.mxu0
      %10114 = vmatpush.bf16.msra.mxu0 %v6065
      %10115 = vmatpush.bf16.msra.mxu0 %v6057
      %10116 = vmatpush.bf16.msra.mxu0 %v6049
      %10117 = vmatpush.bf16.msra.mxu0 %v6041
      %10118 = vmatpush.bf16.msra.mxu0 %v6033
      %10119 = vmatpush.bf16.msra.mxu0 %v6025
      %10120 = vmatpush.bf16.msra.mxu0 %v6017
      %10121 = vmatpush.bf16.msra.mxu0 %v6009
      %10122 = vmatmul.bf16.gmra.mxu0 %v1795
      %v10123 = vpop.f32.mrf.mxu0
      %v10124 = vadd.f32 %v10110, %v10123
      %v10125 = vpop.f32.mrf.mxu0
      %v10126 = vadd.f32 %v10112, %v10125
      %10127 = vdwg.mxu0
      %10128 = vmatpush.bf16.msra.mxu0 %v6129
      %10129 = vmatpush.bf16.msra.mxu0 %v6121
      %10130 = vmatpush.bf16.msra.mxu0 %v6113
      %10131 = vmatpush.bf16.msra.mxu0 %v6105
      %10132 = vmatpush.bf16.msra.mxu0 %v6097
      %10133 = vmatpush.bf16.msra.mxu0 %v6089
      %10134 = vmatpush.bf16.msra.mxu0 %v6081
      %10135 = vmatpush.bf16.msra.mxu0 %v6073
      %10136 = vmatmul.bf16.gmra.mxu0 %v1796
      %v10137 = vpop.f32.mrf.mxu0
      %v10138 = vadd.f32 %v10124, %v10137
      %v10139 = vpop.f32.mrf.mxu0
      %v10140 = vadd.f32 %v10126, %v10139
      %10141 = vdwg.mxu0
      %10142 = vmatpush.bf16.msra.mxu0 %v6193
      %10143 = vmatpush.bf16.msra.mxu0 %v6185
      %10144 = vmatpush.bf16.msra.mxu0 %v6177
      %10145 = vmatpush.bf16.msra.mxu0 %v6169
      %10146 = vmatpush.bf16.msra.mxu0 %v6161
      %10147 = vmatpush.bf16.msra.mxu0 %v6153
      %10148 = vmatpush.bf16.msra.mxu0 %v6145
      %10149 = vmatpush.bf16.msra.mxu0 %v6137
      %10150 = vmatmul.bf16.gmra.mxu0 %v1797
      %v10151 = vpop.f32.mrf.mxu0
      %v10152 = vadd.f32 %v10138, %v10151
      %v10153 = vpop.f32.mrf.mxu0
      %v10154 = vadd.f32 %v10140, %v10153
      %10155 = vdwg.mxu0
      %10156 = vmatpush.bf16.msra.mxu0 %v6257
      %10157 = vmatpush.bf16.msra.mxu0 %v6249
      %10158 = vmatpush.bf16.msra.mxu0 %v6241
      %10159 = vmatpush.bf16.msra.mxu0 %v6233
      %10160 = vmatpush.bf16.msra.mxu0 %v6225
      %10161 = vmatpush.bf16.msra.mxu0 %v6217
      %10162 = vmatpush.bf16.msra.mxu0 %v6209
      %10163 = vmatpush.bf16.msra.mxu0 %v6201
      %10164 = vmatmul.bf16.gmra.mxu0 %v1798
      %v10165 = vpop.f32.mrf.mxu0
      %v10166 = vadd.f32 %v10152, %v10165
      %v10167 = vpop.f32.mrf.mxu0
      %v10168 = vadd.f32 %v10154, %v10167
      %10169 = vdwg.mxu0
      %10170 = vmatpush.bf16.msra.mxu0 %v6321
      %10171 = vmatpush.bf16.msra.mxu0 %v6313
      %10172 = vmatpush.bf16.msra.mxu0 %v6305
      %10173 = vmatpush.bf16.msra.mxu0 %v6297
      %10174 = vmatpush.bf16.msra.mxu0 %v6289
      %10175 = vmatpush.bf16.msra.mxu0 %v6281
      %10176 = vmatpush.bf16.msra.mxu0 %v6273
      %10177 = vmatpush.bf16.msra.mxu0 %v6265
      %10178 = vmatmul.bf16.gmra.mxu0 %v1799
      %v10179 = vpop.f32.mrf.mxu0
      %v10180 = vadd.f32 %v10166, %v10179
      %v10181 = vpop.f32.mrf.mxu0
      %v10182 = vadd.f32 %v10168, %v10181
      %10183 = vdwg.mxu0
      %10184 = vmatpush.bf16.msra.mxu0 %v6385
      %10185 = vmatpush.bf16.msra.mxu0 %v6377
      %10186 = vmatpush.bf16.msra.mxu0 %v6369
      %10187 = vmatpush.bf16.msra.mxu0 %v6361
      %10188 = vmatpush.bf16.msra.mxu0 %v6353
      %10189 = vmatpush.bf16.msra.mxu0 %v6345
      %10190 = vmatpush.bf16.msra.mxu0 %v6337
      %10191 = vmatpush.bf16.msra.mxu0 %v6329
      %10192 = vmatmul.bf16.gmra.mxu0 %v1800
      %v10193 = vpop.f32.mrf.mxu0
      %v10194 = vadd.f32 %v10180, %v10193
      %v10195 = vpop.f32.mrf.mxu0
      %v10196 = vadd.f32 %v10182, %v10195
      %10197 = vdwg.mxu0
      %10198 = vmatpush.bf16.msra.mxu0 %v6449
      %10199 = vmatpush.bf16.msra.mxu0 %v6441
      %10200 = vmatpush.bf16.msra.mxu0 %v6433
      %10201 = vmatpush.bf16.msra.mxu0 %v6425
      %10202 = vmatpush.bf16.msra.mxu0 %v6417
      %10203 = vmatpush.bf16.msra.mxu0 %v6409
      %10204 = vmatpush.bf16.msra.mxu0 %v6401
      %10205 = vmatpush.bf16.msra.mxu0 %v6393
      %10206 = vmatmul.bf16.gmra.mxu0 %v1801
      %v10207 = vpop.f32.mrf.mxu0
      %v10208 = vadd.f32 %v10194, %v10207
      %v10209 = vpop.f32.mrf.mxu0
      %v10210 = vadd.f32 %v10196, %v10209
      %10211 = vdwg.mxu0
      %10212 = vmatpush.bf16.msra.mxu0 %v6513
      %10213 = vmatpush.bf16.msra.mxu0 %v6505
      %10214 = vmatpush.bf16.msra.mxu0 %v6497
      %10215 = vmatpush.bf16.msra.mxu0 %v6489
      %10216 = vmatpush.bf16.msra.mxu0 %v6481
      %10217 = vmatpush.bf16.msra.mxu0 %v6473
      %10218 = vmatpush.bf16.msra.mxu0 %v6465
      %10219 = vmatpush.bf16.msra.mxu0 %v6457
      %10220 = vmatmul.bf16.gmra.mxu0 %v1802
      %v10221 = vpop.f32.mrf.mxu0
      %v10222 = vadd.f32 %v10208, %v10221
      %v10223 = vpop.f32.mrf.mxu0
      %v10224 = vadd.f32 %v10210, %v10223
      %10225 = vdwg.mxu0
      %10226 = vmatpush.bf16.msra.mxu0 %v6577
      %10227 = vmatpush.bf16.msra.mxu0 %v6569
      %10228 = vmatpush.bf16.msra.mxu0 %v6561
      %10229 = vmatpush.bf16.msra.mxu0 %v6553
      %10230 = vmatpush.bf16.msra.mxu0 %v6545
      %10231 = vmatpush.bf16.msra.mxu0 %v6537
      %10232 = vmatpush.bf16.msra.mxu0 %v6529
      %10233 = vmatpush.bf16.msra.mxu0 %v6521
      %10234 = vmatmul.bf16.gmra.mxu0 %v1803
      %v10235 = vpop.f32.mrf.mxu0
      %v10236 = vadd.f32 %v10222, %v10235
      %v10237 = vpop.f32.mrf.mxu0
      %v10238 = vadd.f32 %v10224, %v10237
      %10239 = vdwg.mxu0
      %10240 = vmatpush.bf16.msra.mxu0 %v6641
      %10241 = vmatpush.bf16.msra.mxu0 %v6633
      %10242 = vmatpush.bf16.msra.mxu0 %v6625
      %10243 = vmatpush.bf16.msra.mxu0 %v6617
      %10244 = vmatpush.bf16.msra.mxu0 %v6609
      %10245 = vmatpush.bf16.msra.mxu0 %v6601
      %10246 = vmatpush.bf16.msra.mxu0 %v6593
      %10247 = vmatpush.bf16.msra.mxu0 %v6585
      %10248 = vmatmul.bf16.gmra.mxu0 %v1804
      %v10249 = vpop.f32.mrf.mxu0
      %v10250 = vadd.f32 %v10236, %v10249
      %v10251 = vpop.f32.mrf.mxu0
      %v10252 = vadd.f32 %v10238, %v10251
      %10253 = vdwg.mxu0
      %10254 = vmatpush.bf16.msra.mxu0 %v6705
      %10255 = vmatpush.bf16.msra.mxu0 %v6697
      %10256 = vmatpush.bf16.msra.mxu0 %v6689
      %10257 = vmatpush.bf16.msra.mxu0 %v6681
      %10258 = vmatpush.bf16.msra.mxu0 %v6673
      %10259 = vmatpush.bf16.msra.mxu0 %v6665
      %10260 = vmatpush.bf16.msra.mxu0 %v6657
      %10261 = vmatpush.bf16.msra.mxu0 %v6649
      %10262 = vmatmul.bf16.gmra.mxu0 %v1805
      %v10263 = vpop.f32.mrf.mxu0
      %v10264 = vadd.f32 %v10250, %v10263
      %v10265 = vpop.f32.mrf.mxu0
      %v10266 = vadd.f32 %v10252, %v10265
      %10267 = vdwg.mxu0
      %10268 = vmatpush.bf16.msra.mxu0 %v6769
      %10269 = vmatpush.bf16.msra.mxu0 %v6761
      %10270 = vmatpush.bf16.msra.mxu0 %v6753
      %10271 = vmatpush.bf16.msra.mxu0 %v6745
      %10272 = vmatpush.bf16.msra.mxu0 %v6737
      %10273 = vmatpush.bf16.msra.mxu0 %v6729
      %10274 = vmatpush.bf16.msra.mxu0 %v6721
      %10275 = vmatpush.bf16.msra.mxu0 %v6713
      %10276 = vmatmul.bf16.gmra.mxu0 %v1806
      %v10277 = vpop.f32.mrf.mxu0
      %v10278 = vadd.f32 %v10264, %v10277
      %v10279 = vpop.f32.mrf.mxu0
      %v10280 = vadd.f32 %v10266, %v10279
      %10281 = vdwg.mxu0
      %10282 = vmatpush.bf16.msra.mxu0 %v6833
      %10283 = vmatpush.bf16.msra.mxu0 %v6825
      %10284 = vmatpush.bf16.msra.mxu0 %v6817
      %10285 = vmatpush.bf16.msra.mxu0 %v6809
      %10286 = vmatpush.bf16.msra.mxu0 %v6801
      %10287 = vmatpush.bf16.msra.mxu0 %v6793
      %10288 = vmatpush.bf16.msra.mxu0 %v6785
      %10289 = vmatpush.bf16.msra.mxu0 %v6777
      %10290 = vmatmul.bf16.gmra.mxu0 %v1807
      %v10291 = vpop.f32.mrf.mxu0
      %v10292 = vadd.f32 %v10278, %v10291
      %v10293 = vpop.f32.mrf.mxu0
      %v10294 = vadd.f32 %v10280, %v10293
      %10295 = vdwg.mxu0
      %10296 = vmatpush.bf16.msra.mxu0 %v6897
      %10297 = vmatpush.bf16.msra.mxu0 %v6889
      %10298 = vmatpush.bf16.msra.mxu0 %v6881
      %10299 = vmatpush.bf16.msra.mxu0 %v6873
      %10300 = vmatpush.bf16.msra.mxu0 %v6865
      %10301 = vmatpush.bf16.msra.mxu0 %v6857
      %10302 = vmatpush.bf16.msra.mxu0 %v6849
      %10303 = vmatpush.bf16.msra.mxu0 %v6841
      %10304 = vmatmul.bf16.gmra.mxu0 %v1808
      %v10305 = vpop.f32.mrf.mxu0
      %v10306 = vadd.f32 %v10292, %v10305
      %v10307 = vpop.f32.mrf.mxu0
      %v10308 = vadd.f32 %v10294, %v10307
      %10309 = vdwg.mxu0
      %10310 = vmatpush.bf16.msra.mxu0 %v6961
      %10311 = vmatpush.bf16.msra.mxu0 %v6953
      %10312 = vmatpush.bf16.msra.mxu0 %v6945
      %10313 = vmatpush.bf16.msra.mxu0 %v6937
      %10314 = vmatpush.bf16.msra.mxu0 %v6929
      %10315 = vmatpush.bf16.msra.mxu0 %v6921
      %10316 = vmatpush.bf16.msra.mxu0 %v6913
      %10317 = vmatpush.bf16.msra.mxu0 %v6905
      %10318 = vmatmul.bf16.gmra.mxu0 %v1809
      %v10319 = vpop.f32.mrf.mxu0
      %v10320 = vadd.f32 %v10306, %v10319
      %v10321 = vpop.f32.mrf.mxu0
      %v10322 = vadd.f32 %v10308, %v10321
      %10323 = vdwg.mxu0
      %10324 = vmatpush.bf16.msra.mxu0 0
      %10325 = vmatpush.bf16.msra.mxu0 0
      %10326 = vmatpush.bf16.msra.mxu0 0
      %10327 = vmatpush.bf16.msra.mxu0 0
      %10328 = vmatpush.bf16.msra.mxu0 0
      %10329 = vmatpush.bf16.msra.mxu0 0
      %10330 = vmatpush.bf16.msra.mxu0 0
      %10331 = vmatpush.bf16.msra.mxu0 %v8275
      %10332 = vmatmul.bf16.gmra.mxu0 %v8253
      %v10333 = vpop.f32.mrf.mxu0
      %v10334 = vadd.f32 %v10320, %v10333
      %v10335 = vpop.f32.mrf.mxu0
      %v10336 = vadd.f32 %v10322, %v10335
      %10337 = vdwg.mxu0
      %10338 = vmatpush.bf16.msra.mxu0 %v5746
      %10339 = vmatpush.bf16.msra.mxu0 %v5738
      %10340 = vmatpush.bf16.msra.mxu0 %v5730
      %10341 = vmatpush.bf16.msra.mxu0 %v5722
      %10342 = vmatpush.bf16.msra.mxu0 %v5714
      %10343 = vmatpush.bf16.msra.mxu0 %v5706
      %10344 = vmatpush.bf16.msra.mxu0 %v5698
      %10345 = vmatpush.bf16.msra.mxu0 %v5690
      %10346 = vmatmul.bf16.gmra.mxu0 %v1790
      %v10347 = vpop.f32.mrf.mxu0
      %v10348 = vadd.f32 %v1717, %v10347
      %v10349 = vpop.f32.mrf.mxu0
      %v10350 = vadd.f32 %v1717, %v10349
      %10351 = vdwg.mxu0
      %10352 = vmatpush.bf16.msra.mxu0 %v5810
      %10353 = vmatpush.bf16.msra.mxu0 %v5802
      %10354 = vmatpush.bf16.msra.mxu0 %v5794
      %10355 = vmatpush.bf16.msra.mxu0 %v5786
      %10356 = vmatpush.bf16.msra.mxu0 %v5778
      %10357 = vmatpush.bf16.msra.mxu0 %v5770
      %10358 = vmatpush.bf16.msra.mxu0 %v5762
      %10359 = vmatpush.bf16.msra.mxu0 %v5754
      %10360 = vmatmul.bf16.gmra.mxu0 %v1791
      %v10361 = vpop.f32.mrf.mxu0
      %v10362 = vadd.f32 %v10348, %v10361
      %v10363 = vpop.f32.mrf.mxu0
      %v10364 = vadd.f32 %v10350, %v10363
      %10365 = vdwg.mxu0
      %10366 = vmatpush.bf16.msra.mxu0 %v5874
      %10367 = vmatpush.bf16.msra.mxu0 %v5866
      %10368 = vmatpush.bf16.msra.mxu0 %v5858
      %10369 = vmatpush.bf16.msra.mxu0 %v5850
      %10370 = vmatpush.bf16.msra.mxu0 %v5842
      %10371 = vmatpush.bf16.msra.mxu0 %v5834
      %10372 = vmatpush.bf16.msra.mxu0 %v5826
      %10373 = vmatpush.bf16.msra.mxu0 %v5818
      %10374 = vmatmul.bf16.gmra.mxu0 %v1792
      %v10375 = vpop.f32.mrf.mxu0
      %v10376 = vadd.f32 %v10362, %v10375
      %v10377 = vpop.f32.mrf.mxu0
      %v10378 = vadd.f32 %v10364, %v10377
      %10379 = vdwg.mxu0
      %10380 = vmatpush.bf16.msra.mxu0 %v5938
      %10381 = vmatpush.bf16.msra.mxu0 %v5930
      %10382 = vmatpush.bf16.msra.mxu0 %v5922
      %10383 = vmatpush.bf16.msra.mxu0 %v5914
      %10384 = vmatpush.bf16.msra.mxu0 %v5906
      %10385 = vmatpush.bf16.msra.mxu0 %v5898
      %10386 = vmatpush.bf16.msra.mxu0 %v5890
      %10387 = vmatpush.bf16.msra.mxu0 %v5882
      %10388 = vmatmul.bf16.gmra.mxu0 %v1793
      %v10389 = vpop.f32.mrf.mxu0
      %v10390 = vadd.f32 %v10376, %v10389
      %v10391 = vpop.f32.mrf.mxu0
      %v10392 = vadd.f32 %v10378, %v10391
      %10393 = vdwg.mxu0
      %10394 = vmatpush.bf16.msra.mxu0 %v6002
      %10395 = vmatpush.bf16.msra.mxu0 %v5994
      %10396 = vmatpush.bf16.msra.mxu0 %v5986
      %10397 = vmatpush.bf16.msra.mxu0 %v5978
      %10398 = vmatpush.bf16.msra.mxu0 %v5970
      %10399 = vmatpush.bf16.msra.mxu0 %v5962
      %10400 = vmatpush.bf16.msra.mxu0 %v5954
      %10401 = vmatpush.bf16.msra.mxu0 %v5946
      %10402 = vmatmul.bf16.gmra.mxu0 %v1794
      %v10403 = vpop.f32.mrf.mxu0
      %v10404 = vadd.f32 %v10390, %v10403
      %v10405 = vpop.f32.mrf.mxu0
      %v10406 = vadd.f32 %v10392, %v10405
      %10407 = vdwg.mxu0
      %10408 = vmatpush.bf16.msra.mxu0 %v6066
      %10409 = vmatpush.bf16.msra.mxu0 %v6058
      %10410 = vmatpush.bf16.msra.mxu0 %v6050
      %10411 = vmatpush.bf16.msra.mxu0 %v6042
      %10412 = vmatpush.bf16.msra.mxu0 %v6034
      %10413 = vmatpush.bf16.msra.mxu0 %v6026
      %10414 = vmatpush.bf16.msra.mxu0 %v6018
      %10415 = vmatpush.bf16.msra.mxu0 %v6010
      %10416 = vmatmul.bf16.gmra.mxu0 %v1795
      %v10417 = vpop.f32.mrf.mxu0
      %v10418 = vadd.f32 %v10404, %v10417
      %v10419 = vpop.f32.mrf.mxu0
      %v10420 = vadd.f32 %v10406, %v10419
      %10421 = vdwg.mxu0
      %10422 = vmatpush.bf16.msra.mxu0 %v6130
      %10423 = vmatpush.bf16.msra.mxu0 %v6122
      %10424 = vmatpush.bf16.msra.mxu0 %v6114
      %10425 = vmatpush.bf16.msra.mxu0 %v6106
      %10426 = vmatpush.bf16.msra.mxu0 %v6098
      %10427 = vmatpush.bf16.msra.mxu0 %v6090
      %10428 = vmatpush.bf16.msra.mxu0 %v6082
      %10429 = vmatpush.bf16.msra.mxu0 %v6074
      %10430 = vmatmul.bf16.gmra.mxu0 %v1796
      %v10431 = vpop.f32.mrf.mxu0
      %v10432 = vadd.f32 %v10418, %v10431
      %v10433 = vpop.f32.mrf.mxu0
      %v10434 = vadd.f32 %v10420, %v10433
      %10435 = vdwg.mxu0
      %10436 = vmatpush.bf16.msra.mxu0 %v6194
      %10437 = vmatpush.bf16.msra.mxu0 %v6186
      %10438 = vmatpush.bf16.msra.mxu0 %v6178
      %10439 = vmatpush.bf16.msra.mxu0 %v6170
      %10440 = vmatpush.bf16.msra.mxu0 %v6162
      %10441 = vmatpush.bf16.msra.mxu0 %v6154
      %10442 = vmatpush.bf16.msra.mxu0 %v6146
      %10443 = vmatpush.bf16.msra.mxu0 %v6138
      %10444 = vmatmul.bf16.gmra.mxu0 %v1797
      %v10445 = vpop.f32.mrf.mxu0
      %v10446 = vadd.f32 %v10432, %v10445
      %v10447 = vpop.f32.mrf.mxu0
      %v10448 = vadd.f32 %v10434, %v10447
      %10449 = vdwg.mxu0
      %10450 = vmatpush.bf16.msra.mxu0 %v6258
      %10451 = vmatpush.bf16.msra.mxu0 %v6250
      %10452 = vmatpush.bf16.msra.mxu0 %v6242
      %10453 = vmatpush.bf16.msra.mxu0 %v6234
      %10454 = vmatpush.bf16.msra.mxu0 %v6226
      %10455 = vmatpush.bf16.msra.mxu0 %v6218
      %10456 = vmatpush.bf16.msra.mxu0 %v6210
      %10457 = vmatpush.bf16.msra.mxu0 %v6202
      %10458 = vmatmul.bf16.gmra.mxu0 %v1798
      %v10459 = vpop.f32.mrf.mxu0
      %v10460 = vadd.f32 %v10446, %v10459
      %v10461 = vpop.f32.mrf.mxu0
      %v10462 = vadd.f32 %v10448, %v10461
      %10463 = vdwg.mxu0
      %10464 = vmatpush.bf16.msra.mxu0 %v6322
      %10465 = vmatpush.bf16.msra.mxu0 %v6314
      %10466 = vmatpush.bf16.msra.mxu0 %v6306
      %10467 = vmatpush.bf16.msra.mxu0 %v6298
      %10468 = vmatpush.bf16.msra.mxu0 %v6290
      %10469 = vmatpush.bf16.msra.mxu0 %v6282
      %10470 = vmatpush.bf16.msra.mxu0 %v6274
      %10471 = vmatpush.bf16.msra.mxu0 %v6266
      %10472 = vmatmul.bf16.gmra.mxu0 %v1799
      %v10473 = vpop.f32.mrf.mxu0
      %v10474 = vadd.f32 %v10460, %v10473
      %v10475 = vpop.f32.mrf.mxu0
      %v10476 = vadd.f32 %v10462, %v10475
      %10477 = vdwg.mxu0
      %10478 = vmatpush.bf16.msra.mxu0 %v6386
      %10479 = vmatpush.bf16.msra.mxu0 %v6378
      %10480 = vmatpush.bf16.msra.mxu0 %v6370
      %10481 = vmatpush.bf16.msra.mxu0 %v6362
      %10482 = vmatpush.bf16.msra.mxu0 %v6354
      %10483 = vmatpush.bf16.msra.mxu0 %v6346
      %10484 = vmatpush.bf16.msra.mxu0 %v6338
      %10485 = vmatpush.bf16.msra.mxu0 %v6330
      %10486 = vmatmul.bf16.gmra.mxu0 %v1800
      %v10487 = vpop.f32.mrf.mxu0
      %v10488 = vadd.f32 %v10474, %v10487
      %v10489 = vpop.f32.mrf.mxu0
      %v10490 = vadd.f32 %v10476, %v10489
      %10491 = vdwg.mxu0
      %10492 = vmatpush.bf16.msra.mxu0 %v6450
      %10493 = vmatpush.bf16.msra.mxu0 %v6442
      %10494 = vmatpush.bf16.msra.mxu0 %v6434
      %10495 = vmatpush.bf16.msra.mxu0 %v6426
      %10496 = vmatpush.bf16.msra.mxu0 %v6418
      %10497 = vmatpush.bf16.msra.mxu0 %v6410
      %10498 = vmatpush.bf16.msra.mxu0 %v6402
      %10499 = vmatpush.bf16.msra.mxu0 %v6394
      %10500 = vmatmul.bf16.gmra.mxu0 %v1801
      %v10501 = vpop.f32.mrf.mxu0
      %v10502 = vadd.f32 %v10488, %v10501
      %v10503 = vpop.f32.mrf.mxu0
      %v10504 = vadd.f32 %v10490, %v10503
      %10505 = vdwg.mxu0
      %10506 = vmatpush.bf16.msra.mxu0 %v6514
      %10507 = vmatpush.bf16.msra.mxu0 %v6506
      %10508 = vmatpush.bf16.msra.mxu0 %v6498
      %10509 = vmatpush.bf16.msra.mxu0 %v6490
      %10510 = vmatpush.bf16.msra.mxu0 %v6482
      %10511 = vmatpush.bf16.msra.mxu0 %v6474
      %10512 = vmatpush.bf16.msra.mxu0 %v6466
      %10513 = vmatpush.bf16.msra.mxu0 %v6458
      %10514 = vmatmul.bf16.gmra.mxu0 %v1802
      %v10515 = vpop.f32.mrf.mxu0
      %v10516 = vadd.f32 %v10502, %v10515
      %v10517 = vpop.f32.mrf.mxu0
      %v10518 = vadd.f32 %v10504, %v10517
      %10519 = vdwg.mxu0
      %10520 = vmatpush.bf16.msra.mxu0 %v6578
      %10521 = vmatpush.bf16.msra.mxu0 %v6570
      %10522 = vmatpush.bf16.msra.mxu0 %v6562
      %10523 = vmatpush.bf16.msra.mxu0 %v6554
      %10524 = vmatpush.bf16.msra.mxu0 %v6546
      %10525 = vmatpush.bf16.msra.mxu0 %v6538
      %10526 = vmatpush.bf16.msra.mxu0 %v6530
      %10527 = vmatpush.bf16.msra.mxu0 %v6522
      %10528 = vmatmul.bf16.gmra.mxu0 %v1803
      %v10529 = vpop.f32.mrf.mxu0
      %v10530 = vadd.f32 %v10516, %v10529
      %v10531 = vpop.f32.mrf.mxu0
      %v10532 = vadd.f32 %v10518, %v10531
      %10533 = vdwg.mxu0
      %10534 = vmatpush.bf16.msra.mxu0 %v6642
      %10535 = vmatpush.bf16.msra.mxu0 %v6634
      %10536 = vmatpush.bf16.msra.mxu0 %v6626
      %10537 = vmatpush.bf16.msra.mxu0 %v6618
      %10538 = vmatpush.bf16.msra.mxu0 %v6610
      %10539 = vmatpush.bf16.msra.mxu0 %v6602
      %10540 = vmatpush.bf16.msra.mxu0 %v6594
      %10541 = vmatpush.bf16.msra.mxu0 %v6586
      %10542 = vmatmul.bf16.gmra.mxu0 %v1804
      %v10543 = vpop.f32.mrf.mxu0
      %v10544 = vadd.f32 %v10530, %v10543
      %v10545 = vpop.f32.mrf.mxu0
      %v10546 = vadd.f32 %v10532, %v10545
      %10547 = vdwg.mxu0
      %10548 = vmatpush.bf16.msra.mxu0 %v6706
      %10549 = vmatpush.bf16.msra.mxu0 %v6698
      %10550 = vmatpush.bf16.msra.mxu0 %v6690
      %10551 = vmatpush.bf16.msra.mxu0 %v6682
      %10552 = vmatpush.bf16.msra.mxu0 %v6674
      %10553 = vmatpush.bf16.msra.mxu0 %v6666
      %10554 = vmatpush.bf16.msra.mxu0 %v6658
      %10555 = vmatpush.bf16.msra.mxu0 %v6650
      %10556 = vmatmul.bf16.gmra.mxu0 %v1805
      %v10557 = vpop.f32.mrf.mxu0
      %v10558 = vadd.f32 %v10544, %v10557
      %v10559 = vpop.f32.mrf.mxu0
      %v10560 = vadd.f32 %v10546, %v10559
      %10561 = vdwg.mxu0
      %10562 = vmatpush.bf16.msra.mxu0 %v6770
      %10563 = vmatpush.bf16.msra.mxu0 %v6762
      %10564 = vmatpush.bf16.msra.mxu0 %v6754
      %10565 = vmatpush.bf16.msra.mxu0 %v6746
      %10566 = vmatpush.bf16.msra.mxu0 %v6738
      %10567 = vmatpush.bf16.msra.mxu0 %v6730
      %10568 = vmatpush.bf16.msra.mxu0 %v6722
      %10569 = vmatpush.bf16.msra.mxu0 %v6714
      %10570 = vmatmul.bf16.gmra.mxu0 %v1806
      %v10571 = vpop.f32.mrf.mxu0
      %v10572 = vadd.f32 %v10558, %v10571
      %v10573 = vpop.f32.mrf.mxu0
      %v10574 = vadd.f32 %v10560, %v10573
      %10575 = vdwg.mxu0
      %10576 = vmatpush.bf16.msra.mxu0 %v6834
      %10577 = vmatpush.bf16.msra.mxu0 %v6826
      %10578 = vmatpush.bf16.msra.mxu0 %v6818
      %10579 = vmatpush.bf16.msra.mxu0 %v6810
      %10580 = vmatpush.bf16.msra.mxu0 %v6802
      %10581 = vmatpush.bf16.msra.mxu0 %v6794
      %10582 = vmatpush.bf16.msra.mxu0 %v6786
      %10583 = vmatpush.bf16.msra.mxu0 %v6778
      %10584 = vmatmul.bf16.gmra.mxu0 %v1807
      %v10585 = vpop.f32.mrf.mxu0
      %v10586 = vadd.f32 %v10572, %v10585
      %v10587 = vpop.f32.mrf.mxu0
      %v10588 = vadd.f32 %v10574, %v10587
      %10589 = vdwg.mxu0
      %10590 = vmatpush.bf16.msra.mxu0 %v6898
      %10591 = vmatpush.bf16.msra.mxu0 %v6890
      %10592 = vmatpush.bf16.msra.mxu0 %v6882
      %10593 = vmatpush.bf16.msra.mxu0 %v6874
      %10594 = vmatpush.bf16.msra.mxu0 %v6866
      %10595 = vmatpush.bf16.msra.mxu0 %v6858
      %10596 = vmatpush.bf16.msra.mxu0 %v6850
      %10597 = vmatpush.bf16.msra.mxu0 %v6842
      %10598 = vmatmul.bf16.gmra.mxu0 %v1808
      %v10599 = vpop.f32.mrf.mxu0
      %v10600 = vadd.f32 %v10586, %v10599
      %v10601 = vpop.f32.mrf.mxu0
      %v10602 = vadd.f32 %v10588, %v10601
      %10603 = vdwg.mxu0
      %10604 = vmatpush.bf16.msra.mxu0 %v6962
      %10605 = vmatpush.bf16.msra.mxu0 %v6954
      %10606 = vmatpush.bf16.msra.mxu0 %v6946
      %10607 = vmatpush.bf16.msra.mxu0 %v6938
      %10608 = vmatpush.bf16.msra.mxu0 %v6930
      %10609 = vmatpush.bf16.msra.mxu0 %v6922
      %10610 = vmatpush.bf16.msra.mxu0 %v6914
      %10611 = vmatpush.bf16.msra.mxu0 %v6906
      %10612 = vmatmul.bf16.gmra.mxu0 %v1809
      %v10613 = vpop.f32.mrf.mxu0
      %v10614 = vadd.f32 %v10600, %v10613
      %v10615 = vpop.f32.mrf.mxu0
      %v10616 = vadd.f32 %v10602, %v10615
      %10617 = vdwg.mxu0
      %10618 = vmatpush.bf16.msra.mxu0 0
      %10619 = vmatpush.bf16.msra.mxu0 0
      %10620 = vmatpush.bf16.msra.mxu0 0
      %10621 = vmatpush.bf16.msra.mxu0 0
      %10622 = vmatpush.bf16.msra.mxu0 0
      %10623 = vmatpush.bf16.msra.mxu0 0
      %10624 = vmatpush.bf16.msra.mxu0 0
      %10625 = vmatpush.bf16.msra.mxu0 %v8278
      %10626 = vmatmul.bf16.gmra.mxu0 %v8253
      %v10627 = vpop.f32.mrf.mxu0
      %v10628 = vadd.f32 %v10614, %v10627
      %v10629 = vpop.f32.mrf.mxu0
      %v10630 = vadd.f32 %v10616, %v10629
      %10631 = vdwg.mxu0
      %v10632 = vmax.f32 %v8570, 0.0
      %v10633 = vmax.f32 %v8864, 0.0
      %v10634 = vmax.f32 %v9158, 0.0
      %v10635 = vmax.f32 %v9452, 0.0
      %v10636 = vmax.f32 %v9746, 0.0
      %v10637 = vmax.f32 %v10040, 0.0
      %v10638 = vmax.f32 %v10334, 0.0
      %v10639 = vmax.f32 %v10628, 0.0
      %v10640 = vmax.f32 %v8572, 0.0
      %v10641 = vmax.f32 %v8866, 0.0
      %v10642 = vmax.f32 %v9160, 0.0
      %v10643 = vmax.f32 %v9454, 0.0
      %v10644 = vmax.f32 %v9748, 0.0
      %v10645 = vmax.f32 %v10042, 0.0
      %v10646 = vmax.f32 %v10336, 0.0
      %v10647 = vmax.f32 %v10630, 0.0
      %v10648 = vld [vmem:[#allocation2] sm:$0xff]
      %v10649 = vld [vmem:[#allocation2 + $0x8] sm:$0xff]
      %v10650 = vld [vmem:[#allocation2 + $0x10] sm:$0xff]
      %v10651 = vld [vmem:[#allocation2 + $0x18] sm:$0xff]
      %v10652 = vld [vmem:[#allocation2 + $0x20] sm:$0xff]
      %v10653 = vld [vmem:[#allocation2 + $0x28] sm:$0xff]
      %v10654 = vld [vmem:[#allocation2 + $0x30] sm:$0xff]
      %v10655 = vld [vmem:[#allocation2 + $0x38] sm:$0xff]
      %v10656 = vpack.c.bf16 %v10640, %v10632
      %v10657 = vpack.c.bf16 %v10641, %v10633
      %v10658 = vpack.c.bf16 %v10642, %v10634
      %v10659 = vpack.c.bf16 %v10643, %v10635
      %v10660 = vpack.c.bf16 %v10644, %v10636
      %v10661 = vpack.c.bf16 %v10645, %v10637
      %v10662 = vpack.c.bf16 %v10646, %v10638
      %v10663 = vpack.c.bf16 %v10647, %v10639
      %v10664 = vld [vmem:[%s381] sm:$0xff]
      %v10665 = vld [vmem:[%s381 + $0x8] sm:$0xff]
      %v10666 = vld [vmem:[%s381 + $0x10] sm:$0xff]
      %v10667 = vld [vmem:[%s381 + $0x18] sm:$0xff]
      %v10668 = vld [vmem:[%s381 + $0x20] sm:$0xff]
      %v10669 = vld [vmem:[%s381 + $0x28] sm:$0xff]
      %v10670 = vld [vmem:[%s381 + $0x30] sm:$0xff]
      %v10671 = vld [vmem:[%s381 + $0x38] sm:$0xff]
      %v10672 = vld [vmem:[%s381 + $0x40] sm:$0xff]
      %v10673 = vld [vmem:[%s381 + $0x48] sm:$0xff]
      %v10674 = vld [vmem:[%s381 + $0x50] sm:$0xff]
      %v10675 = vld [vmem:[%s381 + $0x58] sm:$0xff]
      %v10676 = vld [vmem:[%s381 + $0x60] sm:$0xff]
      %v10677 = vld [vmem:[%s381 + $0x68] sm:$0xff]
      %v10678 = vld [vmem:[%s381 + $0x70] sm:$0xff]
      %v10679 = vld [vmem:[%s381 + $0x78] sm:$0xff]
      %v10680 = vld [vmem:[%s381 + $0x80] sm:$0xff]
      %v10681 = vld [vmem:[%s381 + $0x88] sm:$0xff]
      %v10682 = vld [vmem:[%s381 + $0x90] sm:$0xff]
      %v10683 = vld [vmem:[%s381 + $0x98] sm:$0xff]
      %v10684 = vld [vmem:[%s381 + $0xa0] sm:$0xff]
      %v10685 = vld [vmem:[%s381 + $0xa8] sm:$0xff]
      %v10686 = vld [vmem:[%s381 + $0xb0] sm:$0xff]
      %v10687 = vld [vmem:[%s381 + $0xb8] sm:$0xff]
      %v10688 = vld [vmem:[%s381 + $0xc0] sm:$0xff]
      %v10689 = vld [vmem:[%s381 + $0xc8] sm:$0xff]
      %v10690 = vld [vmem:[%s381 + $0xd0] sm:$0xff]
      %v10691 = vld [vmem:[%s381 + $0xd8] sm:$0xff]
      %v10692 = vld [vmem:[%s381 + $0xe0] sm:$0xff]
      %v10693 = vld [vmem:[%s381 + $0xe8] sm:$0xff]
      %v10694 = vld [vmem:[%s381 + $0xf0] sm:$0xff]
      %v10695 = vld [vmem:[%s381 + $0xf8] sm:$0xff]
      %v10696 = vld [vmem:[%s381 + $0x100] sm:$0xff]
      %v10697 = vld [vmem:[%s381 + $0x108] sm:$0xff]
      %v10698 = vld [vmem:[%s381 + $0x110] sm:$0xff]
      %v10699 = vld [vmem:[%s381 + $0x118] sm:$0xff]
      %v10700 = vld [vmem:[%s381 + $0x120] sm:$0xff]
      %v10701 = vld [vmem:[%s381 + $0x128] sm:$0xff]
      %v10702 = vld [vmem:[%s381 + $0x130] sm:$0xff]
      %v10703 = vld [vmem:[%s381 + $0x138] sm:$0xff]
      %v10704 = vld [vmem:[%s381 + $0x140] sm:$0xff]
      %v10705 = vld [vmem:[%s381 + $0x148] sm:$0xff]
      %v10706 = vld [vmem:[%s381 + $0x150] sm:$0xff]
      %v10707 = vld [vmem:[%s381 + $0x158] sm:$0xff]
      %v10708 = vld [vmem:[%s381 + $0x160] sm:$0xff]
      %v10709 = vld [vmem:[%s381 + $0x168] sm:$0xff]
      %v10710 = vld [vmem:[%s381 + $0x170] sm:$0xff]
      %v10711 = vld [vmem:[%s381 + $0x178] sm:$0xff]
      %v10712 = vld [vmem:[%s381 + $0x180] sm:$0xff]
      %v10713 = vld [vmem:[%s381 + $0x188] sm:$0xff]
      %v10714 = vld [vmem:[%s381 + $0x190] sm:$0xff]
      %v10715 = vld [vmem:[%s381 + $0x198] sm:$0xff]
      %v10716 = vld [vmem:[%s381 + $0x1a0] sm:$0xff]
      %v10717 = vld [vmem:[%s381 + $0x1a8] sm:$0xff]
      %v10718 = vld [vmem:[%s381 + $0x1b0] sm:$0xff]
      %v10719 = vld [vmem:[%s381 + $0x1b8] sm:$0xff]
      %v10720 = vld [vmem:[%s381 + $0x1c0] sm:$0xff]
      %v10721 = vld [vmem:[%s381 + $0x1c8] sm:$0xff]
      %v10722 = vld [vmem:[%s381 + $0x1d0] sm:$0xff]
      %v10723 = vld [vmem:[%s381 + $0x1d8] sm:$0xff]
      %v10724 = vld [vmem:[%s381 + $0x1e0] sm:$0xff]
      %v10725 = vld [vmem:[%s381 + $0x1e8] sm:$0xff]
      %v10726 = vld [vmem:[%s381 + $0x1f0] sm:$0xff]
      %v10727 = vld [vmem:[%s381 + $0x1f8] sm:$0xff]
      %v10728 = vld [vmem:[%s381 + $0x200] sm:$0xff]
      %v10729 = vld [vmem:[%s381 + $0x208] sm:$0xff]
      %v10730 = vld [vmem:[%s381 + $0x210] sm:$0xff]
      %v10731 = vld [vmem:[%s381 + $0x218] sm:$0xff]
      %v10732 = vld [vmem:[%s381 + $0x220] sm:$0xff]
      %v10733 = vld [vmem:[%s381 + $0x228] sm:$0xff]
      %v10734 = vld [vmem:[%s381 + $0x230] sm:$0xff]
      %v10735 = vld [vmem:[%s381 + $0x238] sm:$0xff]
      %v10736 = vld [vmem:[%s381 + $0x240] sm:$0xff]
      %v10737 = vld [vmem:[%s381 + $0x248] sm:$0xff]
      %v10738 = vld [vmem:[%s381 + $0x250] sm:$0xff]
      %v10739 = vld [vmem:[%s381 + $0x258] sm:$0xff]
      %v10740 = vld [vmem:[%s381 + $0x260] sm:$0xff]
      %v10741 = vld [vmem:[%s381 + $0x268] sm:$0xff]
      %v10742 = vld [vmem:[%s381 + $0x270] sm:$0xff]
      %v10743 = vld [vmem:[%s381 + $0x278] sm:$0xff]
      %v10744 = vld [vmem:[%s381 + $0x280] sm:$0xff]
      %v10745 = vld [vmem:[%s381 + $0x288] sm:$0xff]
      %v10746 = vld [vmem:[%s381 + $0x290] sm:$0xff]
      %v10747 = vld [vmem:[%s381 + $0x298] sm:$0xff]
      %v10748 = vld [vmem:[%s381 + $0x2a0] sm:$0xff]
      %v10749 = vld [vmem:[%s381 + $0x2a8] sm:$0xff]
      %v10750 = vld [vmem:[%s381 + $0x2b0] sm:$0xff]
      %v10751 = vld [vmem:[%s381 + $0x2b8] sm:$0xff]
      %v10752 = vld [vmem:[%s381 + $0x2c0] sm:$0xff]
      %v10753 = vld [vmem:[%s381 + $0x2c8] sm:$0xff]
      %v10754 = vld [vmem:[%s381 + $0x2d0] sm:$0xff]
      %v10755 = vld [vmem:[%s381 + $0x2d8] sm:$0xff]
      %v10756 = vld [vmem:[%s381 + $0x2e0] sm:$0xff]
      %v10757 = vld [vmem:[%s381 + $0x2e8] sm:$0xff]
      %v10758 = vld [vmem:[%s381 + $0x2f0] sm:$0xff]
      %v10759 = vld [vmem:[%s381 + $0x2f8] sm:$0xff]
      %v10760 = vld [vmem:[%s381 + $0x300] sm:$0xff]
      %v10761 = vld [vmem:[%s381 + $0x308] sm:$0xff]
      %v10762 = vld [vmem:[%s381 + $0x310] sm:$0xff]
      %v10763 = vld [vmem:[%s381 + $0x318] sm:$0xff]
      %v10764 = vld [vmem:[%s381 + $0x320] sm:$0xff]
      %v10765 = vld [vmem:[%s381 + $0x328] sm:$0xff]
      %v10766 = vld [vmem:[%s381 + $0x330] sm:$0xff]
      %v10767 = vld [vmem:[%s381 + $0x338] sm:$0xff]
      %v10768 = vld [vmem:[%s381 + $0x340] sm:$0xff]
      %v10769 = vld [vmem:[%s381 + $0x348] sm:$0xff]
      %v10770 = vld [vmem:[%s381 + $0x350] sm:$0xff]
      %v10771 = vld [vmem:[%s381 + $0x358] sm:$0xff]
      %v10772 = vld [vmem:[%s381 + $0x360] sm:$0xff]
      %v10773 = vld [vmem:[%s381 + $0x368] sm:$0xff]
      %v10774 = vld [vmem:[%s381 + $0x370] sm:$0xff]
      %v10775 = vld [vmem:[%s381 + $0x378] sm:$0xff]
      %v10776 = vld [vmem:[%s381 + $0x380] sm:$0xff]
      %v10777 = vld [vmem:[%s381 + $0x388] sm:$0xff]
      %v10778 = vld [vmem:[%s381 + $0x390] sm:$0xff]
      %v10779 = vld [vmem:[%s381 + $0x398] sm:$0xff]
      %v10780 = vld [vmem:[%s381 + $0x3a0] sm:$0xff]
      %v10781 = vld [vmem:[%s381 + $0x3a8] sm:$0xff]
      %v10782 = vld [vmem:[%s381 + $0x3b0] sm:$0xff]
      %v10783 = vld [vmem:[%s381 + $0x3b8] sm:$0xff]
      %v10784 = vld [vmem:[%s381 + $0x3c0] sm:$0xff]
      %v10785 = vld [vmem:[%s381 + $0x3c8] sm:$0xff]
      %v10786 = vld [vmem:[%s381 + $0x3d0] sm:$0xff]
      %v10787 = vld [vmem:[%s381 + $0x3d8] sm:$0xff]
      %v10788 = vld [vmem:[%s381 + $0x3e0] sm:$0xff]
      %v10789 = vld [vmem:[%s381 + $0x3e8] sm:$0xff]
      %v10790 = vld [vmem:[%s381 + $0x3f0] sm:$0xff]
      %v10791 = vld [vmem:[%s381 + $0x3f8] sm:$0xff]
      %v10792 = vld [vmem:[%s381 + $0x400] sm:$0xff]
      %v10793 = vld [vmem:[%s381 + $0x408] sm:$0xff]
      %v10794 = vld [vmem:[%s381 + $0x410] sm:$0xff]
      %v10795 = vld [vmem:[%s381 + $0x418] sm:$0xff]
      %v10796 = vld [vmem:[%s381 + $0x420] sm:$0xff]
      %v10797 = vld [vmem:[%s381 + $0x428] sm:$0xff]
      %v10798 = vld [vmem:[%s381 + $0x430] sm:$0xff]
      %v10799 = vld [vmem:[%s381 + $0x438] sm:$0xff]
      %v10800 = vld [vmem:[%s381 + $0x440] sm:$0xff]
      %v10801 = vld [vmem:[%s381 + $0x448] sm:$0xff]
      %v10802 = vld [vmem:[%s381 + $0x450] sm:$0xff]
      %v10803 = vld [vmem:[%s381 + $0x458] sm:$0xff]
      %v10804 = vld [vmem:[%s381 + $0x460] sm:$0xff]
      %v10805 = vld [vmem:[%s381 + $0x468] sm:$0xff]
      %v10806 = vld [vmem:[%s381 + $0x470] sm:$0xff]
      %v10807 = vld [vmem:[%s381 + $0x478] sm:$0xff]
      %v10808 = vld [vmem:[%s381 + $0x480] sm:$0xff]
      %v10809 = vld [vmem:[%s381 + $0x488] sm:$0xff]
      %v10810 = vld [vmem:[%s381 + $0x490] sm:$0xff]
      %v10811 = vld [vmem:[%s381 + $0x498] sm:$0xff]
      %v10812 = vld [vmem:[%s381 + $0x4a0] sm:$0xff]
      %v10813 = vld [vmem:[%s381 + $0x4a8] sm:$0xff]
      %v10814 = vld [vmem:[%s381 + $0x4b0] sm:$0xff]
      %v10815 = vld [vmem:[%s381 + $0x4b8] sm:$0xff]
      %v10816 = vld [vmem:[%s381 + $0x4c0] sm:$0xff]
      %v10817 = vld [vmem:[%s381 + $0x4c8] sm:$0xff]
      %v10818 = vld [vmem:[%s381 + $0x4d0] sm:$0xff]
      %v10819 = vld [vmem:[%s381 + $0x4d8] sm:$0xff]
      %v10820 = vld [vmem:[%s381 + $0x4e0] sm:$0xff]
      %v10821 = vld [vmem:[%s381 + $0x4e8] sm:$0xff]
      %v10822 = vld [vmem:[%s381 + $0x4f0] sm:$0xff]
      %v10823 = vld [vmem:[%s381 + $0x4f8] sm:$0xff]
      %v10824 = vld [vmem:[%s381 + $0x500] sm:$0xff]
      %v10825 = vld [vmem:[%s381 + $0x508] sm:$0xff]
      %v10826 = vld [vmem:[%s381 + $0x510] sm:$0xff]
      %v10827 = vld [vmem:[%s381 + $0x518] sm:$0xff]
      %v10828 = vld [vmem:[%s381 + $0x520] sm:$0xff]
      %v10829 = vld [vmem:[%s381 + $0x528] sm:$0xff]
      %v10830 = vld [vmem:[%s381 + $0x530] sm:$0xff]
      %v10831 = vld [vmem:[%s381 + $0x538] sm:$0xff]
      %v10832 = vld [vmem:[%s381 + $0x540] sm:$0xff]
      %v10833 = vld [vmem:[%s381 + $0x548] sm:$0xff]
      %v10834 = vld [vmem:[%s381 + $0x550] sm:$0xff]
      %v10835 = vld [vmem:[%s381 + $0x558] sm:$0xff]
      %v10836 = vld [vmem:[%s381 + $0x560] sm:$0xff]
      %v10837 = vld [vmem:[%s381 + $0x568] sm:$0xff]
      %v10838 = vld [vmem:[%s381 + $0x570] sm:$0xff]
      %v10839 = vld [vmem:[%s381 + $0x578] sm:$0xff]
      %v10840 = vld [vmem:[%s381 + $0x580] sm:$0xff]
      %v10841 = vld [vmem:[%s381 + $0x588] sm:$0xff]
      %v10842 = vld [vmem:[%s381 + $0x590] sm:$0xff]
      %v10843 = vld [vmem:[%s381 + $0x598] sm:$0xff]
      %v10844 = vld [vmem:[%s381 + $0x5a0] sm:$0xff]
      %v10845 = vld [vmem:[%s381 + $0x5a8] sm:$0xff]
      %v10846 = vld [vmem:[%s381 + $0x5b0] sm:$0xff]
      %v10847 = vld [vmem:[%s381 + $0x5b8] sm:$0xff]
      %v10848 = vld [vmem:[%s381 + $0x5c0] sm:$0xff]
      %v10849 = vld [vmem:[%s381 + $0x5c8] sm:$0xff]
      %v10850 = vld [vmem:[%s381 + $0x5d0] sm:$0xff]
      %v10851 = vld [vmem:[%s381 + $0x5d8] sm:$0xff]
      %v10852 = vld [vmem:[%s381 + $0x5e0] sm:$0xff]
      %v10853 = vld [vmem:[%s381 + $0x5e8] sm:$0xff]
      %v10854 = vld [vmem:[%s381 + $0x5f0] sm:$0xff]
      %v10855 = vld [vmem:[%s381 + $0x5f8] sm:$0xff]
      %v10856 = vld [vmem:[%s381 + $0x600] sm:$0xff]
      %v10857 = vld [vmem:[%s381 + $0x608] sm:$0xff]
      %v10858 = vld [vmem:[%s381 + $0x610] sm:$0xff]
      %v10859 = vld [vmem:[%s381 + $0x618] sm:$0xff]
      %v10860 = vld [vmem:[%s381 + $0x620] sm:$0xff]
      %v10861 = vld [vmem:[%s381 + $0x628] sm:$0xff]
      %v10862 = vld [vmem:[%s381 + $0x630] sm:$0xff]
      %v10863 = vld [vmem:[%s381 + $0x638] sm:$0xff]
      %v10864 = vld [vmem:[%s381 + $0x640] sm:$0xff]
      %v10865 = vld [vmem:[%s381 + $0x648] sm:$0xff]
      %v10866 = vld [vmem:[%s381 + $0x650] sm:$0xff]
      %v10867 = vld [vmem:[%s381 + $0x658] sm:$0xff]
      %v10868 = vld [vmem:[%s381 + $0x660] sm:$0xff]
      %v10869 = vld [vmem:[%s381 + $0x668] sm:$0xff]
      %v10870 = vld [vmem:[%s381 + $0x670] sm:$0xff]
      %v10871 = vld [vmem:[%s381 + $0x678] sm:$0xff]
      %v10872 = vld [vmem:[%s381 + $0x680] sm:$0xff]
      %v10873 = vld [vmem:[%s381 + $0x688] sm:$0xff]
      %v10874 = vld [vmem:[%s381 + $0x690] sm:$0xff]
      %v10875 = vld [vmem:[%s381 + $0x698] sm:$0xff]
      %v10876 = vld [vmem:[%s381 + $0x6a0] sm:$0xff]
      %v10877 = vld [vmem:[%s381 + $0x6a8] sm:$0xff]
      %v10878 = vld [vmem:[%s381 + $0x6b0] sm:$0xff]
      %v10879 = vld [vmem:[%s381 + $0x6b8] sm:$0xff]
      %v10880 = vld [vmem:[%s381 + $0x6c0] sm:$0xff]
      %v10881 = vld [vmem:[%s381 + $0x6c8] sm:$0xff]
      %v10882 = vld [vmem:[%s381 + $0x6d0] sm:$0xff]
      %v10883 = vld [vmem:[%s381 + $0x6d8] sm:$0xff]
      %v10884 = vld [vmem:[%s381 + $0x6e0] sm:$0xff]
      %v10885 = vld [vmem:[%s381 + $0x6e8] sm:$0xff]
      %v10886 = vld [vmem:[%s381 + $0x6f0] sm:$0xff]
      %v10887 = vld [vmem:[%s381 + $0x6f8] sm:$0xff]
      %v10888 = vld [vmem:[%s381 + $0x700] sm:$0xff]
      %v10889 = vld [vmem:[%s381 + $0x708] sm:$0xff]
      %v10890 = vld [vmem:[%s381 + $0x710] sm:$0xff]
      %v10891 = vld [vmem:[%s381 + $0x718] sm:$0xff]
      %v10892 = vld [vmem:[%s381 + $0x720] sm:$0xff]
      %v10893 = vld [vmem:[%s381 + $0x728] sm:$0xff]
      %v10894 = vld [vmem:[%s381 + $0x730] sm:$0xff]
      %v10895 = vld [vmem:[%s381 + $0x738] sm:$0xff]
      %v10896 = vld [vmem:[%s381 + $0x740] sm:$0xff]
      %v10897 = vld [vmem:[%s381 + $0x748] sm:$0xff]
      %v10898 = vld [vmem:[%s381 + $0x750] sm:$0xff]
      %v10899 = vld [vmem:[%s381 + $0x758] sm:$0xff]
      %v10900 = vld [vmem:[%s381 + $0x760] sm:$0xff]
      %v10901 = vld [vmem:[%s381 + $0x768] sm:$0xff]
      %v10902 = vld [vmem:[%s381 + $0x770] sm:$0xff]
      %v10903 = vld [vmem:[%s381 + $0x778] sm:$0xff]
      %v10904 = vld [vmem:[%s381 + $0x780] sm:$0xff]
      %v10905 = vld [vmem:[%s381 + $0x788] sm:$0xff]
      %v10906 = vld [vmem:[%s381 + $0x790] sm:$0xff]
      %v10907 = vld [vmem:[%s381 + $0x798] sm:$0xff]
      %v10908 = vld [vmem:[%s381 + $0x7a0] sm:$0xff]
      %v10909 = vld [vmem:[%s381 + $0x7a8] sm:$0xff]
      %v10910 = vld [vmem:[%s381 + $0x7b0] sm:$0xff]
      %v10911 = vld [vmem:[%s381 + $0x7b8] sm:$0xff]
      %v10912 = vld [vmem:[%s381 + $0x7c0] sm:$0xff]
      %v10913 = vld [vmem:[%s381 + $0x7c8] sm:$0xff]
      %v10914 = vld [vmem:[%s381 + $0x7d0] sm:$0xff]
      %v10915 = vld [vmem:[%s381 + $0x7d8] sm:$0xff]
      %v10916 = vld [vmem:[%s381 + $0x7e0] sm:$0xff]
      %v10917 = vld [vmem:[%s381 + $0x7e8] sm:$0xff]
      %v10918 = vld [vmem:[%s381 + $0x7f0] sm:$0xff]
      %v10919 = vld [vmem:[%s381 + $0x7f8] sm:$0xff]
      %v11176 = vunpack.c.l.b16 %v10664
      %v11177 = vunpack.c.h.b16 %v10664
      %v11178 = vunpack.c.l.b16 %v10665
      %v11179 = vunpack.c.h.b16 %v10665
      %v11180 = vunpack.c.l.b16 %v10666
      %v11181 = vunpack.c.h.b16 %v10666
      %v11182 = vunpack.c.l.b16 %v10667
      %v11183 = vunpack.c.h.b16 %v10667
      %v11184 = vunpack.c.l.b16 %v10668
      %v11185 = vunpack.c.h.b16 %v10668
      %v11186 = vunpack.c.l.b16 %v10669
      %v11187 = vunpack.c.h.b16 %v10669
      %v11188 = vunpack.c.l.b16 %v10670
      %v11189 = vunpack.c.h.b16 %v10670
      %v11190 = vunpack.c.l.b16 %v10671
      %v11191 = vunpack.c.h.b16 %v10671
      %v11192 = vunpack.c.l.b16 %v10672
      %v11193 = vunpack.c.h.b16 %v10672
      %v11194 = vunpack.c.l.b16 %v10673
      %v11195 = vunpack.c.h.b16 %v10673
      %v11196 = vunpack.c.l.b16 %v10674
      %v11197 = vunpack.c.h.b16 %v10674
      %v11198 = vunpack.c.l.b16 %v10675
      %v11199 = vunpack.c.h.b16 %v10675
      %v11200 = vunpack.c.l.b16 %v10676
      %v11201 = vunpack.c.h.b16 %v10676
      %v11202 = vunpack.c.l.b16 %v10677
      %v11203 = vunpack.c.h.b16 %v10677
      %v11204 = vunpack.c.l.b16 %v10678
      %v11205 = vunpack.c.h.b16 %v10678
      %v11206 = vunpack.c.l.b16 %v10679
      %v11207 = vunpack.c.h.b16 %v10679
      %v11208 = vunpack.c.l.b16 %v10680
      %v11209 = vunpack.c.h.b16 %v10680
      %v11210 = vunpack.c.l.b16 %v10681
      %v11211 = vunpack.c.h.b16 %v10681
      %v11212 = vunpack.c.l.b16 %v10682
      %v11213 = vunpack.c.h.b16 %v10682
      %v11214 = vunpack.c.l.b16 %v10683
      %v11215 = vunpack.c.h.b16 %v10683
      %v11216 = vunpack.c.l.b16 %v10684
      %v11217 = vunpack.c.h.b16 %v10684
      %v11218 = vunpack.c.l.b16 %v10685
      %v11219 = vunpack.c.h.b16 %v10685
      %v11220 = vunpack.c.l.b16 %v10686
      %v11221 = vunpack.c.h.b16 %v10686
      %v11222 = vunpack.c.l.b16 %v10687
      %v11223 = vunpack.c.h.b16 %v10687
      %v11224 = vunpack.c.l.b16 %v10688
      %v11225 = vunpack.c.h.b16 %v10688
      %v11226 = vunpack.c.l.b16 %v10689
      %v11227 = vunpack.c.h.b16 %v10689
      %v11228 = vunpack.c.l.b16 %v10690
      %v11229 = vunpack.c.h.b16 %v10690
      %v11230 = vunpack.c.l.b16 %v10691
      %v11231 = vunpack.c.h.b16 %v10691
      %v11232 = vunpack.c.l.b16 %v10692
      %v11233 = vunpack.c.h.b16 %v10692
      %v11234 = vunpack.c.l.b16 %v10693
      %v11235 = vunpack.c.h.b16 %v10693
      %v11236 = vunpack.c.l.b16 %v10694
      %v11237 = vunpack.c.h.b16 %v10694
      %v11238 = vunpack.c.l.b16 %v10695
      %v11239 = vunpack.c.h.b16 %v10695
      %v11240 = vunpack.c.l.b16 %v10696
      %v11241 = vunpack.c.h.b16 %v10696
      %v11242 = vunpack.c.l.b16 %v10697
      %v11243 = vunpack.c.h.b16 %v10697
      %v11244 = vunpack.c.l.b16 %v10698
      %v11245 = vunpack.c.h.b16 %v10698
      %v11246 = vunpack.c.l.b16 %v10699
      %v11247 = vunpack.c.h.b16 %v10699
      %v11248 = vunpack.c.l.b16 %v10700
      %v11249 = vunpack.c.h.b16 %v10700
      %v11250 = vunpack.c.l.b16 %v10701
      %v11251 = vunpack.c.h.b16 %v10701
      %v11252 = vunpack.c.l.b16 %v10702
      %v11253 = vunpack.c.h.b16 %v10702
      %v11254 = vunpack.c.l.b16 %v10703
      %v11255 = vunpack.c.h.b16 %v10703
      %v11256 = vunpack.c.l.b16 %v10704
      %v11257 = vunpack.c.h.b16 %v10704
      %v11258 = vunpack.c.l.b16 %v10705
      %v11259 = vunpack.c.h.b16 %v10705
      %v11260 = vunpack.c.l.b16 %v10706
      %v11261 = vunpack.c.h.b16 %v10706
      %v11262 = vunpack.c.l.b16 %v10707
      %v11263 = vunpack.c.h.b16 %v10707
      %v11264 = vunpack.c.l.b16 %v10708
      %v11265 = vunpack.c.h.b16 %v10708
      %v11266 = vunpack.c.l.b16 %v10709
      %v11267 = vunpack.c.h.b16 %v10709
      %v11268 = vunpack.c.l.b16 %v10710
      %v11269 = vunpack.c.h.b16 %v10710
      %v11270 = vunpack.c.l.b16 %v10711
      %v11271 = vunpack.c.h.b16 %v10711
      %v11272 = vunpack.c.l.b16 %v10712
      %v11273 = vunpack.c.h.b16 %v10712
      %v11274 = vunpack.c.l.b16 %v10713
      %v11275 = vunpack.c.h.b16 %v10713
      %v11276 = vunpack.c.l.b16 %v10714
      %v11277 = vunpack.c.h.b16 %v10714
      %v11278 = vunpack.c.l.b16 %v10715
      %v11279 = vunpack.c.h.b16 %v10715
      %v11280 = vunpack.c.l.b16 %v10716
      %v11281 = vunpack.c.h.b16 %v10716
      %v11282 = vunpack.c.l.b16 %v10717
      %v11283 = vunpack.c.h.b16 %v10717
      %v11284 = vunpack.c.l.b16 %v10718
      %v11285 = vunpack.c.h.b16 %v10718
      %v11286 = vunpack.c.l.b16 %v10719
      %v11287 = vunpack.c.h.b16 %v10719
      %v11288 = vunpack.c.l.b16 %v10720
      %v11289 = vunpack.c.h.b16 %v10720
      %v11290 = vunpack.c.l.b16 %v10721
      %v11291 = vunpack.c.h.b16 %v10721
      %v11292 = vunpack.c.l.b16 %v10722
      %v11293 = vunpack.c.h.b16 %v10722
      %v11294 = vunpack.c.l.b16 %v10723
      %v11295 = vunpack.c.h.b16 %v10723
      %v11296 = vunpack.c.l.b16 %v10724
      %v11297 = vunpack.c.h.b16 %v10724
      %v11298 = vunpack.c.l.b16 %v10725
      %v11299 = vunpack.c.h.b16 %v10725
      %v11300 = vunpack.c.l.b16 %v10726
      %v11301 = vunpack.c.h.b16 %v10726
      %v11302 = vunpack.c.l.b16 %v10727
      %v11303 = vunpack.c.h.b16 %v10727
      %v11304 = vunpack.c.l.b16 %v10728
      %v11305 = vunpack.c.h.b16 %v10728
      %v11306 = vunpack.c.l.b16 %v10729
      %v11307 = vunpack.c.h.b16 %v10729
      %v11308 = vunpack.c.l.b16 %v10730
      %v11309 = vunpack.c.h.b16 %v10730
      %v11310 = vunpack.c.l.b16 %v10731
      %v11311 = vunpack.c.h.b16 %v10731
      %v11312 = vunpack.c.l.b16 %v10732
      %v11313 = vunpack.c.h.b16 %v10732
      %v11314 = vunpack.c.l.b16 %v10733
      %v11315 = vunpack.c.h.b16 %v10733
      %v11316 = vunpack.c.l.b16 %v10734
      %v11317 = vunpack.c.h.b16 %v10734
      %v11318 = vunpack.c.l.b16 %v10735
      %v11319 = vunpack.c.h.b16 %v10735
      %v11320 = vunpack.c.l.b16 %v10736
      %v11321 = vunpack.c.h.b16 %v10736
      %v11322 = vunpack.c.l.b16 %v10737
      %v11323 = vunpack.c.h.b16 %v10737
      %v11324 = vunpack.c.l.b16 %v10738
      %v11325 = vunpack.c.h.b16 %v10738
      %v11326 = vunpack.c.l.b16 %v10739
      %v11327 = vunpack.c.h.b16 %v10739
      %v11328 = vunpack.c.l.b16 %v10740
      %v11329 = vunpack.c.h.b16 %v10740
      %v11330 = vunpack.c.l.b16 %v10741
      %v11331 = vunpack.c.h.b16 %v10741
      %v11332 = vunpack.c.l.b16 %v10742
      %v11333 = vunpack.c.h.b16 %v10742
      %v11334 = vunpack.c.l.b16 %v10743
      %v11335 = vunpack.c.h.b16 %v10743
      %v11336 = vunpack.c.l.b16 %v10744
      %v11337 = vunpack.c.h.b16 %v10744
      %v11338 = vunpack.c.l.b16 %v10745
      %v11339 = vunpack.c.h.b16 %v10745
      %v11340 = vunpack.c.l.b16 %v10746
      %v11341 = vunpack.c.h.b16 %v10746
      %v11342 = vunpack.c.l.b16 %v10747
      %v11343 = vunpack.c.h.b16 %v10747
      %v11344 = vunpack.c.l.b16 %v10748
      %v11345 = vunpack.c.h.b16 %v10748
      %v11346 = vunpack.c.l.b16 %v10749
      %v11347 = vunpack.c.h.b16 %v10749
      %v11348 = vunpack.c.l.b16 %v10750
      %v11349 = vunpack.c.h.b16 %v10750
      %v11350 = vunpack.c.l.b16 %v10751
      %v11351 = vunpack.c.h.b16 %v10751
      %v11352 = vunpack.c.l.b16 %v10752
      %v11353 = vunpack.c.h.b16 %v10752
      %v11354 = vunpack.c.l.b16 %v10753
      %v11355 = vunpack.c.h.b16 %v10753
      %v11356 = vunpack.c.l.b16 %v10754
      %v11357 = vunpack.c.h.b16 %v10754
      %v11358 = vunpack.c.l.b16 %v10755
      %v11359 = vunpack.c.h.b16 %v10755
      %v11360 = vunpack.c.l.b16 %v10756
      %v11361 = vunpack.c.h.b16 %v10756
      %v11362 = vunpack.c.l.b16 %v10757
      %v11363 = vunpack.c.h.b16 %v10757
      %v11364 = vunpack.c.l.b16 %v10758
      %v11365 = vunpack.c.h.b16 %v10758
      %v11366 = vunpack.c.l.b16 %v10759
      %v11367 = vunpack.c.h.b16 %v10759
      %v11368 = vunpack.c.l.b16 %v10760
      %v11369 = vunpack.c.h.b16 %v10760
      %v11370 = vunpack.c.l.b16 %v10761
      %v11371 = vunpack.c.h.b16 %v10761
      %v11372 = vunpack.c.l.b16 %v10762
      %v11373 = vunpack.c.h.b16 %v10762
      %v11374 = vunpack.c.l.b16 %v10763
      %v11375 = vunpack.c.h.b16 %v10763
      %v11376 = vunpack.c.l.b16 %v10764
      %v11377 = vunpack.c.h.b16 %v10764
      %v11378 = vunpack.c.l.b16 %v10765
      %v11379 = vunpack.c.h.b16 %v10765
      %v11380 = vunpack.c.l.b16 %v10766
      %v11381 = vunpack.c.h.b16 %v10766
      %v11382 = vunpack.c.l.b16 %v10767
      %v11383 = vunpack.c.h.b16 %v10767
      %v11384 = vunpack.c.l.b16 %v10768
      %v11385 = vunpack.c.h.b16 %v10768
      %v11386 = vunpack.c.l.b16 %v10769
      %v11387 = vunpack.c.h.b16 %v10769
      %v11388 = vunpack.c.l.b16 %v10770
      %v11389 = vunpack.c.h.b16 %v10770
      %v11390 = vunpack.c.l.b16 %v10771
      %v11391 = vunpack.c.h.b16 %v10771
      %v11392 = vunpack.c.l.b16 %v10772
      %v11393 = vunpack.c.h.b16 %v10772
      %v11394 = vunpack.c.l.b16 %v10773
      %v11395 = vunpack.c.h.b16 %v10773
      %v11396 = vunpack.c.l.b16 %v10774
      %v11397 = vunpack.c.h.b16 %v10774
      %v11398 = vunpack.c.l.b16 %v10775
      %v11399 = vunpack.c.h.b16 %v10775
      %v11400 = vunpack.c.l.b16 %v10776
      %v11401 = vunpack.c.h.b16 %v10776
      %v11402 = vunpack.c.l.b16 %v10777
      %v11403 = vunpack.c.h.b16 %v10777
      %v11404 = vunpack.c.l.b16 %v10778
      %v11405 = vunpack.c.h.b16 %v10778
      %v11406 = vunpack.c.l.b16 %v10779
      %v11407 = vunpack.c.h.b16 %v10779
      %v11408 = vunpack.c.l.b16 %v10780
      %v11409 = vunpack.c.h.b16 %v10780
      %v11410 = vunpack.c.l.b16 %v10781
      %v11411 = vunpack.c.h.b16 %v10781
      %v11412 = vunpack.c.l.b16 %v10782
      %v11413 = vunpack.c.h.b16 %v10782
      %v11414 = vunpack.c.l.b16 %v10783
      %v11415 = vunpack.c.h.b16 %v10783
      %v11416 = vunpack.c.l.b16 %v10784
      %v11417 = vunpack.c.h.b16 %v10784
      %v11418 = vunpack.c.l.b16 %v10785
      %v11419 = vunpack.c.h.b16 %v10785
      %v11420 = vunpack.c.l.b16 %v10786
      %v11421 = vunpack.c.h.b16 %v10786
      %v11422 = vunpack.c.l.b16 %v10787
      %v11423 = vunpack.c.h.b16 %v10787
      %v11424 = vunpack.c.l.b16 %v10788
      %v11425 = vunpack.c.h.b16 %v10788
      %v11426 = vunpack.c.l.b16 %v10789
      %v11427 = vunpack.c.h.b16 %v10789
      %v11428 = vunpack.c.l.b16 %v10790
      %v11429 = vunpack.c.h.b16 %v10790
      %v11430 = vunpack.c.l.b16 %v10791
      %v11431 = vunpack.c.h.b16 %v10791
      %v11432 = vunpack.c.l.b16 %v10792
      %v11433 = vunpack.c.h.b16 %v10792
      %v11434 = vunpack.c.l.b16 %v10793
      %v11435 = vunpack.c.h.b16 %v10793
      %v11436 = vunpack.c.l.b16 %v10794
      %v11437 = vunpack.c.h.b16 %v10794
      %v11438 = vunpack.c.l.b16 %v10795
      %v11439 = vunpack.c.h.b16 %v10795
      %v11440 = vunpack.c.l.b16 %v10796
      %v11441 = vunpack.c.h.b16 %v10796
      %v11442 = vunpack.c.l.b16 %v10797
      %v11443 = vunpack.c.h.b16 %v10797
      %v11444 = vunpack.c.l.b16 %v10798
      %v11445 = vunpack.c.h.b16 %v10798
      %v11446 = vunpack.c.l.b16 %v10799
      %v11447 = vunpack.c.h.b16 %v10799
      %v11448 = vunpack.c.l.b16 %v10800
      %v11449 = vunpack.c.h.b16 %v10800
      %v11450 = vunpack.c.l.b16 %v10801
      %v11451 = vunpack.c.h.b16 %v10801
      %v11452 = vunpack.c.l.b16 %v10802
      %v11453 = vunpack.c.h.b16 %v10802
      %v11454 = vunpack.c.l.b16 %v10803
      %v11455 = vunpack.c.h.b16 %v10803
      %v11456 = vunpack.c.l.b16 %v10804
      %v11457 = vunpack.c.h.b16 %v10804
      %v11458 = vunpack.c.l.b16 %v10805
      %v11459 = vunpack.c.h.b16 %v10805
      %v11460 = vunpack.c.l.b16 %v10806
      %v11461 = vunpack.c.h.b16 %v10806
      %v11462 = vunpack.c.l.b16 %v10807
      %v11463 = vunpack.c.h.b16 %v10807
      %v11464 = vunpack.c.l.b16 %v10808
      %v11465 = vunpack.c.h.b16 %v10808
      %v11466 = vunpack.c.l.b16 %v10809
      %v11467 = vunpack.c.h.b16 %v10809
      %v11468 = vunpack.c.l.b16 %v10810
      %v11469 = vunpack.c.h.b16 %v10810
      %v11470 = vunpack.c.l.b16 %v10811
      %v11471 = vunpack.c.h.b16 %v10811
      %v11472 = vunpack.c.l.b16 %v10812
      %v11473 = vunpack.c.h.b16 %v10812
      %v11474 = vunpack.c.l.b16 %v10813
      %v11475 = vunpack.c.h.b16 %v10813
      %v11476 = vunpack.c.l.b16 %v10814
      %v11477 = vunpack.c.h.b16 %v10814
      %v11478 = vunpack.c.l.b16 %v10815
      %v11479 = vunpack.c.h.b16 %v10815
      %v11480 = vunpack.c.l.b16 %v10816
      %v11481 = vunpack.c.h.b16 %v10816
      %v11482 = vunpack.c.l.b16 %v10817
      %v11483 = vunpack.c.h.b16 %v10817
      %v11484 = vunpack.c.l.b16 %v10818
      %v11485 = vunpack.c.h.b16 %v10818
      %v11486 = vunpack.c.l.b16 %v10819
      %v11487 = vunpack.c.h.b16 %v10819
      %v11488 = vunpack.c.l.b16 %v10820
      %v11489 = vunpack.c.h.b16 %v10820
      %v11490 = vunpack.c.l.b16 %v10821
      %v11491 = vunpack.c.h.b16 %v10821
      %v11492 = vunpack.c.l.b16 %v10822
      %v11493 = vunpack.c.h.b16 %v10822
      %v11494 = vunpack.c.l.b16 %v10823
      %v11495 = vunpack.c.h.b16 %v10823
      %v11496 = vunpack.c.l.b16 %v10824
      %v11497 = vunpack.c.h.b16 %v10824
      %v11498 = vunpack.c.l.b16 %v10825
      %v11499 = vunpack.c.h.b16 %v10825
      %v11500 = vunpack.c.l.b16 %v10826
      %v11501 = vunpack.c.h.b16 %v10826
      %v11502 = vunpack.c.l.b16 %v10827
      %v11503 = vunpack.c.h.b16 %v10827
      %v11504 = vunpack.c.l.b16 %v10828
      %v11505 = vunpack.c.h.b16 %v10828
      %v11506 = vunpack.c.l.b16 %v10829
      %v11507 = vunpack.c.h.b16 %v10829
      %v11508 = vunpack.c.l.b16 %v10830
      %v11509 = vunpack.c.h.b16 %v10830
      %v11510 = vunpack.c.l.b16 %v10831
      %v11511 = vunpack.c.h.b16 %v10831
      %v11512 = vunpack.c.l.b16 %v10832
      %v11513 = vunpack.c.h.b16 %v10832
      %v11514 = vunpack.c.l.b16 %v10833
      %v11515 = vunpack.c.h.b16 %v10833
      %v11516 = vunpack.c.l.b16 %v10834
      %v11517 = vunpack.c.h.b16 %v10834
      %v11518 = vunpack.c.l.b16 %v10835
      %v11519 = vunpack.c.h.b16 %v10835
      %v11520 = vunpack.c.l.b16 %v10836
      %v11521 = vunpack.c.h.b16 %v10836
      %v11522 = vunpack.c.l.b16 %v10837
      %v11523 = vunpack.c.h.b16 %v10837
      %v11524 = vunpack.c.l.b16 %v10838
      %v11525 = vunpack.c.h.b16 %v10838
      %v11526 = vunpack.c.l.b16 %v10839
      %v11527 = vunpack.c.h.b16 %v10839
      %v11528 = vunpack.c.l.b16 %v10840
      %v11529 = vunpack.c.h.b16 %v10840
      %v11530 = vunpack.c.l.b16 %v10841
      %v11531 = vunpack.c.h.b16 %v10841
      %v11532 = vunpack.c.l.b16 %v10842
      %v11533 = vunpack.c.h.b16 %v10842
      %v11534 = vunpack.c.l.b16 %v10843
      %v11535 = vunpack.c.h.b16 %v10843
      %v11536 = vunpack.c.l.b16 %v10844
      %v11537 = vunpack.c.h.b16 %v10844
      %v11538 = vunpack.c.l.b16 %v10845
      %v11539 = vunpack.c.h.b16 %v10845
      %v11540 = vunpack.c.l.b16 %v10846
      %v11541 = vunpack.c.h.b16 %v10846
      %v11542 = vunpack.c.l.b16 %v10847
      %v11543 = vunpack.c.h.b16 %v10847
      %v11544 = vunpack.c.l.b16 %v10848
      %v11545 = vunpack.c.h.b16 %v10848
      %v11546 = vunpack.c.l.b16 %v10849
      %v11547 = vunpack.c.h.b16 %v10849
      %v11548 = vunpack.c.l.b16 %v10850
      %v11549 = vunpack.c.h.b16 %v10850
      %v11550 = vunpack.c.l.b16 %v10851
      %v11551 = vunpack.c.h.b16 %v10851
      %v11552 = vunpack.c.l.b16 %v10852
      %v11553 = vunpack.c.h.b16 %v10852
      %v11554 = vunpack.c.l.b16 %v10853
      %v11555 = vunpack.c.h.b16 %v10853
      %v11556 = vunpack.c.l.b16 %v10854
      %v11557 = vunpack.c.h.b16 %v10854
      %v11558 = vunpack.c.l.b16 %v10855
      %v11559 = vunpack.c.h.b16 %v10855
      %v11560 = vunpack.c.l.b16 %v10856
      %v11561 = vunpack.c.h.b16 %v10856
      %v11562 = vunpack.c.l.b16 %v10857
      %v11563 = vunpack.c.h.b16 %v10857
      %v11564 = vunpack.c.l.b16 %v10858
      %v11565 = vunpack.c.h.b16 %v10858
      %v11566 = vunpack.c.l.b16 %v10859
      %v11567 = vunpack.c.h.b16 %v10859
      %v11568 = vunpack.c.l.b16 %v10860
      %v11569 = vunpack.c.h.b16 %v10860
      %v11570 = vunpack.c.l.b16 %v10861
      %v11571 = vunpack.c.h.b16 %v10861
      %v11572 = vunpack.c.l.b16 %v10862
      %v11573 = vunpack.c.h.b16 %v10862
      %v11574 = vunpack.c.l.b16 %v10863
      %v11575 = vunpack.c.h.b16 %v10863
      %v11576 = vunpack.c.l.b16 %v10864
      %v11577 = vunpack.c.h.b16 %v10864
      %v11578 = vunpack.c.l.b16 %v10865
      %v11579 = vunpack.c.h.b16 %v10865
      %v11580 = vunpack.c.l.b16 %v10866
      %v11581 = vunpack.c.h.b16 %v10866
      %v11582 = vunpack.c.l.b16 %v10867
      %v11583 = vunpack.c.h.b16 %v10867
      %v11584 = vunpack.c.l.b16 %v10868
      %v11585 = vunpack.c.h.b16 %v10868
      %v11586 = vunpack.c.l.b16 %v10869
      %v11587 = vunpack.c.h.b16 %v10869
      %v11588 = vunpack.c.l.b16 %v10870
      %v11589 = vunpack.c.h.b16 %v10870
      %v11590 = vunpack.c.l.b16 %v10871
      %v11591 = vunpack.c.h.b16 %v10871
      %v11592 = vunpack.c.l.b16 %v10872
      %v11593 = vunpack.c.h.b16 %v10872
      %v11594 = vunpack.c.l.b16 %v10873
      %v11595 = vunpack.c.h.b16 %v10873
      %v11596 = vunpack.c.l.b16 %v10874
      %v11597 = vunpack.c.h.b16 %v10874
      %v11598 = vunpack.c.l.b16 %v10875
      %v11599 = vunpack.c.h.b16 %v10875
      %v11600 = vunpack.c.l.b16 %v10876
      %v11601 = vunpack.c.h.b16 %v10876
      %v11602 = vunpack.c.l.b16 %v10877
      %v11603 = vunpack.c.h.b16 %v10877
      %v11604 = vunpack.c.l.b16 %v10878
      %v11605 = vunpack.c.h.b16 %v10878
      %v11606 = vunpack.c.l.b16 %v10879
      %v11607 = vunpack.c.h.b16 %v10879
      %v11608 = vunpack.c.l.b16 %v10880
      %v11609 = vunpack.c.h.b16 %v10880
      %v11610 = vunpack.c.l.b16 %v10881
      %v11611 = vunpack.c.h.b16 %v10881
      %v11612 = vunpack.c.l.b16 %v10882
      %v11613 = vunpack.c.h.b16 %v10882
      %v11614 = vunpack.c.l.b16 %v10883
      %v11615 = vunpack.c.h.b16 %v10883
      %v11616 = vunpack.c.l.b16 %v10884
      %v11617 = vunpack.c.h.b16 %v10884
      %v11618 = vunpack.c.l.b16 %v10885
      %v11619 = vunpack.c.h.b16 %v10885
      %v11620 = vunpack.c.l.b16 %v10886
      %v11621 = vunpack.c.h.b16 %v10886
      %v11622 = vunpack.c.l.b16 %v10887
      %v11623 = vunpack.c.h.b16 %v10887
      %v11624 = vunpack.c.l.b16 %v10888
      %v11625 = vunpack.c.h.b16 %v10888
      %v11626 = vunpack.c.l.b16 %v10889
      %v11627 = vunpack.c.h.b16 %v10889
      %v11628 = vunpack.c.l.b16 %v10890
      %v11629 = vunpack.c.h.b16 %v10890
      %v11630 = vunpack.c.l.b16 %v10891
      %v11631 = vunpack.c.h.b16 %v10891
      %v11632 = vunpack.c.l.b16 %v10892
      %v11633 = vunpack.c.h.b16 %v10892
      %v11634 = vunpack.c.l.b16 %v10893
      %v11635 = vunpack.c.h.b16 %v10893
      %v11636 = vunpack.c.l.b16 %v10894
      %v11637 = vunpack.c.h.b16 %v10894
      %v11638 = vunpack.c.l.b16 %v10895
      %v11639 = vunpack.c.h.b16 %v10895
      %v11640 = vunpack.c.l.b16 %v10896
      %v11641 = vunpack.c.h.b16 %v10896
      %v11642 = vunpack.c.l.b16 %v10897
      %v11643 = vunpack.c.h.b16 %v10897
      %v11644 = vunpack.c.l.b16 %v10898
      %v11645 = vunpack.c.h.b16 %v10898
      %v11646 = vunpack.c.l.b16 %v10899
      %v11647 = vunpack.c.h.b16 %v10899
      %v11648 = vunpack.c.l.b16 %v10900
      %v11649 = vunpack.c.h.b16 %v10900
      %v11650 = vunpack.c.l.b16 %v10901
      %v11651 = vunpack.c.h.b16 %v10901
      %v11652 = vunpack.c.l.b16 %v10902
      %v11653 = vunpack.c.h.b16 %v10902
      %v11654 = vunpack.c.l.b16 %v10903
      %v11655 = vunpack.c.h.b16 %v10903
      %v11656 = vunpack.c.l.b16 %v10904
      %v11657 = vunpack.c.h.b16 %v10904
      %v11658 = vunpack.c.l.b16 %v10905
      %v11659 = vunpack.c.h.b16 %v10905
      %v11660 = vunpack.c.l.b16 %v10906
      %v11661 = vunpack.c.h.b16 %v10906
      %v11662 = vunpack.c.l.b16 %v10907
      %v11663 = vunpack.c.h.b16 %v10907
      %v11664 = vunpack.c.l.b16 %v10908
      %v11665 = vunpack.c.h.b16 %v10908
      %v11666 = vunpack.c.l.b16 %v10909
      %v11667 = vunpack.c.h.b16 %v10909
      %v11668 = vunpack.c.l.b16 %v10910
      %v11669 = vunpack.c.h.b16 %v10910
      %v11670 = vunpack.c.l.b16 %v10911
      %v11671 = vunpack.c.h.b16 %v10911
      %v11672 = vunpack.c.l.b16 %v10912
      %v11673 = vunpack.c.h.b16 %v10912
      %v11674 = vunpack.c.l.b16 %v10913
      %v11675 = vunpack.c.h.b16 %v10913
      %v11676 = vunpack.c.l.b16 %v10914
      %v11677 = vunpack.c.h.b16 %v10914
      %v11678 = vunpack.c.l.b16 %v10915
      %v11679 = vunpack.c.h.b16 %v10915
      %v11680 = vunpack.c.l.b16 %v10916
      %v11681 = vunpack.c.h.b16 %v10916
      %v11682 = vunpack.c.l.b16 %v10917
      %v11683 = vunpack.c.h.b16 %v10917
      %v11684 = vunpack.c.l.b16 %v10918
      %v11685 = vunpack.c.h.b16 %v10918
      %v11686 = vunpack.c.l.b16 %v10919
      %v11687 = vunpack.c.h.b16 %v10919
      %v11688 = vpack.c.b16 %v11180, %v11176
      %v11689 = vpack.c.b16 %v11181, %v11177
      %v11690 = vpack.c.b16 %v11182, %v11178
      %v11691 = vpack.c.b16 %v11183, %v11179
      %v11692 = vpack.c.b16 %v11188, %v11184
      %v11693 = vpack.c.b16 %v11189, %v11185
      %v11694 = vpack.c.b16 %v11190, %v11186
      %v11695 = vpack.c.b16 %v11191, %v11187
      %v11696 = vpack.c.b16 %v11196, %v11192
      %v11697 = vpack.c.b16 %v11197, %v11193
      %v11698 = vpack.c.b16 %v11198, %v11194
      %v11699 = vpack.c.b16 %v11199, %v11195
      %v11700 = vpack.c.b16 %v11204, %v11200
      %v11701 = vpack.c.b16 %v11205, %v11201
      %v11702 = vpack.c.b16 %v11206, %v11202
      %v11703 = vpack.c.b16 %v11207, %v11203
      %v11704 = vpack.c.b16 %v11212, %v11208
      %v11705 = vpack.c.b16 %v11213, %v11209
      %v11706 = vpack.c.b16 %v11214, %v11210
      %v11707 = vpack.c.b16 %v11215, %v11211
      %v11708 = vpack.c.b16 %v11220, %v11216
      %v11709 = vpack.c.b16 %v11221, %v11217
      %v11710 = vpack.c.b16 %v11222, %v11218
      %v11711 = vpack.c.b16 %v11223, %v11219
      %v11712 = vpack.c.b16 %v11228, %v11224
      %v11713 = vpack.c.b16 %v11229, %v11225
      %v11714 = vpack.c.b16 %v11230, %v11226
      %v11715 = vpack.c.b16 %v11231, %v11227
      %v11716 = vpack.c.b16 %v11236, %v11232
      %v11717 = vpack.c.b16 %v11237, %v11233
      %v11718 = vpack.c.b16 %v11238, %v11234
      %v11719 = vpack.c.b16 %v11239, %v11235
      %v11720 = vpack.c.b16 %v11244, %v11240
      %v11721 = vpack.c.b16 %v11245, %v11241
      %v11722 = vpack.c.b16 %v11246, %v11242
      %v11723 = vpack.c.b16 %v11247, %v11243
      %v11724 = vpack.c.b16 %v11252, %v11248
      %v11725 = vpack.c.b16 %v11253, %v11249
      %v11726 = vpack.c.b16 %v11254, %v11250
      %v11727 = vpack.c.b16 %v11255, %v11251
      %v11728 = vpack.c.b16 %v11260, %v11256
      %v11729 = vpack.c.b16 %v11261, %v11257
      %v11730 = vpack.c.b16 %v11262, %v11258
      %v11731 = vpack.c.b16 %v11263, %v11259
      %v11732 = vpack.c.b16 %v11268, %v11264
      %v11733 = vpack.c.b16 %v11269, %v11265
      %v11734 = vpack.c.b16 %v11270, %v11266
      %v11735 = vpack.c.b16 %v11271, %v11267
      %v11736 = vpack.c.b16 %v11276, %v11272
      %v11737 = vpack.c.b16 %v11277, %v11273
      %v11738 = vpack.c.b16 %v11278, %v11274
      %v11739 = vpack.c.b16 %v11279, %v11275
      %v11740 = vpack.c.b16 %v11284, %v11280
      %v11741 = vpack.c.b16 %v11285, %v11281
      %v11742 = vpack.c.b16 %v11286, %v11282
      %v11743 = vpack.c.b16 %v11287, %v11283
      %v11744 = vpack.c.b16 %v11292, %v11288
      %v11745 = vpack.c.b16 %v11293, %v11289
      %v11746 = vpack.c.b16 %v11294, %v11290
      %v11747 = vpack.c.b16 %v11295, %v11291
      %v11748 = vpack.c.b16 %v11300, %v11296
      %v11749 = vpack.c.b16 %v11301, %v11297
      %v11750 = vpack.c.b16 %v11302, %v11298
      %v11751 = vpack.c.b16 %v11303, %v11299
      %v11752 = vpack.c.b16 %v11308, %v11304
      %v11753 = vpack.c.b16 %v11309, %v11305
      %v11754 = vpack.c.b16 %v11310, %v11306
      %v11755 = vpack.c.b16 %v11311, %v11307
      %v11756 = vpack.c.b16 %v11316, %v11312
      %v11757 = vpack.c.b16 %v11317, %v11313
      %v11758 = vpack.c.b16 %v11318, %v11314
      %v11759 = vpack.c.b16 %v11319, %v11315
      %v11760 = vpack.c.b16 %v11324, %v11320
      %v11761 = vpack.c.b16 %v11325, %v11321
      %v11762 = vpack.c.b16 %v11326, %v11322
      %v11763 = vpack.c.b16 %v11327, %v11323
      %v11764 = vpack.c.b16 %v11332, %v11328
      %v11765 = vpack.c.b16 %v11333, %v11329
      %v11766 = vpack.c.b16 %v11334, %v11330
      %v11767 = vpack.c.b16 %v11335, %v11331
      %v11768 = vpack.c.b16 %v11340, %v11336
      %v11769 = vpack.c.b16 %v11341, %v11337
      %v11770 = vpack.c.b16 %v11342, %v11338
      %v11771 = vpack.c.b16 %v11343, %v11339
      %v11772 = vpack.c.b16 %v11348, %v11344
      %v11773 = vpack.c.b16 %v11349, %v11345
      %v11774 = vpack.c.b16 %v11350, %v11346
      %v11775 = vpack.c.b16 %v11351, %v11347
      %v11776 = vpack.c.b16 %v11356, %v11352
      %v11777 = vpack.c.b16 %v11357, %v11353
      %v11778 = vpack.c.b16 %v11358, %v11354
      %v11779 = vpack.c.b16 %v11359, %v11355
      %v11780 = vpack.c.b16 %v11364, %v11360
      %v11781 = vpack.c.b16 %v11365, %v11361
      %v11782 = vpack.c.b16 %v11366, %v11362
      %v11783 = vpack.c.b16 %v11367, %v11363
      %v11784 = vpack.c.b16 %v11372, %v11368
      %v11785 = vpack.c.b16 %v11373, %v11369
      %v11786 = vpack.c.b16 %v11374, %v11370
      %v11787 = vpack.c.b16 %v11375, %v11371
      %v11788 = vpack.c.b16 %v11380, %v11376
      %v11789 = vpack.c.b16 %v11381, %v11377
      %v11790 = vpack.c.b16 %v11382, %v11378
      %v11791 = vpack.c.b16 %v11383, %v11379
      %v11792 = vpack.c.b16 %v11388, %v11384
      %v11793 = vpack.c.b16 %v11389, %v11385
      %v11794 = vpack.c.b16 %v11390, %v11386
      %v11795 = vpack.c.b16 %v11391, %v11387
      %v11796 = vpack.c.b16 %v11396, %v11392
      %v11797 = vpack.c.b16 %v11397, %v11393
      %v11798 = vpack.c.b16 %v11398, %v11394
      %v11799 = vpack.c.b16 %v11399, %v11395
      %v11800 = vpack.c.b16 %v11404, %v11400
      %v11801 = vpack.c.b16 %v11405, %v11401
      %v11802 = vpack.c.b16 %v11406, %v11402
      %v11803 = vpack.c.b16 %v11407, %v11403
      %v11804 = vpack.c.b16 %v11412, %v11408
      %v11805 = vpack.c.b16 %v11413, %v11409
      %v11806 = vpack.c.b16 %v11414, %v11410
      %v11807 = vpack.c.b16 %v11415, %v11411
      %v11808 = vpack.c.b16 %v11420, %v11416
      %v11809 = vpack.c.b16 %v11421, %v11417
      %v11810 = vpack.c.b16 %v11422, %v11418
      %v11811 = vpack.c.b16 %v11423, %v11419
      %v11812 = vpack.c.b16 %v11428, %v11424
      %v11813 = vpack.c.b16 %v11429, %v11425
      %v11814 = vpack.c.b16 %v11430, %v11426
      %v11815 = vpack.c.b16 %v11431, %v11427
      %v11816 = vpack.c.b16 %v11436, %v11432
      %v11817 = vpack.c.b16 %v11437, %v11433
      %v11818 = vpack.c.b16 %v11438, %v11434
      %v11819 = vpack.c.b16 %v11439, %v11435
      %v11820 = vpack.c.b16 %v11444, %v11440
      %v11821 = vpack.c.b16 %v11445, %v11441
      %v11822 = vpack.c.b16 %v11446, %v11442
      %v11823 = vpack.c.b16 %v11447, %v11443
      %v11824 = vpack.c.b16 %v11452, %v11448
      %v11825 = vpack.c.b16 %v11453, %v11449
      %v11826 = vpack.c.b16 %v11454, %v11450
      %v11827 = vpack.c.b16 %v11455, %v11451
      %v11828 = vpack.c.b16 %v11460, %v11456
      %v11829 = vpack.c.b16 %v11461, %v11457
      %v11830 = vpack.c.b16 %v11462, %v11458
      %v11831 = vpack.c.b16 %v11463, %v11459
      %v11832 = vpack.c.b16 %v11468, %v11464
      %v11833 = vpack.c.b16 %v11469, %v11465
      %v11834 = vpack.c.b16 %v11470, %v11466
      %v11835 = vpack.c.b16 %v11471, %v11467
      %v11836 = vpack.c.b16 %v11476, %v11472
      %v11837 = vpack.c.b16 %v11477, %v11473
      %v11838 = vpack.c.b16 %v11478, %v11474
      %v11839 = vpack.c.b16 %v11479, %v11475
      %v11840 = vpack.c.b16 %v11484, %v11480
      %v11841 = vpack.c.b16 %v11485, %v11481
      %v11842 = vpack.c.b16 %v11486, %v11482
      %v11843 = vpack.c.b16 %v11487, %v11483
      %v11844 = vpack.c.b16 %v11492, %v11488
      %v11845 = vpack.c.b16 %v11493, %v11489
      %v11846 = vpack.c.b16 %v11494, %v11490
      %v11847 = vpack.c.b16 %v11495, %v11491
      %v11848 = vpack.c.b16 %v11500, %v11496
      %v11849 = vpack.c.b16 %v11501, %v11497
      %v11850 = vpack.c.b16 %v11502, %v11498
      %v11851 = vpack.c.b16 %v11503, %v11499
      %v11852 = vpack.c.b16 %v11508, %v11504
      %v11853 = vpack.c.b16 %v11509, %v11505
      %v11854 = vpack.c.b16 %v11510, %v11506
      %v11855 = vpack.c.b16 %v11511, %v11507
      %v11856 = vpack.c.b16 %v11516, %v11512
      %v11857 = vpack.c.b16 %v11517, %v11513
      %v11858 = vpack.c.b16 %v11518, %v11514
      %v11859 = vpack.c.b16 %v11519, %v11515
      %v11860 = vpack.c.b16 %v11524, %v11520
      %v11861 = vpack.c.b16 %v11525, %v11521
      %v11862 = vpack.c.b16 %v11526, %v11522
      %v11863 = vpack.c.b16 %v11527, %v11523
      %v11864 = vpack.c.b16 %v11532, %v11528
      %v11865 = vpack.c.b16 %v11533, %v11529
      %v11866 = vpack.c.b16 %v11534, %v11530
      %v11867 = vpack.c.b16 %v11535, %v11531
      %v11868 = vpack.c.b16 %v11540, %v11536
      %v11869 = vpack.c.b16 %v11541, %v11537
      %v11870 = vpack.c.b16 %v11542, %v11538
      %v11871 = vpack.c.b16 %v11543, %v11539
      %v11872 = vpack.c.b16 %v11548, %v11544
      %v11873 = vpack.c.b16 %v11549, %v11545
      %v11874 = vpack.c.b16 %v11550, %v11546
      %v11875 = vpack.c.b16 %v11551, %v11547
      %v11876 = vpack.c.b16 %v11556, %v11552
      %v11877 = vpack.c.b16 %v11557, %v11553
      %v11878 = vpack.c.b16 %v11558, %v11554
      %v11879 = vpack.c.b16 %v11559, %v11555
      %v11880 = vpack.c.b16 %v11564, %v11560
      %v11881 = vpack.c.b16 %v11565, %v11561
      %v11882 = vpack.c.b16 %v11566, %v11562
      %v11883 = vpack.c.b16 %v11567, %v11563
      %v11884 = vpack.c.b16 %v11572, %v11568
      %v11885 = vpack.c.b16 %v11573, %v11569
      %v11886 = vpack.c.b16 %v11574, %v11570
      %v11887 = vpack.c.b16 %v11575, %v11571
      %v11888 = vpack.c.b16 %v11580, %v11576
      %v11889 = vpack.c.b16 %v11581, %v11577
      %v11890 = vpack.c.b16 %v11582, %v11578
      %v11891 = vpack.c.b16 %v11583, %v11579
      %v11892 = vpack.c.b16 %v11588, %v11584
      %v11893 = vpack.c.b16 %v11589, %v11585
      %v11894 = vpack.c.b16 %v11590, %v11586
      %v11895 = vpack.c.b16 %v11591, %v11587
      %v11896 = vpack.c.b16 %v11596, %v11592
      %v11897 = vpack.c.b16 %v11597, %v11593
      %v11898 = vpack.c.b16 %v11598, %v11594
      %v11899 = vpack.c.b16 %v11599, %v11595
      %v11900 = vpack.c.b16 %v11604, %v11600
      %v11901 = vpack.c.b16 %v11605, %v11601
      %v11902 = vpack.c.b16 %v11606, %v11602
      %v11903 = vpack.c.b16 %v11607, %v11603
      %v11904 = vpack.c.b16 %v11612, %v11608
      %v11905 = vpack.c.b16 %v11613, %v11609
      %v11906 = vpack.c.b16 %v11614, %v11610
      %v11907 = vpack.c.b16 %v11615, %v11611
      %v11908 = vpack.c.b16 %v11620, %v11616
      %v11909 = vpack.c.b16 %v11621, %v11617
      %v11910 = vpack.c.b16 %v11622, %v11618
      %v11911 = vpack.c.b16 %v11623, %v11619
      %v11912 = vpack.c.b16 %v11628, %v11624
      %v11913 = vpack.c.b16 %v11629, %v11625
      %v11914 = vpack.c.b16 %v11630, %v11626
      %v11915 = vpack.c.b16 %v11631, %v11627
      %v11916 = vpack.c.b16 %v11636, %v11632
      %v11917 = vpack.c.b16 %v11637, %v11633
      %v11918 = vpack.c.b16 %v11638, %v11634
      %v11919 = vpack.c.b16 %v11639, %v11635
      %v11920 = vpack.c.b16 %v11644, %v11640
      %v11921 = vpack.c.b16 %v11645, %v11641
      %v11922 = vpack.c.b16 %v11646, %v11642
      %v11923 = vpack.c.b16 %v11647, %v11643
      %v11924 = vpack.c.b16 %v11652, %v11648
      %v11925 = vpack.c.b16 %v11653, %v11649
      %v11926 = vpack.c.b16 %v11654, %v11650
      %v11927 = vpack.c.b16 %v11655, %v11651
      %v11928 = vpack.c.b16 %v11660, %v11656
      %v11929 = vpack.c.b16 %v11661, %v11657
      %v11930 = vpack.c.b16 %v11662, %v11658
      %v11931 = vpack.c.b16 %v11663, %v11659
      %v11932 = vpack.c.b16 %v11668, %v11664
      %v11933 = vpack.c.b16 %v11669, %v11665
      %v11934 = vpack.c.b16 %v11670, %v11666
      %v11935 = vpack.c.b16 %v11671, %v11667
      %v11936 = vpack.c.b16 %v11676, %v11672
      %v11937 = vpack.c.b16 %v11677, %v11673
      %v11938 = vpack.c.b16 %v11678, %v11674
      %v11939 = vpack.c.b16 %v11679, %v11675
      %v11940 = vpack.c.b16 %v11684, %v11680
      %v11941 = vpack.c.b16 %v11685, %v11681
      %v11942 = vpack.c.b16 %v11686, %v11682
      %v11943 = vpack.c.b16 %v11687, %v11683
      %12200 = vmatpush.bf16.msra.mxu0 %v11716
      %12201 = vmatpush.bf16.msra.mxu0 %v11712
      %12202 = vmatpush.bf16.msra.mxu0 %v11708
      %12203 = vmatpush.bf16.msra.mxu0 %v11704
      %12204 = vmatpush.bf16.msra.mxu0 %v11700
      %12205 = vmatpush.bf16.msra.mxu0 %v11696
      %12206 = vmatpush.bf16.msra.mxu0 %v11692
      %12207 = vmatpush.bf16.msra.mxu0 %v11688
      %12208 = vmatmul.bf16.gmra.mxu0 %v10656
      %v12209 = vpop.f32.mrf.mxu0
      %v12210 = vadd.f32 0.0, %v12209
      %v12211 = vpop.f32.mrf.mxu0
      %v12212 = vadd.f32 0.0, %v12211
      %12213 = vdwg.mxu0
      %12214 = vmatpush.bf16.msra.mxu0 %v11748
      %12215 = vmatpush.bf16.msra.mxu0 %v11744
      %12216 = vmatpush.bf16.msra.mxu0 %v11740
      %12217 = vmatpush.bf16.msra.mxu0 %v11736
      %12218 = vmatpush.bf16.msra.mxu0 %v11732
      %12219 = vmatpush.bf16.msra.mxu0 %v11728
      %12220 = vmatpush.bf16.msra.mxu0 %v11724
      %12221 = vmatpush.bf16.msra.mxu0 %v11720
      %12222 = vmatmul.bf16.gmra.mxu0 %v10657
      %v12223 = vpop.f32.mrf.mxu0
      %v12224 = vadd.f32 %v12210, %v12223
      %v12225 = vpop.f32.mrf.mxu0
      %v12226 = vadd.f32 %v12212, %v12225
      %12227 = vdwg.mxu0
      %12228 = vmatpush.bf16.msra.mxu0 %v11780
      %12229 = vmatpush.bf16.msra.mxu0 %v11776
      %12230 = vmatpush.bf16.msra.mxu0 %v11772
      %12231 = vmatpush.bf16.msra.mxu0 %v11768
      %12232 = vmatpush.bf16.msra.mxu0 %v11764
      %12233 = vmatpush.bf16.msra.mxu0 %v11760
      %12234 = vmatpush.bf16.msra.mxu0 %v11756
      %12235 = vmatpush.bf16.msra.mxu0 %v11752
      %12236 = vmatmul.bf16.gmra.mxu0 %v10658
      %v12237 = vpop.f32.mrf.mxu0
      %v12238 = vadd.f32 %v12224, %v12237
      %v12239 = vpop.f32.mrf.mxu0
      %v12240 = vadd.f32 %v12226, %v12239
      %12241 = vdwg.mxu0
      %12242 = vmatpush.bf16.msra.mxu0 %v11812
      %12243 = vmatpush.bf16.msra.mxu0 %v11808
      %12244 = vmatpush.bf16.msra.mxu0 %v11804
      %12245 = vmatpush.bf16.msra.mxu0 %v11800
      %12246 = vmatpush.bf16.msra.mxu0 %v11796
      %12247 = vmatpush.bf16.msra.mxu0 %v11792
      %12248 = vmatpush.bf16.msra.mxu0 %v11788
      %12249 = vmatpush.bf16.msra.mxu0 %v11784
      %12250 = vmatmul.bf16.gmra.mxu0 %v10659
      %v12251 = vpop.f32.mrf.mxu0
      %v12252 = vadd.f32 %v12238, %v12251
      %v12253 = vpop.f32.mrf.mxu0
      %v12254 = vadd.f32 %v12240, %v12253
      %12255 = vdwg.mxu0
      %12256 = vmatpush.bf16.msra.mxu0 %v11844
      %12257 = vmatpush.bf16.msra.mxu0 %v11840
      %12258 = vmatpush.bf16.msra.mxu0 %v11836
      %12259 = vmatpush.bf16.msra.mxu0 %v11832
      %12260 = vmatpush.bf16.msra.mxu0 %v11828
      %12261 = vmatpush.bf16.msra.mxu0 %v11824
      %12262 = vmatpush.bf16.msra.mxu0 %v11820
      %12263 = vmatpush.bf16.msra.mxu0 %v11816
      %12264 = vmatmul.bf16.gmra.mxu0 %v10660
      %v12265 = vpop.f32.mrf.mxu0
      %v12266 = vadd.f32 %v12252, %v12265
      %v12267 = vpop.f32.mrf.mxu0
      %v12268 = vadd.f32 %v12254, %v12267
      %12269 = vdwg.mxu0
      %12270 = vmatpush.bf16.msra.mxu0 %v11876
      %12271 = vmatpush.bf16.msra.mxu0 %v11872
      %12272 = vmatpush.bf16.msra.mxu0 %v11868
      %12273 = vmatpush.bf16.msra.mxu0 %v11864
      %12274 = vmatpush.bf16.msra.mxu0 %v11860
      %12275 = vmatpush.bf16.msra.mxu0 %v11856
      %12276 = vmatpush.bf16.msra.mxu0 %v11852
      %12277 = vmatpush.bf16.msra.mxu0 %v11848
      %12278 = vmatmul.bf16.gmra.mxu0 %v10661
      %v12279 = vpop.f32.mrf.mxu0
      %v12280 = vadd.f32 %v12266, %v12279
      %v12281 = vpop.f32.mrf.mxu0
      %v12282 = vadd.f32 %v12268, %v12281
      %12283 = vdwg.mxu0
      %12284 = vmatpush.bf16.msra.mxu0 %v11908
      %12285 = vmatpush.bf16.msra.mxu0 %v11904
      %12286 = vmatpush.bf16.msra.mxu0 %v11900
      %12287 = vmatpush.bf16.msra.mxu0 %v11896
      %12288 = vmatpush.bf16.msra.mxu0 %v11892
      %12289 = vmatpush.bf16.msra.mxu0 %v11888
      %12290 = vmatpush.bf16.msra.mxu0 %v11884
      %12291 = vmatpush.bf16.msra.mxu0 %v11880
      %12292 = vmatmul.bf16.gmra.mxu0 %v10662
      %v12293 = vpop.f32.mrf.mxu0
      %v12294 = vadd.f32 %v12280, %v12293
      %v12295 = vpop.f32.mrf.mxu0
      %v12296 = vadd.f32 %v12282, %v12295
      %12297 = vdwg.mxu0
      %12298 = vmatpush.bf16.msra.mxu0 %v11940
      %12299 = vmatpush.bf16.msra.mxu0 %v11936
      %12300 = vmatpush.bf16.msra.mxu0 %v11932
      %12301 = vmatpush.bf16.msra.mxu0 %v11928
      %12302 = vmatpush.bf16.msra.mxu0 %v11924
      %12303 = vmatpush.bf16.msra.mxu0 %v11920
      %12304 = vmatpush.bf16.msra.mxu0 %v11916
      %12305 = vmatpush.bf16.msra.mxu0 %v11912
      %12306 = vmatmul.bf16.gmra.mxu0 %v10663
      %v12307 = vpop.f32.mrf.mxu0
      %v12308 = vadd.f32 %v12294, %v12307
      %v12309 = vpop.f32.mrf.mxu0
      %v12310 = vadd.f32 %v12296, %v12309
      %12311 = vdwg.mxu0
      %12312 = vmatpush.bf16.msra.mxu0 %v11717
      %12313 = vmatpush.bf16.msra.mxu0 %v11713
      %12314 = vmatpush.bf16.msra.mxu0 %v11709
      %12315 = vmatpush.bf16.msra.mxu0 %v11705
      %12316 = vmatpush.bf16.msra.mxu0 %v11701
      %12317 = vmatpush.bf16.msra.mxu0 %v11697
      %12318 = vmatpush.bf16.msra.mxu0 %v11693
      %12319 = vmatpush.bf16.msra.mxu0 %v11689
      %12320 = vmatmul.bf16.gmra.mxu0 %v10656
      %v12321 = vpop.f32.mrf.mxu0
      %v12322 = vadd.f32 0.0, %v12321
      %v12323 = vpop.f32.mrf.mxu0
      %v12324 = vadd.f32 0.0, %v12323
      %12325 = vdwg.mxu0
      %12326 = vmatpush.bf16.msra.mxu0 %v11749
      %12327 = vmatpush.bf16.msra.mxu0 %v11745
      %12328 = vmatpush.bf16.msra.mxu0 %v11741
      %12329 = vmatpush.bf16.msra.mxu0 %v11737
      %12330 = vmatpush.bf16.msra.mxu0 %v11733
      %12331 = vmatpush.bf16.msra.mxu0 %v11729
      %12332 = vmatpush.bf16.msra.mxu0 %v11725
      %12333 = vmatpush.bf16.msra.mxu0 %v11721
      %12334 = vmatmul.bf16.gmra.mxu0 %v10657
      %v12335 = vpop.f32.mrf.mxu0
      %v12336 = vadd.f32 %v12322, %v12335
      %v12337 = vpop.f32.mrf.mxu0
      %v12338 = vadd.f32 %v12324, %v12337
      %12339 = vdwg.mxu0
      %12340 = vmatpush.bf16.msra.mxu0 %v11781
      %12341 = vmatpush.bf16.msra.mxu0 %v11777
      %12342 = vmatpush.bf16.msra.mxu0 %v11773
      %12343 = vmatpush.bf16.msra.mxu0 %v11769
      %12344 = vmatpush.bf16.msra.mxu0 %v11765
      %12345 = vmatpush.bf16.msra.mxu0 %v11761
      %12346 = vmatpush.bf16.msra.mxu0 %v11757
      %12347 = vmatpush.bf16.msra.mxu0 %v11753
      %12348 = vmatmul.bf16.gmra.mxu0 %v10658
      %v12349 = vpop.f32.mrf.mxu0
      %v12350 = vadd.f32 %v12336, %v12349
      %v12351 = vpop.f32.mrf.mxu0
      %v12352 = vadd.f32 %v12338, %v12351
      %12353 = vdwg.mxu0
      %12354 = vmatpush.bf16.msra.mxu0 %v11813
      %12355 = vmatpush.bf16.msra.mxu0 %v11809
      %12356 = vmatpush.bf16.msra.mxu0 %v11805
      %12357 = vmatpush.bf16.msra.mxu0 %v11801
      %12358 = vmatpush.bf16.msra.mxu0 %v11797
      %12359 = vmatpush.bf16.msra.mxu0 %v11793
      %12360 = vmatpush.bf16.msra.mxu0 %v11789
      %12361 = vmatpush.bf16.msra.mxu0 %v11785
      %12362 = vmatmul.bf16.gmra.mxu0 %v10659
      %v12363 = vpop.f32.mrf.mxu0
      %v12364 = vadd.f32 %v12350, %v12363
      %v12365 = vpop.f32.mrf.mxu0
      %v12366 = vadd.f32 %v12352, %v12365
      %12367 = vdwg.mxu0
      %12368 = vmatpush.bf16.msra.mxu0 %v11845
      %12369 = vmatpush.bf16.msra.mxu0 %v11841
      %12370 = vmatpush.bf16.msra.mxu0 %v11837
      %12371 = vmatpush.bf16.msra.mxu0 %v11833
      %12372 = vmatpush.bf16.msra.mxu0 %v11829
      %12373 = vmatpush.bf16.msra.mxu0 %v11825
      %12374 = vmatpush.bf16.msra.mxu0 %v11821
      %12375 = vmatpush.bf16.msra.mxu0 %v11817
      %12376 = vmatmul.bf16.gmra.mxu0 %v10660
      %v12377 = vpop.f32.mrf.mxu0
      %v12378 = vadd.f32 %v12364, %v12377
      %v12379 = vpop.f32.mrf.mxu0
      %v12380 = vadd.f32 %v12366, %v12379
      %12381 = vdwg.mxu0
      %12382 = vmatpush.bf16.msra.mxu0 %v11877
      %12383 = vmatpush.bf16.msra.mxu0 %v11873
      %12384 = vmatpush.bf16.msra.mxu0 %v11869
      %12385 = vmatpush.bf16.msra.mxu0 %v11865
      %12386 = vmatpush.bf16.msra.mxu0 %v11861
      %12387 = vmatpush.bf16.msra.mxu0 %v11857
      %12388 = vmatpush.bf16.msra.mxu0 %v11853
      %12389 = vmatpush.bf16.msra.mxu0 %v11849
      %12390 = vmatmul.bf16.gmra.mxu0 %v10661
      %v12391 = vpop.f32.mrf.mxu0
      %v12392 = vadd.f32 %v12378, %v12391
      %v12393 = vpop.f32.mrf.mxu0
      %v12394 = vadd.f32 %v12380, %v12393
      %12395 = vdwg.mxu0
      %12396 = vmatpush.bf16.msra.mxu0 %v11909
      %12397 = vmatpush.bf16.msra.mxu0 %v11905
      %12398 = vmatpush.bf16.msra.mxu0 %v11901
      %12399 = vmatpush.bf16.msra.mxu0 %v11897
      %12400 = vmatpush.bf16.msra.mxu0 %v11893
      %12401 = vmatpush.bf16.msra.mxu0 %v11889
      %12402 = vmatpush.bf16.msra.mxu0 %v11885
      %12403 = vmatpush.bf16.msra.mxu0 %v11881
      %12404 = vmatmul.bf16.gmra.mxu0 %v10662
      %v12405 = vpop.f32.mrf.mxu0
      %v12406 = vadd.f32 %v12392, %v12405
      %v12407 = vpop.f32.mrf.mxu0
      %v12408 = vadd.f32 %v12394, %v12407
      %12409 = vdwg.mxu0
      %12410 = vmatpush.bf16.msra.mxu0 %v11941
      %12411 = vmatpush.bf16.msra.mxu0 %v11937
      %12412 = vmatpush.bf16.msra.mxu0 %v11933
      %12413 = vmatpush.bf16.msra.mxu0 %v11929
      %12414 = vmatpush.bf16.msra.mxu0 %v11925
      %12415 = vmatpush.bf16.msra.mxu0 %v11921
      %12416 = vmatpush.bf16.msra.mxu0 %v11917
      %12417 = vmatpush.bf16.msra.mxu0 %v11913
      %12418 = vmatmul.bf16.gmra.mxu0 %v10663
      %v12419 = vpop.f32.mrf.mxu0
      %v12420 = vadd.f32 %v12406, %v12419
      %v12421 = vpop.f32.mrf.mxu0
      %v12422 = vadd.f32 %v12408, %v12421
      %12423 = vdwg.mxu0
      %12424 = vmatpush.bf16.msra.mxu0 %v11718
      %12425 = vmatpush.bf16.msra.mxu0 %v11714
      %12426 = vmatpush.bf16.msra.mxu0 %v11710
      %12427 = vmatpush.bf16.msra.mxu0 %v11706
      %12428 = vmatpush.bf16.msra.mxu0 %v11702
      %12429 = vmatpush.bf16.msra.mxu0 %v11698
      %12430 = vmatpush.bf16.msra.mxu0 %v11694
      %12431 = vmatpush.bf16.msra.mxu0 %v11690
      %12432 = vmatmul.bf16.gmra.mxu0 %v10656
      %v12433 = vpop.f32.mrf.mxu0
      %v12434 = vadd.f32 0.0, %v12433
      %v12435 = vpop.f32.mrf.mxu0
      %v12436 = vadd.f32 0.0, %v12435
      %12437 = vdwg.mxu0
      %12438 = vmatpush.bf16.msra.mxu0 %v11750
      %12439 = vmatpush.bf16.msra.mxu0 %v11746
      %12440 = vmatpush.bf16.msra.mxu0 %v11742
      %12441 = vmatpush.bf16.msra.mxu0 %v11738
      %12442 = vmatpush.bf16.msra.mxu0 %v11734
      %12443 = vmatpush.bf16.msra.mxu0 %v11730
      %12444 = vmatpush.bf16.msra.mxu0 %v11726
      %12445 = vmatpush.bf16.msra.mxu0 %v11722
      %12446 = vmatmul.bf16.gmra.mxu0 %v10657
      %v12447 = vpop.f32.mrf.mxu0
      %v12448 = vadd.f32 %v12434, %v12447
      %v12449 = vpop.f32.mrf.mxu0
      %v12450 = vadd.f32 %v12436, %v12449
      %12451 = vdwg.mxu0
      %12452 = vmatpush.bf16.msra.mxu0 %v11782
      %12453 = vmatpush.bf16.msra.mxu0 %v11778
      %12454 = vmatpush.bf16.msra.mxu0 %v11774
      %12455 = vmatpush.bf16.msra.mxu0 %v11770
      %12456 = vmatpush.bf16.msra.mxu0 %v11766
      %12457 = vmatpush.bf16.msra.mxu0 %v11762
      %12458 = vmatpush.bf16.msra.mxu0 %v11758
      %12459 = vmatpush.bf16.msra.mxu0 %v11754
      %12460 = vmatmul.bf16.gmra.mxu0 %v10658
      %v12461 = vpop.f32.mrf.mxu0
      %v12462 = vadd.f32 %v12448, %v12461
      %v12463 = vpop.f32.mrf.mxu0
      %v12464 = vadd.f32 %v12450, %v12463
      %12465 = vdwg.mxu0
      %12466 = vmatpush.bf16.msra.mxu0 %v11814
      %12467 = vmatpush.bf16.msra.mxu0 %v11810
      %12468 = vmatpush.bf16.msra.mxu0 %v11806
      %12469 = vmatpush.bf16.msra.mxu0 %v11802
      %12470 = vmatpush.bf16.msra.mxu0 %v11798
      %12471 = vmatpush.bf16.msra.mxu0 %v11794
      %12472 = vmatpush.bf16.msra.mxu0 %v11790
      %12473 = vmatpush.bf16.msra.mxu0 %v11786
      %12474 = vmatmul.bf16.gmra.mxu0 %v10659
      %v12475 = vpop.f32.mrf.mxu0
      %v12476 = vadd.f32 %v12462, %v12475
      %v12477 = vpop.f32.mrf.mxu0
      %v12478 = vadd.f32 %v12464, %v12477
      %12479 = vdwg.mxu0
      %12480 = vmatpush.bf16.msra.mxu0 %v11846
      %12481 = vmatpush.bf16.msra.mxu0 %v11842
      %12482 = vmatpush.bf16.msra.mxu0 %v11838
      %12483 = vmatpush.bf16.msra.mxu0 %v11834
      %12484 = vmatpush.bf16.msra.mxu0 %v11830
      %12485 = vmatpush.bf16.msra.mxu0 %v11826
      %12486 = vmatpush.bf16.msra.mxu0 %v11822
      %12487 = vmatpush.bf16.msra.mxu0 %v11818
      %12488 = vmatmul.bf16.gmra.mxu0 %v10660
      %v12489 = vpop.f32.mrf.mxu0
      %v12490 = vadd.f32 %v12476, %v12489
      %v12491 = vpop.f32.mrf.mxu0
      %v12492 = vadd.f32 %v12478, %v12491
      %12493 = vdwg.mxu0
      %12494 = vmatpush.bf16.msra.mxu0 %v11878
      %12495 = vmatpush.bf16.msra.mxu0 %v11874
      %12496 = vmatpush.bf16.msra.mxu0 %v11870
      %12497 = vmatpush.bf16.msra.mxu0 %v11866
      %12498 = vmatpush.bf16.msra.mxu0 %v11862
      %12499 = vmatpush.bf16.msra.mxu0 %v11858
      %12500 = vmatpush.bf16.msra.mxu0 %v11854
      %12501 = vmatpush.bf16.msra.mxu0 %v11850
      %12502 = vmatmul.bf16.gmra.mxu0 %v10661
      %v12503 = vpop.f32.mrf.mxu0
      %v12504 = vadd.f32 %v12490, %v12503
      %v12505 = vpop.f32.mrf.mxu0
      %v12506 = vadd.f32 %v12492, %v12505
      %12507 = vdwg.mxu0
      %12508 = vmatpush.bf16.msra.mxu0 %v11910
      %12509 = vmatpush.bf16.msra.mxu0 %v11906
      %12510 = vmatpush.bf16.msra.mxu0 %v11902
      %12511 = vmatpush.bf16.msra.mxu0 %v11898
      %12512 = vmatpush.bf16.msra.mxu0 %v11894
      %12513 = vmatpush.bf16.msra.mxu0 %v11890
      %12514 = vmatpush.bf16.msra.mxu0 %v11886
      %12515 = vmatpush.bf16.msra.mxu0 %v11882
      %12516 = vmatmul.bf16.gmra.mxu0 %v10662
      %v12517 = vpop.f32.mrf.mxu0
      %v12518 = vadd.f32 %v12504, %v12517
      %v12519 = vpop.f32.mrf.mxu0
      %v12520 = vadd.f32 %v12506, %v12519
      %12521 = vdwg.mxu0
      %12522 = vmatpush.bf16.msra.mxu0 %v11942
      %12523 = vmatpush.bf16.msra.mxu0 %v11938
      %12524 = vmatpush.bf16.msra.mxu0 %v11934
      %12525 = vmatpush.bf16.msra.mxu0 %v11930
      %12526 = vmatpush.bf16.msra.mxu0 %v11926
      %12527 = vmatpush.bf16.msra.mxu0 %v11922
      %12528 = vmatpush.bf16.msra.mxu0 %v11918
      %12529 = vmatpush.bf16.msra.mxu0 %v11914
      %12530 = vmatmul.bf16.gmra.mxu0 %v10663
      %v12531 = vpop.f32.mrf.mxu0
      %v12532 = vadd.f32 %v12518, %v12531
      %v12533 = vpop.f32.mrf.mxu0
      %v12534 = vadd.f32 %v12520, %v12533
      %12535 = vdwg.mxu0
      %12536 = vmatpush.bf16.msra.mxu0 %v11719
      %12537 = vmatpush.bf16.msra.mxu0 %v11715
      %12538 = vmatpush.bf16.msra.mxu0 %v11711
      %12539 = vmatpush.bf16.msra.mxu0 %v11707
      %12540 = vmatpush.bf16.msra.mxu0 %v11703
      %12541 = vmatpush.bf16.msra.mxu0 %v11699
      %12542 = vmatpush.bf16.msra.mxu0 %v11695
      %12543 = vmatpush.bf16.msra.mxu0 %v11691
      %12544 = vmatmul.bf16.gmra.mxu0 %v10656
      %v12545 = vpop.f32.mrf.mxu0
      %v12546 = vadd.f32 0.0, %v12545
      %v12547 = vpop.f32.mrf.mxu0
      %v12548 = vadd.f32 0.0, %v12547
      %12549 = vdwg.mxu0
      %12550 = vmatpush.bf16.msra.mxu0 %v11751
      %12551 = vmatpush.bf16.msra.mxu0 %v11747
      %12552 = vmatpush.bf16.msra.mxu0 %v11743
      %12553 = vmatpush.bf16.msra.mxu0 %v11739
      %12554 = vmatpush.bf16.msra.mxu0 %v11735
      %12555 = vmatpush.bf16.msra.mxu0 %v11731
      %12556 = vmatpush.bf16.msra.mxu0 %v11727
      %12557 = vmatpush.bf16.msra.mxu0 %v11723
      %12558 = vmatmul.bf16.gmra.mxu0 %v10657
      %v12559 = vpop.f32.mrf.mxu0
      %v12560 = vadd.f32 %v12546, %v12559
      %v12561 = vpop.f32.mrf.mxu0
      %v12562 = vadd.f32 %v12548, %v12561
      %12563 = vdwg.mxu0
      %12564 = vmatpush.bf16.msra.mxu0 %v11783
      %12565 = vmatpush.bf16.msra.mxu0 %v11779
      %12566 = vmatpush.bf16.msra.mxu0 %v11775
      %12567 = vmatpush.bf16.msra.mxu0 %v11771
      %12568 = vmatpush.bf16.msra.mxu0 %v11767
      %12569 = vmatpush.bf16.msra.mxu0 %v11763
      %12570 = vmatpush.bf16.msra.mxu0 %v11759
      %12571 = vmatpush.bf16.msra.mxu0 %v11755
      %12572 = vmatmul.bf16.gmra.mxu0 %v10658
      %v12573 = vpop.f32.mrf.mxu0
      %v12574 = vadd.f32 %v12560, %v12573
      %v12575 = vpop.f32.mrf.mxu0
      %v12576 = vadd.f32 %v12562, %v12575
      %12577 = vdwg.mxu0
      %12578 = vmatpush.bf16.msra.mxu0 %v11815
      %12579 = vmatpush.bf16.msra.mxu0 %v11811
      %12580 = vmatpush.bf16.msra.mxu0 %v11807
      %12581 = vmatpush.bf16.msra.mxu0 %v11803
      %12582 = vmatpush.bf16.msra.mxu0 %v11799
      %12583 = vmatpush.bf16.msra.mxu0 %v11795
      %12584 = vmatpush.bf16.msra.mxu0 %v11791
      %12585 = vmatpush.bf16.msra.mxu0 %v11787
      %12586 = vmatmul.bf16.gmra.mxu0 %v10659
      %v12587 = vpop.f32.mrf.mxu0
      %v12588 = vadd.f32 %v12574, %v12587
      %v12589 = vpop.f32.mrf.mxu0
      %v12590 = vadd.f32 %v12576, %v12589
      %12591 = vdwg.mxu0
      %12592 = vmatpush.bf16.msra.mxu0 %v11847
      %12593 = vmatpush.bf16.msra.mxu0 %v11843
      %12594 = vmatpush.bf16.msra.mxu0 %v11839
      %12595 = vmatpush.bf16.msra.mxu0 %v11835
      %12596 = vmatpush.bf16.msra.mxu0 %v11831
      %12597 = vmatpush.bf16.msra.mxu0 %v11827
      %12598 = vmatpush.bf16.msra.mxu0 %v11823
      %12599 = vmatpush.bf16.msra.mxu0 %v11819
      %12600 = vmatmul.bf16.gmra.mxu0 %v10660
      %v12601 = vpop.f32.mrf.mxu0
      %v12602 = vadd.f32 %v12588, %v12601
      %v12603 = vpop.f32.mrf.mxu0
      %v12604 = vadd.f32 %v12590, %v12603
      %12605 = vdwg.mxu0
      %12606 = vmatpush.bf16.msra.mxu0 %v11879
      %12607 = vmatpush.bf16.msra.mxu0 %v11875
      %12608 = vmatpush.bf16.msra.mxu0 %v11871
      %12609 = vmatpush.bf16.msra.mxu0 %v11867
      %12610 = vmatpush.bf16.msra.mxu0 %v11863
      %12611 = vmatpush.bf16.msra.mxu0 %v11859
      %12612 = vmatpush.bf16.msra.mxu0 %v11855
      %12613 = vmatpush.bf16.msra.mxu0 %v11851
      %12614 = vmatmul.bf16.gmra.mxu0 %v10661
      %v12615 = vpop.f32.mrf.mxu0
      %v12616 = vadd.f32 %v12602, %v12615
      %v12617 = vpop.f32.mrf.mxu0
      %v12618 = vadd.f32 %v12604, %v12617
      %12619 = vdwg.mxu0
      %12620 = vmatpush.bf16.msra.mxu0 %v11911
      %12621 = vmatpush.bf16.msra.mxu0 %v11907
      %12622 = vmatpush.bf16.msra.mxu0 %v11903
      %12623 = vmatpush.bf16.msra.mxu0 %v11899
      %12624 = vmatpush.bf16.msra.mxu0 %v11895
      %12625 = vmatpush.bf16.msra.mxu0 %v11891
      %12626 = vmatpush.bf16.msra.mxu0 %v11887
      %12627 = vmatpush.bf16.msra.mxu0 %v11883
      %12628 = vmatmul.bf16.gmra.mxu0 %v10662
      %v12629 = vpop.f32.mrf.mxu0
      %v12630 = vadd.f32 %v12616, %v12629
      %v12631 = vpop.f32.mrf.mxu0
      %v12632 = vadd.f32 %v12618, %v12631
      %12633 = vdwg.mxu0
      %12634 = vmatpush.bf16.msra.mxu0 %v11943
      %12635 = vmatpush.bf16.msra.mxu0 %v11939
      %12636 = vmatpush.bf16.msra.mxu0 %v11935
      %12637 = vmatpush.bf16.msra.mxu0 %v11931
      %12638 = vmatpush.bf16.msra.mxu0 %v11927
      %12639 = vmatpush.bf16.msra.mxu0 %v11923
      %12640 = vmatpush.bf16.msra.mxu0 %v11919
      %12641 = vmatpush.bf16.msra.mxu0 %v11915
      %12642 = vmatmul.bf16.gmra.mxu0 %v10663
      %v12643 = vpop.f32.mrf.mxu0
      %v12644 = vadd.f32 %v12630, %v12643
      %v12645 = vpop.f32.mrf.mxu0
      %v12646 = vadd.f32 %v12632, %v12645
      %12647 = vdwg.mxu0
      %v12648 = vadd.f32 %v10648, %v12308
      %v12649 = vadd.f32 %v10649, %v12420
      %v12650 = vadd.f32 %v10650, %v12532
      %v12651 = vadd.f32 %v10651, %v12644
      %v12652 = vadd.f32 %v10652, %v12310
      %v12653 = vadd.f32 %v10653, %v12422
      %v12654 = vadd.f32 %v10654, %v12534
      %v12655 = vadd.f32 %v10655, %v12646
      %12656 = vst [vmem:[#allocation2] sm:$0xff] %v12648
      %12657 = vst [vmem:[#allocation2 + $0x8] sm:$0xff] %v12649
      %12658 = vst [vmem:[#allocation2 + $0x10] sm:$0xff] %v12650
      %12659 = vst [vmem:[#allocation2 + $0x18] sm:$0xff] %v12651
      %12660 = vst [vmem:[#allocation2 + $0x20] sm:$0xff] %v12652
      %12661 = vst [vmem:[#allocation2 + $0x28] sm:$0xff] %v12653
      %12662 = vst [vmem:[#allocation2 + $0x30] sm:$0xff] %v12654
      %12663 = vst [vmem:[#allocation2 + $0x38] sm:$0xff] %v12655
      %p12664 = scmp.eq.s32.totalorder %s25, 1
      // Predicated region
      $region57: #{temperature_scaler_forward.1} parent=51 // pred_check
        %p12665 = pneg %p12664
      $region58: #{temperature_scaler_forward.1} parent=51 // pred_check_branch
        %12667 = sbr.rel (%p12665) target = $region60
      $region59: #{temperature_scaler_forward.1} parent=51 // pred_region
        %v12668 = vld [vmem:[#allocation2] sm:$0xff]
        %v12669 = vld [vmem:[#allocation2 + $0x8] sm:$0xff]
        %v12670 = vld [vmem:[#allocation2 + $0x10] sm:$0xff]
        %v12671 = vld [vmem:[#allocation2 + $0x18] sm:$0xff]
        %v12672 = vld [vmem:[#allocation2 + $0x20] sm:$0xff]
        %v12673 = vld [vmem:[#allocation2 + $0x28] sm:$0xff]
        %v12674 = vld [vmem:[#allocation2 + $0x30] sm:$0xff]
        %v12675 = vld [vmem:[#allocation2 + $0x38] sm:$0xff]
        %v12676 = vld [vmem:[%s5] sm:$0xf]
        %v12678 = vperm.slane %v12676, 0
        %v12679 = vperm.slane %v12676, 1
        %v12680 = vperm.slane %v12676, 2
        %v12681 = vperm.slane %v12676, 3
        %v12686 = vadd.f32 %v12668, %v12678
        %v12687 = vadd.f32 %v12669, %v12679
        %v12688 = vadd.f32 %v12670, %v12680
        %v12689 = vadd.f32 %v12671, %v12681
        %v12690 = vadd.f32 %v12672, %v12678
        %v12691 = vadd.f32 %v12673, %v12679
        %v12692 = vadd.f32 %v12674, %v12680
        %v12693 = vadd.f32 %v12675, %v12681
        %v12694 = vmax.f32 %v12686, 0.0
        %v12695 = vmax.f32 %v12687, 0.0
        %v12696 = vmax.f32 %v12688, 0.0
        %v12697 = vmax.f32 %v12689, 0.0
        %v12698 = vmax.f32 %v12690, 0.0
        %v12699 = vmax.f32 %v12691, 0.0
        %v12700 = vmax.f32 %v12692, 0.0
        %v12701 = vmax.f32 %v12693, 0.0
        %v12702 = vld [vmem:[%s6] sm:$0xff]
        %v12703 = vld [vmem:[%s6 + $0x8] sm:$0xff]
        %v12704 = vld [vmem:[%s6 + $0x10] sm:$0xff]
        %v12705 = vld [vmem:[%s6 + $0x18] sm:$0xff]
        %v12706 = vld [vmem:[%s6 + $0x20] sm:$0xff]
        %v12707 = vld [vmem:[%s6 + $0x28] sm:$0xff]
        %v12708 = vld [vmem:[%s6 + $0x30] sm:$0xff]
        %v12709 = vld [vmem:[%s6 + $0x38] sm:$0xff]
        %v12710 = vld [vmem:[%s6 + $0x40] sm:$0xff]
        %v12711 = vld [vmem:[%s6 + $0x48] sm:$0xff]
        %v12712 = vld [vmem:[%s6 + $0x50] sm:$0xff]
        %v12713 = vld [vmem:[%s6 + $0x58] sm:$0xff]
        %v12714 = vld [vmem:[%s6 + $0x60] sm:$0xff]
        %v12715 = vld [vmem:[%s6 + $0x68] sm:$0xff]
        %v12716 = vld [vmem:[%s6 + $0x70] sm:$0xff]
        %v12717 = vld [vmem:[%s6 + $0x78] sm:$0xff]
        %v12718 = vld [vmem:[%s6 + $0x80] sm:$0xff]
        %v12719 = vld [vmem:[%s6 + $0x88] sm:$0xff]
        %v12720 = vld [vmem:[%s6 + $0x90] sm:$0xff]
        %v12721 = vld [vmem:[%s6 + $0x98] sm:$0xff]
        %v12722 = vld [vmem:[%s6 + $0xa0] sm:$0xff]
        %v12723 = vld [vmem:[%s6 + $0xa8] sm:$0xff]
        %v12724 = vld [vmem:[%s6 + $0xb0] sm:$0xff]
        %v12725 = vld [vmem:[%s6 + $0xb8] sm:$0xff]
        %v12726 = vld [vmem:[%s6 + $0xc0] sm:$0xff]
        %v12727 = vld [vmem:[%s6 + $0xc8] sm:$0xff]
        %v12728 = vld [vmem:[%s6 + $0xd0] sm:$0xff]
        %v12729 = vld [vmem:[%s6 + $0xd8] sm:$0xff]
        %v12730 = vld [vmem:[%s6 + $0xe0] sm:$0xff]
        %v12731 = vld [vmem:[%s6 + $0xe8] sm:$0xff]
        %v12732 = vld [vmem:[%s6 + $0xf0] sm:$0xff]
        %v12733 = vld [vmem:[%s6 + $0xf8] sm:$0xff]
        %v12734 = vld [vmem:[%s6 + $0x100] sm:$0xff]
        %v12735 = vld [vmem:[%s6 + $0x108] sm:$0xff]
        %v12736 = vld [vmem:[%s6 + $0x110] sm:$0xff]
        %v12737 = vld [vmem:[%s6 + $0x118] sm:$0xff]
        %v12738 = vld [vmem:[%s6 + $0x120] sm:$0xff]
        %v12739 = vld [vmem:[%s6 + $0x128] sm:$0xff]
        %v12740 = vld [vmem:[%s6 + $0x130] sm:$0xff]
        %v12741 = vld [vmem:[%s6 + $0x138] sm:$0xff]
        %v12742 = vld [vmem:[%s6 + $0x140] sm:$0xff]
        %v12743 = vld [vmem:[%s6 + $0x148] sm:$0xff]
        %v12744 = vld [vmem:[%s6 + $0x150] sm:$0xff]
        %v12745 = vld [vmem:[%s6 + $0x158] sm:$0xff]
        %v12746 = vld [vmem:[%s6 + $0x160] sm:$0xff]
        %v12747 = vld [vmem:[%s6 + $0x168] sm:$0xff]
        %v12748 = vld [vmem:[%s6 + $0x170] sm:$0xff]
        %v12749 = vld [vmem:[%s6 + $0x178] sm:$0xff]
        %v12750 = vld [vmem:[%s6 + $0x180] sm:$0xff]
        %v12751 = vld [vmem:[%s6 + $0x188] sm:$0xff]
        %v12752 = vld [vmem:[%s6 + $0x190] sm:$0xff]
        %v12753 = vld [vmem:[%s6 + $0x198] sm:$0xff]
        %v12754 = vld [vmem:[%s6 + $0x1a0] sm:$0xff]
        %v12755 = vld [vmem:[%s6 + $0x1a8] sm:$0xff]
        %v12756 = vld [vmem:[%s6 + $0x1b0] sm:$0xff]
        %v12757 = vld [vmem:[%s6 + $0x1b8] sm:$0xff]
        %v12758 = vld [vmem:[%s6 + $0x1c0] sm:$0xff]
        %v12759 = vld [vmem:[%s6 + $0x1c8] sm:$0xff]
        %v12760 = vld [vmem:[%s6 + $0x1d0] sm:$0xff]
        %v12761 = vld [vmem:[%s6 + $0x1d8] sm:$0xff]
        %v12762 = vld [vmem:[%s6 + $0x1e0] sm:$0xff]
        %v12763 = vld [vmem:[%s6 + $0x1e8] sm:$0xff]
        %v12764 = vld [vmem:[%s6 + $0x1f0] sm:$0xff]
        %v12765 = vld [vmem:[%s6 + $0x1f8] sm:$0xff]
        %v12766 = vld [vmem:[%s7] sm:$0x1]
        %v12768 = vperm.slane %v12766, 0
        %12770 = vmatpush.msra.mxu0 %v12717
        %12771 = vmatpush.msra.mxu0 %v12716
        %12772 = vmatpush.msra.mxu0 %v12715
        %12773 = vmatpush.msra.mxu0 %v12714
        %12774 = vmatpush.msra.mxu0 %v12713
        %12775 = vmatpush.msra.mxu0 %v12712
        %12776 = vmatpush.msra.mxu0 %v12711
        %12777 = vmatpush.msra.mxu0 %v12710
        %12778 = vmatpush.msra.mxu0 %v12709
        %12779 = vmatpush.msra.mxu0 %v12708
        %12780 = vmatpush.msra.mxu0 %v12707
        %12781 = vmatpush.msra.mxu0 %v12706
        %12782 = vmatpush.msra.mxu0 %v12705
        %12783 = vmatpush.msra.mxu0 %v12704
        %12784 = vmatpush.msra.mxu0 %v12703
        %12785 = vmatpush.msra.mxu0 %v12702
        %12786 = vmatmul.f32.gmra.mxu0 %v12694
        %v12787 = vpop.f32.mrf.mxu0
        %v12788 = vadd.f32 %v12768, %v12787
        %12789 = vmatmul.f32.gmra.mxu0 %v12698
        %v12790 = vpop.f32.mrf.mxu0
        %v12791 = vadd.f32 %v12768, %v12790
        %12792 = vdwg.mxu0
        %12793 = vmatpush.msra.mxu0 %v12733
        %12794 = vmatpush.msra.mxu0 %v12732
        %12795 = vmatpush.msra.mxu0 %v12731
        %12796 = vmatpush.msra.mxu0 %v12730
        %12797 = vmatpush.msra.mxu0 %v12729
        %12798 = vmatpush.msra.mxu0 %v12728
        %12799 = vmatpush.msra.mxu0 %v12727
        %12800 = vmatpush.msra.mxu0 %v12726
        %12801 = vmatpush.msra.mxu0 %v12725
        %12802 = vmatpush.msra.mxu0 %v12724
        %12803 = vmatpush.msra.mxu0 %v12723
        %12804 = vmatpush.msra.mxu0 %v12722
        %12805 = vmatpush.msra.mxu0 %v12721
        %12806 = vmatpush.msra.mxu0 %v12720
        %12807 = vmatpush.msra.mxu0 %v12719
        %12808 = vmatpush.msra.mxu0 %v12718
        %12809 = vmatmul.f32.gmra.mxu0 %v12695
        %v12810 = vpop.f32.mrf.mxu0
        %v12811 = vadd.f32 %v12788, %v12810
        %12812 = vmatmul.f32.gmra.mxu0 %v12699
        %v12813 = vpop.f32.mrf.mxu0
        %v12814 = vadd.f32 %v12791, %v12813
        %12815 = vdwg.mxu0
        %12816 = vmatpush.msra.mxu0 %v12749
        %12817 = vmatpush.msra.mxu0 %v12748
        %12818 = vmatpush.msra.mxu0 %v12747
        %12819 = vmatpush.msra.mxu0 %v12746
        %12820 = vmatpush.msra.mxu0 %v12745
        %12821 = vmatpush.msra.mxu0 %v12744
        %12822 = vmatpush.msra.mxu0 %v12743
        %12823 = vmatpush.msra.mxu0 %v12742
        %12824 = vmatpush.msra.mxu0 %v12741
        %12825 = vmatpush.msra.mxu0 %v12740
        %12826 = vmatpush.msra.mxu0 %v12739
        %12827 = vmatpush.msra.mxu0 %v12738
        %12828 = vmatpush.msra.mxu0 %v12737
        %12829 = vmatpush.msra.mxu0 %v12736
        %12830 = vmatpush.msra.mxu0 %v12735
        %12831 = vmatpush.msra.mxu0 %v12734
        %12832 = vmatmul.f32.gmra.mxu0 %v12696
        %v12833 = vpop.f32.mrf.mxu0
        %v12834 = vadd.f32 %v12811, %v12833
        %12835 = vmatmul.f32.gmra.mxu0 %v12700
        %v12836 = vpop.f32.mrf.mxu0
        %v12837 = vadd.f32 %v12814, %v12836
        %12838 = vdwg.mxu0
        %12839 = vmatpush.msra.mxu0 %v12765
        %12840 = vmatpush.msra.mxu0 %v12764
        %12841 = vmatpush.msra.mxu0 %v12763
        %12842 = vmatpush.msra.mxu0 %v12762
        %12843 = vmatpush.msra.mxu0 %v12761
        %12844 = vmatpush.msra.mxu0 %v12760
        %12845 = vmatpush.msra.mxu0 %v12759
        %12846 = vmatpush.msra.mxu0 %v12758
        %12847 = vmatpush.msra.mxu0 %v12757
        %12848 = vmatpush.msra.mxu0 %v12756
        %12849 = vmatpush.msra.mxu0 %v12755
        %12850 = vmatpush.msra.mxu0 %v12754
        %12851 = vmatpush.msra.mxu0 %v12753
        %12852 = vmatpush.msra.mxu0 %v12752
        %12853 = vmatpush.msra.mxu0 %v12751
        %12854 = vmatpush.msra.mxu0 %v12750
        %12855 = vmatmul.f32.gmra.mxu0 %v12697
        %v12856 = vpop.f32.mrf.mxu0
        %v12857 = vadd.f32 %v12834, %v12856
        %12858 = vmatmul.f32.gmra.mxu0 %v12701
        %v12859 = vpop.f32.mrf.mxu0
        %v12860 = vadd.f32 %v12837, %v12859
        %12861 = vdwg.mxu0
        %s12862 = sld [smem:[#allocation3]]
        %v12863 = vstv %s12862
        %v12864 = vrcp.pop %v12863
        %v12865 = vmul.f32 %v12863, %v12864
        %v12866 = vsub.f32 1.0, %v12865
        %v12867 = vmul.f32 %v12864, %v12866
        %v12868 = vadd.f32 %v12864, %v12867
        %vm12869 = vweird.f32 %v12863
        %vm12870 = vweird.f32 %v12864
        %vm12871 = vmor %vm12869, %vm12870
        %v12872 = vsel %vm12871, %v12864, %v12868
        %v12873 = vand.u32 2147483647, %v12863
        %vm12874 = vcmp.eq.f32.partialorder %v12873, 8.507059e+37
        %v12875 = vand.u32 %v12863, 2147483648
        %v12876 = vor.u32 1.1754944e-38, %v12875
        %v12877 = vsel %vm12874, %v12876, %v12872
        %v12878 = vmul.f32 %v12857, %v12877
        %v12879 = vmul.f32 %v12860, %v12877
        %vm12880 = vcmask 15360
        %12881 = vst.msk [vmem:[%s387] sm:$0xff] %vm12880, %v12878
        %12882 = vst.msk [vmem:[%s387 + $0x8] sm:$0xff] %vm12880, %v12879
      $region60: #{temperature_scaler_forward.1} parent=51 // pred_fallthru
        _
      %s12883 = smul.u32 2, %s24
      %p12884 = scmp.lt.s32.totalorder %s12883, 1
      %s12885 = scalar_select %p12884, %s12883, 1
      %s12886 = smul.addr %s12885, 8
      %s12887 = scalar_lea.vmem %s8, %s12886
      // Predicated region
      $region61: #{temperature_scaler_forward.1} parent=51 // pred_check
        %p12888 = pneg %p238
      $region62: #{temperature_scaler_forward.1} parent=51 // pred_check_branch
        %12890 = sbr.rel (%p12888) target = $region64
      $region63: #{temperature_scaler_forward.1} parent=51 // pred_region
        %s12891 = smul.u32 2, %s24
      $region64: #{temperature_scaler_forward.1} parent=51 // pred_fallthru
        _
      // Predicated region
      $region65: #{temperature_scaler_forward.1} parent=51 // pred_check
        %p12892 = pneg %p238
      $region66: #{temperature_scaler_forward.1} parent=51 // pred_check_branch
        %12894 = sbr.rel (%p12892) target = $region68
      $region67: #{temperature_scaler_forward.1} parent=51 // pred_region
        %s12895 = smul.u32 2, %s24
        %p12896 = scmp.lt.s32.totalorder %s12895, 1
        %s12897 = scalar_select %p12896, %s12895, 1
        %s12898 = smul.addr %s12897, 8
        %s12899 = scalar_lea.vmem %s8, %s12898
      $region68: #{temperature_scaler_forward.1} parent=51 // pred_fallthru
        _
    $region52: #{temperature_scaler_forward.1} parent=5 // pred_fallthru
      _
    %p12900 = scmp.le.s32.totalorder 2, %s15
    // Predicated region
    $region69: #{temperature_scaler_forward.1} parent=5 // pred_check
      %p12901 = pneg %p12900
    $region70: #{temperature_scaler_forward.1} parent=5 // pred_check_branch
      %12903 = sbr.rel (%p12901) target = $region72
    $region71: #{temperature_scaler_forward.1} parent=5 // pred_region
      %s12904 = ssub.s32 %s15, 2
    $region72: #{temperature_scaler_forward.1} parent=5 // pred_fallthru
      _
  $region6: #{temperature_scaler_forward.1} parent=0 // loop_footer
    %s19 = sadd.s32 1, %s15
  $region7: #{temperature_scaler_forward.1} parent=0 // loop_footer_branch
    %14 = sbr.rel target = $region3
  $region8: #{temperature_scaler_forward.1} parent=0 // loop_exit
    _

</llo_original>
